<compile_context>
chip_gen: v6e
topology: v6e:2x2x1
jax: 0.10.0
libtpu: 0.0.40
codegen_flags: <defaults>
</compile_context>

<pallas_src>
import jax
import jax.numpy as jnp
from jax.experimental import pallas as pl
from jax.experimental.pallas import tpu as pltpu

EPS = 1e-5


def basic_block_kernel(x_ref, w_ref, bn_ref, out_ref, xpad_ref):
    """Fused BasicBlock, NHWC layout (C on lanes, W on sublanes).

    x_ref    : (N, H, W, C)        input activations
    w_ref    : (2, 3, 3, C, C)     conv1/conv2 weights, layout (ky, kx, Cin, Cout)
    bn_ref   : (8, C)              rows 0..3 = gamma1, beta1, gamma2, beta2
    out_ref  : (N, H, W, C)
    xpad_ref : (N, H+2, W+2, C)    zero-padded scratch shared by both convs
    """
    N, H, W, C = x_ref.shape
    NHW = N * H * W
    inv_nhw = 1.0 / NHW

    # Zero the halo once; both convs only ever overwrite the interior,
    # so the 1-pixel border stays zero (== conv padding=1) for both passes.
    xpad_ref[...] = jnp.zeros_like(xpad_ref)

    def conv3x3(layer):
        # 3x3 "same" conv as 9 shifted matmuls on the MXU, f32 accumulation.
        acc = None
        for ky in range(3):
            for kx in range(3):
                patch = xpad_ref[:, ky:ky + H, kx:kx + W, :].reshape(NHW, C)
                part = jnp.dot(patch, w_ref[layer, ky, kx],
                               preferred_element_type=jnp.float32)
                acc = part if acc is None else acc + part
        return acc

    def bn_train(h, gamma, beta, relu):
        # BatchNorm2d training-mode: per-channel stats over (N, H, W), biased
        # variance, normalization folded into a single scale/shift FMA.
        mean = jnp.sum(h, axis=0, keepdims=True) * inv_nhw
        ex2 = jnp.sum(h * h, axis=0, keepdims=True) * inv_nhw
        var = jnp.maximum(ex2 - mean * mean, 0.0)
        scale = gamma * jax.lax.rsqrt(var + EPS)     # (1, C)
        shift = beta - mean * scale                  # (1, C)
        y = h * scale + shift
        return jnp.maximum(y, 0.0) if relu else y

    bnv = bn_ref[...]                       # one (8, C) slab; slice rows locally
    gamma1, beta1 = bnv[0:1, :], bnv[1:2, :]
    gamma2, beta2 = bnv[2:3, :], bnv[3:4, :]

    x = x_ref[...]

    # --- conv1 -> bn1 -> relu -------------------------------------------------
    xpad_ref[:, 1:H + 1, 1:W + 1, :] = x
    h = bn_train(conv3x3(0), gamma1, beta1, relu=True)

    # --- conv2 -> bn2 ---------------------------------------------------------
    xpad_ref[:, 1:H + 1, 1:W + 1, :] = h.reshape(N, H, W, C)
    h = bn_train(conv3x3(1), gamma2, beta2, relu=False)

    # --- identity shortcut + relu ---------------------------------------------
    out_ref[...] = jnp.maximum(h + x.reshape(NHW, C), 0.0).reshape(N, H, W, C)


def basic_block_forward(x_nchw, w1, w2, gamma1, beta1, gamma2, beta2):
    """x_nchw: (N, C, H, W); w1, w2: (3, 3, C, C) in (ky, kx, Cin, Cout) layout."""
    N, C, H, W = x_nchw.shape
    # Layout plumbing (NCHW <-> NHWC) stays in the wrapper; the kernel is NHWC.
    x = jnp.transpose(x_nchw, (0, 2, 3, 1)).astype(jnp.float32)

    # Pack all conv weights into one slab and the four BN affine vectors into one
    # sublane-aligned (8, C) slab: 3 input DMAs total instead of 7+ tiny ones.
    w = jnp.stack([w1, w2], axis=0).astype(jnp.float32)          # (2, 3, 3, C, C)
    bn = jnp.zeros((8, C), jnp.float32)
    bn = bn.at[0].set(gamma1).at[1].set(beta1).at[2].set(gamma2).at[3].set(beta2)

    nhw = N * H * W
    cost = pl.CostEstimate(
        flops=2 * (2 * nhw * 9 * C * C),            # two 3x3 convs on the MXU
        transcendentals=2 * C,                      # two per-channel rsqrt
        bytes_accessed=4 * (2 * N * H * W * C + w.size + bn.size),
    )

    vmem = pl.BlockSpec(memory_space=pltpu.MemorySpace.VMEM)
    out = pl.pallas_call(
        basic_block_kernel,
        out_shape=jax.ShapeDtypeStruct((N, H, W, C), jnp.float32),
        in_specs=[vmem, vmem, vmem],
        out_specs=vmem,
        scratch_shapes=[pltpu.VMEM((N, H + 2, W + 2, C), jnp.float32)],
        cost_estimate=cost,
    )(x, w, bn)
    return jnp.transpose(out, (0, 3, 1, 2))                      # back to NCHW


def basic_block_reference(x_nchw, w1, w2, g1, b1, g2, b2):
    """Pure-JAX reference (XLA conv), same training-mode BN semantics."""
    x = jnp.transpose(x_nchw, (0, 2, 3, 1)).astype(jnp.float32)

    def conv(h, w):
        return jax.lax.conv_general_dilated(
            h, w, window_strides=(1, 1), padding=((1, 1), (1, 1)),
            dimension_numbers=("NHWC", "HWIO", "NHWC"),
            precision=jax.lax.Precision.HIGHEST)

    def bn(h, g, b):
        mean = jnp.mean(h, axis=(0, 1, 2), keepdims=True)
        var = jnp.mean((h - mean) ** 2, axis=(0, 1, 2), keepdims=True)
        return (h - mean) * jax.lax.rsqrt(var + EPS) * g + b

    h = jax.nn.relu(bn(conv(x, w1), g1, b1))
    h = bn(conv(h, w2), g2, b2)
    h = jax.nn.relu(h + x)
    return jnp.transpose(h, (0, 3, 1, 2))


if __name__ == "__main__":
    key = jax.random.PRNGKey(0)
    k_x, k_w1, k_w2 = jax.random.split(key, 3)

    # Small shapes consistent with the module: stride=1, in_planes == planes
    # -> identity shortcut.
    N, C, H, W = 2, 4, 16, 16
    x = jax.random.normal(k_x, (N, C, H, W), jnp.float32)

    # Conv2d weights (bias=False), stored (ky, kx, Cin, Cout) == HWIO.
    std = (2.0 / (C * 3 * 3)) ** 0.5
    w1 = jax.random.normal(k_w1, (3, 3, C, C), jnp.float32) * std
    w2 = jax.random.normal(k_w2, (3, 3, C, C), jnp.float32) * std
    # BatchNorm2d default affine init: gamma=1, beta=0.
    g1 = jnp.ones((C,), jnp.float32)
    b1 = jnp.zeros((C,), jnp.float32)
    g2 = jnp.ones((C,), jnp.float32)
    b2 = jnp.zeros((C,), jnp.float32)

    out = basic_block_forward(x, w1, w2, g1, b1, g2, b2)
    out = jax.block_until_ready(out)
    assert out.shape == (N, C, H, W)

    ref = basic_block_reference(x, w1, w2, g1, b1, g2, b2)
    max_err = float(jnp.max(jnp.abs(out - ref)))
    assert max_err < 1e-3, f"kernel/reference mismatch, max abs err = {max_err}"

    print("KERNEL_OK")
</pallas_src>

<mosaic_0001>
module attributes {stable_mosaic.version = 11 : i64} {
  func.func @basic_block_kernel(%arg0: memref<2x16x16x4xf32, #tpu.memory_space<vmem>>, %arg1: memref<2x3x3x4x4xf32, #tpu.memory_space<vmem>>, %arg2: memref<8x4xf32, #tpu.memory_space<vmem>>, %arg3: memref<2x16x16x4xf32, #tpu.memory_space<vmem>>, %arg4: memref<2x18x18x4xf32, #tpu.memory_space<vmem>>) attributes {dimension_semantics = [], scalar_prefetch = 0 : i64, scratch_operands = 1 : i64, tpu.core_type = #tpu.core_type<tc>} {
    %cst = arith.constant 0.000000e+00 : f32
    %0 = vector.broadcast %cst : f32 to vector<2x18x18x4xf32>
    %c0 = arith.constant 0 : index
    %c0_0 = arith.constant 0 : index
    %c0_1 = arith.constant 0 : index
    %c0_2 = arith.constant 0 : index
    %1 = vector.load %arg4[%c0, %c0_0, %c0_1, %c0_2] : memref<2x18x18x4xf32, #tpu.memory_space<vmem>>, vector<2x18x18x4xf32>
    tpu.vector_store %arg4[%c0, %c0_0, %c0_1, %c0_2], %0 {strides = array<i32>} : memref<2x18x18x4xf32, #tpu.memory_space<vmem>>, vector<2x18x18x4xf32>,
    %c0_3 = arith.constant 0 : index
    %c0_4 = arith.constant 0 : index
    %2 = vector.load %arg2[%c0_3, %c0_4] : memref<8x4xf32, #tpu.memory_space<vmem>>, vector<8x4xf32>
    %3 = vector.extract_strided_slice %2 {offsets = [0, 0], sizes = [1, 4], strides = [1, 1]} : vector<8x4xf32> to vector<1x4xf32>
    %4 = vector.extract_strided_slice %2 {offsets = [1, 0], sizes = [1, 4], strides = [1, 1]} : vector<8x4xf32> to vector<1x4xf32>
    %5 = vector.extract_strided_slice %2 {offsets = [2, 0], sizes = [1, 4], strides = [1, 1]} : vector<8x4xf32> to vector<1x4xf32>
    %6 = vector.extract_strided_slice %2 {offsets = [3, 0], sizes = [1, 4], strides = [1, 1]} : vector<8x4xf32> to vector<1x4xf32>
    %c0_5 = arith.constant 0 : index
    %c0_6 = arith.constant 0 : index
    %c0_7 = arith.constant 0 : index
    %c0_8 = arith.constant 0 : index
    %7 = vector.load %arg0[%c0_5, %c0_6, %c0_7, %c0_8] : memref<2x16x16x4xf32, #tpu.memory_space<vmem>>, vector<2x16x16x4xf32>
    %c0_9 = arith.constant 0 : index
    %c1 = arith.constant 1 : index
    %c1_10 = arith.constant 1 : index
    %c0_11 = arith.constant 0 : index
    %8 = vector.load %arg4[%c0_9, %c1, %c1_10, %c0_11] : memref<2x18x18x4xf32, #tpu.memory_space<vmem>>, vector<2x16x16x4xf32>
    tpu.vector_store %arg4[%c0_9, %c1, %c1_10, %c0_11], %7 {strides = array<i32>} : memref<2x18x18x4xf32, #tpu.memory_space<vmem>>, vector<2x16x16x4xf32>,
    %c0_12 = arith.constant 0 : index
    %c0_13 = arith.constant 0 : index
    %c0_14 = arith.constant 0 : index
    %c0_15 = arith.constant 0 : index
    %9 = vector.load %arg4[%c0_12, %c0_13, %c0_14, %c0_15] : memref<2x18x18x4xf32, #tpu.memory_space<vmem>>, vector<2x16x16x4xf32>
    %10 = vector.shape_cast %9 : vector<2x16x16x4xf32> to vector<512x4xf32>
    %c0_16 = arith.constant 0 : index
    %c0_17 = arith.constant 0 : index
    %c0_18 = arith.constant 0 : index
    %c0_19 = arith.constant 0 : index
    %c0_20 = arith.constant 0 : index
    %11 = vector.load %arg1[%c0_16, %c0_17, %c0_18, %c0_19, %c0_20] : memref<2x3x3x4x4xf32, #tpu.memory_space<vmem>>, vector<1x1x1x4x4xf32>
    %12 = vector.shape_cast %11 : vector<1x1x1x4x4xf32> to vector<4x4xf32>
    %cst_21 = arith.constant dense<0.000000e+00> : vector<512x4xf32>
    %13 = tpu.matmul %10, %12, %cst_21 {dimension_numbers = #tpu.dot_dimension_numbers<[1], [0], [0], [1], [0, 0, 1, 1], [], []>} : vector<512x4xf32>, vector<4x4xf32>, vector<512x4xf32> -> vector<512x4xf32>
    %c0_22 = arith.constant 0 : index
    %c0_23 = arith.constant 0 : index
    %c1_24 = arith.constant 1 : index
    %c0_25 = arith.constant 0 : index
    %14 = vector.load %arg4[%c0_22, %c0_23, %c1_24, %c0_25] : memref<2x18x18x4xf32, #tpu.memory_space<vmem>>, vector<2x16x16x4xf32>
    %15 = vector.shape_cast %14 : vector<2x16x16x4xf32> to vector<512x4xf32>
    %c0_26 = arith.constant 0 : index
    %c0_27 = arith.constant 0 : index
    %c1_28 = arith.constant 1 : index
    %c0_29 = arith.constant 0 : index
    %c0_30 = arith.constant 0 : index
    %16 = vector.load %arg1[%c0_26, %c0_27, %c1_28, %c0_29, %c0_30] : memref<2x3x3x4x4xf32, #tpu.memory_space<vmem>>, vector<1x1x1x4x4xf32>
    %17 = vector.shape_cast %16 : vector<1x1x1x4x4xf32> to vector<4x4xf32>
    %cst_31 = arith.constant dense<0.000000e+00> : vector<512x4xf32>
    %18 = tpu.matmul %15, %17, %cst_31 {dimension_numbers = #tpu.dot_dimension_numbers<[1], [0], [0], [1], [0, 0, 1, 1], [], []>} : vector<512x4xf32>, vector<4x4xf32>, vector<512x4xf32> -> vector<512x4xf32>
    %19 = arith.addf %13, %18 : vector<512x4xf32>
    %c0_32 = arith.constant 0 : index
    %c0_33 = arith.constant 0 : index
    %c2 = arith.constant 2 : index
    %c0_34 = arith.constant 0 : index
    %20 = vector.load %arg4[%c0_32, %c0_33, %c2, %c0_34] : memref<2x18x18x4xf32, #tpu.memory_space<vmem>>, vector<2x16x16x4xf32>
    %21 = vector.shape_cast %20 : vector<2x16x16x4xf32> to vector<512x4xf32>
    %c0_35 = arith.constant 0 : index
    %c0_36 = arith.constant 0 : index
    %c2_37 = arith.constant 2 : index
    %c0_38 = arith.constant 0 : index
    %c0_39 = arith.constant 0 : index
    %22 = vector.load %arg1[%c0_35, %c0_36, %c2_37, %c0_38, %c0_39] : memref<2x3x3x4x4xf32, #tpu.memory_space<vmem>>, vector<1x1x1x4x4xf32>
    %23 = vector.shape_cast %22 : vector<1x1x1x4x4xf32> to vector<4x4xf32>
    %cst_40 = arith.constant dense<0.000000e+00> : vector<512x4xf32>
    %24 = tpu.matmul %21, %23, %cst_40 {dimension_numbers = #tpu.dot_dimension_numbers<[1], [0], [0], [1], [0, 0, 1, 1], [], []>} : vector<512x4xf32>, vector<4x4xf32>, vector<512x4xf32> -> vector<512x4xf32>
    %25 = arith.addf %19, %24 : vector<512x4xf32>
    %c0_41 = arith.constant 0 : index
    %c1_42 = arith.constant 1 : index
    %c0_43 = arith.constant 0 : index
    %c0_44 = arith.constant 0 : index
    %26 = vector.load %arg4[%c0_41, %c1_42, %c0_43, %c0_44] : memref<2x18x18x4xf32, #tpu.memory_space<vmem>>, vector<2x16x16x4xf32>
    %27 = vector.shape_cast %26 : vector<2x16x16x4xf32> to vector<512x4xf32>
    %c0_45 = arith.constant 0 : index
    %c1_46 = arith.constant 1 : index
    %c0_47 = arith.constant 0 : index
    %c0_48 = arith.constant 0 : index
    %c0_49 = arith.constant 0 : index
    %28 = vector.load %arg1[%c0_45, %c1_46, %c0_47, %c0_48, %c0_49] : memref<2x3x3x4x4xf32, #tpu.memory_space<vmem>>, vector<1x1x1x4x4xf32>
    %29 = vector.shape_cast %28 : vector<1x1x1x4x4xf32> to vector<4x4xf32>
    %cst_50 = arith.constant dense<0.000000e+00> : vector<512x4xf32>
    %30 = tpu.matmul %27, %29, %cst_50 {dimension_numbers = #tpu.dot_dimension_numbers<[1], [0], [0], [1], [0, 0, 1, 1], [], []>} : vector<512x4xf32>, vector<4x4xf32>, vector<512x4xf32> -> vector<512x4xf32>
    %31 = arith.addf %25, %30 : vector<512x4xf32>
    %c0_51 = arith.constant 0 : index
    %c1_52 = arith.constant 1 : index
    %c1_53 = arith.constant 1 : index
    %c0_54 = arith.constant 0 : index
    %32 = vector.load %arg4[%c0_51, %c1_52, %c1_53, %c0_54] : memref<2x18x18x4xf32, #tpu.memory_space<vmem>>, vector<2x16x16x4xf32>
    %33 = vector.shape_cast %32 : vector<2x16x16x4xf32> to vector<512x4xf32>
    %c0_55 = arith.constant 0 : index
    %c1_56 = arith.constant 1 : index
    %c1_57 = arith.constant 1 : index
    %c0_58 = arith.constant 0 : index
    %c0_59 = arith.constant 0 : index
    %34 = vector.load %arg1[%c0_55, %c1_56, %c1_57, %c0_58, %c0_59] : memref<2x3x3x4x4xf32, #tpu.memory_space<vmem>>, vector<1x1x1x4x4xf32>
    %35 = vector.shape_cast %34 : vector<1x1x1x4x4xf32> to vector<4x4xf32>
    %cst_60 = arith.constant dense<0.000000e+00> : vector<512x4xf32>
    %36 = tpu.matmul %33, %35, %cst_60 {dimension_numbers = #tpu.dot_dimension_numbers<[1], [0], [0], [1], [0, 0, 1, 1], [], []>} : vector<512x4xf32>, vector<4x4xf32>, vector<512x4xf32> -> vector<512x4xf32>
    %37 = arith.addf %31, %36 : vector<512x4xf32>
    %c0_61 = arith.constant 0 : index
    %c1_62 = arith.constant 1 : index
    %c2_63 = arith.constant 2 : index
    %c0_64 = arith.constant 0 : index
    %38 = vector.load %arg4[%c0_61, %c1_62, %c2_63, %c0_64] : memref<2x18x18x4xf32, #tpu.memory_space<vmem>>, vector<2x16x16x4xf32>
    %39 = vector.shape_cast %38 : vector<2x16x16x4xf32> to vector<512x4xf32>
    %c0_65 = arith.constant 0 : index
    %c1_66 = arith.constant 1 : index
    %c2_67 = arith.constant 2 : index
    %c0_68 = arith.constant 0 : index
    %c0_69 = arith.constant 0 : index
    %40 = vector.load %arg1[%c0_65, %c1_66, %c2_67, %c0_68, %c0_69] : memref<2x3x3x4x4xf32, #tpu.memory_space<vmem>>, vector<1x1x1x4x4xf32>
    %41 = vector.shape_cast %40 : vector<1x1x1x4x4xf32> to vector<4x4xf32>
    %cst_70 = arith.constant dense<0.000000e+00> : vector<512x4xf32>
    %42 = tpu.matmul %39, %41, %cst_70 {dimension_numbers = #tpu.dot_dimension_numbers<[1], [0], [0], [1], [0, 0, 1, 1], [], []>} : vector<512x4xf32>, vector<4x4xf32>, vector<512x4xf32> -> vector<512x4xf32>
    %43 = arith.addf %37, %42 : vector<512x4xf32>
    %c0_71 = arith.constant 0 : index
    %c2_72 = arith.constant 2 : index
    %c0_73 = arith.constant 0 : index
    %c0_74 = arith.constant 0 : index
    %44 = vector.load %arg4[%c0_71, %c2_72, %c0_73, %c0_74] : memref<2x18x18x4xf32, #tpu.memory_space<vmem>>, vector<2x16x16x4xf32>
    %45 = vector.shape_cast %44 : vector<2x16x16x4xf32> to vector<512x4xf32>
    %c0_75 = arith.constant 0 : index
    %c2_76 = arith.constant 2 : index
    %c0_77 = arith.constant 0 : index
    %c0_78 = arith.constant 0 : index
    %c0_79 = arith.constant 0 : index
    %46 = vector.load %arg1[%c0_75, %c2_76, %c0_77, %c0_78, %c0_79] : memref<2x3x3x4x4xf32, #tpu.memory_space<vmem>>, vector<1x1x1x4x4xf32>
    %47 = vector.shape_cast %46 : vector<1x1x1x4x4xf32> to vector<4x4xf32>
    %cst_80 = arith.constant dense<0.000000e+00> : vector<512x4xf32>
    %48 = tpu.matmul %45, %47, %cst_80 {dimension_numbers = #tpu.dot_dimension_numbers<[1], [0], [0], [1], [0, 0, 1, 1], [], []>} : vector<512x4xf32>, vector<4x4xf32>, vector<512x4xf32> -> vector<512x4xf32>
    %49 = arith.addf %43, %48 : vector<512x4xf32>
    %c0_81 = arith.constant 0 : index
    %c2_82 = arith.constant 2 : index
    %c1_83 = arith.constant 1 : index
    %c0_84 = arith.constant 0 : index
    %50 = vector.load %arg4[%c0_81, %c2_82, %c1_83, %c0_84] : memref<2x18x18x4xf32, #tpu.memory_space<vmem>>, vector<2x16x16x4xf32>
    %51 = vector.shape_cast %50 : vector<2x16x16x4xf32> to vector<512x4xf32>
    %c0_85 = arith.constant 0 : index
    %c2_86 = arith.constant 2 : index
    %c1_87 = arith.constant 1 : index
    %c0_88 = arith.constant 0 : index
    %c0_89 = arith.constant 0 : index
    %52 = vector.load %arg1[%c0_85, %c2_86, %c1_87, %c0_88, %c0_89] : memref<2x3x3x4x4xf32, #tpu.memory_space<vmem>>, vector<1x1x1x4x4xf32>
    %53 = vector.shape_cast %52 : vector<1x1x1x4x4xf32> to vector<4x4xf32>
    %cst_90 = arith.constant dense<0.000000e+00> : vector<512x4xf32>
    %54 = tpu.matmul %51, %53, %cst_90 {dimension_numbers = #tpu.dot_dimension_numbers<[1], [0], [0], [1], [0, 0, 1, 1], [], []>} : vector<512x4xf32>, vector<4x4xf32>, vector<512x4xf32> -> vector<512x4xf32>
    %55 = arith.addf %49, %54 : vector<512x4xf32>
    %c0_91 = arith.constant 0 : index
    %c2_92 = arith.constant 2 : index
    %c2_93 = arith.constant 2 : index
    %c0_94 = arith.constant 0 : index
    %56 = vector.load %arg4[%c0_91, %c2_92, %c2_93, %c0_94] : memref<2x18x18x4xf32, #tpu.memory_space<vmem>>, vector<2x16x16x4xf32>
    %57 = vector.shape_cast %56 : vector<2x16x16x4xf32> to vector<512x4xf32>
    %c0_95 = arith.constant 0 : index
    %c2_96 = arith.constant 2 : index
    %c2_97 = arith.constant 2 : index
    %c0_98 = arith.constant 0 : index
    %c0_99 = arith.constant 0 : index
    %58 = vector.load %arg1[%c0_95, %c2_96, %c2_97, %c0_98, %c0_99] : memref<2x3x3x4x4xf32, #tpu.memory_space<vmem>>, vector<1x1x1x4x4xf32>
    %59 = vector.shape_cast %58 : vector<1x1x1x4x4xf32> to vector<4x4xf32>
    %cst_100 = arith.constant dense<0.000000e+00> : vector<512x4xf32>
    %60 = tpu.matmul %57, %59, %cst_100 {dimension_numbers = #tpu.dot_dimension_numbers<[1], [0], [0], [1], [0, 0, 1, 1], [], []>} : vector<512x4xf32>, vector<4x4xf32>, vector<512x4xf32> -> vector<512x4xf32>
    %61 = arith.addf %55, %60 : vector<512x4xf32>
    %cst_101 = arith.constant dense<0.000000e+00> : vector<4xf32>
    %62 = vector.multi_reduction <add>, %61, %cst_101 [0] : vector<512x4xf32> to vector<4xf32>
    %63 = vector.shape_cast %62 : vector<4xf32> to vector<1x4xf32>
    %cst_102 = arith.constant 0.001953125 : f32
    %64 = vector.broadcast %cst_102 : f32 to vector<1x4xf32>
    %65 = arith.mulf %63, %64 : vector<1x4xf32>
    %66 = arith.mulf %61, %61 : vector<512x4xf32>
    %cst_103 = arith.constant dense<0.000000e+00> : vector<4xf32>
    %67 = vector.multi_reduction <add>, %66, %cst_103 [0] : vector<512x4xf32> to vector<4xf32>
    %68 = vector.shape_cast %67 : vector<4xf32> to vector<1x4xf32>
    %cst_104 = arith.constant 0.001953125 : f32
    %69 = vector.broadcast %cst_104 : f32 to vector<1x4xf32>
    %70 = arith.mulf %68, %69 : vector<1x4xf32>
    %71 = arith.mulf %65, %65 : vector<1x4xf32>
    %72 = arith.subf %70, %71 : vector<1x4xf32>
    %cst_105 = arith.constant 0.000000e+00 : f32
    %73 = vector.broadcast %cst_105 : f32 to vector<1x4xf32>
    %74 = arith.maximumf %72, %73 : vector<1x4xf32>
    %cst_106 = arith.constant 9.99999974E-6 : f32
    %75 = vector.broadcast %cst_106 : f32 to vector<1x4xf32>
    %76 = arith.addf %74, %75 : vector<1x4xf32>
    %77 = math.rsqrt %76 : vector<1x4xf32>
    %78 = arith.mulf %3, %77 : vector<1x4xf32>
    %79 = arith.mulf %65, %78 : vector<1x4xf32>
    %80 = arith.subf %4, %79 : vector<1x4xf32>
    %81 = vector.broadcast %78 : vector<1x4xf32> to vector<512x4xf32>
    %82 = arith.mulf %61, %81 : vector<512x4xf32>
    %83 = vector.broadcast %80 : vector<1x4xf32> to vector<512x4xf32>
    %84 = arith.addf %82, %83 : vector<512x4xf32>
    %cst_107 = arith.constant 0.000000e+00 : f32
    %85 = vector.broadcast %cst_107 : f32 to vector<512x4xf32>
    %86 = arith.maximumf %84, %85 : vector<512x4xf32>
    %87 = vector.shape_cast %86 : vector<512x4xf32> to vector<2x16x16x4xf32>
    %c0_108 = arith.constant 0 : index
    %c1_109 = arith.constant 1 : index
    %c1_110 = arith.constant 1 : index
    %c0_111 = arith.constant 0 : index
    %88 = vector.load %arg4[%c0_108, %c1_109, %c1_110, %c0_111] : memref<2x18x18x4xf32, #tpu.memory_space<vmem>>, vector<2x16x16x4xf32>
    tpu.vector_store %arg4[%c0_108, %c1_109, %c1_110, %c0_111], %87 {strides = array<i32>} : memref<2x18x18x4xf32, #tpu.memory_space<vmem>>, vector<2x16x16x4xf32>,
    %c0_112 = arith.constant 0 : index
    %c0_113 = arith.constant 0 : index
    %c0_114 = arith.constant 0 : index
    %c0_115 = arith.constant 0 : index
    %89 = vector.load %arg4[%c0_112, %c0_113, %c0_114, %c0_115] : memref<2x18x18x4xf32, #tpu.memory_space<vmem>>, vector<2x16x16x4xf32>
    %90 = vector.shape_cast %89 : vector<2x16x16x4xf32> to vector<512x4xf32>
    %c1_116 = arith.constant 1 : index
    %c0_117 = arith.constant 0 : index
    %c0_118 = arith.constant 0 : index
    %c0_119 = arith.constant 0 : index
    %c0_120 = arith.constant 0 : index
    %91 = vector.load %arg1[%c1_116, %c0_117, %c0_118, %c0_119, %c0_120] : memref<2x3x3x4x4xf32, #tpu.memory_space<vmem>>, vector<1x1x1x4x4xf32>
    %92 = vector.shape_cast %91 : vector<1x1x1x4x4xf32> to vector<4x4xf32>
    %cst_121 = arith.constant dense<0.000000e+00> : vector<512x4xf32>
    %93 = tpu.matmul %90, %92, %cst_121 {dimension_numbers = #tpu.dot_dimension_numbers<[1], [0], [0], [1], [0, 0, 1, 1], [], []>} : vector<512x4xf32>, vector<4x4xf32>, vector<512x4xf32> -> vector<512x4xf32>
    %c0_122 = arith.constant 0 : index
    %c0_123 = arith.constant 0 : index
    %c1_124 = arith.constant 1 : index
    %c0_125 = arith.constant 0 : index
    %94 = vector.load %arg4[%c0_122, %c0_123, %c1_124, %c0_125] : memref<2x18x18x4xf32, #tpu.memory_space<vmem>>, vector<2x16x16x4xf32>
    %95 = vector.shape_cast %94 : vector<2x16x16x4xf32> to vector<512x4xf32>
    %c1_126 = arith.constant 1 : index
    %c0_127 = arith.constant 0 : index
    %c1_128 = arith.constant 1 : index
    %c0_129 = arith.constant 0 : index
    %c0_130 = arith.constant 0 : index
    %96 = vector.load %arg1[%c1_126, %c0_127, %c1_128, %c0_129, %c0_130] : memref<2x3x3x4x4xf32, #tpu.memory_space<vmem>>, vector<1x1x1x4x4xf32>
    %97 = vector.shape_cast %96 : vector<1x1x1x4x4xf32> to vector<4x4xf32>
    %cst_131 = arith.constant dense<0.000000e+00> : vector<512x4xf32>
    %98 = tpu.matmul %95, %97, %cst_131 {dimension_numbers = #tpu.dot_dimension_numbers<[1], [0], [0], [1], [0, 0, 1, 1], [], []>} : vector<512x4xf32>, vector<4x4xf32>, vector<512x4xf32> -> vector<512x4xf32>
    %99 = arith.addf %93, %98 : vector<512x4xf32>
    %c0_132 = arith.constant 0 : index
    %c0_133 = arith.constant 0 : index
    %c2_134 = arith.constant 2 : index
    %c0_135 = arith.constant 0 : index
    %100 = vector.load %arg4[%c0_132, %c0_133, %c2_134, %c0_135] : memref<2x18x18x4xf32, #tpu.memory_space<vmem>>, vector<2x16x16x4xf32>
    %101 = vector.shape_cast %100 : vector<2x16x16x4xf32> to vector<512x4xf32>
    %c1_136 = arith.constant 1 : index
    %c0_137 = arith.constant 0 : index
    %c2_138 = arith.constant 2 : index
    %c0_139 = arith.constant 0 : index
    %c0_140 = arith.constant 0 : index
    %102 = vector.load %arg1[%c1_136, %c0_137, %c2_138, %c0_139, %c0_140] : memref<2x3x3x4x4xf32, #tpu.memory_space<vmem>>, vector<1x1x1x4x4xf32>
    %103 = vector.shape_cast %102 : vector<1x1x1x4x4xf32> to vector<4x4xf32>
    %cst_141 = arith.constant dense<0.000000e+00> : vector<512x4xf32>
    %104 = tpu.matmul %101, %103, %cst_141 {dimension_numbers = #tpu.dot_dimension_numbers<[1], [0], [0], [1], [0, 0, 1, 1], [], []>} : vector<512x4xf32>, vector<4x4xf32>, vector<512x4xf32> -> vector<512x4xf32>
    %105 = arith.addf %99, %104 : vector<512x4xf32>
    %c0_142 = arith.constant 0 : index
    %c1_143 = arith.constant 1 : index
    %c0_144 = arith.constant 0 : index
    %c0_145 = arith.constant 0 : index
    %106 = vector.load %arg4[%c0_142, %c1_143, %c0_144, %c0_145] : memref<2x18x18x4xf32, #tpu.memory_space<vmem>>, vector<2x16x16x4xf32>
    %107 = vector.shape_cast %106 : vector<2x16x16x4xf32> to vector<512x4xf32>
    %c1_146 = arith.constant 1 : index
    %c1_147 = arith.constant 1 : index
    %c0_148 = arith.constant 0 : index
    %c0_149 = arith.constant 0 : index
    %c0_150 = arith.constant 0 : index
    %108 = vector.load %arg1[%c1_146, %c1_147, %c0_148, %c0_149, %c0_150] : memref<2x3x3x4x4xf32, #tpu.memory_space<vmem>>, vector<1x1x1x4x4xf32>
    %109 = vector.shape_cast %108 : vector<1x1x1x4x4xf32> to vector<4x4xf32>
    %cst_151 = arith.constant dense<0.000000e+00> : vector<512x4xf32>
    %110 = tpu.matmul %107, %109, %cst_151 {dimension_numbers = #tpu.dot_dimension_numbers<[1], [0], [0], [1], [0, 0, 1, 1], [], []>} : vector<512x4xf32>, vector<4x4xf32>, vector<512x4xf32> -> vector<512x4xf32>
    %111 = arith.addf %105, %110 : vector<512x4xf32>
    %c0_152 = arith.constant 0 : index
    %c1_153 = arith.constant 1 : index
    %c1_154 = arith.constant 1 : index
    %c0_155 = arith.constant 0 : index
    %112 = vector.load %arg4[%c0_152, %c1_153, %c1_154, %c0_155] : memref<2x18x18x4xf32, #tpu.memory_space<vmem>>, vector<2x16x16x4xf32>
    %113 = vector.shape_cast %112 : vector<2x16x16x4xf32> to vector<512x4xf32>
    %c1_156 = arith.constant 1 : index
    %c1_157 = arith.constant 1 : index
    %c1_158 = arith.constant 1 : index
    %c0_159 = arith.constant 0 : index
    %c0_160 = arith.constant 0 : index
    %114 = vector.load %arg1[%c1_156, %c1_157, %c1_158, %c0_159, %c0_160] : memref<2x3x3x4x4xf32, #tpu.memory_space<vmem>>, vector<1x1x1x4x4xf32>
    %115 = vector.shape_cast %114 : vector<1x1x1x4x4xf32> to vector<4x4xf32>
    %cst_161 = arith.constant dense<0.000000e+00> : vector<512x4xf32>
    %116 = tpu.matmul %113, %115, %cst_161 {dimension_numbers = #tpu.dot_dimension_numbers<[1], [0], [0], [1], [0, 0, 1, 1], [], []>} : vector<512x4xf32>, vector<4x4xf32>, vector<512x4xf32> -> vector<512x4xf32>
    %117 = arith.addf %111, %116 : vector<512x4xf32>
    %c0_162 = arith.constant 0 : index
    %c1_163 = arith.constant 1 : index
    %c2_164 = arith.constant 2 : index
    %c0_165 = arith.constant 0 : index
    %118 = vector.load %arg4[%c0_162, %c1_163, %c2_164, %c0_165] : memref<2x18x18x4xf32, #tpu.memory_space<vmem>>, vector<2x16x16x4xf32>
    %119 = vector.shape_cast %118 : vector<2x16x16x4xf32> to vector<512x4xf32>
    %c1_166 = arith.constant 1 : index
    %c1_167 = arith.constant 1 : index
    %c2_168 = arith.constant 2 : index
    %c0_169 = arith.constant 0 : index
    %c0_170 = arith.constant 0 : index
    %120 = vector.load %arg1[%c1_166, %c1_167, %c2_168, %c0_169, %c0_170] : memref<2x3x3x4x4xf32, #tpu.memory_space<vmem>>, vector<1x1x1x4x4xf32>
    %121 = vector.shape_cast %120 : vector<1x1x1x4x4xf32> to vector<4x4xf32>
    %cst_171 = arith.constant dense<0.000000e+00> : vector<512x4xf32>
    %122 = tpu.matmul %119, %121, %cst_171 {dimension_numbers = #tpu.dot_dimension_numbers<[1], [0], [0], [1], [0, 0, 1, 1], [], []>} : vector<512x4xf32>, vector<4x4xf32>, vector<512x4xf32> -> vector<512x4xf32>
    %123 = arith.addf %117, %122 : vector<512x4xf32>
    %c0_172 = arith.constant 0 : index
    %c2_173 = arith.constant 2 : index
    %c0_174 = arith.constant 0 : index
    %c0_175 = arith.constant 0 : index
    %124 = vector.load %arg4[%c0_172, %c2_173, %c0_174, %c0_175] : memref<2x18x18x4xf32, #tpu.memory_space<vmem>>, vector<2x16x16x4xf32>
    %125 = vector.shape_cast %124 : vector<2x16x16x4xf32> to vector<512x4xf32>
    %c1_176 = arith.constant 1 : index
    %c2_177 = arith.constant 2 : index
    %c0_178 = arith.constant 0 : index
    %c0_179 = arith.constant 0 : index
    %c0_180 = arith.constant 0 : index
    %126 = vector.load %arg1[%c1_176, %c2_177, %c0_178, %c0_179, %c0_180] : memref<2x3x3x4x4xf32, #tpu.memory_space<vmem>>, vector<1x1x1x4x4xf32>
    %127 = vector.shape_cast %126 : vector<1x1x1x4x4xf32> to vector<4x4xf32>
    %cst_181 = arith.constant dense<0.000000e+00> : vector<512x4xf32>
    %128 = tpu.matmul %125, %127, %cst_181 {dimension_numbers = #tpu.dot_dimension_numbers<[1], [0], [0], [1], [0, 0, 1, 1], [], []>} : vector<512x4xf32>, vector<4x4xf32>, vector<512x4xf32> -> vector<512x4xf32>
    %129 = arith.addf %123, %128 : vector<512x4xf32>
    %c0_182 = arith.constant 0 : index
    %c2_183 = arith.constant 2 : index
    %c1_184 = arith.constant 1 : index
    %c0_185 = arith.constant 0 : index
    %130 = vector.load %arg4[%c0_182, %c2_183, %c1_184, %c0_185] : memref<2x18x18x4xf32, #tpu.memory_space<vmem>>, vector<2x16x16x4xf32>
    %131 = vector.shape_cast %130 : vector<2x16x16x4xf32> to vector<512x4xf32>
    %c1_186 = arith.constant 1 : index
    %c2_187 = arith.constant 2 : index
    %c1_188 = arith.constant 1 : index
    %c0_189 = arith.constant 0 : index
    %c0_190 = arith.constant 0 : index
    %132 = vector.load %arg1[%c1_186, %c2_187, %c1_188, %c0_189, %c0_190] : memref<2x3x3x4x4xf32, #tpu.memory_space<vmem>>, vector<1x1x1x4x4xf32>
    %133 = vector.shape_cast %132 : vector<1x1x1x4x4xf32> to vector<4x4xf32>
    %cst_191 = arith.constant dense<0.000000e+00> : vector<512x4xf32>
    %134 = tpu.matmul %131, %133, %cst_191 {dimension_numbers = #tpu.dot_dimension_numbers<[1], [0], [0], [1], [0, 0, 1, 1], [], []>} : vector<512x4xf32>, vector<4x4xf32>, vector<512x4xf32> -> vector<512x4xf32>
    %135 = arith.addf %129, %134 : vector<512x4xf32>
    %c0_192 = arith.constant 0 : index
    %c2_193 = arith.constant 2 : index
    %c2_194 = arith.constant 2 : index
    %c0_195 = arith.constant 0 : index
    %136 = vector.load %arg4[%c0_192, %c2_193, %c2_194, %c0_195] : memref<2x18x18x4xf32, #tpu.memory_space<vmem>>, vector<2x16x16x4xf32>
    %137 = vector.shape_cast %136 : vector<2x16x16x4xf32> to vector<512x4xf32>
    %c1_196 = arith.constant 1 : index
    %c2_197 = arith.constant 2 : index
    %c2_198 = arith.constant 2 : index
    %c0_199 = arith.constant 0 : index
    %c0_200 = arith.constant 0 : index
    %138 = vector.load %arg1[%c1_196, %c2_197, %c2_198, %c0_199, %c0_200] : memref<2x3x3x4x4xf32, #tpu.memory_space<vmem>>, vector<1x1x1x4x4xf32>
    %139 = vector.shape_cast %138 : vector<1x1x1x4x4xf32> to vector<4x4xf32>
    %cst_201 = arith.constant dense<0.000000e+00> : vector<512x4xf32>
    %140 = tpu.matmul %137, %139, %cst_201 {dimension_numbers = #tpu.dot_dimension_numbers<[1], [0], [0], [1], [0, 0, 1, 1], [], []>} : vector<512x4xf32>, vector<4x4xf32>, vector<512x4xf32> -> vector<512x4xf32>
    %141 = arith.addf %135, %140 : vector<512x4xf32>
    %cst_202 = arith.constant dense<0.000000e+00> : vector<4xf32>
    %142 = vector.multi_reduction <add>, %141, %cst_202 [0] : vector<512x4xf32> to vector<4xf32>
    %143 = vector.shape_cast %142 : vector<4xf32> to vector<1x4xf32>
    %cst_203 = arith.constant 0.001953125 : f32
    %144 = vector.broadcast %cst_203 : f32 to vector<1x4xf32>
    %145 = arith.mulf %143, %144 : vector<1x4xf32>
    %146 = arith.mulf %141, %141 : vector<512x4xf32>
    %cst_204 = arith.constant dense<0.000000e+00> : vector<4xf32>
    %147 = vector.multi_reduction <add>, %146, %cst_204 [0] : vector<512x4xf32> to vector<4xf32>
    %148 = vector.shape_cast %147 : vector<4xf32> to vector<1x4xf32>
    %cst_205 = arith.constant 0.001953125 : f32
    %149 = vector.broadcast %cst_205 : f32 to vector<1x4xf32>
    %150 = arith.mulf %148, %149 : vector<1x4xf32>
    %151 = arith.mulf %145, %145 : vector<1x4xf32>
    %152 = arith.subf %150, %151 : vector<1x4xf32>
    %cst_206 = arith.constant 0.000000e+00 : f32
    %153 = vector.broadcast %cst_206 : f32 to vector<1x4xf32>
    %154 = arith.maximumf %152, %153 : vector<1x4xf32>
    %cst_207 = arith.constant 9.99999974E-6 : f32
    %155 = vector.broadcast %cst_207 : f32 to vector<1x4xf32>
    %156 = arith.addf %154, %155 : vector<1x4xf32>
    %157 = math.rsqrt %156 : vector<1x4xf32>
    %158 = arith.mulf %5, %157 : vector<1x4xf32>
    %159 = arith.mulf %145, %158 : vector<1x4xf32>
    %160 = arith.subf %6, %159 : vector<1x4xf32>
    %161 = vector.broadcast %158 : vector<1x4xf32> to vector<512x4xf32>
    %162 = arith.mulf %141, %161 : vector<512x4xf32>
    %163 = vector.broadcast %160 : vector<1x4xf32> to vector<512x4xf32>
    %164 = arith.addf %162, %163 : vector<512x4xf32>
    %165 = vector.shape_cast %7 : vector<2x16x16x4xf32> to vector<512x4xf32>
    %166 = arith.addf %164, %165 : vector<512x4xf32>
    %cst_208 = arith.constant 0.000000e+00 : f32
    %167 = vector.broadcast %cst_208 : f32 to vector<512x4xf32>
    %168 = arith.maximumf %166, %167 : vector<512x4xf32>
    %169 = vector.shape_cast %168 : vector<512x4xf32> to vector<2x16x16x4xf32>
    %c0_209 = arith.constant 0 : index
    %c0_210 = arith.constant 0 : index
    %c0_211 = arith.constant 0 : index
    %c0_212 = arith.constant 0 : index
    %170 = vector.load %arg3[%c0_209, %c0_210, %c0_211, %c0_212] : memref<2x16x16x4xf32, #tpu.memory_space<vmem>>, vector<2x16x16x4xf32>
    tpu.vector_store %arg3[%c0_209, %c0_210, %c0_211, %c0_212], %169 {strides = array<i32>} : memref<2x16x16x4xf32, #tpu.memory_space<vmem>>, vector<2x16x16x4xf32>,
    return
  }
}

</mosaic_0001>

<llo_original>
// kernel: tpu_custom_call.1
$region0: #{tpu_custom_call.1}
  #allocation0 [shape = 'u32[]', space=smem, size = 0x4, offset = 0x4, fixed_abs, tag = 'smem constant byte address 0x4 - core index']
  #allocation1 [shape = 'u32[144,128]{1,0:T(1,128)}', space=vmem, size = 0x12000, scoped, tag = 'internal scratch']
  #allocation2 [shape = 'f32[2,18,18,4]{3,2,1,0:T(8,128)}', space=vmem, size = 0x6c000, scoped, tag = 'scratch operand']
  %s0 = inlined_call_operand.vmem [shape: f32[2,16,16,4], index: 0, kind: input, shape index: {}]
  %s1 = inlined_call_operand.vmem [shape: f32[2,3,3,4,4], index: 1, kind: input, shape index: {}]
  %s2 = inlined_call_operand.vmem [shape: f32[8,4], index: 2, kind: input, shape index: {}]
  %s3 = inlined_call_operand.vmem [shape: f32[2,16,16,4], index: 3, kind: output, shape index: {}]
  %s4 = sld [smem:[#allocation0]]
  $region22: #{tpu_custom_call.1} parent=0
    _
  %s6 = ssub.s32 1, %s4
  %s7 = scalar_select 0, %s6, %s4
  // Predicated region
  $region2: #{tpu_custom_call.1} parent=0 // pred_check
    _
  $region3: #{tpu_custom_call.1} parent=0 // pred_check_branch
    %9 = sbr.rel (0) target = $region5
  $region4: #{tpu_custom_call.1} parent=0 // pred_region
    _
  $region5: #{tpu_custom_call.1} parent=0 // pred_fallthru
    _
  // Predicated region
  $region6: #{tpu_custom_call.1} parent=0 // pred_check
    _
  $region7: #{tpu_custom_call.1} parent=0 // pred_check_branch
    %11 = sbr.rel (0) target = $region9
  $region8: #{tpu_custom_call.1} parent=0 // pred_region
    _
  $region9: #{tpu_custom_call.1} parent=0 // pred_fallthru
    _
  // Predicated region
  $region10: #{tpu_custom_call.1} parent=0 // pred_check
    _
  $region11: #{tpu_custom_call.1} parent=0 // pred_check_branch
    %13 = sbr.rel (0) target = $region13
  $region12: #{tpu_custom_call.1} parent=0 // pred_region
    _
  $region13: #{tpu_custom_call.1} parent=0 // pred_fallthru
    _
  %vm14 = vcmask 31744
  %15 = vst.msk [vmem:[#allocation2] sm:$0xff] %vm14, 0.0
  %16 = vst.msk [vmem:[#allocation2 + $0x8] sm:$0xff] %vm14, 0.0
  %vm17 = vcmask 25600
  %18 = vst.msk [vmem:[#allocation2 + $0x10] sm:$0x3] %vm17, 0.0
  %19 = vst.msk [vmem:[#allocation2 + $0x18] sm:$0xff] %vm14, 0.0
  %20 = vst.msk [vmem:[#allocation2 + $0x20] sm:$0xff] %vm14, 0.0
  %21 = vst.msk [vmem:[#allocation2 + $0x28] sm:$0x3] %vm17, 0.0
  %22 = vst.msk [vmem:[#allocation2 + $0x30] sm:$0xff] %vm14, 0.0
  %23 = vst.msk [vmem:[#allocation2 + $0x38] sm:$0xff] %vm14, 0.0
  %24 = vst.msk [vmem:[#allocation2 + $0x40] sm:$0x3] %vm17, 0.0
  %25 = vst.msk [vmem:[#allocation2 + $0x48] sm:$0xff] %vm14, 0.0
  %26 = vst.msk [vmem:[#allocation2 + $0x50] sm:$0xff] %vm14, 0.0
  %27 = vst.msk [vmem:[#allocation2 + $0x58] sm:$0x3] %vm17, 0.0
  %28 = vst.msk [vmem:[#allocation2 + $0x60] sm:$0xff] %vm14, 0.0
  %29 = vst.msk [vmem:[#allocation2 + $0x68] sm:$0xff] %vm14, 0.0
  %30 = vst.msk [vmem:[#allocation2 + $0x70] sm:$0x3] %vm17, 0.0
  %31 = vst.msk [vmem:[#allocation2 + $0x78] sm:$0xff] %vm14, 0.0
  %32 = vst.msk [vmem:[#allocation2 + $0x80] sm:$0xff] %vm14, 0.0
  %33 = vst.msk [vmem:[#allocation2 + $0x88] sm:$0x3] %vm17, 0.0
  %34 = vst.msk [vmem:[#allocation2 + $0x90] sm:$0xff] %vm14, 0.0
  %35 = vst.msk [vmem:[#allocation2 + $0x98] sm:$0xff] %vm14, 0.0
  %36 = vst.msk [vmem:[#allocation2 + $0xa0] sm:$0x3] %vm17, 0.0
  %37 = vst.msk [vmem:[#allocation2 + $0xa8] sm:$0xff] %vm14, 0.0
  %38 = vst.msk [vmem:[#allocation2 + $0xb0] sm:$0xff] %vm14, 0.0
  %39 = vst.msk [vmem:[#allocation2 + $0xb8] sm:$0x3] %vm17, 0.0
  %40 = vst.msk [vmem:[#allocation2 + $0xc0] sm:$0xff] %vm14, 0.0
  %41 = vst.msk [vmem:[#allocation2 + $0xc8] sm:$0xff] %vm14, 0.0
  %42 = vst.msk [vmem:[#allocation2 + $0xd0] sm:$0x3] %vm17, 0.0
  %43 = vst.msk [vmem:[#allocation2 + $0xd8] sm:$0xff] %vm14, 0.0
  %44 = vst.msk [vmem:[#allocation2 + $0xe0] sm:$0xff] %vm14, 0.0
  %45 = vst.msk [vmem:[#allocation2 + $0xe8] sm:$0x3] %vm17, 0.0
  %46 = vst.msk [vmem:[#allocation2 + $0xf0] sm:$0xff] %vm14, 0.0
  %47 = vst.msk [vmem:[#allocation2 + $0xf8] sm:$0xff] %vm14, 0.0
  %48 = vst.msk [vmem:[#allocation2 + $0x100] sm:$0x3] %vm17, 0.0
  %49 = vst.msk [vmem:[#allocation2 + $0x108] sm:$0xff] %vm14, 0.0
  %50 = vst.msk [vmem:[#allocation2 + $0x110] sm:$0xff] %vm14, 0.0
  %51 = vst.msk [vmem:[#allocation2 + $0x118] sm:$0x3] %vm17, 0.0
  %52 = vst.msk [vmem:[#allocation2 + $0x120] sm:$0xff] %vm14, 0.0
  %53 = vst.msk [vmem:[#allocation2 + $0x128] sm:$0xff] %vm14, 0.0
  %54 = vst.msk [vmem:[#allocation2 + $0x130] sm:$0x3] %vm17, 0.0
  %55 = vst.msk [vmem:[#allocation2 + $0x138] sm:$0xff] %vm14, 0.0
  %56 = vst.msk [vmem:[#allocation2 + $0x140] sm:$0xff] %vm14, 0.0
  %57 = vst.msk [vmem:[#allocation2 + $0x148] sm:$0x3] %vm17, 0.0
  %58 = vst.msk [vmem:[#allocation2 + $0x150] sm:$0xff] %vm14, 0.0
  %59 = vst.msk [vmem:[#allocation2 + $0x158] sm:$0xff] %vm14, 0.0
  %60 = vst.msk [vmem:[#allocation2 + $0x160] sm:$0x3] %vm17, 0.0
  %61 = vst.msk [vmem:[#allocation2 + $0x168] sm:$0xff] %vm14, 0.0
  %62 = vst.msk [vmem:[#allocation2 + $0x170] sm:$0xff] %vm14, 0.0
  %63 = vst.msk [vmem:[#allocation2 + $0x178] sm:$0x3] %vm17, 0.0
  %64 = vst.msk [vmem:[#allocation2 + $0x180] sm:$0xff] %vm14, 0.0
  %65 = vst.msk [vmem:[#allocation2 + $0x188] sm:$0xff] %vm14, 0.0
  %66 = vst.msk [vmem:[#allocation2 + $0x190] sm:$0x3] %vm17, 0.0
  %67 = vst.msk [vmem:[#allocation2 + $0x198] sm:$0xff] %vm14, 0.0
  %68 = vst.msk [vmem:[#allocation2 + $0x1a0] sm:$0xff] %vm14, 0.0
  %69 = vst.msk [vmem:[#allocation2 + $0x1a8] sm:$0x3] %vm17, 0.0
  %70 = vst.msk [vmem:[#allocation2 + $0x1b0] sm:$0xff] %vm14, 0.0
  %71 = vst.msk [vmem:[#allocation2 + $0x1b8] sm:$0xff] %vm14, 0.0
  %72 = vst.msk [vmem:[#allocation2 + $0x1c0] sm:$0x3] %vm17, 0.0
  %73 = vst.msk [vmem:[#allocation2 + $0x1c8] sm:$0xff] %vm14, 0.0
  %74 = vst.msk [vmem:[#allocation2 + $0x1d0] sm:$0xff] %vm14, 0.0
  %75 = vst.msk [vmem:[#allocation2 + $0x1d8] sm:$0x3] %vm17, 0.0
  %76 = vst.msk [vmem:[#allocation2 + $0x1e0] sm:$0xff] %vm14, 0.0
  %77 = vst.msk [vmem:[#allocation2 + $0x1e8] sm:$0xff] %vm14, 0.0
  %78 = vst.msk [vmem:[#allocation2 + $0x1f0] sm:$0x3] %vm17, 0.0
  %79 = vst.msk [vmem:[#allocation2 + $0x1f8] sm:$0xff] %vm14, 0.0
  %80 = vst.msk [vmem:[#allocation2 + $0x200] sm:$0xff] %vm14, 0.0
  %81 = vst.msk [vmem:[#allocation2 + $0x208] sm:$0x3] %vm17, 0.0
  %82 = vst.msk [vmem:[#allocation2 + $0x210] sm:$0xff] %vm14, 0.0
  %83 = vst.msk [vmem:[#allocation2 + $0x218] sm:$0xff] %vm14, 0.0
  %84 = vst.msk [vmem:[#allocation2 + $0x220] sm:$0x3] %vm17, 0.0
  %85 = vst.msk [vmem:[#allocation2 + $0x228] sm:$0xff] %vm14, 0.0
  %86 = vst.msk [vmem:[#allocation2 + $0x230] sm:$0xff] %vm14, 0.0
  %87 = vst.msk [vmem:[#allocation2 + $0x238] sm:$0x3] %vm17, 0.0
  %88 = vst.msk [vmem:[#allocation2 + $0x240] sm:$0xff] %vm14, 0.0
  %89 = vst.msk [vmem:[#allocation2 + $0x248] sm:$0xff] %vm14, 0.0
  %90 = vst.msk [vmem:[#allocation2 + $0x250] sm:$0x3] %vm17, 0.0
  %91 = vst.msk [vmem:[#allocation2 + $0x258] sm:$0xff] %vm14, 0.0
  %92 = vst.msk [vmem:[#allocation2 + $0x260] sm:$0xff] %vm14, 0.0
  %93 = vst.msk [vmem:[#allocation2 + $0x268] sm:$0x3] %vm17, 0.0
  %94 = vst.msk [vmem:[#allocation2 + $0x270] sm:$0xff] %vm14, 0.0
  %95 = vst.msk [vmem:[#allocation2 + $0x278] sm:$0xff] %vm14, 0.0
  %96 = vst.msk [vmem:[#allocation2 + $0x280] sm:$0x3] %vm17, 0.0
  %97 = vst.msk [vmem:[#allocation2 + $0x288] sm:$0xff] %vm14, 0.0
  %98 = vst.msk [vmem:[#allocation2 + $0x290] sm:$0xff] %vm14, 0.0
  %99 = vst.msk [vmem:[#allocation2 + $0x298] sm:$0x3] %vm17, 0.0
  %100 = vst.msk [vmem:[#allocation2 + $0x2a0] sm:$0xff] %vm14, 0.0
  %101 = vst.msk [vmem:[#allocation2 + $0x2a8] sm:$0xff] %vm14, 0.0
  %102 = vst.msk [vmem:[#allocation2 + $0x2b0] sm:$0x3] %vm17, 0.0
  %103 = vst.msk [vmem:[#allocation2 + $0x2b8] sm:$0xff] %vm14, 0.0
  %104 = vst.msk [vmem:[#allocation2 + $0x2c0] sm:$0xff] %vm14, 0.0
  %105 = vst.msk [vmem:[#allocation2 + $0x2c8] sm:$0x3] %vm17, 0.0
  %106 = vst.msk [vmem:[#allocation2 + $0x2d0] sm:$0xff] %vm14, 0.0
  %107 = vst.msk [vmem:[#allocation2 + $0x2d8] sm:$0xff] %vm14, 0.0
  %108 = vst.msk [vmem:[#allocation2 + $0x2e0] sm:$0x3] %vm17, 0.0
  %109 = vst.msk [vmem:[#allocation2 + $0x2e8] sm:$0xff] %vm14, 0.0
  %110 = vst.msk [vmem:[#allocation2 + $0x2f0] sm:$0xff] %vm14, 0.0
  %111 = vst.msk [vmem:[#allocation2 + $0x2f8] sm:$0x3] %vm17, 0.0
  %112 = vst.msk [vmem:[#allocation2 + $0x300] sm:$0xff] %vm14, 0.0
  %113 = vst.msk [vmem:[#allocation2 + $0x308] sm:$0xff] %vm14, 0.0
  %114 = vst.msk [vmem:[#allocation2 + $0x310] sm:$0x3] %vm17, 0.0
  %115 = vst.msk [vmem:[#allocation2 + $0x318] sm:$0xff] %vm14, 0.0
  %116 = vst.msk [vmem:[#allocation2 + $0x320] sm:$0xff] %vm14, 0.0
  %117 = vst.msk [vmem:[#allocation2 + $0x328] sm:$0x3] %vm17, 0.0
  %118 = vst.msk [vmem:[#allocation2 + $0x330] sm:$0xff] %vm14, 0.0
  %119 = vst.msk [vmem:[#allocation2 + $0x338] sm:$0xff] %vm14, 0.0
  %120 = vst.msk [vmem:[#allocation2 + $0x340] sm:$0x3] %vm17, 0.0
  %121 = vst.msk [vmem:[#allocation2 + $0x348] sm:$0xff] %vm14, 0.0
  %122 = vst.msk [vmem:[#allocation2 + $0x350] sm:$0xff] %vm14, 0.0
  %123 = vst.msk [vmem:[#allocation2 + $0x358] sm:$0x3] %vm17, 0.0
  %v124 = vld [vmem:[%s2] sm:$0xff]
  %v125 = vld [vmem:[%s0] sm:$0xff]
  %v126 = vld [vmem:[%s0 + $0x8] sm:$0xff]
  %v127 = vld [vmem:[%s0 + $0x10] sm:$0xff]
  %v128 = vld [vmem:[%s0 + $0x18] sm:$0xff]
  %v129 = vld [vmem:[%s0 + $0x20] sm:$0xff]
  %v130 = vld [vmem:[%s0 + $0x28] sm:$0xff]
  %v131 = vld [vmem:[%s0 + $0x30] sm:$0xff]
  %v132 = vld [vmem:[%s0 + $0x38] sm:$0xff]
  %v133 = vld [vmem:[%s0 + $0x40] sm:$0xff]
  %v134 = vld [vmem:[%s0 + $0x48] sm:$0xff]
  %v135 = vld [vmem:[%s0 + $0x50] sm:$0xff]
  %v136 = vld [vmem:[%s0 + $0x58] sm:$0xff]
  %v137 = vld [vmem:[%s0 + $0x60] sm:$0xff]
  %v138 = vld [vmem:[%s0 + $0x68] sm:$0xff]
  %v139 = vld [vmem:[%s0 + $0x70] sm:$0xff]
  %v140 = vld [vmem:[%s0 + $0x78] sm:$0xff]
  %v141 = vld [vmem:[%s0 + $0x80] sm:$0xff]
  %v142 = vld [vmem:[%s0 + $0x88] sm:$0xff]
  %v143 = vld [vmem:[%s0 + $0x90] sm:$0xff]
  %v144 = vld [vmem:[%s0 + $0x98] sm:$0xff]
  %v145 = vld [vmem:[%s0 + $0xa0] sm:$0xff]
  %v146 = vld [vmem:[%s0 + $0xa8] sm:$0xff]
  %v147 = vld [vmem:[%s0 + $0xb0] sm:$0xff]
  %v148 = vld [vmem:[%s0 + $0xb8] sm:$0xff]
  %v149 = vld [vmem:[%s0 + $0xc0] sm:$0xff]
  %v150 = vld [vmem:[%s0 + $0xc8] sm:$0xff]
  %v151 = vld [vmem:[%s0 + $0xd0] sm:$0xff]
  %v152 = vld [vmem:[%s0 + $0xd8] sm:$0xff]
  %v153 = vld [vmem:[%s0 + $0xe0] sm:$0xff]
  %v154 = vld [vmem:[%s0 + $0xe8] sm:$0xff]
  %v155 = vld [vmem:[%s0 + $0xf0] sm:$0xff]
  %v156 = vld [vmem:[%s0 + $0xf8] sm:$0xff]
  %v157 = vld [vmem:[%s0 + $0x100] sm:$0xff]
  %v158 = vld [vmem:[%s0 + $0x108] sm:$0xff]
  %v159 = vld [vmem:[%s0 + $0x110] sm:$0xff]
  %v160 = vld [vmem:[%s0 + $0x118] sm:$0xff]
  %v161 = vld [vmem:[%s0 + $0x120] sm:$0xff]
  %v162 = vld [vmem:[%s0 + $0x128] sm:$0xff]
  %v163 = vld [vmem:[%s0 + $0x130] sm:$0xff]
  %v164 = vld [vmem:[%s0 + $0x138] sm:$0xff]
  %v165 = vld [vmem:[%s0 + $0x140] sm:$0xff]
  %v166 = vld [vmem:[%s0 + $0x148] sm:$0xff]
  %v167 = vld [vmem:[%s0 + $0x150] sm:$0xff]
  %v168 = vld [vmem:[%s0 + $0x158] sm:$0xff]
  %v169 = vld [vmem:[%s0 + $0x160] sm:$0xff]
  %v170 = vld [vmem:[%s0 + $0x168] sm:$0xff]
  %v171 = vld [vmem:[%s0 + $0x170] sm:$0xff]
  %v172 = vld [vmem:[%s0 + $0x178] sm:$0xff]
  %v173 = vld [vmem:[%s0 + $0x180] sm:$0xff]
  %v174 = vld [vmem:[%s0 + $0x188] sm:$0xff]
  %v175 = vld [vmem:[%s0 + $0x190] sm:$0xff]
  %v176 = vld [vmem:[%s0 + $0x198] sm:$0xff]
  %v177 = vld [vmem:[%s0 + $0x1a0] sm:$0xff]
  %v178 = vld [vmem:[%s0 + $0x1a8] sm:$0xff]
  %v179 = vld [vmem:[%s0 + $0x1b0] sm:$0xff]
  %v180 = vld [vmem:[%s0 + $0x1b8] sm:$0xff]
  %v181 = vld [vmem:[%s0 + $0x1c0] sm:$0xff]
  %v182 = vld [vmem:[%s0 + $0x1c8] sm:$0xff]
  %v183 = vld [vmem:[%s0 + $0x1d0] sm:$0xff]
  %v184 = vld [vmem:[%s0 + $0x1d8] sm:$0xff]
  %v185 = vld [vmem:[%s0 + $0x1e0] sm:$0xff]
  %v186 = vld [vmem:[%s0 + $0x1e8] sm:$0xff]
  %v187 = vld [vmem:[%s0 + $0x1f0] sm:$0xff]
  %v188 = vld [vmem:[%s0 + $0x1f8] sm:$0xff]
  %s189 = scalar_lea.vmem [#allocation2], 24
  %190 = vst.msk [vmem:[%s189 + $0x1] sm:$0xff] %vm14, %v125
  %191 = vst.msk [vmem:[%s189 + $0x9] sm:$0xff] %vm14, %v126
  %192 = vst.msk [vmem:[%s189 + $0x19] sm:$0xff] %vm14, %v127
  %193 = vst.msk [vmem:[%s189 + $0x21] sm:$0xff] %vm14, %v128
  %194 = vst.msk [vmem:[%s189 + $0x31] sm:$0xff] %vm14, %v129
  %195 = vst.msk [vmem:[%s189 + $0x39] sm:$0xff] %vm14, %v130
  %196 = vst.msk [vmem:[%s189 + $0x49] sm:$0xff] %vm14, %v131
  %197 = vst.msk [vmem:[%s189 + $0x51] sm:$0xff] %vm14, %v132
  %198 = vst.msk [vmem:[%s189 + $0x61] sm:$0xff] %vm14, %v133
  %199 = vst.msk [vmem:[%s189 + $0x69] sm:$0xff] %vm14, %v134
  %200 = vst.msk [vmem:[%s189 + $0x79] sm:$0xff] %vm14, %v135
  %201 = vst.msk [vmem:[%s189 + $0x81] sm:$0xff] %vm14, %v136
  %202 = vst.msk [vmem:[%s189 + $0x91] sm:$0xff] %vm14, %v137
  %203 = vst.msk [vmem:[%s189 + $0x99] sm:$0xff] %vm14, %v138
  %204 = vst.msk [vmem:[%s189 + $0xa9] sm:$0xff] %vm14, %v139
  %205 = vst.msk [vmem:[%s189 + $0xb1] sm:$0xff] %vm14, %v140
  %206 = vst.msk [vmem:[%s189 + $0xc1] sm:$0xff] %vm14, %v141
  %207 = vst.msk [vmem:[%s189 + $0xc9] sm:$0xff] %vm14, %v142
  %208 = vst.msk [vmem:[%s189 + $0xd9] sm:$0xff] %vm14, %v143
  %209 = vst.msk [vmem:[%s189 + $0xe1] sm:$0xff] %vm14, %v144
  %210 = vst.msk [vmem:[%s189 + $0xf1] sm:$0xff] %vm14, %v145
  %211 = vst.msk [vmem:[%s189 + $0xf9] sm:$0xff] %vm14, %v146
  %212 = vst.msk [vmem:[%s189 + $0x109] sm:$0xff] %vm14, %v147
  %213 = vst.msk [vmem:[%s189 + $0x111] sm:$0xff] %vm14, %v148
  %214 = vst.msk [vmem:[%s189 + $0x121] sm:$0xff] %vm14, %v149
  %215 = vst.msk [vmem:[%s189 + $0x129] sm:$0xff] %vm14, %v150
  %216 = vst.msk [vmem:[%s189 + $0x139] sm:$0xff] %vm14, %v151
  %217 = vst.msk [vmem:[%s189 + $0x141] sm:$0xff] %vm14, %v152
  %218 = vst.msk [vmem:[%s189 + $0x151] sm:$0xff] %vm14, %v153
  %219 = vst.msk [vmem:[%s189 + $0x159] sm:$0xff] %vm14, %v154
  %220 = vst.msk [vmem:[%s189 + $0x169] sm:$0xff] %vm14, %v155
  %221 = vst.msk [vmem:[%s189 + $0x171] sm:$0xff] %vm14, %v156
  %222 = vst.msk [vmem:[%s189 + $0x1b1] sm:$0xff] %vm14, %v157
  %223 = vst.msk [vmem:[%s189 + $0x1b9] sm:$0xff] %vm14, %v158
  %224 = vst.msk [vmem:[%s189 + $0x1c9] sm:$0xff] %vm14, %v159
  %225 = vst.msk [vmem:[%s189 + $0x1d1] sm:$0xff] %vm14, %v160
  %226 = vst.msk [vmem:[%s189 + $0x1e1] sm:$0xff] %vm14, %v161
  %227 = vst.msk [vmem:[%s189 + $0x1e9] sm:$0xff] %vm14, %v162
  %228 = vst.msk [vmem:[%s189 + $0x1f9] sm:$0xff] %vm14, %v163
  %229 = vst.msk [vmem:[%s189 + $0x201] sm:$0xff] %vm14, %v164
  %230 = vst.msk [vmem:[%s189 + $0x211] sm:$0xff] %vm14, %v165
  %231 = vst.msk [vmem:[%s189 + $0x219] sm:$0xff] %vm14, %v166
  %232 = vst.msk [vmem:[%s189 + $0x229] sm:$0xff] %vm14, %v167
  %233 = vst.msk [vmem:[%s189 + $0x231] sm:$0xff] %vm14, %v168
  %234 = vst.msk [vmem:[%s189 + $0x241] sm:$0xff] %vm14, %v169
  %235 = vst.msk [vmem:[%s189 + $0x249] sm:$0xff] %vm14, %v170
  %236 = vst.msk [vmem:[%s189 + $0x259] sm:$0xff] %vm14, %v171
  %237 = vst.msk [vmem:[%s189 + $0x261] sm:$0xff] %vm14, %v172
  %238 = vst.msk [vmem:[%s189 + $0x271] sm:$0xff] %vm14, %v173
  %239 = vst.msk [vmem:[%s189 + $0x279] sm:$0xff] %vm14, %v174
  %240 = vst.msk [vmem:[%s189 + $0x289] sm:$0xff] %vm14, %v175
  %241 = vst.msk [vmem:[%s189 + $0x291] sm:$0xff] %vm14, %v176
  %242 = vst.msk [vmem:[%s189 + $0x2a1] sm:$0xff] %vm14, %v177
  %243 = vst.msk [vmem:[%s189 + $0x2a9] sm:$0xff] %vm14, %v178
  %244 = vst.msk [vmem:[%s189 + $0x2b9] sm:$0xff] %vm14, %v179
  %245 = vst.msk [vmem:[%s189 + $0x2c1] sm:$0xff] %vm14, %v180
  %246 = vst.msk [vmem:[%s189 + $0x2d1] sm:$0xff] %vm14, %v181
  %247 = vst.msk [vmem:[%s189 + $0x2d9] sm:$0xff] %vm14, %v182
  %248 = vst.msk [vmem:[%s189 + $0x2e9] sm:$0xff] %vm14, %v183
  %249 = vst.msk [vmem:[%s189 + $0x2f1] sm:$0xff] %vm14, %v184
  %250 = vst.msk [vmem:[%s189 + $0x301] sm:$0xff] %vm14, %v185
  %251 = vst.msk [vmem:[%s189 + $0x309] sm:$0xff] %vm14, %v186
  %252 = vst.msk [vmem:[%s189 + $0x319] sm:$0xff] %vm14, %v187
  %253 = vst.msk [vmem:[%s189 + $0x321] sm:$0xff] %vm14, %v188
  %v254 = vld [vmem:[#allocation2] sm:$0xff]
  %v255 = vld [vmem:[#allocation2 + $0x8] sm:$0xff]
  %v256 = vld [vmem:[#allocation2 + $0x18] sm:$0xff]
  %v257 = vld [vmem:[#allocation2 + $0x20] sm:$0xff]
  %v258 = vld [vmem:[#allocation2 + $0x30] sm:$0xff]
  %v259 = vld [vmem:[#allocation2 + $0x38] sm:$0xff]
  %v260 = vld [vmem:[#allocation2 + $0x48] sm:$0xff]
  %v261 = vld [vmem:[#allocation2 + $0x50] sm:$0xff]
  %v262 = vld [vmem:[#allocation2 + $0x60] sm:$0xff]
  %v263 = vld [vmem:[#allocation2 + $0x68] sm:$0xff]
  %v264 = vld [vmem:[#allocation2 + $0x78] sm:$0xff]
  %v265 = vld [vmem:[#allocation2 + $0x80] sm:$0xff]
  %v266 = vld [vmem:[#allocation2 + $0x90] sm:$0xff]
  %v267 = vld [vmem:[#allocation2 + $0x98] sm:$0xff]
  %v268 = vld [vmem:[#allocation2 + $0xa8] sm:$0xff]
  %v269 = vld [vmem:[#allocation2 + $0xb0] sm:$0xff]
  %v270 = vld [vmem:[#allocation2 + $0xc0] sm:$0xff]
  %v271 = vld [vmem:[#allocation2 + $0xc8] sm:$0xff]
  %v272 = vld [vmem:[#allocation2 + $0xd8] sm:$0xff]
  %v273 = vld [vmem:[#allocation2 + $0xe0] sm:$0xff]
  %v274 = vld [vmem:[#allocation2 + $0xf0] sm:$0xff]
  %v275 = vld [vmem:[#allocation2 + $0xf8] sm:$0xff]
  %v276 = vld [vmem:[#allocation2 + $0x108] sm:$0xff]
  %v277 = vld [vmem:[#allocation2 + $0x110] sm:$0xff]
  %v278 = vld [vmem:[#allocation2 + $0x120] sm:$0xff]
  %v279 = vld [vmem:[#allocation2 + $0x128] sm:$0xff]
  %v280 = vld [vmem:[#allocation2 + $0x138] sm:$0xff]
  %v281 = vld [vmem:[#allocation2 + $0x140] sm:$0xff]
  %v282 = vld [vmem:[#allocation2 + $0x150] sm:$0xff]
  %v283 = vld [vmem:[#allocation2 + $0x158] sm:$0xff]
  %v284 = vld [vmem:[#allocation2 + $0x168] sm:$0xff]
  %v285 = vld [vmem:[#allocation2 + $0x170] sm:$0xff]
  %v286 = vld [vmem:[#allocation2 + $0x1b0] sm:$0xff]
  %v287 = vld [vmem:[#allocation2 + $0x1b8] sm:$0xff]
  %v288 = vld [vmem:[#allocation2 + $0x1c8] sm:$0xff]
  %v289 = vld [vmem:[#allocation2 + $0x1d0] sm:$0xff]
  %v290 = vld [vmem:[#allocation2 + $0x1e0] sm:$0xff]
  %v291 = vld [vmem:[#allocation2 + $0x1e8] sm:$0xff]
  %v292 = vld [vmem:[#allocation2 + $0x1f8] sm:$0xff]
  %v293 = vld [vmem:[#allocation2 + $0x200] sm:$0xff]
  %v294 = vld [vmem:[#allocation2 + $0x210] sm:$0xff]
  %v295 = vld [vmem:[#allocation2 + $0x218] sm:$0xff]
  %v296 = vld [vmem:[#allocation2 + $0x228] sm:$0xff]
  %v297 = vld [vmem:[#allocation2 + $0x230] sm:$0xff]
  %v298 = vld [vmem:[#allocation2 + $0x240] sm:$0xff]
  %v299 = vld [vmem:[#allocation2 + $0x248] sm:$0xff]
  %v300 = vld [vmem:[#allocation2 + $0x258] sm:$0xff]
  %v301 = vld [vmem:[#allocation2 + $0x260] sm:$0xff]
  %v302 = vld [vmem:[#allocation2 + $0x270] sm:$0xff]
  %v303 = vld [vmem:[#allocation2 + $0x278] sm:$0xff]
  %v304 = vld [vmem:[#allocation2 + $0x288] sm:$0xff]
  %v305 = vld [vmem:[#allocation2 + $0x290] sm:$0xff]
  %v306 = vld [vmem:[#allocation2 + $0x2a0] sm:$0xff]
  %v307 = vld [vmem:[#allocation2 + $0x2a8] sm:$0xff]
  %v308 = vld [vmem:[#allocation2 + $0x2b8] sm:$0xff]
  %v309 = vld [vmem:[#allocation2 + $0x2c0] sm:$0xff]
  %v310 = vld [vmem:[#allocation2 + $0x2d0] sm:$0xff]
  %v311 = vld [vmem:[#allocation2 + $0x2d8] sm:$0xff]
  %v312 = vld [vmem:[#allocation2 + $0x2e8] sm:$0xff]
  %v313 = vld [vmem:[#allocation2 + $0x2f0] sm:$0xff]
  %v314 = vld [vmem:[#allocation2 + $0x300] sm:$0xff]
  %v315 = vld [vmem:[#allocation2 + $0x308] sm:$0xff]
  %v316 = vld [vmem:[#allocation2 + $0x318] sm:$0xff]
  %v317 = vld [vmem:[#allocation2 + $0x320] sm:$0xff]
  %v318 = vld [vmem:[%s1] sm:$0xf]
  %v319 = vld [vmem:[#allocation2 + $0x1] sm:$0xff]
  %v320 = vld [vmem:[#allocation2 + $0x9] sm:$0xff]
  %v321 = vld [vmem:[#allocation2 + $0x19] sm:$0xff]
  %v322 = vld [vmem:[#allocation2 + $0x21] sm:$0xff]
  %v323 = vld [vmem:[#allocation2 + $0x31] sm:$0xff]
  %v324 = vld [vmem:[#allocation2 + $0x39] sm:$0xff]
  %v325 = vld [vmem:[#allocation2 + $0x49] sm:$0xff]
  %v326 = vld [vmem:[#allocation2 + $0x51] sm:$0xff]
  %v327 = vld [vmem:[#allocation2 + $0x61] sm:$0xff]
  %v328 = vld [vmem:[#allocation2 + $0x69] sm:$0xff]
  %v329 = vld [vmem:[#allocation2 + $0x79] sm:$0xff]
  %v330 = vld [vmem:[#allocation2 + $0x81] sm:$0xff]
  %v331 = vld [vmem:[#allocation2 + $0x91] sm:$0xff]
  %v332 = vld [vmem:[#allocation2 + $0x99] sm:$0xff]
  %v333 = vld [vmem:[#allocation2 + $0xa9] sm:$0xff]
  %v334 = vld [vmem:[#allocation2 + $0xb1] sm:$0xff]
  %v335 = vld [vmem:[#allocation2 + $0xc1] sm:$0xff]
  %v336 = vld [vmem:[#allocation2 + $0xc9] sm:$0xff]
  %v337 = vld [vmem:[#allocation2 + $0xd9] sm:$0xff]
  %v338 = vld [vmem:[#allocation2 + $0xe1] sm:$0xff]
  %v339 = vld [vmem:[#allocation2 + $0xf1] sm:$0xff]
  %v340 = vld [vmem:[#allocation2 + $0xf9] sm:$0xff]
  %v341 = vld [vmem:[#allocation2 + $0x109] sm:$0xff]
  %v342 = vld [vmem:[#allocation2 + $0x111] sm:$0xff]
  %v343 = vld [vmem:[#allocation2 + $0x121] sm:$0xff]
  %v344 = vld [vmem:[#allocation2 + $0x129] sm:$0xff]
  %v345 = vld [vmem:[#allocation2 + $0x139] sm:$0xff]
  %v346 = vld [vmem:[#allocation2 + $0x141] sm:$0xff]
  %v347 = vld [vmem:[#allocation2 + $0x151] sm:$0xff]
  %v348 = vld [vmem:[#allocation2 + $0x159] sm:$0xff]
  %v349 = vld [vmem:[#allocation2 + $0x169] sm:$0xff]
  %v350 = vld [vmem:[#allocation2 + $0x171] sm:$0xff]
  %v351 = vld [vmem:[#allocation2 + $0x1b1] sm:$0xff]
  %v352 = vld [vmem:[#allocation2 + $0x1b9] sm:$0xff]
  %v353 = vld [vmem:[#allocation2 + $0x1c9] sm:$0xff]
  %v354 = vld [vmem:[#allocation2 + $0x1d1] sm:$0xff]
  %v355 = vld [vmem:[#allocation2 + $0x1e1] sm:$0xff]
  %v356 = vld [vmem:[#allocation2 + $0x1e9] sm:$0xff]
  %v357 = vld [vmem:[#allocation2 + $0x1f9] sm:$0xff]
  %v358 = vld [vmem:[#allocation2 + $0x201] sm:$0xff]
  %v359 = vld [vmem:[#allocation2 + $0x211] sm:$0xff]
  %v360 = vld [vmem:[#allocation2 + $0x219] sm:$0xff]
  %v361 = vld [vmem:[#allocation2 + $0x229] sm:$0xff]
  %v362 = vld [vmem:[#allocation2 + $0x231] sm:$0xff]
  %v363 = vld [vmem:[#allocation2 + $0x241] sm:$0xff]
  %v364 = vld [vmem:[#allocation2 + $0x249] sm:$0xff]
  %v365 = vld [vmem:[#allocation2 + $0x259] sm:$0xff]
  %v366 = vld [vmem:[#allocation2 + $0x261] sm:$0xff]
  %v367 = vld [vmem:[#allocation2 + $0x271] sm:$0xff]
  %v368 = vld [vmem:[#allocation2 + $0x279] sm:$0xff]
  %v369 = vld [vmem:[#allocation2 + $0x289] sm:$0xff]
  %v370 = vld [vmem:[#allocation2 + $0x291] sm:$0xff]
  %v371 = vld [vmem:[#allocation2 + $0x2a1] sm:$0xff]
  %v372 = vld [vmem:[#allocation2 + $0x2a9] sm:$0xff]
  %v373 = vld [vmem:[#allocation2 + $0x2b9] sm:$0xff]
  %v374 = vld [vmem:[#allocation2 + $0x2c1] sm:$0xff]
  %v375 = vld [vmem:[#allocation2 + $0x2d1] sm:$0xff]
  %v376 = vld [vmem:[#allocation2 + $0x2d9] sm:$0xff]
  %v377 = vld [vmem:[#allocation2 + $0x2e9] sm:$0xff]
  %v378 = vld [vmem:[#allocation2 + $0x2f1] sm:$0xff]
  %v379 = vld [vmem:[#allocation2 + $0x301] sm:$0xff]
  %v380 = vld [vmem:[#allocation2 + $0x309] sm:$0xff]
  %v381 = vld [vmem:[#allocation2 + $0x319] sm:$0xff]
  %v382 = vld [vmem:[#allocation2 + $0x321] sm:$0xff]
  %s383 = scalar_lea.vmem %s1, 4
  %v384 = vld [vmem:[%s383] sm:$0xf]
  %v386 = vsel %vm14, %v319, 0
  %v389 = vsel %vm14, %v320, 0
  %v392 = vsel %vm14, %v321, 0
  %v395 = vsel %vm14, %v322, 0
  %v398 = vsel %vm14, %v323, 0
  %v401 = vsel %vm14, %v324, 0
  %v404 = vsel %vm14, %v325, 0
  %v407 = vsel %vm14, %v326, 0
  %v410 = vsel %vm14, %v327, 0
  %v413 = vsel %vm14, %v328, 0
  %v416 = vsel %vm14, %v329, 0
  %v419 = vsel %vm14, %v330, 0
  %v422 = vsel %vm14, %v331, 0
  %v425 = vsel %vm14, %v332, 0
  %v428 = vsel %vm14, %v333, 0
  %v431 = vsel %vm14, %v334, 0
  %v434 = vsel %vm14, %v335, 0
  %v437 = vsel %vm14, %v336, 0
  %v440 = vsel %vm14, %v337, 0
  %v443 = vsel %vm14, %v338, 0
  %v446 = vsel %vm14, %v339, 0
  %v449 = vsel %vm14, %v340, 0
  %v452 = vsel %vm14, %v341, 0
  %v455 = vsel %vm14, %v342, 0
  %v458 = vsel %vm14, %v343, 0
  %v461 = vsel %vm14, %v344, 0
  %v464 = vsel %vm14, %v345, 0
  %v467 = vsel %vm14, %v346, 0
  %v470 = vsel %vm14, %v347, 0
  %v473 = vsel %vm14, %v348, 0
  %v476 = vsel %vm14, %v349, 0
  %v479 = vsel %vm14, %v350, 0
  %v482 = vsel %vm14, %v351, 0
  %v485 = vsel %vm14, %v352, 0
  %v488 = vsel %vm14, %v353, 0
  %v491 = vsel %vm14, %v354, 0
  %v494 = vsel %vm14, %v355, 0
  %v497 = vsel %vm14, %v356, 0
  %v500 = vsel %vm14, %v357, 0
  %v503 = vsel %vm14, %v358, 0
  %v506 = vsel %vm14, %v359, 0
  %v509 = vsel %vm14, %v360, 0
  %v512 = vsel %vm14, %v361, 0
  %v515 = vsel %vm14, %v362, 0
  %v518 = vsel %vm14, %v363, 0
  %v521 = vsel %vm14, %v364, 0
  %v524 = vsel %vm14, %v365, 0
  %v527 = vsel %vm14, %v366, 0
  %v530 = vsel %vm14, %v367, 0
  %v533 = vsel %vm14, %v368, 0
  %v536 = vsel %vm14, %v369, 0
  %v539 = vsel %vm14, %v370, 0
  %v542 = vsel %vm14, %v371, 0
  %v545 = vsel %vm14, %v372, 0
  %v548 = vsel %vm14, %v373, 0
  %v551 = vsel %vm14, %v374, 0
  %v554 = vsel %vm14, %v375, 0
  %v557 = vsel %vm14, %v376, 0
  %v560 = vsel %vm14, %v377, 0
  %v563 = vsel %vm14, %v378, 0
  %v566 = vsel %vm14, %v379, 0
  %v569 = vsel %vm14, %v380, 0
  %v572 = vsel %vm14, %v381, 0
  %v575 = vsel %vm14, %v382, 0
  %vm577 = vcmask 1043456
  %v579 = vsel %vm577, %v384, 0
  %581 = vmatprep.subr.mxu0 0.0
  %582 = vmatpush1.msra.mxu0 0.0
  %583 = vmatprep.subr.mxu0 0.0
  %584 = vmatpush1.msra.mxu0 0.0
  %585 = vmatprep.subr.mxu0 0.0
  %586 = vmatpush1.msra.mxu0 0.0
  %587 = vmatprep.subr.mxu0 0.0
  %588 = vmatpush1.msra.mxu0 0.0
  %589 = vmatprep.subr.mxu0 0.0
  %590 = vmatpush1.msra.mxu0 0.0
  %591 = vmatprep.subr.mxu0 0.0
  %592 = vmatpush1.msra.mxu0 0.0
  %593 = vmatprep.subr.mxu0 0.0
  %594 = vmatpush1.msra.mxu0 0.0
  %595 = vmatprep.subr.mxu0 0.0
  %596 = vmatpush1.msra.mxu0 0.0
  %597 = vmatprep.subr.mxu0 0.0
  %598 = vmatpush1.msra.mxu0 0.0
  %599 = vmatprep.subr.mxu0 0.0
  %600 = vmatpush1.msra.mxu0 0.0
  %601 = vmatprep.subr.mxu0 0.0
  %602 = vmatpush1.msra.mxu0 0.0
  %603 = vmatprep.subr.mxu0 0.0
  %604 = vmatpush1.msra.mxu0 0.0
  %605 = vmatprep.subr.mxu0 0.0
  %606 = vmatpush1.msra.mxu0 0.0
  %607 = vmatprep.subr.mxu0 0.0
  %608 = vmatpush1.msra.mxu0 0.0
  %609 = vmatprep.subr.mxu0 0.0
  %610 = vmatpush1.msra.mxu0 0.0
  %611 = vmatprep.subr.mxu0 0.0
  %612 = vmatpush1.msra.mxu0 %v579
  %613 = vmatprep.subr.mxu0 0.0
  %614 = vmatpush2.msra.mxu0 0.0
  %615 = vmatprep.subr.mxu0 0.0
  %616 = vmatpush2.msra.mxu0 0.0
  %617 = vmatprep.subr.mxu0 0.0
  %618 = vmatpush2.msra.mxu0 0.0
  %619 = vmatprep.subr.mxu0 0.0
  %620 = vmatpush2.msra.mxu0 0.0
  %621 = vmatprep.subr.mxu0 0.0
  %622 = vmatpush2.msra.mxu0 0.0
  %623 = vmatprep.subr.mxu0 0.0
  %624 = vmatpush2.msra.mxu0 0.0
  %625 = vmatprep.subr.mxu0 0.0
  %626 = vmatpush2.msra.mxu0 0.0
  %627 = vmatprep.subr.mxu0 0.0
  %628 = vmatpush2.msra.mxu0 0.0
  %629 = vmatprep.subr.mxu0 0.0
  %630 = vmatpush2.msra.mxu0 0.0
  %631 = vmatprep.subr.mxu0 0.0
  %632 = vmatpush2.msra.mxu0 0.0
  %633 = vmatprep.subr.mxu0 0.0
  %634 = vmatpush2.msra.mxu0 0.0
  %635 = vmatprep.subr.mxu0 0.0
  %636 = vmatpush2.msra.mxu0 0.0
  %637 = vmatprep.subr.mxu0 0.0
  %638 = vmatpush2.msra.mxu0 0.0
  %639 = vmatprep.subr.mxu0 0.0
  %640 = vmatpush2.msra.mxu0 0.0
  %641 = vmatprep.subr.mxu0 0.0
  %642 = vmatpush2.msra.mxu0 0.0
  %643 = vmatprep.subr.mxu0 0.0
  %644 = vmatpush2.msra.mxu0 0.0
  %645 = vmatprep.mubr.f32.mxu0 0.0
  %646 = vmatmul.mubr.f32.gmra.mxu0 %v386
  %v647 = vpop.f32.mrf.mxu0
  %v648 = vadd.f32 0.0, %v647
  %v649 = vpop.f32.mrf.mxu0
  %650 = vmatprep.mubr.f32.mxu0 0.0
  %651 = vmatmul.mubr.f32.gmra.mxu0 %v389
  %v652 = vpop.f32.mrf.mxu0
  %v653 = vadd.f32 0.0, %v652
  %v654 = vpop.f32.mrf.mxu0
  %655 = vmatprep.mubr.f32.mxu0 0.0
  %656 = vmatmul.mubr.f32.gmra.mxu0 %v392
  %v657 = vpop.f32.mrf.mxu0
  %v658 = vadd.f32 0.0, %v657
  %v659 = vpop.f32.mrf.mxu0
  %660 = vmatprep.mubr.f32.mxu0 0.0
  %661 = vmatmul.mubr.f32.gmra.mxu0 %v395
  %v662 = vpop.f32.mrf.mxu0
  %v663 = vadd.f32 0.0, %v662
  %v664 = vpop.f32.mrf.mxu0
  %665 = vmatprep.mubr.f32.mxu0 0.0
  %666 = vmatmul.mubr.f32.gmra.mxu0 %v398
  %v667 = vpop.f32.mrf.mxu0
  %v668 = vadd.f32 0.0, %v667
  %v669 = vpop.f32.mrf.mxu0
  %670 = vmatprep.mubr.f32.mxu0 0.0
  %671 = vmatmul.mubr.f32.gmra.mxu0 %v401
  %v672 = vpop.f32.mrf.mxu0
  %v673 = vadd.f32 0.0, %v672
  %v674 = vpop.f32.mrf.mxu0
  %675 = vmatprep.mubr.f32.mxu0 0.0
  %676 = vmatmul.mubr.f32.gmra.mxu0 %v404
  %v677 = vpop.f32.mrf.mxu0
  %v678 = vadd.f32 0.0, %v677
  %v679 = vpop.f32.mrf.mxu0
  %680 = vmatprep.mubr.f32.mxu0 0.0
  %681 = vmatmul.mubr.f32.gmra.mxu0 %v407
  %v682 = vpop.f32.mrf.mxu0
  %v683 = vadd.f32 0.0, %v682
  %v684 = vpop.f32.mrf.mxu0
  %685 = vmatprep.mubr.f32.mxu0 0.0
  %686 = vmatmul.mubr.f32.gmra.mxu0 %v410
  %v687 = vpop.f32.mrf.mxu0
  %v688 = vadd.f32 0.0, %v687
  %v689 = vpop.f32.mrf.mxu0
  %690 = vmatprep.mubr.f32.mxu0 0.0
  %691 = vmatmul.mubr.f32.gmra.mxu0 %v413
  %v692 = vpop.f32.mrf.mxu0
  %v693 = vadd.f32 0.0, %v692
  %v694 = vpop.f32.mrf.mxu0
  %695 = vmatprep.mubr.f32.mxu0 0.0
  %696 = vmatmul.mubr.f32.gmra.mxu0 %v416
  %v697 = vpop.f32.mrf.mxu0
  %v698 = vadd.f32 0.0, %v697
  %v699 = vpop.f32.mrf.mxu0
  %700 = vmatprep.mubr.f32.mxu0 0.0
  %701 = vmatmul.mubr.f32.gmra.mxu0 %v419
  %v702 = vpop.f32.mrf.mxu0
  %v703 = vadd.f32 0.0, %v702
  %v704 = vpop.f32.mrf.mxu0
  %705 = vmatprep.mubr.f32.mxu0 0.0
  %706 = vmatmul.mubr.f32.gmra.mxu0 %v422
  %v707 = vpop.f32.mrf.mxu0
  %v708 = vadd.f32 0.0, %v707
  %v709 = vpop.f32.mrf.mxu0
  %710 = vmatprep.mubr.f32.mxu0 0.0
  %711 = vmatmul.mubr.f32.gmra.mxu0 %v425
  %v712 = vpop.f32.mrf.mxu0
  %v713 = vadd.f32 0.0, %v712
  %v714 = vpop.f32.mrf.mxu0
  %715 = vmatprep.mubr.f32.mxu0 0.0
  %716 = vmatmul.mubr.f32.gmra.mxu0 %v428
  %v717 = vpop.f32.mrf.mxu0
  %v718 = vadd.f32 0.0, %v717
  %v719 = vpop.f32.mrf.mxu0
  %720 = vmatprep.mubr.f32.mxu0 0.0
  %721 = vmatmul.mubr.f32.gmra.mxu0 %v431
  %v722 = vpop.f32.mrf.mxu0
  %v723 = vadd.f32 0.0, %v722
  %v724 = vpop.f32.mrf.mxu0
  %725 = vmatprep.mubr.f32.mxu0 0.0
  %726 = vmatmul.mubr.f32.gmra.mxu0 %v434
  %v727 = vpop.f32.mrf.mxu0
  %v728 = vadd.f32 0.0, %v727
  %v729 = vpop.f32.mrf.mxu0
  %730 = vmatprep.mubr.f32.mxu0 0.0
  %731 = vmatmul.mubr.f32.gmra.mxu0 %v437
  %v732 = vpop.f32.mrf.mxu0
  %v733 = vadd.f32 0.0, %v732
  %v734 = vpop.f32.mrf.mxu0
  %735 = vmatprep.mubr.f32.mxu0 0.0
  %736 = vmatmul.mubr.f32.gmra.mxu0 %v440
  %v737 = vpop.f32.mrf.mxu0
  %v738 = vadd.f32 0.0, %v737
  %v739 = vpop.f32.mrf.mxu0
  %740 = vmatprep.mubr.f32.mxu0 0.0
  %741 = vmatmul.mubr.f32.gmra.mxu0 %v443
  %v742 = vpop.f32.mrf.mxu0
  %v743 = vadd.f32 0.0, %v742
  %v744 = vpop.f32.mrf.mxu0
  %745 = vmatprep.mubr.f32.mxu0 0.0
  %746 = vmatmul.mubr.f32.gmra.mxu0 %v446
  %v747 = vpop.f32.mrf.mxu0
  %v748 = vadd.f32 0.0, %v747
  %v749 = vpop.f32.mrf.mxu0
  %750 = vmatprep.mubr.f32.mxu0 0.0
  %751 = vmatmul.mubr.f32.gmra.mxu0 %v449
  %v752 = vpop.f32.mrf.mxu0
  %v753 = vadd.f32 0.0, %v752
  %v754 = vpop.f32.mrf.mxu0
  %755 = vmatprep.mubr.f32.mxu0 0.0
  %756 = vmatmul.mubr.f32.gmra.mxu0 %v452
  %v757 = vpop.f32.mrf.mxu0
  %v758 = vadd.f32 0.0, %v757
  %v759 = vpop.f32.mrf.mxu0
  %760 = vmatprep.mubr.f32.mxu0 0.0
  %761 = vmatmul.mubr.f32.gmra.mxu0 %v455
  %v762 = vpop.f32.mrf.mxu0
  %v763 = vadd.f32 0.0, %v762
  %v764 = vpop.f32.mrf.mxu0
  %765 = vmatprep.mubr.f32.mxu0 0.0
  %766 = vmatmul.mubr.f32.gmra.mxu0 %v458
  %v767 = vpop.f32.mrf.mxu0
  %v768 = vadd.f32 0.0, %v767
  %v769 = vpop.f32.mrf.mxu0
  %770 = vmatprep.mubr.f32.mxu0 0.0
  %771 = vmatmul.mubr.f32.gmra.mxu0 %v461
  %v772 = vpop.f32.mrf.mxu0
  %v773 = vadd.f32 0.0, %v772
  %v774 = vpop.f32.mrf.mxu0
  %775 = vmatprep.mubr.f32.mxu0 0.0
  %776 = vmatmul.mubr.f32.gmra.mxu0 %v464
  %v777 = vpop.f32.mrf.mxu0
  %v778 = vadd.f32 0.0, %v777
  %v779 = vpop.f32.mrf.mxu0
  %780 = vmatprep.mubr.f32.mxu0 0.0
  %781 = vmatmul.mubr.f32.gmra.mxu0 %v467
  %v782 = vpop.f32.mrf.mxu0
  %v783 = vadd.f32 0.0, %v782
  %v784 = vpop.f32.mrf.mxu0
  %785 = vmatprep.mubr.f32.mxu0 0.0
  %786 = vmatmul.mubr.f32.gmra.mxu0 %v470
  %v787 = vpop.f32.mrf.mxu0
  %v788 = vadd.f32 0.0, %v787
  %v789 = vpop.f32.mrf.mxu0
  %790 = vmatprep.mubr.f32.mxu0 0.0
  %791 = vmatmul.mubr.f32.gmra.mxu0 %v473
  %v792 = vpop.f32.mrf.mxu0
  %v793 = vadd.f32 0.0, %v792
  %v794 = vpop.f32.mrf.mxu0
  %795 = vmatprep.mubr.f32.mxu0 0.0
  %796 = vmatmul.mubr.f32.gmra.mxu0 %v476
  %v797 = vpop.f32.mrf.mxu0
  %v798 = vadd.f32 0.0, %v797
  %v799 = vpop.f32.mrf.mxu0
  %800 = vmatprep.mubr.f32.mxu0 0.0
  %801 = vmatmul.mubr.f32.gmra.mxu0 %v479
  %v802 = vpop.f32.mrf.mxu0
  %v803 = vadd.f32 0.0, %v802
  %v804 = vpop.f32.mrf.mxu0
  %805 = vmatprep.mubr.f32.mxu0 0.0
  %806 = vmatmul.mubr.f32.gmra.mxu0 %v482
  %v807 = vpop.f32.mrf.mxu0
  %v808 = vadd.f32 0.0, %v807
  %v809 = vpop.f32.mrf.mxu0
  %810 = vmatprep.mubr.f32.mxu0 0.0
  %811 = vmatmul.mubr.f32.gmra.mxu0 %v485
  %v812 = vpop.f32.mrf.mxu0
  %v813 = vadd.f32 0.0, %v812
  %v814 = vpop.f32.mrf.mxu0
  %815 = vmatprep.mubr.f32.mxu0 0.0
  %816 = vmatmul.mubr.f32.gmra.mxu0 %v488
  %v817 = vpop.f32.mrf.mxu0
  %v818 = vadd.f32 0.0, %v817
  %v819 = vpop.f32.mrf.mxu0
  %820 = vmatprep.mubr.f32.mxu0 0.0
  %821 = vmatmul.mubr.f32.gmra.mxu0 %v491
  %v822 = vpop.f32.mrf.mxu0
  %v823 = vadd.f32 0.0, %v822
  %v824 = vpop.f32.mrf.mxu0
  %825 = vmatprep.mubr.f32.mxu0 0.0
  %826 = vmatmul.mubr.f32.gmra.mxu0 %v494
  %v827 = vpop.f32.mrf.mxu0
  %v828 = vadd.f32 0.0, %v827
  %v829 = vpop.f32.mrf.mxu0
  %830 = vmatprep.mubr.f32.mxu0 0.0
  %831 = vmatmul.mubr.f32.gmra.mxu0 %v497
  %v832 = vpop.f32.mrf.mxu0
  %v833 = vadd.f32 0.0, %v832
  %v834 = vpop.f32.mrf.mxu0
  %835 = vmatprep.mubr.f32.mxu0 0.0
  %836 = vmatmul.mubr.f32.gmra.mxu0 %v500
  %v837 = vpop.f32.mrf.mxu0
  %v838 = vadd.f32 0.0, %v837
  %v839 = vpop.f32.mrf.mxu0
  %840 = vmatprep.mubr.f32.mxu0 0.0
  %841 = vmatmul.mubr.f32.gmra.mxu0 %v503
  %v842 = vpop.f32.mrf.mxu0
  %v843 = vadd.f32 0.0, %v842
  %v844 = vpop.f32.mrf.mxu0
  %845 = vmatprep.mubr.f32.mxu0 0.0
  %846 = vmatmul.mubr.f32.gmra.mxu0 %v506
  %v847 = vpop.f32.mrf.mxu0
  %v848 = vadd.f32 0.0, %v847
  %v849 = vpop.f32.mrf.mxu0
  %850 = vmatprep.mubr.f32.mxu0 0.0
  %851 = vmatmul.mubr.f32.gmra.mxu0 %v509
  %v852 = vpop.f32.mrf.mxu0
  %v853 = vadd.f32 0.0, %v852
  %v854 = vpop.f32.mrf.mxu0
  %855 = vmatprep.mubr.f32.mxu0 0.0
  %856 = vmatmul.mubr.f32.gmra.mxu0 %v512
  %v857 = vpop.f32.mrf.mxu0
  %v858 = vadd.f32 0.0, %v857
  %v859 = vpop.f32.mrf.mxu0
  %860 = vmatprep.mubr.f32.mxu0 0.0
  %861 = vmatmul.mubr.f32.gmra.mxu0 %v515
  %v862 = vpop.f32.mrf.mxu0
  %v863 = vadd.f32 0.0, %v862
  %v864 = vpop.f32.mrf.mxu0
  %865 = vmatprep.mubr.f32.mxu0 0.0
  %866 = vmatmul.mubr.f32.gmra.mxu0 %v518
  %v867 = vpop.f32.mrf.mxu0
  %v868 = vadd.f32 0.0, %v867
  %v869 = vpop.f32.mrf.mxu0
  %870 = vmatprep.mubr.f32.mxu0 0.0
  %871 = vmatmul.mubr.f32.gmra.mxu0 %v521
  %v872 = vpop.f32.mrf.mxu0
  %v873 = vadd.f32 0.0, %v872
  %v874 = vpop.f32.mrf.mxu0
  %875 = vmatprep.mubr.f32.mxu0 0.0
  %876 = vmatmul.mubr.f32.gmra.mxu0 %v524
  %v877 = vpop.f32.mrf.mxu0
  %v878 = vadd.f32 0.0, %v877
  %v879 = vpop.f32.mrf.mxu0
  %880 = vmatprep.mubr.f32.mxu0 0.0
  %881 = vmatmul.mubr.f32.gmra.mxu0 %v527
  %v882 = vpop.f32.mrf.mxu0
  %v883 = vadd.f32 0.0, %v882
  %v884 = vpop.f32.mrf.mxu0
  %885 = vmatprep.mubr.f32.mxu0 0.0
  %886 = vmatmul.mubr.f32.gmra.mxu0 %v530
  %v887 = vpop.f32.mrf.mxu0
  %v888 = vadd.f32 0.0, %v887
  %v889 = vpop.f32.mrf.mxu0
  %890 = vmatprep.mubr.f32.mxu0 0.0
  %891 = vmatmul.mubr.f32.gmra.mxu0 %v533
  %v892 = vpop.f32.mrf.mxu0
  %v893 = vadd.f32 0.0, %v892
  %v894 = vpop.f32.mrf.mxu0
  %895 = vmatprep.mubr.f32.mxu0 0.0
  %896 = vmatmul.mubr.f32.gmra.mxu0 %v536
  %v897 = vpop.f32.mrf.mxu0
  %v898 = vadd.f32 0.0, %v897
  %v899 = vpop.f32.mrf.mxu0
  %900 = vmatprep.mubr.f32.mxu0 0.0
  %901 = vmatmul.mubr.f32.gmra.mxu0 %v539
  %v902 = vpop.f32.mrf.mxu0
  %v903 = vadd.f32 0.0, %v902
  %v904 = vpop.f32.mrf.mxu0
  %905 = vmatprep.mubr.f32.mxu0 0.0
  %906 = vmatmul.mubr.f32.gmra.mxu0 %v542
  %v907 = vpop.f32.mrf.mxu0
  %v908 = vadd.f32 0.0, %v907
  %v909 = vpop.f32.mrf.mxu0
  %910 = vmatprep.mubr.f32.mxu0 0.0
  %911 = vmatmul.mubr.f32.gmra.mxu0 %v545
  %v912 = vpop.f32.mrf.mxu0
  %v913 = vadd.f32 0.0, %v912
  %v914 = vpop.f32.mrf.mxu0
  %915 = vmatprep.mubr.f32.mxu0 0.0
  %916 = vmatmul.mubr.f32.gmra.mxu0 %v548
  %v917 = vpop.f32.mrf.mxu0
  %v918 = vadd.f32 0.0, %v917
  %v919 = vpop.f32.mrf.mxu0
  %920 = vmatprep.mubr.f32.mxu0 0.0
  %921 = vmatmul.mubr.f32.gmra.mxu0 %v551
  %v922 = vpop.f32.mrf.mxu0
  %v923 = vadd.f32 0.0, %v922
  %v924 = vpop.f32.mrf.mxu0
  %925 = vmatprep.mubr.f32.mxu0 0.0
  %926 = vmatmul.mubr.f32.gmra.mxu0 %v554
  %v927 = vpop.f32.mrf.mxu0
  %v928 = vadd.f32 0.0, %v927
  %v929 = vpop.f32.mrf.mxu0
  %930 = vmatprep.mubr.f32.mxu0 0.0
  %931 = vmatmul.mubr.f32.gmra.mxu0 %v557
  %v932 = vpop.f32.mrf.mxu0
  %v933 = vadd.f32 0.0, %v932
  %v934 = vpop.f32.mrf.mxu0
  %935 = vmatprep.mubr.f32.mxu0 0.0
  %936 = vmatmul.mubr.f32.gmra.mxu0 %v560
  %v937 = vpop.f32.mrf.mxu0
  %v938 = vadd.f32 0.0, %v937
  %v939 = vpop.f32.mrf.mxu0
  %940 = vmatprep.mubr.f32.mxu0 0.0
  %941 = vmatmul.mubr.f32.gmra.mxu0 %v563
  %v942 = vpop.f32.mrf.mxu0
  %v943 = vadd.f32 0.0, %v942
  %v944 = vpop.f32.mrf.mxu0
  %945 = vmatprep.mubr.f32.mxu0 0.0
  %946 = vmatmul.mubr.f32.gmra.mxu0 %v566
  %v947 = vpop.f32.mrf.mxu0
  %v948 = vadd.f32 0.0, %v947
  %v949 = vpop.f32.mrf.mxu0
  %950 = vmatprep.mubr.f32.mxu0 0.0
  %951 = vmatmul.mubr.f32.gmra.mxu0 %v569
  %v952 = vpop.f32.mrf.mxu0
  %v953 = vadd.f32 0.0, %v952
  %v954 = vpop.f32.mrf.mxu0
  %955 = vmatprep.mubr.f32.mxu0 0.0
  %956 = vmatmul.mubr.f32.gmra.mxu0 %v572
  %v957 = vpop.f32.mrf.mxu0
  %v958 = vadd.f32 0.0, %v957
  %v959 = vpop.f32.mrf.mxu0
  %960 = vmatprep.mubr.f32.mxu0 0.0
  %961 = vmatmul.mubr.f32.gmra.mxu0 %v575
  %v962 = vpop.f32.mrf.mxu0
  %v963 = vadd.f32 0.0, %v962
  %v964 = vpop.f32.mrf.mxu0
  %965 = vdwg.mxu0
  %v967 = vsel %vm14, %v254, 0
  %v970 = vsel %vm14, %v255, 0
  %v973 = vsel %vm14, %v256, 0
  %v976 = vsel %vm14, %v257, 0
  %v979 = vsel %vm14, %v258, 0
  %v982 = vsel %vm14, %v259, 0
  %v985 = vsel %vm14, %v260, 0
  %v988 = vsel %vm14, %v261, 0
  %v991 = vsel %vm14, %v262, 0
  %v994 = vsel %vm14, %v263, 0
  %v997 = vsel %vm14, %v264, 0
  %v1000 = vsel %vm14, %v265, 0
  %v1003 = vsel %vm14, %v266, 0
  %v1006 = vsel %vm14, %v267, 0
  %v1009 = vsel %vm14, %v268, 0
  %v1012 = vsel %vm14, %v269, 0
  %v1015 = vsel %vm14, %v270, 0
  %v1018 = vsel %vm14, %v271, 0
  %v1021 = vsel %vm14, %v272, 0
  %v1024 = vsel %vm14, %v273, 0
  %v1027 = vsel %vm14, %v274, 0
  %v1030 = vsel %vm14, %v275, 0
  %v1033 = vsel %vm14, %v276, 0
  %v1036 = vsel %vm14, %v277, 0
  %v1039 = vsel %vm14, %v278, 0
  %v1042 = vsel %vm14, %v279, 0
  %v1045 = vsel %vm14, %v280, 0
  %v1048 = vsel %vm14, %v281, 0
  %v1051 = vsel %vm14, %v282, 0
  %v1054 = vsel %vm14, %v283, 0
  %v1057 = vsel %vm14, %v284, 0
  %v1060 = vsel %vm14, %v285, 0
  %v1063 = vsel %vm14, %v286, 0
  %v1066 = vsel %vm14, %v287, 0
  %v1069 = vsel %vm14, %v288, 0
  %v1072 = vsel %vm14, %v289, 0
  %v1075 = vsel %vm14, %v290, 0
  %v1078 = vsel %vm14, %v291, 0
  %v1081 = vsel %vm14, %v292, 0
  %v1084 = vsel %vm14, %v293, 0
  %v1087 = vsel %vm14, %v294, 0
  %v1090 = vsel %vm14, %v295, 0
  %v1093 = vsel %vm14, %v296, 0
  %v1096 = vsel %vm14, %v297, 0
  %v1099 = vsel %vm14, %v298, 0
  %v1102 = vsel %vm14, %v299, 0
  %v1105 = vsel %vm14, %v300, 0
  %v1108 = vsel %vm14, %v301, 0
  %v1111 = vsel %vm14, %v302, 0
  %v1114 = vsel %vm14, %v303, 0
  %v1117 = vsel %vm14, %v304, 0
  %v1120 = vsel %vm14, %v305, 0
  %v1123 = vsel %vm14, %v306, 0
  %v1126 = vsel %vm14, %v307, 0
  %v1129 = vsel %vm14, %v308, 0
  %v1132 = vsel %vm14, %v309, 0
  %v1135 = vsel %vm14, %v310, 0
  %v1138 = vsel %vm14, %v311, 0
  %v1141 = vsel %vm14, %v312, 0
  %v1144 = vsel %vm14, %v313, 0
  %v1147 = vsel %vm14, %v314, 0
  %v1150 = vsel %vm14, %v315, 0
  %v1153 = vsel %vm14, %v316, 0
  %v1156 = vsel %vm14, %v317, 0
  %v1159 = vsel %vm577, %v318, 0
  %1161 = vmatprep.subr.mxu0 0.0
  %1162 = vmatpush1.msra.mxu0 0.0
  %1163 = vmatprep.subr.mxu0 0.0
  %1164 = vmatpush1.msra.mxu0 0.0
  %1165 = vmatprep.subr.mxu0 0.0
  %1166 = vmatpush1.msra.mxu0 0.0
  %1167 = vmatprep.subr.mxu0 0.0
  %1168 = vmatpush1.msra.mxu0 0.0
  %1169 = vmatprep.subr.mxu0 0.0
  %1170 = vmatpush1.msra.mxu0 0.0
  %1171 = vmatprep.subr.mxu0 0.0
  %1172 = vmatpush1.msra.mxu0 0.0
  %1173 = vmatprep.subr.mxu0 0.0
  %1174 = vmatpush1.msra.mxu0 0.0
  %1175 = vmatprep.subr.mxu0 0.0
  %1176 = vmatpush1.msra.mxu0 0.0
  %1177 = vmatprep.subr.mxu0 0.0
  %1178 = vmatpush1.msra.mxu0 0.0
  %1179 = vmatprep.subr.mxu0 0.0
  %1180 = vmatpush1.msra.mxu0 0.0
  %1181 = vmatprep.subr.mxu0 0.0
  %1182 = vmatpush1.msra.mxu0 0.0
  %1183 = vmatprep.subr.mxu0 0.0
  %1184 = vmatpush1.msra.mxu0 0.0
  %1185 = vmatprep.subr.mxu0 0.0
  %1186 = vmatpush1.msra.mxu0 0.0
  %1187 = vmatprep.subr.mxu0 0.0
  %1188 = vmatpush1.msra.mxu0 0.0
  %1189 = vmatprep.subr.mxu0 0.0
  %1190 = vmatpush1.msra.mxu0 0.0
  %1191 = vmatprep.subr.mxu0 0.0
  %1192 = vmatpush1.msra.mxu0 %v1159
  %1193 = vmatprep.subr.mxu0 0.0
  %1194 = vmatpush2.msra.mxu0 0.0
  %1195 = vmatprep.subr.mxu0 0.0
  %1196 = vmatpush2.msra.mxu0 0.0
  %1197 = vmatprep.subr.mxu0 0.0
  %1198 = vmatpush2.msra.mxu0 0.0
  %1199 = vmatprep.subr.mxu0 0.0
  %1200 = vmatpush2.msra.mxu0 0.0
  %1201 = vmatprep.subr.mxu0 0.0
  %1202 = vmatpush2.msra.mxu0 0.0
  %1203 = vmatprep.subr.mxu0 0.0
  %1204 = vmatpush2.msra.mxu0 0.0
  %1205 = vmatprep.subr.mxu0 0.0
  %1206 = vmatpush2.msra.mxu0 0.0
  %1207 = vmatprep.subr.mxu0 0.0
  %1208 = vmatpush2.msra.mxu0 0.0
  %1209 = vmatprep.subr.mxu0 0.0
  %1210 = vmatpush2.msra.mxu0 0.0
  %1211 = vmatprep.subr.mxu0 0.0
  %1212 = vmatpush2.msra.mxu0 0.0
  %1213 = vmatprep.subr.mxu0 0.0
  %1214 = vmatpush2.msra.mxu0 0.0
  %1215 = vmatprep.subr.mxu0 0.0
  %1216 = vmatpush2.msra.mxu0 0.0
  %1217 = vmatprep.subr.mxu0 0.0
  %1218 = vmatpush2.msra.mxu0 0.0
  %1219 = vmatprep.subr.mxu0 0.0
  %1220 = vmatpush2.msra.mxu0 0.0
  %1221 = vmatprep.subr.mxu0 0.0
  %1222 = vmatpush2.msra.mxu0 0.0
  %1223 = vmatprep.subr.mxu0 0.0
  %1224 = vmatpush2.msra.mxu0 0.0
  %1225 = vmatprep.mubr.f32.mxu0 0.0
  %1226 = vmatmul.mubr.f32.gmra.mxu0 %v967
  %v1227 = vpop.f32.mrf.mxu0
  %v1228 = vadd.f32 %v648, %v1227
  %v1229 = vpop.f32.mrf.mxu0
  %1230 = vmatprep.mubr.f32.mxu0 0.0
  %1231 = vmatmul.mubr.f32.gmra.mxu0 %v970
  %v1232 = vpop.f32.mrf.mxu0
  %v1233 = vadd.f32 %v653, %v1232
  %v1234 = vpop.f32.mrf.mxu0
  %1235 = vmatprep.mubr.f32.mxu0 0.0
  %1236 = vmatmul.mubr.f32.gmra.mxu0 %v973
  %v1237 = vpop.f32.mrf.mxu0
  %v1238 = vadd.f32 %v658, %v1237
  %v1239 = vpop.f32.mrf.mxu0
  %1240 = vmatprep.mubr.f32.mxu0 0.0
  %1241 = vmatmul.mubr.f32.gmra.mxu0 %v976
  %v1242 = vpop.f32.mrf.mxu0
  %v1243 = vadd.f32 %v663, %v1242
  %v1244 = vpop.f32.mrf.mxu0
  %1245 = vmatprep.mubr.f32.mxu0 0.0
  %1246 = vmatmul.mubr.f32.gmra.mxu0 %v979
  %v1247 = vpop.f32.mrf.mxu0
  %v1248 = vadd.f32 %v668, %v1247
  %v1249 = vpop.f32.mrf.mxu0
  %1250 = vmatprep.mubr.f32.mxu0 0.0
  %1251 = vmatmul.mubr.f32.gmra.mxu0 %v982
  %v1252 = vpop.f32.mrf.mxu0
  %v1253 = vadd.f32 %v673, %v1252
  %v1254 = vpop.f32.mrf.mxu0
  %1255 = vmatprep.mubr.f32.mxu0 0.0
  %1256 = vmatmul.mubr.f32.gmra.mxu0 %v985
  %v1257 = vpop.f32.mrf.mxu0
  %v1258 = vadd.f32 %v678, %v1257
  %v1259 = vpop.f32.mrf.mxu0
  %1260 = vmatprep.mubr.f32.mxu0 0.0
  %1261 = vmatmul.mubr.f32.gmra.mxu0 %v988
  %v1262 = vpop.f32.mrf.mxu0
  %v1263 = vadd.f32 %v683, %v1262
  %v1264 = vpop.f32.mrf.mxu0
  %1265 = vmatprep.mubr.f32.mxu0 0.0
  %1266 = vmatmul.mubr.f32.gmra.mxu0 %v991
  %v1267 = vpop.f32.mrf.mxu0
  %v1268 = vadd.f32 %v688, %v1267
  %v1269 = vpop.f32.mrf.mxu0
  %1270 = vmatprep.mubr.f32.mxu0 0.0
  %1271 = vmatmul.mubr.f32.gmra.mxu0 %v994
  %v1272 = vpop.f32.mrf.mxu0
  %v1273 = vadd.f32 %v693, %v1272
  %v1274 = vpop.f32.mrf.mxu0
  %1275 = vmatprep.mubr.f32.mxu0 0.0
  %1276 = vmatmul.mubr.f32.gmra.mxu0 %v997
  %v1277 = vpop.f32.mrf.mxu0
  %v1278 = vadd.f32 %v698, %v1277
  %v1279 = vpop.f32.mrf.mxu0
  %1280 = vmatprep.mubr.f32.mxu0 0.0
  %1281 = vmatmul.mubr.f32.gmra.mxu0 %v1000
  %v1282 = vpop.f32.mrf.mxu0
  %v1283 = vadd.f32 %v703, %v1282
  %v1284 = vpop.f32.mrf.mxu0
  %1285 = vmatprep.mubr.f32.mxu0 0.0
  %1286 = vmatmul.mubr.f32.gmra.mxu0 %v1003
  %v1287 = vpop.f32.mrf.mxu0
  %v1288 = vadd.f32 %v708, %v1287
  %v1289 = vpop.f32.mrf.mxu0
  %1290 = vmatprep.mubr.f32.mxu0 0.0
  %1291 = vmatmul.mubr.f32.gmra.mxu0 %v1006
  %v1292 = vpop.f32.mrf.mxu0
  %v1293 = vadd.f32 %v713, %v1292
  %v1294 = vpop.f32.mrf.mxu0
  %1295 = vmatprep.mubr.f32.mxu0 0.0
  %1296 = vmatmul.mubr.f32.gmra.mxu0 %v1009
  %v1297 = vpop.f32.mrf.mxu0
  %v1298 = vadd.f32 %v718, %v1297
  %v1299 = vpop.f32.mrf.mxu0
  %1300 = vmatprep.mubr.f32.mxu0 0.0
  %1301 = vmatmul.mubr.f32.gmra.mxu0 %v1012
  %v1302 = vpop.f32.mrf.mxu0
  %v1303 = vadd.f32 %v723, %v1302
  %v1304 = vpop.f32.mrf.mxu0
  %1305 = vmatprep.mubr.f32.mxu0 0.0
  %1306 = vmatmul.mubr.f32.gmra.mxu0 %v1015
  %v1307 = vpop.f32.mrf.mxu0
  %v1308 = vadd.f32 %v728, %v1307
  %v1309 = vpop.f32.mrf.mxu0
  %1310 = vmatprep.mubr.f32.mxu0 0.0
  %1311 = vmatmul.mubr.f32.gmra.mxu0 %v1018
  %v1312 = vpop.f32.mrf.mxu0
  %v1313 = vadd.f32 %v733, %v1312
  %v1314 = vpop.f32.mrf.mxu0
  %1315 = vmatprep.mubr.f32.mxu0 0.0
  %1316 = vmatmul.mubr.f32.gmra.mxu0 %v1021
  %v1317 = vpop.f32.mrf.mxu0
  %v1318 = vadd.f32 %v738, %v1317
  %v1319 = vpop.f32.mrf.mxu0
  %1320 = vmatprep.mubr.f32.mxu0 0.0
  %1321 = vmatmul.mubr.f32.gmra.mxu0 %v1024
  %v1322 = vpop.f32.mrf.mxu0
  %v1323 = vadd.f32 %v743, %v1322
  %v1324 = vpop.f32.mrf.mxu0
  %1325 = vmatprep.mubr.f32.mxu0 0.0
  %1326 = vmatmul.mubr.f32.gmra.mxu0 %v1027
  %v1327 = vpop.f32.mrf.mxu0
  %v1328 = vadd.f32 %v748, %v1327
  %v1329 = vpop.f32.mrf.mxu0
  %1330 = vmatprep.mubr.f32.mxu0 0.0
  %1331 = vmatmul.mubr.f32.gmra.mxu0 %v1030
  %v1332 = vpop.f32.mrf.mxu0
  %v1333 = vadd.f32 %v753, %v1332
  %v1334 = vpop.f32.mrf.mxu0
  %1335 = vmatprep.mubr.f32.mxu0 0.0
  %1336 = vmatmul.mubr.f32.gmra.mxu0 %v1033
  %v1337 = vpop.f32.mrf.mxu0
  %v1338 = vadd.f32 %v758, %v1337
  %v1339 = vpop.f32.mrf.mxu0
  %1340 = vmatprep.mubr.f32.mxu0 0.0
  %1341 = vmatmul.mubr.f32.gmra.mxu0 %v1036
  %v1342 = vpop.f32.mrf.mxu0
  %v1343 = vadd.f32 %v763, %v1342
  %v1344 = vpop.f32.mrf.mxu0
  %1345 = vmatprep.mubr.f32.mxu0 0.0
  %1346 = vmatmul.mubr.f32.gmra.mxu0 %v1039
  %v1347 = vpop.f32.mrf.mxu0
  %v1348 = vadd.f32 %v768, %v1347
  %v1349 = vpop.f32.mrf.mxu0
  %1350 = vmatprep.mubr.f32.mxu0 0.0
  %1351 = vmatmul.mubr.f32.gmra.mxu0 %v1042
  %v1352 = vpop.f32.mrf.mxu0
  %v1353 = vadd.f32 %v773, %v1352
  %v1354 = vpop.f32.mrf.mxu0
  %1355 = vmatprep.mubr.f32.mxu0 0.0
  %1356 = vmatmul.mubr.f32.gmra.mxu0 %v1045
  %v1357 = vpop.f32.mrf.mxu0
  %v1358 = vadd.f32 %v778, %v1357
  %v1359 = vpop.f32.mrf.mxu0
  %1360 = vmatprep.mubr.f32.mxu0 0.0
  %1361 = vmatmul.mubr.f32.gmra.mxu0 %v1048
  %v1362 = vpop.f32.mrf.mxu0
  %v1363 = vadd.f32 %v783, %v1362
  %v1364 = vpop.f32.mrf.mxu0
  %1365 = vmatprep.mubr.f32.mxu0 0.0
  %1366 = vmatmul.mubr.f32.gmra.mxu0 %v1051
  %v1367 = vpop.f32.mrf.mxu0
  %v1368 = vadd.f32 %v788, %v1367
  %v1369 = vpop.f32.mrf.mxu0
  %1370 = vmatprep.mubr.f32.mxu0 0.0
  %1371 = vmatmul.mubr.f32.gmra.mxu0 %v1054
  %v1372 = vpop.f32.mrf.mxu0
  %v1373 = vadd.f32 %v793, %v1372
  %v1374 = vpop.f32.mrf.mxu0
  %1375 = vmatprep.mubr.f32.mxu0 0.0
  %1376 = vmatmul.mubr.f32.gmra.mxu0 %v1057
  %v1377 = vpop.f32.mrf.mxu0
  %v1378 = vadd.f32 %v798, %v1377
  %v1379 = vpop.f32.mrf.mxu0
  %1380 = vmatprep.mubr.f32.mxu0 0.0
  %1381 = vmatmul.mubr.f32.gmra.mxu0 %v1060
  %v1382 = vpop.f32.mrf.mxu0
  %v1383 = vadd.f32 %v803, %v1382
  %v1384 = vpop.f32.mrf.mxu0
  %1385 = vmatprep.mubr.f32.mxu0 0.0
  %1386 = vmatmul.mubr.f32.gmra.mxu0 %v1063
  %v1387 = vpop.f32.mrf.mxu0
  %v1388 = vadd.f32 %v808, %v1387
  %v1389 = vpop.f32.mrf.mxu0
  %1390 = vmatprep.mubr.f32.mxu0 0.0
  %1391 = vmatmul.mubr.f32.gmra.mxu0 %v1066
  %v1392 = vpop.f32.mrf.mxu0
  %v1393 = vadd.f32 %v813, %v1392
  %v1394 = vpop.f32.mrf.mxu0
  %1395 = vmatprep.mubr.f32.mxu0 0.0
  %1396 = vmatmul.mubr.f32.gmra.mxu0 %v1069
  %v1397 = vpop.f32.mrf.mxu0
  %v1398 = vadd.f32 %v818, %v1397
  %v1399 = vpop.f32.mrf.mxu0
  %1400 = vmatprep.mubr.f32.mxu0 0.0
  %1401 = vmatmul.mubr.f32.gmra.mxu0 %v1072
  %v1402 = vpop.f32.mrf.mxu0
  %v1403 = vadd.f32 %v823, %v1402
  %v1404 = vpop.f32.mrf.mxu0
  %1405 = vmatprep.mubr.f32.mxu0 0.0
  %1406 = vmatmul.mubr.f32.gmra.mxu0 %v1075
  %v1407 = vpop.f32.mrf.mxu0
  %v1408 = vadd.f32 %v828, %v1407
  %v1409 = vpop.f32.mrf.mxu0
  %1410 = vmatprep.mubr.f32.mxu0 0.0
  %1411 = vmatmul.mubr.f32.gmra.mxu0 %v1078
  %v1412 = vpop.f32.mrf.mxu0
  %v1413 = vadd.f32 %v833, %v1412
  %v1414 = vpop.f32.mrf.mxu0
  %1415 = vmatprep.mubr.f32.mxu0 0.0
  %1416 = vmatmul.mubr.f32.gmra.mxu0 %v1081
  %v1417 = vpop.f32.mrf.mxu0
  %v1418 = vadd.f32 %v838, %v1417
  %v1419 = vpop.f32.mrf.mxu0
  %1420 = vmatprep.mubr.f32.mxu0 0.0
  %1421 = vmatmul.mubr.f32.gmra.mxu0 %v1084
  %v1422 = vpop.f32.mrf.mxu0
  %v1423 = vadd.f32 %v843, %v1422
  %v1424 = vpop.f32.mrf.mxu0
  %1425 = vmatprep.mubr.f32.mxu0 0.0
  %1426 = vmatmul.mubr.f32.gmra.mxu0 %v1087
  %v1427 = vpop.f32.mrf.mxu0
  %v1428 = vadd.f32 %v848, %v1427
  %v1429 = vpop.f32.mrf.mxu0
  %1430 = vmatprep.mubr.f32.mxu0 0.0
  %1431 = vmatmul.mubr.f32.gmra.mxu0 %v1090
  %v1432 = vpop.f32.mrf.mxu0
  %v1433 = vadd.f32 %v853, %v1432
  %v1434 = vpop.f32.mrf.mxu0
  %1435 = vmatprep.mubr.f32.mxu0 0.0
  %1436 = vmatmul.mubr.f32.gmra.mxu0 %v1093
  %v1437 = vpop.f32.mrf.mxu0
  %v1438 = vadd.f32 %v858, %v1437
  %v1439 = vpop.f32.mrf.mxu0
  %1440 = vmatprep.mubr.f32.mxu0 0.0
  %1441 = vmatmul.mubr.f32.gmra.mxu0 %v1096
  %v1442 = vpop.f32.mrf.mxu0
  %v1443 = vadd.f32 %v863, %v1442
  %v1444 = vpop.f32.mrf.mxu0
  %1445 = vmatprep.mubr.f32.mxu0 0.0
  %1446 = vmatmul.mubr.f32.gmra.mxu0 %v1099
  %v1447 = vpop.f32.mrf.mxu0
  %v1448 = vadd.f32 %v868, %v1447
  %v1449 = vpop.f32.mrf.mxu0
  %1450 = vmatprep.mubr.f32.mxu0 0.0
  %1451 = vmatmul.mubr.f32.gmra.mxu0 %v1102
  %v1452 = vpop.f32.mrf.mxu0
  %v1453 = vadd.f32 %v873, %v1452
  %v1454 = vpop.f32.mrf.mxu0
  %1455 = vmatprep.mubr.f32.mxu0 0.0
  %1456 = vmatmul.mubr.f32.gmra.mxu0 %v1105
  %v1457 = vpop.f32.mrf.mxu0
  %v1458 = vadd.f32 %v878, %v1457
  %v1459 = vpop.f32.mrf.mxu0
  %1460 = vmatprep.mubr.f32.mxu0 0.0
  %1461 = vmatmul.mubr.f32.gmra.mxu0 %v1108
  %v1462 = vpop.f32.mrf.mxu0
  %v1463 = vadd.f32 %v883, %v1462
  %v1464 = vpop.f32.mrf.mxu0
  %1465 = vmatprep.mubr.f32.mxu0 0.0
  %1466 = vmatmul.mubr.f32.gmra.mxu0 %v1111
  %v1467 = vpop.f32.mrf.mxu0
  %v1468 = vadd.f32 %v888, %v1467
  %v1469 = vpop.f32.mrf.mxu0
  %1470 = vmatprep.mubr.f32.mxu0 0.0
  %1471 = vmatmul.mubr.f32.gmra.mxu0 %v1114
  %v1472 = vpop.f32.mrf.mxu0
  %v1473 = vadd.f32 %v893, %v1472
  %v1474 = vpop.f32.mrf.mxu0
  %1475 = vmatprep.mubr.f32.mxu0 0.0
  %1476 = vmatmul.mubr.f32.gmra.mxu0 %v1117
  %v1477 = vpop.f32.mrf.mxu0
  %v1478 = vadd.f32 %v898, %v1477
  %v1479 = vpop.f32.mrf.mxu0
  %1480 = vmatprep.mubr.f32.mxu0 0.0
  %1481 = vmatmul.mubr.f32.gmra.mxu0 %v1120
  %v1482 = vpop.f32.mrf.mxu0
  %v1483 = vadd.f32 %v903, %v1482
  %v1484 = vpop.f32.mrf.mxu0
  %1485 = vmatprep.mubr.f32.mxu0 0.0
  %1486 = vmatmul.mubr.f32.gmra.mxu0 %v1123
  %v1487 = vpop.f32.mrf.mxu0
  %v1488 = vadd.f32 %v908, %v1487
  %v1489 = vpop.f32.mrf.mxu0
  %1490 = vmatprep.mubr.f32.mxu0 0.0
  %1491 = vmatmul.mubr.f32.gmra.mxu0 %v1126
  %v1492 = vpop.f32.mrf.mxu0
  %v1493 = vadd.f32 %v913, %v1492
  %v1494 = vpop.f32.mrf.mxu0
  %1495 = vmatprep.mubr.f32.mxu0 0.0
  %1496 = vmatmul.mubr.f32.gmra.mxu0 %v1129
  %v1497 = vpop.f32.mrf.mxu0
  %v1498 = vadd.f32 %v918, %v1497
  %v1499 = vpop.f32.mrf.mxu0
  %1500 = vmatprep.mubr.f32.mxu0 0.0
  %1501 = vmatmul.mubr.f32.gmra.mxu0 %v1132
  %v1502 = vpop.f32.mrf.mxu0
  %v1503 = vadd.f32 %v923, %v1502
  %v1504 = vpop.f32.mrf.mxu0
  %1505 = vmatprep.mubr.f32.mxu0 0.0
  %1506 = vmatmul.mubr.f32.gmra.mxu0 %v1135
  %v1507 = vpop.f32.mrf.mxu0
  %v1508 = vadd.f32 %v928, %v1507
  %v1509 = vpop.f32.mrf.mxu0
  %1510 = vmatprep.mubr.f32.mxu0 0.0
  %1511 = vmatmul.mubr.f32.gmra.mxu0 %v1138
  %v1512 = vpop.f32.mrf.mxu0
  %v1513 = vadd.f32 %v933, %v1512
  %v1514 = vpop.f32.mrf.mxu0
  %1515 = vmatprep.mubr.f32.mxu0 0.0
  %1516 = vmatmul.mubr.f32.gmra.mxu0 %v1141
  %v1517 = vpop.f32.mrf.mxu0
  %v1518 = vadd.f32 %v938, %v1517
  %v1519 = vpop.f32.mrf.mxu0
  %1520 = vmatprep.mubr.f32.mxu0 0.0
  %1521 = vmatmul.mubr.f32.gmra.mxu0 %v1144
  %v1522 = vpop.f32.mrf.mxu0
  %v1523 = vadd.f32 %v943, %v1522
  %v1524 = vpop.f32.mrf.mxu0
  %1525 = vmatprep.mubr.f32.mxu0 0.0
  %1526 = vmatmul.mubr.f32.gmra.mxu0 %v1147
  %v1527 = vpop.f32.mrf.mxu0
  %v1528 = vadd.f32 %v948, %v1527
  %v1529 = vpop.f32.mrf.mxu0
  %1530 = vmatprep.mubr.f32.mxu0 0.0
  %1531 = vmatmul.mubr.f32.gmra.mxu0 %v1150
  %v1532 = vpop.f32.mrf.mxu0
  %v1533 = vadd.f32 %v953, %v1532
  %v1534 = vpop.f32.mrf.mxu0
  %1535 = vmatprep.mubr.f32.mxu0 0.0
  %1536 = vmatmul.mubr.f32.gmra.mxu0 %v1153
  %v1537 = vpop.f32.mrf.mxu0
  %v1538 = vadd.f32 %v958, %v1537
  %v1539 = vpop.f32.mrf.mxu0
  %1540 = vmatprep.mubr.f32.mxu0 0.0
  %1541 = vmatmul.mubr.f32.gmra.mxu0 %v1156
  %v1542 = vpop.f32.mrf.mxu0
  %v1543 = vadd.f32 %v963, %v1542
  %v1544 = vpop.f32.mrf.mxu0
  %1545 = vdwg.mxu0
  %v1546 = vld [vmem:[#allocation2 + $0x2] sm:$0xff]
  %v1547 = vld [vmem:[#allocation2 + $0xa] sm:$0xff]
  %v1548 = vld [vmem:[#allocation2 + $0x1a] sm:$0xff]
  %v1549 = vld [vmem:[#allocation2 + $0x22] sm:$0xff]
  %v1550 = vld [vmem:[#allocation2 + $0x32] sm:$0xff]
  %v1551 = vld [vmem:[#allocation2 + $0x3a] sm:$0xff]
  %v1552 = vld [vmem:[#allocation2 + $0x4a] sm:$0xff]
  %v1553 = vld [vmem:[#allocation2 + $0x52] sm:$0xff]
  %v1554 = vld [vmem:[#allocation2 + $0x62] sm:$0xff]
  %v1555 = vld [vmem:[#allocation2 + $0x6a] sm:$0xff]
  %v1556 = vld [vmem:[#allocation2 + $0x7a] sm:$0xff]
  %v1557 = vld [vmem:[#allocation2 + $0x82] sm:$0xff]
  %v1558 = vld [vmem:[#allocation2 + $0x92] sm:$0xff]
  %v1559 = vld [vmem:[#allocation2 + $0x9a] sm:$0xff]
  %v1560 = vld [vmem:[#allocation2 + $0xaa] sm:$0xff]
  %v1561 = vld [vmem:[#allocation2 + $0xb2] sm:$0xff]
  %v1562 = vld [vmem:[#allocation2 + $0xc2] sm:$0xff]
  %v1563 = vld [vmem:[#allocation2 + $0xca] sm:$0xff]
  %v1564 = vld [vmem:[#allocation2 + $0xda] sm:$0xff]
  %v1565 = vld [vmem:[#allocation2 + $0xe2] sm:$0xff]
  %v1566 = vld [vmem:[#allocation2 + $0xf2] sm:$0xff]
  %v1567 = vld [vmem:[#allocation2 + $0xfa] sm:$0xff]
  %v1568 = vld [vmem:[#allocation2 + $0x10a] sm:$0xff]
  %v1569 = vld [vmem:[#allocation2 + $0x112] sm:$0xff]
  %v1570 = vld [vmem:[#allocation2 + $0x122] sm:$0xff]
  %v1571 = vld [vmem:[#allocation2 + $0x12a] sm:$0xff]
  %v1572 = vld [vmem:[#allocation2 + $0x13a] sm:$0xff]
  %v1573 = vld [vmem:[#allocation2 + $0x142] sm:$0xff]
  %v1574 = vld [vmem:[#allocation2 + $0x152] sm:$0xff]
  %v1575 = vld [vmem:[#allocation2 + $0x15a] sm:$0xff]
  %v1576 = vld [vmem:[#allocation2 + $0x16a] sm:$0xff]
  %v1577 = vld [vmem:[#allocation2 + $0x172] sm:$0xff]
  %v1578 = vld [vmem:[#allocation2 + $0x1b2] sm:$0xff]
  %v1579 = vld [vmem:[#allocation2 + $0x1ba] sm:$0xff]
  %v1580 = vld [vmem:[#allocation2 + $0x1ca] sm:$0xff]
  %v1581 = vld [vmem:[#allocation2 + $0x1d2] sm:$0xff]
  %v1582 = vld [vmem:[#allocation2 + $0x1e2] sm:$0xff]
  %v1583 = vld [vmem:[#allocation2 + $0x1ea] sm:$0xff]
  %v1584 = vld [vmem:[#allocation2 + $0x1fa] sm:$0xff]
  %v1585 = vld [vmem:[#allocation2 + $0x202] sm:$0xff]
  %v1586 = vld [vmem:[#allocation2 + $0x212] sm:$0xff]
  %v1587 = vld [vmem:[#allocation2 + $0x21a] sm:$0xff]
  %v1588 = vld [vmem:[#allocation2 + $0x22a] sm:$0xff]
  %v1589 = vld [vmem:[#allocation2 + $0x232] sm:$0xff]
  %v1590 = vld [vmem:[#allocation2 + $0x242] sm:$0xff]
  %v1591 = vld [vmem:[#allocation2 + $0x24a] sm:$0xff]
  %v1592 = vld [vmem:[#allocation2 + $0x25a] sm:$0xff]
  %v1593 = vld [vmem:[#allocation2 + $0x262] sm:$0xff]
  %v1594 = vld [vmem:[#allocation2 + $0x272] sm:$0xff]
  %v1595 = vld [vmem:[#allocation2 + $0x27a] sm:$0xff]
  %v1596 = vld [vmem:[#allocation2 + $0x28a] sm:$0xff]
  %v1597 = vld [vmem:[#allocation2 + $0x292] sm:$0xff]
  %v1598 = vld [vmem:[#allocation2 + $0x2a2] sm:$0xff]
  %v1599 = vld [vmem:[#allocation2 + $0x2aa] sm:$0xff]
  %v1600 = vld [vmem:[#allocation2 + $0x2ba] sm:$0xff]
  %v1601 = vld [vmem:[#allocation2 + $0x2c2] sm:$0xff]
  %v1602 = vld [vmem:[#allocation2 + $0x2d2] sm:$0xff]
  %v1603 = vld [vmem:[#allocation2 + $0x2da] sm:$0xff]
  %v1604 = vld [vmem:[#allocation2 + $0x2ea] sm:$0xff]
  %v1605 = vld [vmem:[#allocation2 + $0x2f2] sm:$0xff]
  %v1606 = vld [vmem:[#allocation2 + $0x302] sm:$0xff]
  %v1607 = vld [vmem:[#allocation2 + $0x30a] sm:$0xff]
  %v1608 = vld [vmem:[#allocation2 + $0x31a] sm:$0xff]
  %v1609 = vld [vmem:[#allocation2 + $0x322] sm:$0xff]
  %s1610 = scalar_lea.vmem %s1, 8
  %v1611 = vld [vmem:[%s1610] sm:$0xf]
  %v1613 = vsel %vm14, %v1546, 0
  %v1616 = vsel %vm14, %v1547, 0
  %v1619 = vsel %vm14, %v1548, 0
  %v1622 = vsel %vm14, %v1549, 0
  %v1625 = vsel %vm14, %v1550, 0
  %v1628 = vsel %vm14, %v1551, 0
  %v1631 = vsel %vm14, %v1552, 0
  %v1634 = vsel %vm14, %v1553, 0
  %v1637 = vsel %vm14, %v1554, 0
  %v1640 = vsel %vm14, %v1555, 0
  %v1643 = vsel %vm14, %v1556, 0
  %v1646 = vsel %vm14, %v1557, 0
  %v1649 = vsel %vm14, %v1558, 0
  %v1652 = vsel %vm14, %v1559, 0
  %v1655 = vsel %vm14, %v1560, 0
  %v1658 = vsel %vm14, %v1561, 0
  %v1661 = vsel %vm14, %v1562, 0
  %v1664 = vsel %vm14, %v1563, 0
  %v1667 = vsel %vm14, %v1564, 0
  %v1670 = vsel %vm14, %v1565, 0
  %v1673 = vsel %vm14, %v1566, 0
  %v1676 = vsel %vm14, %v1567, 0
  %v1679 = vsel %vm14, %v1568, 0
  %v1682 = vsel %vm14, %v1569, 0
  %v1685 = vsel %vm14, %v1570, 0
  %v1688 = vsel %vm14, %v1571, 0
  %v1691 = vsel %vm14, %v1572, 0
  %v1694 = vsel %vm14, %v1573, 0
  %v1697 = vsel %vm14, %v1574, 0
  %v1700 = vsel %vm14, %v1575, 0
  %v1703 = vsel %vm14, %v1576, 0
  %v1706 = vsel %vm14, %v1577, 0
  %v1709 = vsel %vm14, %v1578, 0
  %v1712 = vsel %vm14, %v1579, 0
  %v1715 = vsel %vm14, %v1580, 0
  %v1718 = vsel %vm14, %v1581, 0
  %v1721 = vsel %vm14, %v1582, 0
  %v1724 = vsel %vm14, %v1583, 0
  %v1727 = vsel %vm14, %v1584, 0
  %v1730 = vsel %vm14, %v1585, 0
  %v1733 = vsel %vm14, %v1586, 0
  %v1736 = vsel %vm14, %v1587, 0
  %v1739 = vsel %vm14, %v1588, 0
  %v1742 = vsel %vm14, %v1589, 0
  %v1745 = vsel %vm14, %v1590, 0
  %v1748 = vsel %vm14, %v1591, 0
  %v1751 = vsel %vm14, %v1592, 0
  %v1754 = vsel %vm14, %v1593, 0
  %v1757 = vsel %vm14, %v1594, 0
  %v1760 = vsel %vm14, %v1595, 0
  %v1763 = vsel %vm14, %v1596, 0
  %v1766 = vsel %vm14, %v1597, 0
  %v1769 = vsel %vm14, %v1598, 0
  %v1772 = vsel %vm14, %v1599, 0
  %v1775 = vsel %vm14, %v1600, 0
  %v1778 = vsel %vm14, %v1601, 0
  %v1781 = vsel %vm14, %v1602, 0
  %v1784 = vsel %vm14, %v1603, 0
  %v1787 = vsel %vm14, %v1604, 0
  %v1790 = vsel %vm14, %v1605, 0
  %v1793 = vsel %vm14, %v1606, 0
  %v1796 = vsel %vm14, %v1607, 0
  %v1799 = vsel %vm14, %v1608, 0
  %v1802 = vsel %vm14, %v1609, 0
  %v1805 = vsel %vm577, %v1611, 0
  %1807 = vmatprep.subr.mxu0 0.0
  %1808 = vmatpush1.msra.mxu0 0.0
  %1809 = vmatprep.subr.mxu0 0.0
  %1810 = vmatpush1.msra.mxu0 0.0
  %1811 = vmatprep.subr.mxu0 0.0
  %1812 = vmatpush1.msra.mxu0 0.0
  %1813 = vmatprep.subr.mxu0 0.0
  %1814 = vmatpush1.msra.mxu0 0.0
  %1815 = vmatprep.subr.mxu0 0.0
  %1816 = vmatpush1.msra.mxu0 0.0
  %1817 = vmatprep.subr.mxu0 0.0
  %1818 = vmatpush1.msra.mxu0 0.0
  %1819 = vmatprep.subr.mxu0 0.0
  %1820 = vmatpush1.msra.mxu0 0.0
  %1821 = vmatprep.subr.mxu0 0.0
  %1822 = vmatpush1.msra.mxu0 0.0
  %1823 = vmatprep.subr.mxu0 0.0
  %1824 = vmatpush1.msra.mxu0 0.0
  %1825 = vmatprep.subr.mxu0 0.0
  %1826 = vmatpush1.msra.mxu0 0.0
  %1827 = vmatprep.subr.mxu0 0.0
  %1828 = vmatpush1.msra.mxu0 0.0
  %1829 = vmatprep.subr.mxu0 0.0
  %1830 = vmatpush1.msra.mxu0 0.0
  %1831 = vmatprep.subr.mxu0 0.0
  %1832 = vmatpush1.msra.mxu0 0.0
  %1833 = vmatprep.subr.mxu0 0.0
  %1834 = vmatpush1.msra.mxu0 0.0
  %1835 = vmatprep.subr.mxu0 0.0
  %1836 = vmatpush1.msra.mxu0 0.0
  %1837 = vmatprep.subr.mxu0 0.0
  %1838 = vmatpush1.msra.mxu0 %v1805
  %1839 = vmatprep.subr.mxu0 0.0
  %1840 = vmatpush2.msra.mxu0 0.0
  %1841 = vmatprep.subr.mxu0 0.0
  %1842 = vmatpush2.msra.mxu0 0.0
  %1843 = vmatprep.subr.mxu0 0.0
  %1844 = vmatpush2.msra.mxu0 0.0
  %1845 = vmatprep.subr.mxu0 0.0
  %1846 = vmatpush2.msra.mxu0 0.0
  %1847 = vmatprep.subr.mxu0 0.0
  %1848 = vmatpush2.msra.mxu0 0.0
  %1849 = vmatprep.subr.mxu0 0.0
  %1850 = vmatpush2.msra.mxu0 0.0
  %1851 = vmatprep.subr.mxu0 0.0
  %1852 = vmatpush2.msra.mxu0 0.0
  %1853 = vmatprep.subr.mxu0 0.0
  %1854 = vmatpush2.msra.mxu0 0.0
  %1855 = vmatprep.subr.mxu0 0.0
  %1856 = vmatpush2.msra.mxu0 0.0
  %1857 = vmatprep.subr.mxu0 0.0
  %1858 = vmatpush2.msra.mxu0 0.0
  %1859 = vmatprep.subr.mxu0 0.0
  %1860 = vmatpush2.msra.mxu0 0.0
  %1861 = vmatprep.subr.mxu0 0.0
  %1862 = vmatpush2.msra.mxu0 0.0
  %1863 = vmatprep.subr.mxu0 0.0
  %1864 = vmatpush2.msra.mxu0 0.0
  %1865 = vmatprep.subr.mxu0 0.0
  %1866 = vmatpush2.msra.mxu0 0.0
  %1867 = vmatprep.subr.mxu0 0.0
  %1868 = vmatpush2.msra.mxu0 0.0
  %1869 = vmatprep.subr.mxu0 0.0
  %1870 = vmatpush2.msra.mxu0 0.0
  %1871 = vmatprep.mubr.f32.mxu0 0.0
  %1872 = vmatmul.mubr.f32.gmra.mxu0 %v1613
  %v1873 = vpop.f32.mrf.mxu0
  %v1874 = vadd.f32 0.0, %v1873
  %v1875 = vpop.f32.mrf.mxu0
  %1876 = vmatprep.mubr.f32.mxu0 0.0
  %1877 = vmatmul.mubr.f32.gmra.mxu0 %v1616
  %v1878 = vpop.f32.mrf.mxu0
  %v1879 = vadd.f32 0.0, %v1878
  %v1880 = vpop.f32.mrf.mxu0
  %1881 = vmatprep.mubr.f32.mxu0 0.0
  %1882 = vmatmul.mubr.f32.gmra.mxu0 %v1619
  %v1883 = vpop.f32.mrf.mxu0
  %v1884 = vadd.f32 0.0, %v1883
  %v1885 = vpop.f32.mrf.mxu0
  %1886 = vmatprep.mubr.f32.mxu0 0.0
  %1887 = vmatmul.mubr.f32.gmra.mxu0 %v1622
  %v1888 = vpop.f32.mrf.mxu0
  %v1889 = vadd.f32 0.0, %v1888
  %v1890 = vpop.f32.mrf.mxu0
  %1891 = vmatprep.mubr.f32.mxu0 0.0
  %1892 = vmatmul.mubr.f32.gmra.mxu0 %v1625
  %v1893 = vpop.f32.mrf.mxu0
  %v1894 = vadd.f32 0.0, %v1893
  %v1895 = vpop.f32.mrf.mxu0
  %1896 = vmatprep.mubr.f32.mxu0 0.0
  %1897 = vmatmul.mubr.f32.gmra.mxu0 %v1628
  %v1898 = vpop.f32.mrf.mxu0
  %v1899 = vadd.f32 0.0, %v1898
  %v1900 = vpop.f32.mrf.mxu0
  %1901 = vmatprep.mubr.f32.mxu0 0.0
  %1902 = vmatmul.mubr.f32.gmra.mxu0 %v1631
  %v1903 = vpop.f32.mrf.mxu0
  %v1904 = vadd.f32 0.0, %v1903
  %v1905 = vpop.f32.mrf.mxu0
  %1906 = vmatprep.mubr.f32.mxu0 0.0
  %1907 = vmatmul.mubr.f32.gmra.mxu0 %v1634
  %v1908 = vpop.f32.mrf.mxu0
  %v1909 = vadd.f32 0.0, %v1908
  %v1910 = vpop.f32.mrf.mxu0
  %1911 = vmatprep.mubr.f32.mxu0 0.0
  %1912 = vmatmul.mubr.f32.gmra.mxu0 %v1637
  %v1913 = vpop.f32.mrf.mxu0
  %v1914 = vadd.f32 0.0, %v1913
  %v1915 = vpop.f32.mrf.mxu0
  %1916 = vmatprep.mubr.f32.mxu0 0.0
  %1917 = vmatmul.mubr.f32.gmra.mxu0 %v1640
  %v1918 = vpop.f32.mrf.mxu0
  %v1919 = vadd.f32 0.0, %v1918
  %v1920 = vpop.f32.mrf.mxu0
  %1921 = vmatprep.mubr.f32.mxu0 0.0
  %1922 = vmatmul.mubr.f32.gmra.mxu0 %v1643
  %v1923 = vpop.f32.mrf.mxu0
  %v1924 = vadd.f32 0.0, %v1923
  %v1925 = vpop.f32.mrf.mxu0
  %1926 = vmatprep.mubr.f32.mxu0 0.0
  %1927 = vmatmul.mubr.f32.gmra.mxu0 %v1646
  %v1928 = vpop.f32.mrf.mxu0
  %v1929 = vadd.f32 0.0, %v1928
  %v1930 = vpop.f32.mrf.mxu0
  %1931 = vmatprep.mubr.f32.mxu0 0.0
  %1932 = vmatmul.mubr.f32.gmra.mxu0 %v1649
  %v1933 = vpop.f32.mrf.mxu0
  %v1934 = vadd.f32 0.0, %v1933
  %v1935 = vpop.f32.mrf.mxu0
  %1936 = vmatprep.mubr.f32.mxu0 0.0
  %1937 = vmatmul.mubr.f32.gmra.mxu0 %v1652
  %v1938 = vpop.f32.mrf.mxu0
  %v1939 = vadd.f32 0.0, %v1938
  %v1940 = vpop.f32.mrf.mxu0
  %1941 = vmatprep.mubr.f32.mxu0 0.0
  %1942 = vmatmul.mubr.f32.gmra.mxu0 %v1655
  %v1943 = vpop.f32.mrf.mxu0
  %v1944 = vadd.f32 0.0, %v1943
  %v1945 = vpop.f32.mrf.mxu0
  %1946 = vmatprep.mubr.f32.mxu0 0.0
  %1947 = vmatmul.mubr.f32.gmra.mxu0 %v1658
  %v1948 = vpop.f32.mrf.mxu0
  %v1949 = vadd.f32 0.0, %v1948
  %v1950 = vpop.f32.mrf.mxu0
  %1951 = vmatprep.mubr.f32.mxu0 0.0
  %1952 = vmatmul.mubr.f32.gmra.mxu0 %v1661
  %v1953 = vpop.f32.mrf.mxu0
  %v1954 = vadd.f32 0.0, %v1953
  %v1955 = vpop.f32.mrf.mxu0
  %1956 = vmatprep.mubr.f32.mxu0 0.0
  %1957 = vmatmul.mubr.f32.gmra.mxu0 %v1664
  %v1958 = vpop.f32.mrf.mxu0
  %v1959 = vadd.f32 0.0, %v1958
  %v1960 = vpop.f32.mrf.mxu0
  %1961 = vmatprep.mubr.f32.mxu0 0.0
  %1962 = vmatmul.mubr.f32.gmra.mxu0 %v1667
  %v1963 = vpop.f32.mrf.mxu0
  %v1964 = vadd.f32 0.0, %v1963
  %v1965 = vpop.f32.mrf.mxu0
  %1966 = vmatprep.mubr.f32.mxu0 0.0
  %1967 = vmatmul.mubr.f32.gmra.mxu0 %v1670
  %v1968 = vpop.f32.mrf.mxu0
  %v1969 = vadd.f32 0.0, %v1968
  %v1970 = vpop.f32.mrf.mxu0
  %1971 = vmatprep.mubr.f32.mxu0 0.0
  %1972 = vmatmul.mubr.f32.gmra.mxu0 %v1673
  %v1973 = vpop.f32.mrf.mxu0
  %v1974 = vadd.f32 0.0, %v1973
  %v1975 = vpop.f32.mrf.mxu0
  %1976 = vmatprep.mubr.f32.mxu0 0.0
  %1977 = vmatmul.mubr.f32.gmra.mxu0 %v1676
  %v1978 = vpop.f32.mrf.mxu0
  %v1979 = vadd.f32 0.0, %v1978
  %v1980 = vpop.f32.mrf.mxu0
  %1981 = vmatprep.mubr.f32.mxu0 0.0
  %1982 = vmatmul.mubr.f32.gmra.mxu0 %v1679
  %v1983 = vpop.f32.mrf.mxu0
  %v1984 = vadd.f32 0.0, %v1983
  %v1985 = vpop.f32.mrf.mxu0
  %1986 = vmatprep.mubr.f32.mxu0 0.0
  %1987 = vmatmul.mubr.f32.gmra.mxu0 %v1682
  %v1988 = vpop.f32.mrf.mxu0
  %v1989 = vadd.f32 0.0, %v1988
  %v1990 = vpop.f32.mrf.mxu0
  %1991 = vmatprep.mubr.f32.mxu0 0.0
  %1992 = vmatmul.mubr.f32.gmra.mxu0 %v1685
  %v1993 = vpop.f32.mrf.mxu0
  %v1994 = vadd.f32 0.0, %v1993
  %v1995 = vpop.f32.mrf.mxu0
  %1996 = vmatprep.mubr.f32.mxu0 0.0
  %1997 = vmatmul.mubr.f32.gmra.mxu0 %v1688
  %v1998 = vpop.f32.mrf.mxu0
  %v1999 = vadd.f32 0.0, %v1998
  %v2000 = vpop.f32.mrf.mxu0
  %2001 = vmatprep.mubr.f32.mxu0 0.0
  %2002 = vmatmul.mubr.f32.gmra.mxu0 %v1691
  %v2003 = vpop.f32.mrf.mxu0
  %v2004 = vadd.f32 0.0, %v2003
  %v2005 = vpop.f32.mrf.mxu0
  %2006 = vmatprep.mubr.f32.mxu0 0.0
  %2007 = vmatmul.mubr.f32.gmra.mxu0 %v1694
  %v2008 = vpop.f32.mrf.mxu0
  %v2009 = vadd.f32 0.0, %v2008
  %v2010 = vpop.f32.mrf.mxu0
  %2011 = vmatprep.mubr.f32.mxu0 0.0
  %2012 = vmatmul.mubr.f32.gmra.mxu0 %v1697
  %v2013 = vpop.f32.mrf.mxu0
  %v2014 = vadd.f32 0.0, %v2013
  %v2015 = vpop.f32.mrf.mxu0
  %2016 = vmatprep.mubr.f32.mxu0 0.0
  %2017 = vmatmul.mubr.f32.gmra.mxu0 %v1700
  %v2018 = vpop.f32.mrf.mxu0
  %v2019 = vadd.f32 0.0, %v2018
  %v2020 = vpop.f32.mrf.mxu0
  %2021 = vmatprep.mubr.f32.mxu0 0.0
  %2022 = vmatmul.mubr.f32.gmra.mxu0 %v1703
  %v2023 = vpop.f32.mrf.mxu0
  %v2024 = vadd.f32 0.0, %v2023
  %v2025 = vpop.f32.mrf.mxu0
  %2026 = vmatprep.mubr.f32.mxu0 0.0
  %2027 = vmatmul.mubr.f32.gmra.mxu0 %v1706
  %v2028 = vpop.f32.mrf.mxu0
  %v2029 = vadd.f32 0.0, %v2028
  %v2030 = vpop.f32.mrf.mxu0
  %2031 = vmatprep.mubr.f32.mxu0 0.0
  %2032 = vmatmul.mubr.f32.gmra.mxu0 %v1709
  %v2033 = vpop.f32.mrf.mxu0
  %v2034 = vadd.f32 0.0, %v2033
  %v2035 = vpop.f32.mrf.mxu0
  %2036 = vmatprep.mubr.f32.mxu0 0.0
  %2037 = vmatmul.mubr.f32.gmra.mxu0 %v1712
  %v2038 = vpop.f32.mrf.mxu0
  %v2039 = vadd.f32 0.0, %v2038
  %v2040 = vpop.f32.mrf.mxu0
  %2041 = vmatprep.mubr.f32.mxu0 0.0
  %2042 = vmatmul.mubr.f32.gmra.mxu0 %v1715
  %v2043 = vpop.f32.mrf.mxu0
  %v2044 = vadd.f32 0.0, %v2043
  %v2045 = vpop.f32.mrf.mxu0
  %2046 = vmatprep.mubr.f32.mxu0 0.0
  %2047 = vmatmul.mubr.f32.gmra.mxu0 %v1718
  %v2048 = vpop.f32.mrf.mxu0
  %v2049 = vadd.f32 0.0, %v2048
  %v2050 = vpop.f32.mrf.mxu0
  %2051 = vmatprep.mubr.f32.mxu0 0.0
  %2052 = vmatmul.mubr.f32.gmra.mxu0 %v1721
  %v2053 = vpop.f32.mrf.mxu0
  %v2054 = vadd.f32 0.0, %v2053
  %v2055 = vpop.f32.mrf.mxu0
  %2056 = vmatprep.mubr.f32.mxu0 0.0
  %2057 = vmatmul.mubr.f32.gmra.mxu0 %v1724
  %v2058 = vpop.f32.mrf.mxu0
  %v2059 = vadd.f32 0.0, %v2058
  %v2060 = vpop.f32.mrf.mxu0
  %2061 = vmatprep.mubr.f32.mxu0 0.0
  %2062 = vmatmul.mubr.f32.gmra.mxu0 %v1727
  %v2063 = vpop.f32.mrf.mxu0
  %v2064 = vadd.f32 0.0, %v2063
  %v2065 = vpop.f32.mrf.mxu0
  %2066 = vmatprep.mubr.f32.mxu0 0.0
  %2067 = vmatmul.mubr.f32.gmra.mxu0 %v1730
  %v2068 = vpop.f32.mrf.mxu0
  %v2069 = vadd.f32 0.0, %v2068
  %v2070 = vpop.f32.mrf.mxu0
  %2071 = vmatprep.mubr.f32.mxu0 0.0
  %2072 = vmatmul.mubr.f32.gmra.mxu0 %v1733
  %v2073 = vpop.f32.mrf.mxu0
  %v2074 = vadd.f32 0.0, %v2073
  %v2075 = vpop.f32.mrf.mxu0
  %2076 = vmatprep.mubr.f32.mxu0 0.0
  %2077 = vmatmul.mubr.f32.gmra.mxu0 %v1736
  %v2078 = vpop.f32.mrf.mxu0
  %v2079 = vadd.f32 0.0, %v2078
  %v2080 = vpop.f32.mrf.mxu0
  %2081 = vmatprep.mubr.f32.mxu0 0.0
  %2082 = vmatmul.mubr.f32.gmra.mxu0 %v1739
  %v2083 = vpop.f32.mrf.mxu0
  %v2084 = vadd.f32 0.0, %v2083
  %v2085 = vpop.f32.mrf.mxu0
  %2086 = vmatprep.mubr.f32.mxu0 0.0
  %2087 = vmatmul.mubr.f32.gmra.mxu0 %v1742
  %v2088 = vpop.f32.mrf.mxu0
  %v2089 = vadd.f32 0.0, %v2088
  %v2090 = vpop.f32.mrf.mxu0
  %2091 = vmatprep.mubr.f32.mxu0 0.0
  %2092 = vmatmul.mubr.f32.gmra.mxu0 %v1745
  %v2093 = vpop.f32.mrf.mxu0
  %v2094 = vadd.f32 0.0, %v2093
  %v2095 = vpop.f32.mrf.mxu0
  %2096 = vmatprep.mubr.f32.mxu0 0.0
  %2097 = vmatmul.mubr.f32.gmra.mxu0 %v1748
  %v2098 = vpop.f32.mrf.mxu0
  %v2099 = vadd.f32 0.0, %v2098
  %v2100 = vpop.f32.mrf.mxu0
  %2101 = vmatprep.mubr.f32.mxu0 0.0
  %2102 = vmatmul.mubr.f32.gmra.mxu0 %v1751
  %v2103 = vpop.f32.mrf.mxu0
  %v2104 = vadd.f32 0.0, %v2103
  %v2105 = vpop.f32.mrf.mxu0
  %2106 = vmatprep.mubr.f32.mxu0 0.0
  %2107 = vmatmul.mubr.f32.gmra.mxu0 %v1754
  %v2108 = vpop.f32.mrf.mxu0
  %v2109 = vadd.f32 0.0, %v2108
  %v2110 = vpop.f32.mrf.mxu0
  %2111 = vmatprep.mubr.f32.mxu0 0.0
  %2112 = vmatmul.mubr.f32.gmra.mxu0 %v1757
  %v2113 = vpop.f32.mrf.mxu0
  %v2114 = vadd.f32 0.0, %v2113
  %v2115 = vpop.f32.mrf.mxu0
  %2116 = vmatprep.mubr.f32.mxu0 0.0
  %2117 = vmatmul.mubr.f32.gmra.mxu0 %v1760
  %v2118 = vpop.f32.mrf.mxu0
  %v2119 = vadd.f32 0.0, %v2118
  %v2120 = vpop.f32.mrf.mxu0
  %2121 = vmatprep.mubr.f32.mxu0 0.0
  %2122 = vmatmul.mubr.f32.gmra.mxu0 %v1763
  %v2123 = vpop.f32.mrf.mxu0
  %v2124 = vadd.f32 0.0, %v2123
  %v2125 = vpop.f32.mrf.mxu0
  %2126 = vmatprep.mubr.f32.mxu0 0.0
  %2127 = vmatmul.mubr.f32.gmra.mxu0 %v1766
  %v2128 = vpop.f32.mrf.mxu0
  %v2129 = vadd.f32 0.0, %v2128
  %v2130 = vpop.f32.mrf.mxu0
  %2131 = vmatprep.mubr.f32.mxu0 0.0
  %2132 = vmatmul.mubr.f32.gmra.mxu0 %v1769
  %v2133 = vpop.f32.mrf.mxu0
  %v2134 = vadd.f32 0.0, %v2133
  %v2135 = vpop.f32.mrf.mxu0
  %2136 = vmatprep.mubr.f32.mxu0 0.0
  %2137 = vmatmul.mubr.f32.gmra.mxu0 %v1772
  %v2138 = vpop.f32.mrf.mxu0
  %v2139 = vadd.f32 0.0, %v2138
  %v2140 = vpop.f32.mrf.mxu0
  %2141 = vmatprep.mubr.f32.mxu0 0.0
  %2142 = vmatmul.mubr.f32.gmra.mxu0 %v1775
  %v2143 = vpop.f32.mrf.mxu0
  %v2144 = vadd.f32 0.0, %v2143
  %v2145 = vpop.f32.mrf.mxu0
  %2146 = vmatprep.mubr.f32.mxu0 0.0
  %2147 = vmatmul.mubr.f32.gmra.mxu0 %v1778
  %v2148 = vpop.f32.mrf.mxu0
  %v2149 = vadd.f32 0.0, %v2148
  %v2150 = vpop.f32.mrf.mxu0
  %2151 = vmatprep.mubr.f32.mxu0 0.0
  %2152 = vmatmul.mubr.f32.gmra.mxu0 %v1781
  %v2153 = vpop.f32.mrf.mxu0
  %v2154 = vadd.f32 0.0, %v2153
  %v2155 = vpop.f32.mrf.mxu0
  %2156 = vmatprep.mubr.f32.mxu0 0.0
  %2157 = vmatmul.mubr.f32.gmra.mxu0 %v1784
  %v2158 = vpop.f32.mrf.mxu0
  %v2159 = vadd.f32 0.0, %v2158
  %v2160 = vpop.f32.mrf.mxu0
  %2161 = vmatprep.mubr.f32.mxu0 0.0
  %2162 = vmatmul.mubr.f32.gmra.mxu0 %v1787
  %v2163 = vpop.f32.mrf.mxu0
  %v2164 = vadd.f32 0.0, %v2163
  %v2165 = vpop.f32.mrf.mxu0
  %2166 = vmatprep.mubr.f32.mxu0 0.0
  %2167 = vmatmul.mubr.f32.gmra.mxu0 %v1790
  %v2168 = vpop.f32.mrf.mxu0
  %v2169 = vadd.f32 0.0, %v2168
  %v2170 = vpop.f32.mrf.mxu0
  %2171 = vmatprep.mubr.f32.mxu0 0.0
  %2172 = vmatmul.mubr.f32.gmra.mxu0 %v1793
  %v2173 = vpop.f32.mrf.mxu0
  %v2174 = vadd.f32 0.0, %v2173
  %v2175 = vpop.f32.mrf.mxu0
  %2176 = vmatprep.mubr.f32.mxu0 0.0
  %2177 = vmatmul.mubr.f32.gmra.mxu0 %v1796
  %v2178 = vpop.f32.mrf.mxu0
  %v2179 = vadd.f32 0.0, %v2178
  %v2180 = vpop.f32.mrf.mxu0
  %2181 = vmatprep.mubr.f32.mxu0 0.0
  %2182 = vmatmul.mubr.f32.gmra.mxu0 %v1799
  %v2183 = vpop.f32.mrf.mxu0
  %v2184 = vadd.f32 0.0, %v2183
  %v2185 = vpop.f32.mrf.mxu0
  %2186 = vmatprep.mubr.f32.mxu0 0.0
  %2187 = vmatmul.mubr.f32.gmra.mxu0 %v1802
  %v2188 = vpop.f32.mrf.mxu0
  %v2189 = vadd.f32 0.0, %v2188
  %v2190 = vpop.f32.mrf.mxu0
  %2191 = vdwg.mxu0
  %v2192 = vadd.f32 %v1228, %v1874
  %v2193 = vadd.f32 %v1233, %v1879
  %v2194 = vadd.f32 %v1238, %v1884
  %v2195 = vadd.f32 %v1243, %v1889
  %v2196 = vadd.f32 %v1248, %v1894
  %v2197 = vadd.f32 %v1253, %v1899
  %v2198 = vadd.f32 %v1258, %v1904
  %v2199 = vadd.f32 %v1263, %v1909
  %v2200 = vadd.f32 %v1268, %v1914
  %v2201 = vadd.f32 %v1273, %v1919
  %v2202 = vadd.f32 %v1278, %v1924
  %v2203 = vadd.f32 %v1283, %v1929
  %v2204 = vadd.f32 %v1288, %v1934
  %v2205 = vadd.f32 %v1293, %v1939
  %v2206 = vadd.f32 %v1298, %v1944
  %v2207 = vadd.f32 %v1303, %v1949
  %v2208 = vadd.f32 %v1308, %v1954
  %v2209 = vadd.f32 %v1313, %v1959
  %v2210 = vadd.f32 %v1318, %v1964
  %v2211 = vadd.f32 %v1323, %v1969
  %v2212 = vadd.f32 %v1328, %v1974
  %v2213 = vadd.f32 %v1333, %v1979
  %v2214 = vadd.f32 %v1338, %v1984
  %v2215 = vadd.f32 %v1343, %v1989
  %v2216 = vadd.f32 %v1348, %v1994
  %v2217 = vadd.f32 %v1353, %v1999
  %v2218 = vadd.f32 %v1358, %v2004
  %v2219 = vadd.f32 %v1363, %v2009
  %v2220 = vadd.f32 %v1368, %v2014
  %v2221 = vadd.f32 %v1373, %v2019
  %v2222 = vadd.f32 %v1378, %v2024
  %v2223 = vadd.f32 %v1383, %v2029
  %v2224 = vadd.f32 %v1388, %v2034
  %v2225 = vadd.f32 %v1393, %v2039
  %v2226 = vadd.f32 %v1398, %v2044
  %v2227 = vadd.f32 %v1403, %v2049
  %v2228 = vadd.f32 %v1408, %v2054
  %v2229 = vadd.f32 %v1413, %v2059
  %v2230 = vadd.f32 %v1418, %v2064
  %v2231 = vadd.f32 %v1423, %v2069
  %v2232 = vadd.f32 %v1428, %v2074
  %v2233 = vadd.f32 %v1433, %v2079
  %v2234 = vadd.f32 %v1438, %v2084
  %v2235 = vadd.f32 %v1443, %v2089
  %v2236 = vadd.f32 %v1448, %v2094
  %v2237 = vadd.f32 %v1453, %v2099
  %v2238 = vadd.f32 %v1458, %v2104
  %v2239 = vadd.f32 %v1463, %v2109
  %v2240 = vadd.f32 %v1468, %v2114
  %v2241 = vadd.f32 %v1473, %v2119
  %v2242 = vadd.f32 %v1478, %v2124
  %v2243 = vadd.f32 %v1483, %v2129
  %v2244 = vadd.f32 %v1488, %v2134
  %v2245 = vadd.f32 %v1493, %v2139
  %v2246 = vadd.f32 %v1498, %v2144
  %v2247 = vadd.f32 %v1503, %v2149
  %v2248 = vadd.f32 %v1508, %v2154
  %v2249 = vadd.f32 %v1513, %v2159
  %v2250 = vadd.f32 %v1518, %v2164
  %v2251 = vadd.f32 %v1523, %v2169
  %v2252 = vadd.f32 %v1528, %v2174
  %v2253 = vadd.f32 %v1533, %v2179
  %v2254 = vadd.f32 %v1538, %v2184
  %v2255 = vadd.f32 %v1543, %v2189
  %v2256 = vld [vmem:[%s189] sm:$0xff]
  %v2257 = vld [vmem:[%s189 + $0x8] sm:$0xff]
  %v2258 = vld [vmem:[%s189 + $0x18] sm:$0xff]
  %v2259 = vld [vmem:[%s189 + $0x20] sm:$0xff]
  %v2260 = vld [vmem:[%s189 + $0x30] sm:$0xff]
  %v2261 = vld [vmem:[%s189 + $0x38] sm:$0xff]
  %v2262 = vld [vmem:[%s189 + $0x48] sm:$0xff]
  %v2263 = vld [vmem:[%s189 + $0x50] sm:$0xff]
  %v2264 = vld [vmem:[%s189 + $0x60] sm:$0xff]
  %v2265 = vld [vmem:[%s189 + $0x68] sm:$0xff]
  %v2266 = vld [vmem:[%s189 + $0x78] sm:$0xff]
  %v2267 = vld [vmem:[%s189 + $0x80] sm:$0xff]
  %v2268 = vld [vmem:[%s189 + $0x90] sm:$0xff]
  %v2269 = vld [vmem:[%s189 + $0x98] sm:$0xff]
  %v2270 = vld [vmem:[%s189 + $0xa8] sm:$0xff]
  %v2271 = vld [vmem:[%s189 + $0xb0] sm:$0xff]
  %v2272 = vld [vmem:[%s189 + $0xc0] sm:$0xff]
  %v2273 = vld [vmem:[%s189 + $0xc8] sm:$0xff]
  %v2274 = vld [vmem:[%s189 + $0xd8] sm:$0xff]
  %v2275 = vld [vmem:[%s189 + $0xe0] sm:$0xff]
  %v2276 = vld [vmem:[%s189 + $0xf0] sm:$0xff]
  %v2277 = vld [vmem:[%s189 + $0xf8] sm:$0xff]
  %v2278 = vld [vmem:[%s189 + $0x108] sm:$0xff]
  %v2279 = vld [vmem:[%s189 + $0x110] sm:$0xff]
  %v2280 = vld [vmem:[%s189 + $0x120] sm:$0xff]
  %v2281 = vld [vmem:[%s189 + $0x128] sm:$0xff]
  %v2282 = vld [vmem:[%s189 + $0x138] sm:$0xff]
  %v2283 = vld [vmem:[%s189 + $0x140] sm:$0xff]
  %v2284 = vld [vmem:[%s189 + $0x150] sm:$0xff]
  %v2285 = vld [vmem:[%s189 + $0x158] sm:$0xff]
  %v2286 = vld [vmem:[%s189 + $0x168] sm:$0xff]
  %v2287 = vld [vmem:[%s189 + $0x170] sm:$0xff]
  %v2288 = vld [vmem:[%s189 + $0x1b0] sm:$0xff]
  %v2289 = vld [vmem:[%s189 + $0x1b8] sm:$0xff]
  %v2290 = vld [vmem:[%s189 + $0x1c8] sm:$0xff]
  %v2291 = vld [vmem:[%s189 + $0x1d0] sm:$0xff]
  %v2292 = vld [vmem:[%s189 + $0x1e0] sm:$0xff]
  %v2293 = vld [vmem:[%s189 + $0x1e8] sm:$0xff]
  %v2294 = vld [vmem:[%s189 + $0x1f8] sm:$0xff]
  %v2295 = vld [vmem:[%s189 + $0x200] sm:$0xff]
  %v2296 = vld [vmem:[%s189 + $0x210] sm:$0xff]
  %v2297 = vld [vmem:[%s189 + $0x218] sm:$0xff]
  %v2298 = vld [vmem:[%s189 + $0x228] sm:$0xff]
  %v2299 = vld [vmem:[%s189 + $0x230] sm:$0xff]
  %v2300 = vld [vmem:[%s189 + $0x240] sm:$0xff]
  %v2301 = vld [vmem:[%s189 + $0x248] sm:$0xff]
  %v2302 = vld [vmem:[%s189 + $0x258] sm:$0xff]
  %v2303 = vld [vmem:[%s189 + $0x260] sm:$0xff]
  %v2304 = vld [vmem:[%s189 + $0x270] sm:$0xff]
  %v2305 = vld [vmem:[%s189 + $0x278] sm:$0xff]
  %v2306 = vld [vmem:[%s189 + $0x288] sm:$0xff]
  %v2307 = vld [vmem:[%s189 + $0x290] sm:$0xff]
  %v2308 = vld [vmem:[%s189 + $0x2a0] sm:$0xff]
  %v2309 = vld [vmem:[%s189 + $0x2a8] sm:$0xff]
  %v2310 = vld [vmem:[%s189 + $0x2b8] sm:$0xff]
  %v2311 = vld [vmem:[%s189 + $0x2c0] sm:$0xff]
  %v2312 = vld [vmem:[%s189 + $0x2d0] sm:$0xff]
  %v2313 = vld [vmem:[%s189 + $0x2d8] sm:$0xff]
  %v2314 = vld [vmem:[%s189 + $0x2e8] sm:$0xff]
  %v2315 = vld [vmem:[%s189 + $0x2f0] sm:$0xff]
  %v2316 = vld [vmem:[%s189 + $0x300] sm:$0xff]
  %v2317 = vld [vmem:[%s189 + $0x308] sm:$0xff]
  %v2318 = vld [vmem:[%s189 + $0x318] sm:$0xff]
  %v2319 = vld [vmem:[%s189 + $0x320] sm:$0xff]
  %s2320 = scalar_lea.vmem %s1, 12
  %v2321 = vld [vmem:[%s2320] sm:$0xf]
  %v2323 = vsel %vm14, %v2256, 0
  %v2326 = vsel %vm14, %v2257, 0
  %v2329 = vsel %vm14, %v2258, 0
  %v2332 = vsel %vm14, %v2259, 0
  %v2335 = vsel %vm14, %v2260, 0
  %v2338 = vsel %vm14, %v2261, 0
  %v2341 = vsel %vm14, %v2262, 0
  %v2344 = vsel %vm14, %v2263, 0
  %v2347 = vsel %vm14, %v2264, 0
  %v2350 = vsel %vm14, %v2265, 0
  %v2353 = vsel %vm14, %v2266, 0
  %v2356 = vsel %vm14, %v2267, 0
  %v2359 = vsel %vm14, %v2268, 0
  %v2362 = vsel %vm14, %v2269, 0
  %v2365 = vsel %vm14, %v2270, 0
  %v2368 = vsel %vm14, %v2271, 0
  %v2371 = vsel %vm14, %v2272, 0
  %v2374 = vsel %vm14, %v2273, 0
  %v2377 = vsel %vm14, %v2274, 0
  %v2380 = vsel %vm14, %v2275, 0
  %v2383 = vsel %vm14, %v2276, 0
  %v2386 = vsel %vm14, %v2277, 0
  %v2389 = vsel %vm14, %v2278, 0
  %v2392 = vsel %vm14, %v2279, 0
  %v2395 = vsel %vm14, %v2280, 0
  %v2398 = vsel %vm14, %v2281, 0
  %v2401 = vsel %vm14, %v2282, 0
  %v2404 = vsel %vm14, %v2283, 0
  %v2407 = vsel %vm14, %v2284, 0
  %v2410 = vsel %vm14, %v2285, 0
  %v2413 = vsel %vm14, %v2286, 0
  %v2416 = vsel %vm14, %v2287, 0
  %v2419 = vsel %vm14, %v2288, 0
  %v2422 = vsel %vm14, %v2289, 0
  %v2425 = vsel %vm14, %v2290, 0
  %v2428 = vsel %vm14, %v2291, 0
  %v2431 = vsel %vm14, %v2292, 0
  %v2434 = vsel %vm14, %v2293, 0
  %v2437 = vsel %vm14, %v2294, 0
  %v2440 = vsel %vm14, %v2295, 0
  %v2443 = vsel %vm14, %v2296, 0
  %v2446 = vsel %vm14, %v2297, 0
  %v2449 = vsel %vm14, %v2298, 0
  %v2452 = vsel %vm14, %v2299, 0
  %v2455 = vsel %vm14, %v2300, 0
  %v2458 = vsel %vm14, %v2301, 0
  %v2461 = vsel %vm14, %v2302, 0
  %v2464 = vsel %vm14, %v2303, 0
  %v2467 = vsel %vm14, %v2304, 0
  %v2470 = vsel %vm14, %v2305, 0
  %v2473 = vsel %vm14, %v2306, 0
  %v2476 = vsel %vm14, %v2307, 0
  %v2479 = vsel %vm14, %v2308, 0
  %v2482 = vsel %vm14, %v2309, 0
  %v2485 = vsel %vm14, %v2310, 0
  %v2488 = vsel %vm14, %v2311, 0
  %v2491 = vsel %vm14, %v2312, 0
  %v2494 = vsel %vm14, %v2313, 0
  %v2497 = vsel %vm14, %v2314, 0
  %v2500 = vsel %vm14, %v2315, 0
  %v2503 = vsel %vm14, %v2316, 0
  %v2506 = vsel %vm14, %v2317, 0
  %v2509 = vsel %vm14, %v2318, 0
  %v2512 = vsel %vm14, %v2319, 0
  %v2515 = vsel %vm577, %v2321, 0
  %2517 = vmatprep.subr.mxu0 0.0
  %2518 = vmatpush1.msra.mxu0 0.0
  %2519 = vmatprep.subr.mxu0 0.0
  %2520 = vmatpush1.msra.mxu0 0.0
  %2521 = vmatprep.subr.mxu0 0.0
  %2522 = vmatpush1.msra.mxu0 0.0
  %2523 = vmatprep.subr.mxu0 0.0
  %2524 = vmatpush1.msra.mxu0 0.0
  %2525 = vmatprep.subr.mxu0 0.0
  %2526 = vmatpush1.msra.mxu0 0.0
  %2527 = vmatprep.subr.mxu0 0.0
  %2528 = vmatpush1.msra.mxu0 0.0
  %2529 = vmatprep.subr.mxu0 0.0
  %2530 = vmatpush1.msra.mxu0 0.0
  %2531 = vmatprep.subr.mxu0 0.0
  %2532 = vmatpush1.msra.mxu0 0.0
  %2533 = vmatprep.subr.mxu0 0.0
  %2534 = vmatpush1.msra.mxu0 0.0
  %2535 = vmatprep.subr.mxu0 0.0
  %2536 = vmatpush1.msra.mxu0 0.0
  %2537 = vmatprep.subr.mxu0 0.0
  %2538 = vmatpush1.msra.mxu0 0.0
  %2539 = vmatprep.subr.mxu0 0.0
  %2540 = vmatpush1.msra.mxu0 0.0
  %2541 = vmatprep.subr.mxu0 0.0
  %2542 = vmatpush1.msra.mxu0 0.0
  %2543 = vmatprep.subr.mxu0 0.0
  %2544 = vmatpush1.msra.mxu0 0.0
  %2545 = vmatprep.subr.mxu0 0.0
  %2546 = vmatpush1.msra.mxu0 0.0
  %2547 = vmatprep.subr.mxu0 0.0
  %2548 = vmatpush1.msra.mxu0 %v2515
  %2549 = vmatprep.subr.mxu0 0.0
  %2550 = vmatpush2.msra.mxu0 0.0
  %2551 = vmatprep.subr.mxu0 0.0
  %2552 = vmatpush2.msra.mxu0 0.0
  %2553 = vmatprep.subr.mxu0 0.0
  %2554 = vmatpush2.msra.mxu0 0.0
  %2555 = vmatprep.subr.mxu0 0.0
  %2556 = vmatpush2.msra.mxu0 0.0
  %2557 = vmatprep.subr.mxu0 0.0
  %2558 = vmatpush2.msra.mxu0 0.0
  %2559 = vmatprep.subr.mxu0 0.0
  %2560 = vmatpush2.msra.mxu0 0.0
  %2561 = vmatprep.subr.mxu0 0.0
  %2562 = vmatpush2.msra.mxu0 0.0
  %2563 = vmatprep.subr.mxu0 0.0
  %2564 = vmatpush2.msra.mxu0 0.0
  %2565 = vmatprep.subr.mxu0 0.0
  %2566 = vmatpush2.msra.mxu0 0.0
  %2567 = vmatprep.subr.mxu0 0.0
  %2568 = vmatpush2.msra.mxu0 0.0
  %2569 = vmatprep.subr.mxu0 0.0
  %2570 = vmatpush2.msra.mxu0 0.0
  %2571 = vmatprep.subr.mxu0 0.0
  %2572 = vmatpush2.msra.mxu0 0.0
  %2573 = vmatprep.subr.mxu0 0.0
  %2574 = vmatpush2.msra.mxu0 0.0
  %2575 = vmatprep.subr.mxu0 0.0
  %2576 = vmatpush2.msra.mxu0 0.0
  %2577 = vmatprep.subr.mxu0 0.0
  %2578 = vmatpush2.msra.mxu0 0.0
  %2579 = vmatprep.subr.mxu0 0.0
  %2580 = vmatpush2.msra.mxu0 0.0
  %2581 = vmatprep.mubr.f32.mxu0 0.0
  %2582 = vmatmul.mubr.f32.gmra.mxu0 %v2323
  %v2583 = vpop.f32.mrf.mxu0
  %v2584 = vadd.f32 0.0, %v2583
  %v2585 = vpop.f32.mrf.mxu0
  %2586 = vmatprep.mubr.f32.mxu0 0.0
  %2587 = vmatmul.mubr.f32.gmra.mxu0 %v2326
  %v2588 = vpop.f32.mrf.mxu0
  %v2589 = vadd.f32 0.0, %v2588
  %v2590 = vpop.f32.mrf.mxu0
  %2591 = vmatprep.mubr.f32.mxu0 0.0
  %2592 = vmatmul.mubr.f32.gmra.mxu0 %v2329
  %v2593 = vpop.f32.mrf.mxu0
  %v2594 = vadd.f32 0.0, %v2593
  %v2595 = vpop.f32.mrf.mxu0
  %2596 = vmatprep.mubr.f32.mxu0 0.0
  %2597 = vmatmul.mubr.f32.gmra.mxu0 %v2332
  %v2598 = vpop.f32.mrf.mxu0
  %v2599 = vadd.f32 0.0, %v2598
  %v2600 = vpop.f32.mrf.mxu0
  %2601 = vmatprep.mubr.f32.mxu0 0.0
  %2602 = vmatmul.mubr.f32.gmra.mxu0 %v2335
  %v2603 = vpop.f32.mrf.mxu0
  %v2604 = vadd.f32 0.0, %v2603
  %v2605 = vpop.f32.mrf.mxu0
  %2606 = vmatprep.mubr.f32.mxu0 0.0
  %2607 = vmatmul.mubr.f32.gmra.mxu0 %v2338
  %v2608 = vpop.f32.mrf.mxu0
  %v2609 = vadd.f32 0.0, %v2608
  %v2610 = vpop.f32.mrf.mxu0
  %2611 = vmatprep.mubr.f32.mxu0 0.0
  %2612 = vmatmul.mubr.f32.gmra.mxu0 %v2341
  %v2613 = vpop.f32.mrf.mxu0
  %v2614 = vadd.f32 0.0, %v2613
  %v2615 = vpop.f32.mrf.mxu0
  %2616 = vmatprep.mubr.f32.mxu0 0.0
  %2617 = vmatmul.mubr.f32.gmra.mxu0 %v2344
  %v2618 = vpop.f32.mrf.mxu0
  %v2619 = vadd.f32 0.0, %v2618
  %v2620 = vpop.f32.mrf.mxu0
  %2621 = vmatprep.mubr.f32.mxu0 0.0
  %2622 = vmatmul.mubr.f32.gmra.mxu0 %v2347
  %v2623 = vpop.f32.mrf.mxu0
  %v2624 = vadd.f32 0.0, %v2623
  %v2625 = vpop.f32.mrf.mxu0
  %2626 = vmatprep.mubr.f32.mxu0 0.0
  %2627 = vmatmul.mubr.f32.gmra.mxu0 %v2350
  %v2628 = vpop.f32.mrf.mxu0
  %v2629 = vadd.f32 0.0, %v2628
  %v2630 = vpop.f32.mrf.mxu0
  %2631 = vmatprep.mubr.f32.mxu0 0.0
  %2632 = vmatmul.mubr.f32.gmra.mxu0 %v2353
  %v2633 = vpop.f32.mrf.mxu0
  %v2634 = vadd.f32 0.0, %v2633
  %v2635 = vpop.f32.mrf.mxu0
  %2636 = vmatprep.mubr.f32.mxu0 0.0
  %2637 = vmatmul.mubr.f32.gmra.mxu0 %v2356
  %v2638 = vpop.f32.mrf.mxu0
  %v2639 = vadd.f32 0.0, %v2638
  %v2640 = vpop.f32.mrf.mxu0
  %2641 = vmatprep.mubr.f32.mxu0 0.0
  %2642 = vmatmul.mubr.f32.gmra.mxu0 %v2359
  %v2643 = vpop.f32.mrf.mxu0
  %v2644 = vadd.f32 0.0, %v2643
  %v2645 = vpop.f32.mrf.mxu0
  %2646 = vmatprep.mubr.f32.mxu0 0.0
  %2647 = vmatmul.mubr.f32.gmra.mxu0 %v2362
  %v2648 = vpop.f32.mrf.mxu0
  %v2649 = vadd.f32 0.0, %v2648
  %v2650 = vpop.f32.mrf.mxu0
  %2651 = vmatprep.mubr.f32.mxu0 0.0
  %2652 = vmatmul.mubr.f32.gmra.mxu0 %v2365
  %v2653 = vpop.f32.mrf.mxu0
  %v2654 = vadd.f32 0.0, %v2653
  %v2655 = vpop.f32.mrf.mxu0
  %2656 = vmatprep.mubr.f32.mxu0 0.0
  %2657 = vmatmul.mubr.f32.gmra.mxu0 %v2368
  %v2658 = vpop.f32.mrf.mxu0
  %v2659 = vadd.f32 0.0, %v2658
  %v2660 = vpop.f32.mrf.mxu0
  %2661 = vmatprep.mubr.f32.mxu0 0.0
  %2662 = vmatmul.mubr.f32.gmra.mxu0 %v2371
  %v2663 = vpop.f32.mrf.mxu0
  %v2664 = vadd.f32 0.0, %v2663
  %v2665 = vpop.f32.mrf.mxu0
  %2666 = vmatprep.mubr.f32.mxu0 0.0
  %2667 = vmatmul.mubr.f32.gmra.mxu0 %v2374
  %v2668 = vpop.f32.mrf.mxu0
  %v2669 = vadd.f32 0.0, %v2668
  %v2670 = vpop.f32.mrf.mxu0
  %2671 = vmatprep.mubr.f32.mxu0 0.0
  %2672 = vmatmul.mubr.f32.gmra.mxu0 %v2377
  %v2673 = vpop.f32.mrf.mxu0
  %v2674 = vadd.f32 0.0, %v2673
  %v2675 = vpop.f32.mrf.mxu0
  %2676 = vmatprep.mubr.f32.mxu0 0.0
  %2677 = vmatmul.mubr.f32.gmra.mxu0 %v2380
  %v2678 = vpop.f32.mrf.mxu0
  %v2679 = vadd.f32 0.0, %v2678
  %v2680 = vpop.f32.mrf.mxu0
  %2681 = vmatprep.mubr.f32.mxu0 0.0
  %2682 = vmatmul.mubr.f32.gmra.mxu0 %v2383
  %v2683 = vpop.f32.mrf.mxu0
  %v2684 = vadd.f32 0.0, %v2683
  %v2685 = vpop.f32.mrf.mxu0
  %2686 = vmatprep.mubr.f32.mxu0 0.0
  %2687 = vmatmul.mubr.f32.gmra.mxu0 %v2386
  %v2688 = vpop.f32.mrf.mxu0
  %v2689 = vadd.f32 0.0, %v2688
  %v2690 = vpop.f32.mrf.mxu0
  %2691 = vmatprep.mubr.f32.mxu0 0.0
  %2692 = vmatmul.mubr.f32.gmra.mxu0 %v2389
  %v2693 = vpop.f32.mrf.mxu0
  %v2694 = vadd.f32 0.0, %v2693
  %v2695 = vpop.f32.mrf.mxu0
  %2696 = vmatprep.mubr.f32.mxu0 0.0
  %2697 = vmatmul.mubr.f32.gmra.mxu0 %v2392
  %v2698 = vpop.f32.mrf.mxu0
  %v2699 = vadd.f32 0.0, %v2698
  %v2700 = vpop.f32.mrf.mxu0
  %2701 = vmatprep.mubr.f32.mxu0 0.0
  %2702 = vmatmul.mubr.f32.gmra.mxu0 %v2395
  %v2703 = vpop.f32.mrf.mxu0
  %v2704 = vadd.f32 0.0, %v2703
  %v2705 = vpop.f32.mrf.mxu0
  %2706 = vmatprep.mubr.f32.mxu0 0.0
  %2707 = vmatmul.mubr.f32.gmra.mxu0 %v2398
  %v2708 = vpop.f32.mrf.mxu0
  %v2709 = vadd.f32 0.0, %v2708
  %v2710 = vpop.f32.mrf.mxu0
  %2711 = vmatprep.mubr.f32.mxu0 0.0
  %2712 = vmatmul.mubr.f32.gmra.mxu0 %v2401
  %v2713 = vpop.f32.mrf.mxu0
  %v2714 = vadd.f32 0.0, %v2713
  %v2715 = vpop.f32.mrf.mxu0
  %2716 = vmatprep.mubr.f32.mxu0 0.0
  %2717 = vmatmul.mubr.f32.gmra.mxu0 %v2404
  %v2718 = vpop.f32.mrf.mxu0
  %v2719 = vadd.f32 0.0, %v2718
  %v2720 = vpop.f32.mrf.mxu0
  %2721 = vmatprep.mubr.f32.mxu0 0.0
  %2722 = vmatmul.mubr.f32.gmra.mxu0 %v2407
  %v2723 = vpop.f32.mrf.mxu0
  %v2724 = vadd.f32 0.0, %v2723
  %v2725 = vpop.f32.mrf.mxu0
  %2726 = vmatprep.mubr.f32.mxu0 0.0
  %2727 = vmatmul.mubr.f32.gmra.mxu0 %v2410
  %v2728 = vpop.f32.mrf.mxu0
  %v2729 = vadd.f32 0.0, %v2728
  %v2730 = vpop.f32.mrf.mxu0
  %2731 = vmatprep.mubr.f32.mxu0 0.0
  %2732 = vmatmul.mubr.f32.gmra.mxu0 %v2413
  %v2733 = vpop.f32.mrf.mxu0
  %v2734 = vadd.f32 0.0, %v2733
  %v2735 = vpop.f32.mrf.mxu0
  %2736 = vmatprep.mubr.f32.mxu0 0.0
  %2737 = vmatmul.mubr.f32.gmra.mxu0 %v2416
  %v2738 = vpop.f32.mrf.mxu0
  %v2739 = vadd.f32 0.0, %v2738
  %v2740 = vpop.f32.mrf.mxu0
  %2741 = vmatprep.mubr.f32.mxu0 0.0
  %2742 = vmatmul.mubr.f32.gmra.mxu0 %v2419
  %v2743 = vpop.f32.mrf.mxu0
  %v2744 = vadd.f32 0.0, %v2743
  %v2745 = vpop.f32.mrf.mxu0
  %2746 = vmatprep.mubr.f32.mxu0 0.0
  %2747 = vmatmul.mubr.f32.gmra.mxu0 %v2422
  %v2748 = vpop.f32.mrf.mxu0
  %v2749 = vadd.f32 0.0, %v2748
  %v2750 = vpop.f32.mrf.mxu0
  %2751 = vmatprep.mubr.f32.mxu0 0.0
  %2752 = vmatmul.mubr.f32.gmra.mxu0 %v2425
  %v2753 = vpop.f32.mrf.mxu0
  %v2754 = vadd.f32 0.0, %v2753
  %v2755 = vpop.f32.mrf.mxu0
  %2756 = vmatprep.mubr.f32.mxu0 0.0
  %2757 = vmatmul.mubr.f32.gmra.mxu0 %v2428
  %v2758 = vpop.f32.mrf.mxu0
  %v2759 = vadd.f32 0.0, %v2758
  %v2760 = vpop.f32.mrf.mxu0
  %2761 = vmatprep.mubr.f32.mxu0 0.0
  %2762 = vmatmul.mubr.f32.gmra.mxu0 %v2431
  %v2763 = vpop.f32.mrf.mxu0
  %v2764 = vadd.f32 0.0, %v2763
  %v2765 = vpop.f32.mrf.mxu0
  %2766 = vmatprep.mubr.f32.mxu0 0.0
  %2767 = vmatmul.mubr.f32.gmra.mxu0 %v2434
  %v2768 = vpop.f32.mrf.mxu0
  %v2769 = vadd.f32 0.0, %v2768
  %v2770 = vpop.f32.mrf.mxu0
  %2771 = vmatprep.mubr.f32.mxu0 0.0
  %2772 = vmatmul.mubr.f32.gmra.mxu0 %v2437
  %v2773 = vpop.f32.mrf.mxu0
  %v2774 = vadd.f32 0.0, %v2773
  %v2775 = vpop.f32.mrf.mxu0
  %2776 = vmatprep.mubr.f32.mxu0 0.0
  %2777 = vmatmul.mubr.f32.gmra.mxu0 %v2440
  %v2778 = vpop.f32.mrf.mxu0
  %v2779 = vadd.f32 0.0, %v2778
  %v2780 = vpop.f32.mrf.mxu0
  %2781 = vmatprep.mubr.f32.mxu0 0.0
  %2782 = vmatmul.mubr.f32.gmra.mxu0 %v2443
  %v2783 = vpop.f32.mrf.mxu0
  %v2784 = vadd.f32 0.0, %v2783
  %v2785 = vpop.f32.mrf.mxu0
  %2786 = vmatprep.mubr.f32.mxu0 0.0
  %2787 = vmatmul.mubr.f32.gmra.mxu0 %v2446
  %v2788 = vpop.f32.mrf.mxu0
  %v2789 = vadd.f32 0.0, %v2788
  %v2790 = vpop.f32.mrf.mxu0
  %2791 = vmatprep.mubr.f32.mxu0 0.0
  %2792 = vmatmul.mubr.f32.gmra.mxu0 %v2449
  %v2793 = vpop.f32.mrf.mxu0
  %v2794 = vadd.f32 0.0, %v2793
  %v2795 = vpop.f32.mrf.mxu0
  %2796 = vmatprep.mubr.f32.mxu0 0.0
  %2797 = vmatmul.mubr.f32.gmra.mxu0 %v2452
  %v2798 = vpop.f32.mrf.mxu0
  %v2799 = vadd.f32 0.0, %v2798
  %v2800 = vpop.f32.mrf.mxu0
  %2801 = vmatprep.mubr.f32.mxu0 0.0
  %2802 = vmatmul.mubr.f32.gmra.mxu0 %v2455
  %v2803 = vpop.f32.mrf.mxu0
  %v2804 = vadd.f32 0.0, %v2803
  %v2805 = vpop.f32.mrf.mxu0
  %2806 = vmatprep.mubr.f32.mxu0 0.0
  %2807 = vmatmul.mubr.f32.gmra.mxu0 %v2458
  %v2808 = vpop.f32.mrf.mxu0
  %v2809 = vadd.f32 0.0, %v2808
  %v2810 = vpop.f32.mrf.mxu0
  %2811 = vmatprep.mubr.f32.mxu0 0.0
  %2812 = vmatmul.mubr.f32.gmra.mxu0 %v2461
  %v2813 = vpop.f32.mrf.mxu0
  %v2814 = vadd.f32 0.0, %v2813
  %v2815 = vpop.f32.mrf.mxu0
  %2816 = vmatprep.mubr.f32.mxu0 0.0
  %2817 = vmatmul.mubr.f32.gmra.mxu0 %v2464
  %v2818 = vpop.f32.mrf.mxu0
  %v2819 = vadd.f32 0.0, %v2818
  %v2820 = vpop.f32.mrf.mxu0
  %2821 = vmatprep.mubr.f32.mxu0 0.0
  %2822 = vmatmul.mubr.f32.gmra.mxu0 %v2467
  %v2823 = vpop.f32.mrf.mxu0
  %v2824 = vadd.f32 0.0, %v2823
  %v2825 = vpop.f32.mrf.mxu0
  %2826 = vmatprep.mubr.f32.mxu0 0.0
  %2827 = vmatmul.mubr.f32.gmra.mxu0 %v2470
  %v2828 = vpop.f32.mrf.mxu0
  %v2829 = vadd.f32 0.0, %v2828
  %v2830 = vpop.f32.mrf.mxu0
  %2831 = vmatprep.mubr.f32.mxu0 0.0
  %2832 = vmatmul.mubr.f32.gmra.mxu0 %v2473
  %v2833 = vpop.f32.mrf.mxu0
  %v2834 = vadd.f32 0.0, %v2833
  %v2835 = vpop.f32.mrf.mxu0
  %2836 = vmatprep.mubr.f32.mxu0 0.0
  %2837 = vmatmul.mubr.f32.gmra.mxu0 %v2476
  %v2838 = vpop.f32.mrf.mxu0
  %v2839 = vadd.f32 0.0, %v2838
  %v2840 = vpop.f32.mrf.mxu0
  %2841 = vmatprep.mubr.f32.mxu0 0.0
  %2842 = vmatmul.mubr.f32.gmra.mxu0 %v2479
  %v2843 = vpop.f32.mrf.mxu0
  %v2844 = vadd.f32 0.0, %v2843
  %v2845 = vpop.f32.mrf.mxu0
  %2846 = vmatprep.mubr.f32.mxu0 0.0
  %2847 = vmatmul.mubr.f32.gmra.mxu0 %v2482
  %v2848 = vpop.f32.mrf.mxu0
  %v2849 = vadd.f32 0.0, %v2848
  %v2850 = vpop.f32.mrf.mxu0
  %2851 = vmatprep.mubr.f32.mxu0 0.0
  %2852 = vmatmul.mubr.f32.gmra.mxu0 %v2485
  %v2853 = vpop.f32.mrf.mxu0
  %v2854 = vadd.f32 0.0, %v2853
  %v2855 = vpop.f32.mrf.mxu0
  %2856 = vmatprep.mubr.f32.mxu0 0.0
  %2857 = vmatmul.mubr.f32.gmra.mxu0 %v2488
  %v2858 = vpop.f32.mrf.mxu0
  %v2859 = vadd.f32 0.0, %v2858
  %v2860 = vpop.f32.mrf.mxu0
  %2861 = vmatprep.mubr.f32.mxu0 0.0
  %2862 = vmatmul.mubr.f32.gmra.mxu0 %v2491
  %v2863 = vpop.f32.mrf.mxu0
  %v2864 = vadd.f32 0.0, %v2863
  %v2865 = vpop.f32.mrf.mxu0
  %2866 = vmatprep.mubr.f32.mxu0 0.0
  %2867 = vmatmul.mubr.f32.gmra.mxu0 %v2494
  %v2868 = vpop.f32.mrf.mxu0
  %v2869 = vadd.f32 0.0, %v2868
  %v2870 = vpop.f32.mrf.mxu0
  %2871 = vmatprep.mubr.f32.mxu0 0.0
  %2872 = vmatmul.mubr.f32.gmra.mxu0 %v2497
  %v2873 = vpop.f32.mrf.mxu0
  %v2874 = vadd.f32 0.0, %v2873
  %v2875 = vpop.f32.mrf.mxu0
  %2876 = vmatprep.mubr.f32.mxu0 0.0
  %2877 = vmatmul.mubr.f32.gmra.mxu0 %v2500
  %v2878 = vpop.f32.mrf.mxu0
  %v2879 = vadd.f32 0.0, %v2878
  %v2880 = vpop.f32.mrf.mxu0
  %2881 = vmatprep.mubr.f32.mxu0 0.0
  %2882 = vmatmul.mubr.f32.gmra.mxu0 %v2503
  %v2883 = vpop.f32.mrf.mxu0
  %v2884 = vadd.f32 0.0, %v2883
  %v2885 = vpop.f32.mrf.mxu0
  %2886 = vmatprep.mubr.f32.mxu0 0.0
  %2887 = vmatmul.mubr.f32.gmra.mxu0 %v2506
  %v2888 = vpop.f32.mrf.mxu0
  %v2889 = vadd.f32 0.0, %v2888
  %v2890 = vpop.f32.mrf.mxu0
  %2891 = vmatprep.mubr.f32.mxu0 0.0
  %2892 = vmatmul.mubr.f32.gmra.mxu0 %v2509
  %v2893 = vpop.f32.mrf.mxu0
  %v2894 = vadd.f32 0.0, %v2893
  %v2895 = vpop.f32.mrf.mxu0
  %2896 = vmatprep.mubr.f32.mxu0 0.0
  %2897 = vmatmul.mubr.f32.gmra.mxu0 %v2512
  %v2898 = vpop.f32.mrf.mxu0
  %v2899 = vadd.f32 0.0, %v2898
  %v2900 = vpop.f32.mrf.mxu0
  %2901 = vdwg.mxu0
  %v2902 = vadd.f32 %v2192, %v2584
  %v2903 = vadd.f32 %v2193, %v2589
  %v2904 = vadd.f32 %v2194, %v2594
  %v2905 = vadd.f32 %v2195, %v2599
  %v2906 = vadd.f32 %v2196, %v2604
  %v2907 = vadd.f32 %v2197, %v2609
  %v2908 = vadd.f32 %v2198, %v2614
  %v2909 = vadd.f32 %v2199, %v2619
  %v2910 = vadd.f32 %v2200, %v2624
  %v2911 = vadd.f32 %v2201, %v2629
  %v2912 = vadd.f32 %v2202, %v2634
  %v2913 = vadd.f32 %v2203, %v2639
  %v2914 = vadd.f32 %v2204, %v2644
  %v2915 = vadd.f32 %v2205, %v2649
  %v2916 = vadd.f32 %v2206, %v2654
  %v2917 = vadd.f32 %v2207, %v2659
  %v2918 = vadd.f32 %v2208, %v2664
  %v2919 = vadd.f32 %v2209, %v2669
  %v2920 = vadd.f32 %v2210, %v2674
  %v2921 = vadd.f32 %v2211, %v2679
  %v2922 = vadd.f32 %v2212, %v2684
  %v2923 = vadd.f32 %v2213, %v2689
  %v2924 = vadd.f32 %v2214, %v2694
  %v2925 = vadd.f32 %v2215, %v2699
  %v2926 = vadd.f32 %v2216, %v2704
  %v2927 = vadd.f32 %v2217, %v2709
  %v2928 = vadd.f32 %v2218, %v2714
  %v2929 = vadd.f32 %v2219, %v2719
  %v2930 = vadd.f32 %v2220, %v2724
  %v2931 = vadd.f32 %v2221, %v2729
  %v2932 = vadd.f32 %v2222, %v2734
  %v2933 = vadd.f32 %v2223, %v2739
  %v2934 = vadd.f32 %v2224, %v2744
  %v2935 = vadd.f32 %v2225, %v2749
  %v2936 = vadd.f32 %v2226, %v2754
  %v2937 = vadd.f32 %v2227, %v2759
  %v2938 = vadd.f32 %v2228, %v2764
  %v2939 = vadd.f32 %v2229, %v2769
  %v2940 = vadd.f32 %v2230, %v2774
  %v2941 = vadd.f32 %v2231, %v2779
  %v2942 = vadd.f32 %v2232, %v2784
  %v2943 = vadd.f32 %v2233, %v2789
  %v2944 = vadd.f32 %v2234, %v2794
  %v2945 = vadd.f32 %v2235, %v2799
  %v2946 = vadd.f32 %v2236, %v2804
  %v2947 = vadd.f32 %v2237, %v2809
  %v2948 = vadd.f32 %v2238, %v2814
  %v2949 = vadd.f32 %v2239, %v2819
  %v2950 = vadd.f32 %v2240, %v2824
  %v2951 = vadd.f32 %v2241, %v2829
  %v2952 = vadd.f32 %v2242, %v2834
  %v2953 = vadd.f32 %v2243, %v2839
  %v2954 = vadd.f32 %v2244, %v2844
  %v2955 = vadd.f32 %v2245, %v2849
  %v2956 = vadd.f32 %v2246, %v2854
  %v2957 = vadd.f32 %v2247, %v2859
  %v2958 = vadd.f32 %v2248, %v2864
  %v2959 = vadd.f32 %v2249, %v2869
  %v2960 = vadd.f32 %v2250, %v2874
  %v2961 = vadd.f32 %v2251, %v2879
  %v2962 = vadd.f32 %v2252, %v2884
  %v2963 = vadd.f32 %v2253, %v2889
  %v2964 = vadd.f32 %v2254, %v2894
  %v2965 = vadd.f32 %v2255, %v2899
  %v2966 = vld [vmem:[%s189 + $0x1] sm:$0xff]
  %v2967 = vld [vmem:[%s189 + $0x9] sm:$0xff]
  %v2968 = vld [vmem:[%s189 + $0x19] sm:$0xff]
  %v2969 = vld [vmem:[%s189 + $0x21] sm:$0xff]
  %v2970 = vld [vmem:[%s189 + $0x31] sm:$0xff]
  %v2971 = vld [vmem:[%s189 + $0x39] sm:$0xff]
  %v2972 = vld [vmem:[%s189 + $0x49] sm:$0xff]
  %v2973 = vld [vmem:[%s189 + $0x51] sm:$0xff]
  %v2974 = vld [vmem:[%s189 + $0x61] sm:$0xff]
  %v2975 = vld [vmem:[%s189 + $0x69] sm:$0xff]
  %v2976 = vld [vmem:[%s189 + $0x79] sm:$0xff]
  %v2977 = vld [vmem:[%s189 + $0x81] sm:$0xff]
  %v2978 = vld [vmem:[%s189 + $0x91] sm:$0xff]
  %v2979 = vld [vmem:[%s189 + $0x99] sm:$0xff]
  %v2980 = vld [vmem:[%s189 + $0xa9] sm:$0xff]
  %v2981 = vld [vmem:[%s189 + $0xb1] sm:$0xff]
  %v2982 = vld [vmem:[%s189 + $0xc1] sm:$0xff]
  %v2983 = vld [vmem:[%s189 + $0xc9] sm:$0xff]
  %v2984 = vld [vmem:[%s189 + $0xd9] sm:$0xff]
  %v2985 = vld [vmem:[%s189 + $0xe1] sm:$0xff]
  %v2986 = vld [vmem:[%s189 + $0xf1] sm:$0xff]
  %v2987 = vld [vmem:[%s189 + $0xf9] sm:$0xff]
  %v2988 = vld [vmem:[%s189 + $0x109] sm:$0xff]
  %v2989 = vld [vmem:[%s189 + $0x111] sm:$0xff]
  %v2990 = vld [vmem:[%s189 + $0x121] sm:$0xff]
  %v2991 = vld [vmem:[%s189 + $0x129] sm:$0xff]
  %v2992 = vld [vmem:[%s189 + $0x139] sm:$0xff]
  %v2993 = vld [vmem:[%s189 + $0x141] sm:$0xff]
  %v2994 = vld [vmem:[%s189 + $0x151] sm:$0xff]
  %v2995 = vld [vmem:[%s189 + $0x159] sm:$0xff]
  %v2996 = vld [vmem:[%s189 + $0x169] sm:$0xff]
  %v2997 = vld [vmem:[%s189 + $0x171] sm:$0xff]
  %v2998 = vld [vmem:[%s189 + $0x1b1] sm:$0xff]
  %v2999 = vld [vmem:[%s189 + $0x1b9] sm:$0xff]
  %v3000 = vld [vmem:[%s189 + $0x1c9] sm:$0xff]
  %v3001 = vld [vmem:[%s189 + $0x1d1] sm:$0xff]
  %v3002 = vld [vmem:[%s189 + $0x1e1] sm:$0xff]
  %v3003 = vld [vmem:[%s189 + $0x1e9] sm:$0xff]
  %v3004 = vld [vmem:[%s189 + $0x1f9] sm:$0xff]
  %v3005 = vld [vmem:[%s189 + $0x201] sm:$0xff]
  %v3006 = vld [vmem:[%s189 + $0x211] sm:$0xff]
  %v3007 = vld [vmem:[%s189 + $0x219] sm:$0xff]
  %v3008 = vld [vmem:[%s189 + $0x229] sm:$0xff]
  %v3009 = vld [vmem:[%s189 + $0x231] sm:$0xff]
  %v3010 = vld [vmem:[%s189 + $0x241] sm:$0xff]
  %v3011 = vld [vmem:[%s189 + $0x249] sm:$0xff]
  %v3012 = vld [vmem:[%s189 + $0x259] sm:$0xff]
  %v3013 = vld [vmem:[%s189 + $0x261] sm:$0xff]
  %v3014 = vld [vmem:[%s189 + $0x271] sm:$0xff]
  %v3015 = vld [vmem:[%s189 + $0x279] sm:$0xff]
  %v3016 = vld [vmem:[%s189 + $0x289] sm:$0xff]
  %v3017 = vld [vmem:[%s189 + $0x291] sm:$0xff]
  %v3018 = vld [vmem:[%s189 + $0x2a1] sm:$0xff]
  %v3019 = vld [vmem:[%s189 + $0x2a9] sm:$0xff]
  %v3020 = vld [vmem:[%s189 + $0x2b9] sm:$0xff]
  %v3021 = vld [vmem:[%s189 + $0x2c1] sm:$0xff]
  %v3022 = vld [vmem:[%s189 + $0x2d1] sm:$0xff]
  %v3023 = vld [vmem:[%s189 + $0x2d9] sm:$0xff]
  %v3024 = vld [vmem:[%s189 + $0x2e9] sm:$0xff]
  %v3025 = vld [vmem:[%s189 + $0x2f1] sm:$0xff]
  %v3026 = vld [vmem:[%s189 + $0x301] sm:$0xff]
  %v3027 = vld [vmem:[%s189 + $0x309] sm:$0xff]
  %v3028 = vld [vmem:[%s189 + $0x319] sm:$0xff]
  %v3029 = vld [vmem:[%s189 + $0x321] sm:$0xff]
  %s3030 = scalar_lea.vmem %s1, 16
  %v3031 = vld [vmem:[%s3030] sm:$0xf]
  %v3033 = vsel %vm14, %v2966, 0
  %v3036 = vsel %vm14, %v2967, 0
  %v3039 = vsel %vm14, %v2968, 0
  %v3042 = vsel %vm14, %v2969, 0
  %v3045 = vsel %vm14, %v2970, 0
  %v3048 = vsel %vm14, %v2971, 0
  %v3051 = vsel %vm14, %v2972, 0
  %v3054 = vsel %vm14, %v2973, 0
  %v3057 = vsel %vm14, %v2974, 0
  %v3060 = vsel %vm14, %v2975, 0
  %v3063 = vsel %vm14, %v2976, 0
  %v3066 = vsel %vm14, %v2977, 0
  %v3069 = vsel %vm14, %v2978, 0
  %v3072 = vsel %vm14, %v2979, 0
  %v3075 = vsel %vm14, %v2980, 0
  %v3078 = vsel %vm14, %v2981, 0
  %v3081 = vsel %vm14, %v2982, 0
  %v3084 = vsel %vm14, %v2983, 0
  %v3087 = vsel %vm14, %v2984, 0
  %v3090 = vsel %vm14, %v2985, 0
  %v3093 = vsel %vm14, %v2986, 0
  %v3096 = vsel %vm14, %v2987, 0
  %v3099 = vsel %vm14, %v2988, 0
  %v3102 = vsel %vm14, %v2989, 0
  %v3105 = vsel %vm14, %v2990, 0
  %v3108 = vsel %vm14, %v2991, 0
  %v3111 = vsel %vm14, %v2992, 0
  %v3114 = vsel %vm14, %v2993, 0
  %v3117 = vsel %vm14, %v2994, 0
  %v3120 = vsel %vm14, %v2995, 0
  %v3123 = vsel %vm14, %v2996, 0
  %v3126 = vsel %vm14, %v2997, 0
  %v3129 = vsel %vm14, %v2998, 0
  %v3132 = vsel %vm14, %v2999, 0
  %v3135 = vsel %vm14, %v3000, 0
  %v3138 = vsel %vm14, %v3001, 0
  %v3141 = vsel %vm14, %v3002, 0
  %v3144 = vsel %vm14, %v3003, 0
  %v3147 = vsel %vm14, %v3004, 0
  %v3150 = vsel %vm14, %v3005, 0
  %v3153 = vsel %vm14, %v3006, 0
  %v3156 = vsel %vm14, %v3007, 0
  %v3159 = vsel %vm14, %v3008, 0
  %v3162 = vsel %vm14, %v3009, 0
  %v3165 = vsel %vm14, %v3010, 0
  %v3168 = vsel %vm14, %v3011, 0
  %v3171 = vsel %vm14, %v3012, 0
  %v3174 = vsel %vm14, %v3013, 0
  %v3177 = vsel %vm14, %v3014, 0
  %v3180 = vsel %vm14, %v3015, 0
  %v3183 = vsel %vm14, %v3016, 0
  %v3186 = vsel %vm14, %v3017, 0
  %v3189 = vsel %vm14, %v3018, 0
  %v3192 = vsel %vm14, %v3019, 0
  %v3195 = vsel %vm14, %v3020, 0
  %v3198 = vsel %vm14, %v3021, 0
  %v3201 = vsel %vm14, %v3022, 0
  %v3204 = vsel %vm14, %v3023, 0
  %v3207 = vsel %vm14, %v3024, 0
  %v3210 = vsel %vm14, %v3025, 0
  %v3213 = vsel %vm14, %v3026, 0
  %v3216 = vsel %vm14, %v3027, 0
  %v3219 = vsel %vm14, %v3028, 0
  %v3222 = vsel %vm14, %v3029, 0
  %v3225 = vsel %vm577, %v3031, 0
  %3227 = vmatprep.subr.mxu0 0.0
  %3228 = vmatpush1.msra.mxu0 0.0
  %3229 = vmatprep.subr.mxu0 0.0
  %3230 = vmatpush1.msra.mxu0 0.0
  %3231 = vmatprep.subr.mxu0 0.0
  %3232 = vmatpush1.msra.mxu0 0.0
  %3233 = vmatprep.subr.mxu0 0.0
  %3234 = vmatpush1.msra.mxu0 0.0
  %3235 = vmatprep.subr.mxu0 0.0
  %3236 = vmatpush1.msra.mxu0 0.0
  %3237 = vmatprep.subr.mxu0 0.0
  %3238 = vmatpush1.msra.mxu0 0.0
  %3239 = vmatprep.subr.mxu0 0.0
  %3240 = vmatpush1.msra.mxu0 0.0
  %3241 = vmatprep.subr.mxu0 0.0
  %3242 = vmatpush1.msra.mxu0 0.0
  %3243 = vmatprep.subr.mxu0 0.0
  %3244 = vmatpush1.msra.mxu0 0.0
  %3245 = vmatprep.subr.mxu0 0.0
  %3246 = vmatpush1.msra.mxu0 0.0
  %3247 = vmatprep.subr.mxu0 0.0
  %3248 = vmatpush1.msra.mxu0 0.0
  %3249 = vmatprep.subr.mxu0 0.0
  %3250 = vmatpush1.msra.mxu0 0.0
  %3251 = vmatprep.subr.mxu0 0.0
  %3252 = vmatpush1.msra.mxu0 0.0
  %3253 = vmatprep.subr.mxu0 0.0
  %3254 = vmatpush1.msra.mxu0 0.0
  %3255 = vmatprep.subr.mxu0 0.0
  %3256 = vmatpush1.msra.mxu0 0.0
  %3257 = vmatprep.subr.mxu0 0.0
  %3258 = vmatpush1.msra.mxu0 %v3225
  %3259 = vmatprep.subr.mxu0 0.0
  %3260 = vmatpush2.msra.mxu0 0.0
  %3261 = vmatprep.subr.mxu0 0.0
  %3262 = vmatpush2.msra.mxu0 0.0
  %3263 = vmatprep.subr.mxu0 0.0
  %3264 = vmatpush2.msra.mxu0 0.0
  %3265 = vmatprep.subr.mxu0 0.0
  %3266 = vmatpush2.msra.mxu0 0.0
  %3267 = vmatprep.subr.mxu0 0.0
  %3268 = vmatpush2.msra.mxu0 0.0
  %3269 = vmatprep.subr.mxu0 0.0
  %3270 = vmatpush2.msra.mxu0 0.0
  %3271 = vmatprep.subr.mxu0 0.0
  %3272 = vmatpush2.msra.mxu0 0.0
  %3273 = vmatprep.subr.mxu0 0.0
  %3274 = vmatpush2.msra.mxu0 0.0
  %3275 = vmatprep.subr.mxu0 0.0
  %3276 = vmatpush2.msra.mxu0 0.0
  %3277 = vmatprep.subr.mxu0 0.0
  %3278 = vmatpush2.msra.mxu0 0.0
  %3279 = vmatprep.subr.mxu0 0.0
  %3280 = vmatpush2.msra.mxu0 0.0
  %3281 = vmatprep.subr.mxu0 0.0
  %3282 = vmatpush2.msra.mxu0 0.0
  %3283 = vmatprep.subr.mxu0 0.0
  %3284 = vmatpush2.msra.mxu0 0.0
  %3285 = vmatprep.subr.mxu0 0.0
  %3286 = vmatpush2.msra.mxu0 0.0
  %3287 = vmatprep.subr.mxu0 0.0
  %3288 = vmatpush2.msra.mxu0 0.0
  %3289 = vmatprep.subr.mxu0 0.0
  %3290 = vmatpush2.msra.mxu0 0.0
  %3291 = vmatprep.mubr.f32.mxu0 0.0
  %3292 = vmatmul.mubr.f32.gmra.mxu0 %v3033
  %v3293 = vpop.f32.mrf.mxu0
  %v3294 = vadd.f32 0.0, %v3293
  %v3295 = vpop.f32.mrf.mxu0
  %3296 = vmatprep.mubr.f32.mxu0 0.0
  %3297 = vmatmul.mubr.f32.gmra.mxu0 %v3036
  %v3298 = vpop.f32.mrf.mxu0
  %v3299 = vadd.f32 0.0, %v3298
  %v3300 = vpop.f32.mrf.mxu0
  %3301 = vmatprep.mubr.f32.mxu0 0.0
  %3302 = vmatmul.mubr.f32.gmra.mxu0 %v3039
  %v3303 = vpop.f32.mrf.mxu0
  %v3304 = vadd.f32 0.0, %v3303
  %v3305 = vpop.f32.mrf.mxu0
  %3306 = vmatprep.mubr.f32.mxu0 0.0
  %3307 = vmatmul.mubr.f32.gmra.mxu0 %v3042
  %v3308 = vpop.f32.mrf.mxu0
  %v3309 = vadd.f32 0.0, %v3308
  %v3310 = vpop.f32.mrf.mxu0
  %3311 = vmatprep.mubr.f32.mxu0 0.0
  %3312 = vmatmul.mubr.f32.gmra.mxu0 %v3045
  %v3313 = vpop.f32.mrf.mxu0
  %v3314 = vadd.f32 0.0, %v3313
  %v3315 = vpop.f32.mrf.mxu0
  %3316 = vmatprep.mubr.f32.mxu0 0.0
  %3317 = vmatmul.mubr.f32.gmra.mxu0 %v3048
  %v3318 = vpop.f32.mrf.mxu0
  %v3319 = vadd.f32 0.0, %v3318
  %v3320 = vpop.f32.mrf.mxu0
  %3321 = vmatprep.mubr.f32.mxu0 0.0
  %3322 = vmatmul.mubr.f32.gmra.mxu0 %v3051
  %v3323 = vpop.f32.mrf.mxu0
  %v3324 = vadd.f32 0.0, %v3323
  %v3325 = vpop.f32.mrf.mxu0
  %3326 = vmatprep.mubr.f32.mxu0 0.0
  %3327 = vmatmul.mubr.f32.gmra.mxu0 %v3054
  %v3328 = vpop.f32.mrf.mxu0
  %v3329 = vadd.f32 0.0, %v3328
  %v3330 = vpop.f32.mrf.mxu0
  %3331 = vmatprep.mubr.f32.mxu0 0.0
  %3332 = vmatmul.mubr.f32.gmra.mxu0 %v3057
  %v3333 = vpop.f32.mrf.mxu0
  %v3334 = vadd.f32 0.0, %v3333
  %v3335 = vpop.f32.mrf.mxu0
  %3336 = vmatprep.mubr.f32.mxu0 0.0
  %3337 = vmatmul.mubr.f32.gmra.mxu0 %v3060
  %v3338 = vpop.f32.mrf.mxu0
  %v3339 = vadd.f32 0.0, %v3338
  %v3340 = vpop.f32.mrf.mxu0
  %3341 = vmatprep.mubr.f32.mxu0 0.0
  %3342 = vmatmul.mubr.f32.gmra.mxu0 %v3063
  %v3343 = vpop.f32.mrf.mxu0
  %v3344 = vadd.f32 0.0, %v3343
  %v3345 = vpop.f32.mrf.mxu0
  %3346 = vmatprep.mubr.f32.mxu0 0.0
  %3347 = vmatmul.mubr.f32.gmra.mxu0 %v3066
  %v3348 = vpop.f32.mrf.mxu0
  %v3349 = vadd.f32 0.0, %v3348
  %v3350 = vpop.f32.mrf.mxu0
  %3351 = vmatprep.mubr.f32.mxu0 0.0
  %3352 = vmatmul.mubr.f32.gmra.mxu0 %v3069
  %v3353 = vpop.f32.mrf.mxu0
  %v3354 = vadd.f32 0.0, %v3353
  %v3355 = vpop.f32.mrf.mxu0
  %3356 = vmatprep.mubr.f32.mxu0 0.0
  %3357 = vmatmul.mubr.f32.gmra.mxu0 %v3072
  %v3358 = vpop.f32.mrf.mxu0
  %v3359 = vadd.f32 0.0, %v3358
  %v3360 = vpop.f32.mrf.mxu0
  %3361 = vmatprep.mubr.f32.mxu0 0.0
  %3362 = vmatmul.mubr.f32.gmra.mxu0 %v3075
  %v3363 = vpop.f32.mrf.mxu0
  %v3364 = vadd.f32 0.0, %v3363
  %v3365 = vpop.f32.mrf.mxu0
  %3366 = vmatprep.mubr.f32.mxu0 0.0
  %3367 = vmatmul.mubr.f32.gmra.mxu0 %v3078
  %v3368 = vpop.f32.mrf.mxu0
  %v3369 = vadd.f32 0.0, %v3368
  %v3370 = vpop.f32.mrf.mxu0
  %3371 = vmatprep.mubr.f32.mxu0 0.0
  %3372 = vmatmul.mubr.f32.gmra.mxu0 %v3081
  %v3373 = vpop.f32.mrf.mxu0
  %v3374 = vadd.f32 0.0, %v3373
  %v3375 = vpop.f32.mrf.mxu0
  %3376 = vmatprep.mubr.f32.mxu0 0.0
  %3377 = vmatmul.mubr.f32.gmra.mxu0 %v3084
  %v3378 = vpop.f32.mrf.mxu0
  %v3379 = vadd.f32 0.0, %v3378
  %v3380 = vpop.f32.mrf.mxu0
  %3381 = vmatprep.mubr.f32.mxu0 0.0
  %3382 = vmatmul.mubr.f32.gmra.mxu0 %v3087
  %v3383 = vpop.f32.mrf.mxu0
  %v3384 = vadd.f32 0.0, %v3383
  %v3385 = vpop.f32.mrf.mxu0
  %3386 = vmatprep.mubr.f32.mxu0 0.0
  %3387 = vmatmul.mubr.f32.gmra.mxu0 %v3090
  %v3388 = vpop.f32.mrf.mxu0
  %v3389 = vadd.f32 0.0, %v3388
  %v3390 = vpop.f32.mrf.mxu0
  %3391 = vmatprep.mubr.f32.mxu0 0.0
  %3392 = vmatmul.mubr.f32.gmra.mxu0 %v3093
  %v3393 = vpop.f32.mrf.mxu0
  %v3394 = vadd.f32 0.0, %v3393
  %v3395 = vpop.f32.mrf.mxu0
  %3396 = vmatprep.mubr.f32.mxu0 0.0
  %3397 = vmatmul.mubr.f32.gmra.mxu0 %v3096
  %v3398 = vpop.f32.mrf.mxu0
  %v3399 = vadd.f32 0.0, %v3398
  %v3400 = vpop.f32.mrf.mxu0
  %3401 = vmatprep.mubr.f32.mxu0 0.0
  %3402 = vmatmul.mubr.f32.gmra.mxu0 %v3099
  %v3403 = vpop.f32.mrf.mxu0
  %v3404 = vadd.f32 0.0, %v3403
  %v3405 = vpop.f32.mrf.mxu0
  %3406 = vmatprep.mubr.f32.mxu0 0.0
  %3407 = vmatmul.mubr.f32.gmra.mxu0 %v3102
  %v3408 = vpop.f32.mrf.mxu0
  %v3409 = vadd.f32 0.0, %v3408
  %v3410 = vpop.f32.mrf.mxu0
  %3411 = vmatprep.mubr.f32.mxu0 0.0
  %3412 = vmatmul.mubr.f32.gmra.mxu0 %v3105
  %v3413 = vpop.f32.mrf.mxu0
  %v3414 = vadd.f32 0.0, %v3413
  %v3415 = vpop.f32.mrf.mxu0
  %3416 = vmatprep.mubr.f32.mxu0 0.0
  %3417 = vmatmul.mubr.f32.gmra.mxu0 %v3108
  %v3418 = vpop.f32.mrf.mxu0
  %v3419 = vadd.f32 0.0, %v3418
  %v3420 = vpop.f32.mrf.mxu0
  %3421 = vmatprep.mubr.f32.mxu0 0.0
  %3422 = vmatmul.mubr.f32.gmra.mxu0 %v3111
  %v3423 = vpop.f32.mrf.mxu0
  %v3424 = vadd.f32 0.0, %v3423
  %v3425 = vpop.f32.mrf.mxu0
  %3426 = vmatprep.mubr.f32.mxu0 0.0
  %3427 = vmatmul.mubr.f32.gmra.mxu0 %v3114
  %v3428 = vpop.f32.mrf.mxu0
  %v3429 = vadd.f32 0.0, %v3428
  %v3430 = vpop.f32.mrf.mxu0
  %3431 = vmatprep.mubr.f32.mxu0 0.0
  %3432 = vmatmul.mubr.f32.gmra.mxu0 %v3117
  %v3433 = vpop.f32.mrf.mxu0
  %v3434 = vadd.f32 0.0, %v3433
  %v3435 = vpop.f32.mrf.mxu0
  %3436 = vmatprep.mubr.f32.mxu0 0.0
  %3437 = vmatmul.mubr.f32.gmra.mxu0 %v3120
  %v3438 = vpop.f32.mrf.mxu0
  %v3439 = vadd.f32 0.0, %v3438
  %v3440 = vpop.f32.mrf.mxu0
  %3441 = vmatprep.mubr.f32.mxu0 0.0
  %3442 = vmatmul.mubr.f32.gmra.mxu0 %v3123
  %v3443 = vpop.f32.mrf.mxu0
  %v3444 = vadd.f32 0.0, %v3443
  %v3445 = vpop.f32.mrf.mxu0
  %3446 = vmatprep.mubr.f32.mxu0 0.0
  %3447 = vmatmul.mubr.f32.gmra.mxu0 %v3126
  %v3448 = vpop.f32.mrf.mxu0
  %v3449 = vadd.f32 0.0, %v3448
  %v3450 = vpop.f32.mrf.mxu0
  %3451 = vmatprep.mubr.f32.mxu0 0.0
  %3452 = vmatmul.mubr.f32.gmra.mxu0 %v3129
  %v3453 = vpop.f32.mrf.mxu0
  %v3454 = vadd.f32 0.0, %v3453
  %v3455 = vpop.f32.mrf.mxu0
  %3456 = vmatprep.mubr.f32.mxu0 0.0
  %3457 = vmatmul.mubr.f32.gmra.mxu0 %v3132
  %v3458 = vpop.f32.mrf.mxu0
  %v3459 = vadd.f32 0.0, %v3458
  %v3460 = vpop.f32.mrf.mxu0
  %3461 = vmatprep.mubr.f32.mxu0 0.0
  %3462 = vmatmul.mubr.f32.gmra.mxu0 %v3135
  %v3463 = vpop.f32.mrf.mxu0
  %v3464 = vadd.f32 0.0, %v3463
  %v3465 = vpop.f32.mrf.mxu0
  %3466 = vmatprep.mubr.f32.mxu0 0.0
  %3467 = vmatmul.mubr.f32.gmra.mxu0 %v3138
  %v3468 = vpop.f32.mrf.mxu0
  %v3469 = vadd.f32 0.0, %v3468
  %v3470 = vpop.f32.mrf.mxu0
  %3471 = vmatprep.mubr.f32.mxu0 0.0
  %3472 = vmatmul.mubr.f32.gmra.mxu0 %v3141
  %v3473 = vpop.f32.mrf.mxu0
  %v3474 = vadd.f32 0.0, %v3473
  %v3475 = vpop.f32.mrf.mxu0
  %3476 = vmatprep.mubr.f32.mxu0 0.0
  %3477 = vmatmul.mubr.f32.gmra.mxu0 %v3144
  %v3478 = vpop.f32.mrf.mxu0
  %v3479 = vadd.f32 0.0, %v3478
  %v3480 = vpop.f32.mrf.mxu0
  %3481 = vmatprep.mubr.f32.mxu0 0.0
  %3482 = vmatmul.mubr.f32.gmra.mxu0 %v3147
  %v3483 = vpop.f32.mrf.mxu0
  %v3484 = vadd.f32 0.0, %v3483
  %v3485 = vpop.f32.mrf.mxu0
  %3486 = vmatprep.mubr.f32.mxu0 0.0
  %3487 = vmatmul.mubr.f32.gmra.mxu0 %v3150
  %v3488 = vpop.f32.mrf.mxu0
  %v3489 = vadd.f32 0.0, %v3488
  %v3490 = vpop.f32.mrf.mxu0
  %3491 = vmatprep.mubr.f32.mxu0 0.0
  %3492 = vmatmul.mubr.f32.gmra.mxu0 %v3153
  %v3493 = vpop.f32.mrf.mxu0
  %v3494 = vadd.f32 0.0, %v3493
  %v3495 = vpop.f32.mrf.mxu0
  %3496 = vmatprep.mubr.f32.mxu0 0.0
  %3497 = vmatmul.mubr.f32.gmra.mxu0 %v3156
  %v3498 = vpop.f32.mrf.mxu0
  %v3499 = vadd.f32 0.0, %v3498
  %v3500 = vpop.f32.mrf.mxu0
  %3501 = vmatprep.mubr.f32.mxu0 0.0
  %3502 = vmatmul.mubr.f32.gmra.mxu0 %v3159
  %v3503 = vpop.f32.mrf.mxu0
  %v3504 = vadd.f32 0.0, %v3503
  %v3505 = vpop.f32.mrf.mxu0
  %3506 = vmatprep.mubr.f32.mxu0 0.0
  %3507 = vmatmul.mubr.f32.gmra.mxu0 %v3162
  %v3508 = vpop.f32.mrf.mxu0
  %v3509 = vadd.f32 0.0, %v3508
  %v3510 = vpop.f32.mrf.mxu0
  %3511 = vmatprep.mubr.f32.mxu0 0.0
  %3512 = vmatmul.mubr.f32.gmra.mxu0 %v3165
  %v3513 = vpop.f32.mrf.mxu0
  %v3514 = vadd.f32 0.0, %v3513
  %v3515 = vpop.f32.mrf.mxu0
  %3516 = vmatprep.mubr.f32.mxu0 0.0
  %3517 = vmatmul.mubr.f32.gmra.mxu0 %v3168
  %v3518 = vpop.f32.mrf.mxu0
  %v3519 = vadd.f32 0.0, %v3518
  %v3520 = vpop.f32.mrf.mxu0
  %3521 = vmatprep.mubr.f32.mxu0 0.0
  %3522 = vmatmul.mubr.f32.gmra.mxu0 %v3171
  %v3523 = vpop.f32.mrf.mxu0
  %v3524 = vadd.f32 0.0, %v3523
  %v3525 = vpop.f32.mrf.mxu0
  %3526 = vmatprep.mubr.f32.mxu0 0.0
  %3527 = vmatmul.mubr.f32.gmra.mxu0 %v3174
  %v3528 = vpop.f32.mrf.mxu0
  %v3529 = vadd.f32 0.0, %v3528
  %v3530 = vpop.f32.mrf.mxu0
  %3531 = vmatprep.mubr.f32.mxu0 0.0
  %3532 = vmatmul.mubr.f32.gmra.mxu0 %v3177
  %v3533 = vpop.f32.mrf.mxu0
  %v3534 = vadd.f32 0.0, %v3533
  %v3535 = vpop.f32.mrf.mxu0
  %3536 = vmatprep.mubr.f32.mxu0 0.0
  %3537 = vmatmul.mubr.f32.gmra.mxu0 %v3180
  %v3538 = vpop.f32.mrf.mxu0
  %v3539 = vadd.f32 0.0, %v3538
  %v3540 = vpop.f32.mrf.mxu0
  %3541 = vmatprep.mubr.f32.mxu0 0.0
  %3542 = vmatmul.mubr.f32.gmra.mxu0 %v3183
  %v3543 = vpop.f32.mrf.mxu0
  %v3544 = vadd.f32 0.0, %v3543
  %v3545 = vpop.f32.mrf.mxu0
  %3546 = vmatprep.mubr.f32.mxu0 0.0
  %3547 = vmatmul.mubr.f32.gmra.mxu0 %v3186
  %v3548 = vpop.f32.mrf.mxu0
  %v3549 = vadd.f32 0.0, %v3548
  %v3550 = vpop.f32.mrf.mxu0
  %3551 = vmatprep.mubr.f32.mxu0 0.0
  %3552 = vmatmul.mubr.f32.gmra.mxu0 %v3189
  %v3553 = vpop.f32.mrf.mxu0
  %v3554 = vadd.f32 0.0, %v3553
  %v3555 = vpop.f32.mrf.mxu0
  %3556 = vmatprep.mubr.f32.mxu0 0.0
  %3557 = vmatmul.mubr.f32.gmra.mxu0 %v3192
  %v3558 = vpop.f32.mrf.mxu0
  %v3559 = vadd.f32 0.0, %v3558
  %v3560 = vpop.f32.mrf.mxu0
  %3561 = vmatprep.mubr.f32.mxu0 0.0
  %3562 = vmatmul.mubr.f32.gmra.mxu0 %v3195
  %v3563 = vpop.f32.mrf.mxu0
  %v3564 = vadd.f32 0.0, %v3563
  %v3565 = vpop.f32.mrf.mxu0
  %3566 = vmatprep.mubr.f32.mxu0 0.0
  %3567 = vmatmul.mubr.f32.gmra.mxu0 %v3198
  %v3568 = vpop.f32.mrf.mxu0
  %v3569 = vadd.f32 0.0, %v3568
  %v3570 = vpop.f32.mrf.mxu0
  %3571 = vmatprep.mubr.f32.mxu0 0.0
  %3572 = vmatmul.mubr.f32.gmra.mxu0 %v3201
  %v3573 = vpop.f32.mrf.mxu0
  %v3574 = vadd.f32 0.0, %v3573
  %v3575 = vpop.f32.mrf.mxu0
  %3576 = vmatprep.mubr.f32.mxu0 0.0
  %3577 = vmatmul.mubr.f32.gmra.mxu0 %v3204
  %v3578 = vpop.f32.mrf.mxu0
  %v3579 = vadd.f32 0.0, %v3578
  %v3580 = vpop.f32.mrf.mxu0
  %3581 = vmatprep.mubr.f32.mxu0 0.0
  %3582 = vmatmul.mubr.f32.gmra.mxu0 %v3207
  %v3583 = vpop.f32.mrf.mxu0
  %v3584 = vadd.f32 0.0, %v3583
  %v3585 = vpop.f32.mrf.mxu0
  %3586 = vmatprep.mubr.f32.mxu0 0.0
  %3587 = vmatmul.mubr.f32.gmra.mxu0 %v3210
  %v3588 = vpop.f32.mrf.mxu0
  %v3589 = vadd.f32 0.0, %v3588
  %v3590 = vpop.f32.mrf.mxu0
  %3591 = vmatprep.mubr.f32.mxu0 0.0
  %3592 = vmatmul.mubr.f32.gmra.mxu0 %v3213
  %v3593 = vpop.f32.mrf.mxu0
  %v3594 = vadd.f32 0.0, %v3593
  %v3595 = vpop.f32.mrf.mxu0
  %3596 = vmatprep.mubr.f32.mxu0 0.0
  %3597 = vmatmul.mubr.f32.gmra.mxu0 %v3216
  %v3598 = vpop.f32.mrf.mxu0
  %v3599 = vadd.f32 0.0, %v3598
  %v3600 = vpop.f32.mrf.mxu0
  %3601 = vmatprep.mubr.f32.mxu0 0.0
  %3602 = vmatmul.mubr.f32.gmra.mxu0 %v3219
  %v3603 = vpop.f32.mrf.mxu0
  %v3604 = vadd.f32 0.0, %v3603
  %v3605 = vpop.f32.mrf.mxu0
  %3606 = vmatprep.mubr.f32.mxu0 0.0
  %3607 = vmatmul.mubr.f32.gmra.mxu0 %v3222
  %v3608 = vpop.f32.mrf.mxu0
  %v3609 = vadd.f32 0.0, %v3608
  %v3610 = vpop.f32.mrf.mxu0
  %3611 = vdwg.mxu0
  %v3612 = vadd.f32 %v2902, %v3294
  %v3613 = vadd.f32 %v2903, %v3299
  %v3614 = vadd.f32 %v2904, %v3304
  %v3615 = vadd.f32 %v2905, %v3309
  %v3616 = vadd.f32 %v2906, %v3314
  %v3617 = vadd.f32 %v2907, %v3319
  %v3618 = vadd.f32 %v2908, %v3324
  %v3619 = vadd.f32 %v2909, %v3329
  %v3620 = vadd.f32 %v2910, %v3334
  %v3621 = vadd.f32 %v2911, %v3339
  %v3622 = vadd.f32 %v2912, %v3344
  %v3623 = vadd.f32 %v2913, %v3349
  %v3624 = vadd.f32 %v2914, %v3354
  %v3625 = vadd.f32 %v2915, %v3359
  %v3626 = vadd.f32 %v2916, %v3364
  %v3627 = vadd.f32 %v2917, %v3369
  %v3628 = vadd.f32 %v2918, %v3374
  %v3629 = vadd.f32 %v2919, %v3379
  %v3630 = vadd.f32 %v2920, %v3384
  %v3631 = vadd.f32 %v2921, %v3389
  %v3632 = vadd.f32 %v2922, %v3394
  %v3633 = vadd.f32 %v2923, %v3399
  %v3634 = vadd.f32 %v2924, %v3404
  %v3635 = vadd.f32 %v2925, %v3409
  %v3636 = vadd.f32 %v2926, %v3414
  %v3637 = vadd.f32 %v2927, %v3419
  %v3638 = vadd.f32 %v2928, %v3424
  %v3639 = vadd.f32 %v2929, %v3429
  %v3640 = vadd.f32 %v2930, %v3434
  %v3641 = vadd.f32 %v2931, %v3439
  %v3642 = vadd.f32 %v2932, %v3444
  %v3643 = vadd.f32 %v2933, %v3449
  %v3644 = vadd.f32 %v2934, %v3454
  %v3645 = vadd.f32 %v2935, %v3459
  %v3646 = vadd.f32 %v2936, %v3464
  %v3647 = vadd.f32 %v2937, %v3469
  %v3648 = vadd.f32 %v2938, %v3474
  %v3649 = vadd.f32 %v2939, %v3479
  %v3650 = vadd.f32 %v2940, %v3484
  %v3651 = vadd.f32 %v2941, %v3489
  %v3652 = vadd.f32 %v2942, %v3494
  %v3653 = vadd.f32 %v2943, %v3499
  %v3654 = vadd.f32 %v2944, %v3504
  %v3655 = vadd.f32 %v2945, %v3509
  %v3656 = vadd.f32 %v2946, %v3514
  %v3657 = vadd.f32 %v2947, %v3519
  %v3658 = vadd.f32 %v2948, %v3524
  %v3659 = vadd.f32 %v2949, %v3529
  %v3660 = vadd.f32 %v2950, %v3534
  %v3661 = vadd.f32 %v2951, %v3539
  %v3662 = vadd.f32 %v2952, %v3544
  %v3663 = vadd.f32 %v2953, %v3549
  %v3664 = vadd.f32 %v2954, %v3554
  %v3665 = vadd.f32 %v2955, %v3559
  %v3666 = vadd.f32 %v2956, %v3564
  %v3667 = vadd.f32 %v2957, %v3569
  %v3668 = vadd.f32 %v2958, %v3574
  %v3669 = vadd.f32 %v2959, %v3579
  %v3670 = vadd.f32 %v2960, %v3584
  %v3671 = vadd.f32 %v2961, %v3589
  %v3672 = vadd.f32 %v2962, %v3594
  %v3673 = vadd.f32 %v2963, %v3599
  %v3674 = vadd.f32 %v2964, %v3604
  %v3675 = vadd.f32 %v2965, %v3609
  %v3676 = vld [vmem:[%s189 + $0x2] sm:$0xff]
  %v3677 = vld [vmem:[%s189 + $0xa] sm:$0xff]
  %v3678 = vld [vmem:[%s189 + $0x1a] sm:$0xff]
  %v3679 = vld [vmem:[%s189 + $0x22] sm:$0xff]
  %v3680 = vld [vmem:[%s189 + $0x32] sm:$0xff]
  %v3681 = vld [vmem:[%s189 + $0x3a] sm:$0xff]
  %v3682 = vld [vmem:[%s189 + $0x4a] sm:$0xff]
  %v3683 = vld [vmem:[%s189 + $0x52] sm:$0xff]
  %v3684 = vld [vmem:[%s189 + $0x62] sm:$0xff]
  %v3685 = vld [vmem:[%s189 + $0x6a] sm:$0xff]
  %v3686 = vld [vmem:[%s189 + $0x7a] sm:$0xff]
  %v3687 = vld [vmem:[%s189 + $0x82] sm:$0xff]
  %v3688 = vld [vmem:[%s189 + $0x92] sm:$0xff]
  %v3689 = vld [vmem:[%s189 + $0x9a] sm:$0xff]
  %v3690 = vld [vmem:[%s189 + $0xaa] sm:$0xff]
  %v3691 = vld [vmem:[%s189 + $0xb2] sm:$0xff]
  %v3692 = vld [vmem:[%s189 + $0xc2] sm:$0xff]
  %v3693 = vld [vmem:[%s189 + $0xca] sm:$0xff]
  %v3694 = vld [vmem:[%s189 + $0xda] sm:$0xff]
  %v3695 = vld [vmem:[%s189 + $0xe2] sm:$0xff]
  %v3696 = vld [vmem:[%s189 + $0xf2] sm:$0xff]
  %v3697 = vld [vmem:[%s189 + $0xfa] sm:$0xff]
  %v3698 = vld [vmem:[%s189 + $0x10a] sm:$0xff]
  %v3699 = vld [vmem:[%s189 + $0x112] sm:$0xff]
  %v3700 = vld [vmem:[%s189 + $0x122] sm:$0xff]
  %v3701 = vld [vmem:[%s189 + $0x12a] sm:$0xff]
  %v3702 = vld [vmem:[%s189 + $0x13a] sm:$0xff]
  %v3703 = vld [vmem:[%s189 + $0x142] sm:$0xff]
  %v3704 = vld [vmem:[%s189 + $0x152] sm:$0xff]
  %v3705 = vld [vmem:[%s189 + $0x15a] sm:$0xff]
  %v3706 = vld [vmem:[%s189 + $0x16a] sm:$0xff]
  %v3707 = vld [vmem:[%s189 + $0x172] sm:$0xff]
  %v3708 = vld [vmem:[%s189 + $0x1b2] sm:$0xff]
  %v3709 = vld [vmem:[%s189 + $0x1ba] sm:$0xff]
  %v3710 = vld [vmem:[%s189 + $0x1ca] sm:$0xff]
  %v3711 = vld [vmem:[%s189 + $0x1d2] sm:$0xff]
  %v3712 = vld [vmem:[%s189 + $0x1e2] sm:$0xff]
  %v3713 = vld [vmem:[%s189 + $0x1ea] sm:$0xff]
  %v3714 = vld [vmem:[%s189 + $0x1fa] sm:$0xff]
  %v3715 = vld [vmem:[%s189 + $0x202] sm:$0xff]
  %v3716 = vld [vmem:[%s189 + $0x212] sm:$0xff]
  %v3717 = vld [vmem:[%s189 + $0x21a] sm:$0xff]
  %v3718 = vld [vmem:[%s189 + $0x22a] sm:$0xff]
  %v3719 = vld [vmem:[%s189 + $0x232] sm:$0xff]
  %v3720 = vld [vmem:[%s189 + $0x242] sm:$0xff]
  %v3721 = vld [vmem:[%s189 + $0x24a] sm:$0xff]
  %v3722 = vld [vmem:[%s189 + $0x25a] sm:$0xff]
  %v3723 = vld [vmem:[%s189 + $0x262] sm:$0xff]
  %v3724 = vld [vmem:[%s189 + $0x272] sm:$0xff]
  %v3725 = vld [vmem:[%s189 + $0x27a] sm:$0xff]
  %v3726 = vld [vmem:[%s189 + $0x28a] sm:$0xff]
  %v3727 = vld [vmem:[%s189 + $0x292] sm:$0xff]
  %v3728 = vld [vmem:[%s189 + $0x2a2] sm:$0xff]
  %v3729 = vld [vmem:[%s189 + $0x2aa] sm:$0xff]
  %v3730 = vld [vmem:[%s189 + $0x2ba] sm:$0xff]
  %v3731 = vld [vmem:[%s189 + $0x2c2] sm:$0xff]
  %v3732 = vld [vmem:[%s189 + $0x2d2] sm:$0xff]
  %v3733 = vld [vmem:[%s189 + $0x2da] sm:$0xff]
  %v3734 = vld [vmem:[%s189 + $0x2ea] sm:$0xff]
  %v3735 = vld [vmem:[%s189 + $0x2f2] sm:$0xff]
  %v3736 = vld [vmem:[%s189 + $0x302] sm:$0xff]
  %v3737 = vld [vmem:[%s189 + $0x30a] sm:$0xff]
  %v3738 = vld [vmem:[%s189 + $0x31a] sm:$0xff]
  %v3739 = vld [vmem:[%s189 + $0x322] sm:$0xff]
  %s3740 = scalar_lea.vmem %s1, 20
  %v3741 = vld [vmem:[%s3740] sm:$0xf]
  %v3743 = vsel %vm14, %v3676, 0
  %v3746 = vsel %vm14, %v3677, 0
  %v3749 = vsel %vm14, %v3678, 0
  %v3752 = vsel %vm14, %v3679, 0
  %v3755 = vsel %vm14, %v3680, 0
  %v3758 = vsel %vm14, %v3681, 0
  %v3761 = vsel %vm14, %v3682, 0
  %v3764 = vsel %vm14, %v3683, 0
  %v3767 = vsel %vm14, %v3684, 0
  %v3770 = vsel %vm14, %v3685, 0
  %v3773 = vsel %vm14, %v3686, 0
  %v3776 = vsel %vm14, %v3687, 0
  %v3779 = vsel %vm14, %v3688, 0
  %v3782 = vsel %vm14, %v3689, 0
  %v3785 = vsel %vm14, %v3690, 0
  %v3788 = vsel %vm14, %v3691, 0
  %v3791 = vsel %vm14, %v3692, 0
  %v3794 = vsel %vm14, %v3693, 0
  %v3797 = vsel %vm14, %v3694, 0
  %v3800 = vsel %vm14, %v3695, 0
  %v3803 = vsel %vm14, %v3696, 0
  %v3806 = vsel %vm14, %v3697, 0
  %v3809 = vsel %vm14, %v3698, 0
  %v3812 = vsel %vm14, %v3699, 0
  %v3815 = vsel %vm14, %v3700, 0
  %v3818 = vsel %vm14, %v3701, 0
  %v3821 = vsel %vm14, %v3702, 0
  %v3824 = vsel %vm14, %v3703, 0
  %v3827 = vsel %vm14, %v3704, 0
  %v3830 = vsel %vm14, %v3705, 0
  %v3833 = vsel %vm14, %v3706, 0
  %v3836 = vsel %vm14, %v3707, 0
  %v3839 = vsel %vm14, %v3708, 0
  %v3842 = vsel %vm14, %v3709, 0
  %v3845 = vsel %vm14, %v3710, 0
  %v3848 = vsel %vm14, %v3711, 0
  %v3851 = vsel %vm14, %v3712, 0
  %v3854 = vsel %vm14, %v3713, 0
  %v3857 = vsel %vm14, %v3714, 0
  %v3860 = vsel %vm14, %v3715, 0
  %v3863 = vsel %vm14, %v3716, 0
  %v3866 = vsel %vm14, %v3717, 0
  %v3869 = vsel %vm14, %v3718, 0
  %v3872 = vsel %vm14, %v3719, 0
  %v3875 = vsel %vm14, %v3720, 0
  %v3878 = vsel %vm14, %v3721, 0
  %v3881 = vsel %vm14, %v3722, 0
  %v3884 = vsel %vm14, %v3723, 0
  %v3887 = vsel %vm14, %v3724, 0
  %v3890 = vsel %vm14, %v3725, 0
  %v3893 = vsel %vm14, %v3726, 0
  %v3896 = vsel %vm14, %v3727, 0
  %v3899 = vsel %vm14, %v3728, 0
  %v3902 = vsel %vm14, %v3729, 0
  %v3905 = vsel %vm14, %v3730, 0
  %v3908 = vsel %vm14, %v3731, 0
  %v3911 = vsel %vm14, %v3732, 0
  %v3914 = vsel %vm14, %v3733, 0
  %v3917 = vsel %vm14, %v3734, 0
  %v3920 = vsel %vm14, %v3735, 0
  %v3923 = vsel %vm14, %v3736, 0
  %v3926 = vsel %vm14, %v3737, 0
  %v3929 = vsel %vm14, %v3738, 0
  %v3932 = vsel %vm14, %v3739, 0
  %v3935 = vsel %vm577, %v3741, 0
  %3937 = vmatprep.subr.mxu0 0.0
  %3938 = vmatpush1.msra.mxu0 0.0
  %3939 = vmatprep.subr.mxu0 0.0
  %3940 = vmatpush1.msra.mxu0 0.0
  %3941 = vmatprep.subr.mxu0 0.0
  %3942 = vmatpush1.msra.mxu0 0.0
  %3943 = vmatprep.subr.mxu0 0.0
  %3944 = vmatpush1.msra.mxu0 0.0
  %3945 = vmatprep.subr.mxu0 0.0
  %3946 = vmatpush1.msra.mxu0 0.0
  %3947 = vmatprep.subr.mxu0 0.0
  %3948 = vmatpush1.msra.mxu0 0.0
  %3949 = vmatprep.subr.mxu0 0.0
  %3950 = vmatpush1.msra.mxu0 0.0
  %3951 = vmatprep.subr.mxu0 0.0
  %3952 = vmatpush1.msra.mxu0 0.0
  %3953 = vmatprep.subr.mxu0 0.0
  %3954 = vmatpush1.msra.mxu0 0.0
  %3955 = vmatprep.subr.mxu0 0.0
  %3956 = vmatpush1.msra.mxu0 0.0
  %3957 = vmatprep.subr.mxu0 0.0
  %3958 = vmatpush1.msra.mxu0 0.0
  %3959 = vmatprep.subr.mxu0 0.0
  %3960 = vmatpush1.msra.mxu0 0.0
  %3961 = vmatprep.subr.mxu0 0.0
  %3962 = vmatpush1.msra.mxu0 0.0
  %3963 = vmatprep.subr.mxu0 0.0
  %3964 = vmatpush1.msra.mxu0 0.0
  %3965 = vmatprep.subr.mxu0 0.0
  %3966 = vmatpush1.msra.mxu0 0.0
  %3967 = vmatprep.subr.mxu0 0.0
  %3968 = vmatpush1.msra.mxu0 %v3935
  %3969 = vmatprep.subr.mxu0 0.0
  %3970 = vmatpush2.msra.mxu0 0.0
  %3971 = vmatprep.subr.mxu0 0.0
  %3972 = vmatpush2.msra.mxu0 0.0
  %3973 = vmatprep.subr.mxu0 0.0
  %3974 = vmatpush2.msra.mxu0 0.0
  %3975 = vmatprep.subr.mxu0 0.0
  %3976 = vmatpush2.msra.mxu0 0.0
  %3977 = vmatprep.subr.mxu0 0.0
  %3978 = vmatpush2.msra.mxu0 0.0
  %3979 = vmatprep.subr.mxu0 0.0
  %3980 = vmatpush2.msra.mxu0 0.0
  %3981 = vmatprep.subr.mxu0 0.0
  %3982 = vmatpush2.msra.mxu0 0.0
  %3983 = vmatprep.subr.mxu0 0.0
  %3984 = vmatpush2.msra.mxu0 0.0
  %3985 = vmatprep.subr.mxu0 0.0
  %3986 = vmatpush2.msra.mxu0 0.0
  %3987 = vmatprep.subr.mxu0 0.0
  %3988 = vmatpush2.msra.mxu0 0.0
  %3989 = vmatprep.subr.mxu0 0.0
  %3990 = vmatpush2.msra.mxu0 0.0
  %3991 = vmatprep.subr.mxu0 0.0
  %3992 = vmatpush2.msra.mxu0 0.0
  %3993 = vmatprep.subr.mxu0 0.0
  %3994 = vmatpush2.msra.mxu0 0.0
  %3995 = vmatprep.subr.mxu0 0.0
  %3996 = vmatpush2.msra.mxu0 0.0
  %3997 = vmatprep.subr.mxu0 0.0
  %3998 = vmatpush2.msra.mxu0 0.0
  %3999 = vmatprep.subr.mxu0 0.0
  %4000 = vmatpush2.msra.mxu0 0.0
  %4001 = vmatprep.mubr.f32.mxu0 0.0
  %4002 = vmatmul.mubr.f32.gmra.mxu0 %v3743
  %v4003 = vpop.f32.mrf.mxu0
  %v4004 = vadd.f32 0.0, %v4003
  %v4005 = vpop.f32.mrf.mxu0
  %4006 = vmatprep.mubr.f32.mxu0 0.0
  %4007 = vmatmul.mubr.f32.gmra.mxu0 %v3746
  %v4008 = vpop.f32.mrf.mxu0
  %v4009 = vadd.f32 0.0, %v4008
  %v4010 = vpop.f32.mrf.mxu0
  %4011 = vmatprep.mubr.f32.mxu0 0.0
  %4012 = vmatmul.mubr.f32.gmra.mxu0 %v3749
  %v4013 = vpop.f32.mrf.mxu0
  %v4014 = vadd.f32 0.0, %v4013
  %v4015 = vpop.f32.mrf.mxu0
  %4016 = vmatprep.mubr.f32.mxu0 0.0
  %4017 = vmatmul.mubr.f32.gmra.mxu0 %v3752
  %v4018 = vpop.f32.mrf.mxu0
  %v4019 = vadd.f32 0.0, %v4018
  %v4020 = vpop.f32.mrf.mxu0
  %4021 = vmatprep.mubr.f32.mxu0 0.0
  %4022 = vmatmul.mubr.f32.gmra.mxu0 %v3755
  %v4023 = vpop.f32.mrf.mxu0
  %v4024 = vadd.f32 0.0, %v4023
  %v4025 = vpop.f32.mrf.mxu0
  %4026 = vmatprep.mubr.f32.mxu0 0.0
  %4027 = vmatmul.mubr.f32.gmra.mxu0 %v3758
  %v4028 = vpop.f32.mrf.mxu0
  %v4029 = vadd.f32 0.0, %v4028
  %v4030 = vpop.f32.mrf.mxu0
  %4031 = vmatprep.mubr.f32.mxu0 0.0
  %4032 = vmatmul.mubr.f32.gmra.mxu0 %v3761
  %v4033 = vpop.f32.mrf.mxu0
  %v4034 = vadd.f32 0.0, %v4033
  %v4035 = vpop.f32.mrf.mxu0
  %4036 = vmatprep.mubr.f32.mxu0 0.0
  %4037 = vmatmul.mubr.f32.gmra.mxu0 %v3764
  %v4038 = vpop.f32.mrf.mxu0
  %v4039 = vadd.f32 0.0, %v4038
  %v4040 = vpop.f32.mrf.mxu0
  %4041 = vmatprep.mubr.f32.mxu0 0.0
  %4042 = vmatmul.mubr.f32.gmra.mxu0 %v3767
  %v4043 = vpop.f32.mrf.mxu0
  %v4044 = vadd.f32 0.0, %v4043
  %v4045 = vpop.f32.mrf.mxu0
  %4046 = vmatprep.mubr.f32.mxu0 0.0
  %4047 = vmatmul.mubr.f32.gmra.mxu0 %v3770
  %v4048 = vpop.f32.mrf.mxu0
  %v4049 = vadd.f32 0.0, %v4048
  %v4050 = vpop.f32.mrf.mxu0
  %4051 = vmatprep.mubr.f32.mxu0 0.0
  %4052 = vmatmul.mubr.f32.gmra.mxu0 %v3773
  %v4053 = vpop.f32.mrf.mxu0
  %v4054 = vadd.f32 0.0, %v4053
  %v4055 = vpop.f32.mrf.mxu0
  %4056 = vmatprep.mubr.f32.mxu0 0.0
  %4057 = vmatmul.mubr.f32.gmra.mxu0 %v3776
  %v4058 = vpop.f32.mrf.mxu0
  %v4059 = vadd.f32 0.0, %v4058
  %v4060 = vpop.f32.mrf.mxu0
  %4061 = vmatprep.mubr.f32.mxu0 0.0
  %4062 = vmatmul.mubr.f32.gmra.mxu0 %v3779
  %v4063 = vpop.f32.mrf.mxu0
  %v4064 = vadd.f32 0.0, %v4063
  %v4065 = vpop.f32.mrf.mxu0
  %4066 = vmatprep.mubr.f32.mxu0 0.0
  %4067 = vmatmul.mubr.f32.gmra.mxu0 %v3782
  %v4068 = vpop.f32.mrf.mxu0
  %v4069 = vadd.f32 0.0, %v4068
  %v4070 = vpop.f32.mrf.mxu0
  %4071 = vmatprep.mubr.f32.mxu0 0.0
  %4072 = vmatmul.mubr.f32.gmra.mxu0 %v3785
  %v4073 = vpop.f32.mrf.mxu0
  %v4074 = vadd.f32 0.0, %v4073
  %v4075 = vpop.f32.mrf.mxu0
  %4076 = vmatprep.mubr.f32.mxu0 0.0
  %4077 = vmatmul.mubr.f32.gmra.mxu0 %v3788
  %v4078 = vpop.f32.mrf.mxu0
  %v4079 = vadd.f32 0.0, %v4078
  %v4080 = vpop.f32.mrf.mxu0
  %4081 = vmatprep.mubr.f32.mxu0 0.0
  %4082 = vmatmul.mubr.f32.gmra.mxu0 %v3791
  %v4083 = vpop.f32.mrf.mxu0
  %v4084 = vadd.f32 0.0, %v4083
  %v4085 = vpop.f32.mrf.mxu0
  %4086 = vmatprep.mubr.f32.mxu0 0.0
  %4087 = vmatmul.mubr.f32.gmra.mxu0 %v3794
  %v4088 = vpop.f32.mrf.mxu0
  %v4089 = vadd.f32 0.0, %v4088
  %v4090 = vpop.f32.mrf.mxu0
  %4091 = vmatprep.mubr.f32.mxu0 0.0
  %4092 = vmatmul.mubr.f32.gmra.mxu0 %v3797
  %v4093 = vpop.f32.mrf.mxu0
  %v4094 = vadd.f32 0.0, %v4093
  %v4095 = vpop.f32.mrf.mxu0
  %4096 = vmatprep.mubr.f32.mxu0 0.0
  %4097 = vmatmul.mubr.f32.gmra.mxu0 %v3800
  %v4098 = vpop.f32.mrf.mxu0
  %v4099 = vadd.f32 0.0, %v4098
  %v4100 = vpop.f32.mrf.mxu0
  %4101 = vmatprep.mubr.f32.mxu0 0.0
  %4102 = vmatmul.mubr.f32.gmra.mxu0 %v3803
  %v4103 = vpop.f32.mrf.mxu0
  %v4104 = vadd.f32 0.0, %v4103
  %v4105 = vpop.f32.mrf.mxu0
  %4106 = vmatprep.mubr.f32.mxu0 0.0
  %4107 = vmatmul.mubr.f32.gmra.mxu0 %v3806
  %v4108 = vpop.f32.mrf.mxu0
  %v4109 = vadd.f32 0.0, %v4108
  %v4110 = vpop.f32.mrf.mxu0
  %4111 = vmatprep.mubr.f32.mxu0 0.0
  %4112 = vmatmul.mubr.f32.gmra.mxu0 %v3809
  %v4113 = vpop.f32.mrf.mxu0
  %v4114 = vadd.f32 0.0, %v4113
  %v4115 = vpop.f32.mrf.mxu0
  %4116 = vmatprep.mubr.f32.mxu0 0.0
  %4117 = vmatmul.mubr.f32.gmra.mxu0 %v3812
  %v4118 = vpop.f32.mrf.mxu0
  %v4119 = vadd.f32 0.0, %v4118
  %v4120 = vpop.f32.mrf.mxu0
  %4121 = vmatprep.mubr.f32.mxu0 0.0
  %4122 = vmatmul.mubr.f32.gmra.mxu0 %v3815
  %v4123 = vpop.f32.mrf.mxu0
  %v4124 = vadd.f32 0.0, %v4123
  %v4125 = vpop.f32.mrf.mxu0
  %4126 = vmatprep.mubr.f32.mxu0 0.0
  %4127 = vmatmul.mubr.f32.gmra.mxu0 %v3818
  %v4128 = vpop.f32.mrf.mxu0
  %v4129 = vadd.f32 0.0, %v4128
  %v4130 = vpop.f32.mrf.mxu0
  %4131 = vmatprep.mubr.f32.mxu0 0.0
  %4132 = vmatmul.mubr.f32.gmra.mxu0 %v3821
  %v4133 = vpop.f32.mrf.mxu0
  %v4134 = vadd.f32 0.0, %v4133
  %v4135 = vpop.f32.mrf.mxu0
  %4136 = vmatprep.mubr.f32.mxu0 0.0
  %4137 = vmatmul.mubr.f32.gmra.mxu0 %v3824
  %v4138 = vpop.f32.mrf.mxu0
  %v4139 = vadd.f32 0.0, %v4138
  %v4140 = vpop.f32.mrf.mxu0
  %4141 = vmatprep.mubr.f32.mxu0 0.0
  %4142 = vmatmul.mubr.f32.gmra.mxu0 %v3827
  %v4143 = vpop.f32.mrf.mxu0
  %v4144 = vadd.f32 0.0, %v4143
  %v4145 = vpop.f32.mrf.mxu0
  %4146 = vmatprep.mubr.f32.mxu0 0.0
  %4147 = vmatmul.mubr.f32.gmra.mxu0 %v3830
  %v4148 = vpop.f32.mrf.mxu0
  %v4149 = vadd.f32 0.0, %v4148
  %v4150 = vpop.f32.mrf.mxu0
  %4151 = vmatprep.mubr.f32.mxu0 0.0
  %4152 = vmatmul.mubr.f32.gmra.mxu0 %v3833
  %v4153 = vpop.f32.mrf.mxu0
  %v4154 = vadd.f32 0.0, %v4153
  %v4155 = vpop.f32.mrf.mxu0
  %4156 = vmatprep.mubr.f32.mxu0 0.0
  %4157 = vmatmul.mubr.f32.gmra.mxu0 %v3836
  %v4158 = vpop.f32.mrf.mxu0
  %v4159 = vadd.f32 0.0, %v4158
  %v4160 = vpop.f32.mrf.mxu0
  %4161 = vmatprep.mubr.f32.mxu0 0.0
  %4162 = vmatmul.mubr.f32.gmra.mxu0 %v3839
  %v4163 = vpop.f32.mrf.mxu0
  %v4164 = vadd.f32 0.0, %v4163
  %v4165 = vpop.f32.mrf.mxu0
  %4166 = vmatprep.mubr.f32.mxu0 0.0
  %4167 = vmatmul.mubr.f32.gmra.mxu0 %v3842
  %v4168 = vpop.f32.mrf.mxu0
  %v4169 = vadd.f32 0.0, %v4168
  %v4170 = vpop.f32.mrf.mxu0
  %4171 = vmatprep.mubr.f32.mxu0 0.0
  %4172 = vmatmul.mubr.f32.gmra.mxu0 %v3845
  %v4173 = vpop.f32.mrf.mxu0
  %v4174 = vadd.f32 0.0, %v4173
  %v4175 = vpop.f32.mrf.mxu0
  %4176 = vmatprep.mubr.f32.mxu0 0.0
  %4177 = vmatmul.mubr.f32.gmra.mxu0 %v3848
  %v4178 = vpop.f32.mrf.mxu0
  %v4179 = vadd.f32 0.0, %v4178
  %v4180 = vpop.f32.mrf.mxu0
  %4181 = vmatprep.mubr.f32.mxu0 0.0
  %4182 = vmatmul.mubr.f32.gmra.mxu0 %v3851
  %v4183 = vpop.f32.mrf.mxu0
  %v4184 = vadd.f32 0.0, %v4183
  %v4185 = vpop.f32.mrf.mxu0
  %4186 = vmatprep.mubr.f32.mxu0 0.0
  %4187 = vmatmul.mubr.f32.gmra.mxu0 %v3854
  %v4188 = vpop.f32.mrf.mxu0
  %v4189 = vadd.f32 0.0, %v4188
  %v4190 = vpop.f32.mrf.mxu0
  %4191 = vmatprep.mubr.f32.mxu0 0.0
  %4192 = vmatmul.mubr.f32.gmra.mxu0 %v3857
  %v4193 = vpop.f32.mrf.mxu0
  %v4194 = vadd.f32 0.0, %v4193
  %v4195 = vpop.f32.mrf.mxu0
  %4196 = vmatprep.mubr.f32.mxu0 0.0
  %4197 = vmatmul.mubr.f32.gmra.mxu0 %v3860
  %v4198 = vpop.f32.mrf.mxu0
  %v4199 = vadd.f32 0.0, %v4198
  %v4200 = vpop.f32.mrf.mxu0
  %4201 = vmatprep.mubr.f32.mxu0 0.0
  %4202 = vmatmul.mubr.f32.gmra.mxu0 %v3863
  %v4203 = vpop.f32.mrf.mxu0
  %v4204 = vadd.f32 0.0, %v4203
  %v4205 = vpop.f32.mrf.mxu0
  %4206 = vmatprep.mubr.f32.mxu0 0.0
  %4207 = vmatmul.mubr.f32.gmra.mxu0 %v3866
  %v4208 = vpop.f32.mrf.mxu0
  %v4209 = vadd.f32 0.0, %v4208
  %v4210 = vpop.f32.mrf.mxu0
  %4211 = vmatprep.mubr.f32.mxu0 0.0
  %4212 = vmatmul.mubr.f32.gmra.mxu0 %v3869
  %v4213 = vpop.f32.mrf.mxu0
  %v4214 = vadd.f32 0.0, %v4213
  %v4215 = vpop.f32.mrf.mxu0
  %4216 = vmatprep.mubr.f32.mxu0 0.0
  %4217 = vmatmul.mubr.f32.gmra.mxu0 %v3872
  %v4218 = vpop.f32.mrf.mxu0
  %v4219 = vadd.f32 0.0, %v4218
  %v4220 = vpop.f32.mrf.mxu0
  %4221 = vmatprep.mubr.f32.mxu0 0.0
  %4222 = vmatmul.mubr.f32.gmra.mxu0 %v3875
  %v4223 = vpop.f32.mrf.mxu0
  %v4224 = vadd.f32 0.0, %v4223
  %v4225 = vpop.f32.mrf.mxu0
  %4226 = vmatprep.mubr.f32.mxu0 0.0
  %4227 = vmatmul.mubr.f32.gmra.mxu0 %v3878
  %v4228 = vpop.f32.mrf.mxu0
  %v4229 = vadd.f32 0.0, %v4228
  %v4230 = vpop.f32.mrf.mxu0
  %4231 = vmatprep.mubr.f32.mxu0 0.0
  %4232 = vmatmul.mubr.f32.gmra.mxu0 %v3881
  %v4233 = vpop.f32.mrf.mxu0
  %v4234 = vadd.f32 0.0, %v4233
  %v4235 = vpop.f32.mrf.mxu0
  %4236 = vmatprep.mubr.f32.mxu0 0.0
  %4237 = vmatmul.mubr.f32.gmra.mxu0 %v3884
  %v4238 = vpop.f32.mrf.mxu0
  %v4239 = vadd.f32 0.0, %v4238
  %v4240 = vpop.f32.mrf.mxu0
  %4241 = vmatprep.mubr.f32.mxu0 0.0
  %4242 = vmatmul.mubr.f32.gmra.mxu0 %v3887
  %v4243 = vpop.f32.mrf.mxu0
  %v4244 = vadd.f32 0.0, %v4243
  %v4245 = vpop.f32.mrf.mxu0
  %4246 = vmatprep.mubr.f32.mxu0 0.0
  %4247 = vmatmul.mubr.f32.gmra.mxu0 %v3890
  %v4248 = vpop.f32.mrf.mxu0
  %v4249 = vadd.f32 0.0, %v4248
  %v4250 = vpop.f32.mrf.mxu0
  %4251 = vmatprep.mubr.f32.mxu0 0.0
  %4252 = vmatmul.mubr.f32.gmra.mxu0 %v3893
  %v4253 = vpop.f32.mrf.mxu0
  %v4254 = vadd.f32 0.0, %v4253
  %v4255 = vpop.f32.mrf.mxu0
  %4256 = vmatprep.mubr.f32.mxu0 0.0
  %4257 = vmatmul.mubr.f32.gmra.mxu0 %v3896
  %v4258 = vpop.f32.mrf.mxu0
  %v4259 = vadd.f32 0.0, %v4258
  %v4260 = vpop.f32.mrf.mxu0
  %4261 = vmatprep.mubr.f32.mxu0 0.0
  %4262 = vmatmul.mubr.f32.gmra.mxu0 %v3899
  %v4263 = vpop.f32.mrf.mxu0
  %v4264 = vadd.f32 0.0, %v4263
  %v4265 = vpop.f32.mrf.mxu0
  %4266 = vmatprep.mubr.f32.mxu0 0.0
  %4267 = vmatmul.mubr.f32.gmra.mxu0 %v3902
  %v4268 = vpop.f32.mrf.mxu0
  %v4269 = vadd.f32 0.0, %v4268
  %v4270 = vpop.f32.mrf.mxu0
  %4271 = vmatprep.mubr.f32.mxu0 0.0
  %4272 = vmatmul.mubr.f32.gmra.mxu0 %v3905
  %v4273 = vpop.f32.mrf.mxu0
  %v4274 = vadd.f32 0.0, %v4273
  %v4275 = vpop.f32.mrf.mxu0
  %4276 = vmatprep.mubr.f32.mxu0 0.0
  %4277 = vmatmul.mubr.f32.gmra.mxu0 %v3908
  %v4278 = vpop.f32.mrf.mxu0
  %v4279 = vadd.f32 0.0, %v4278
  %v4280 = vpop.f32.mrf.mxu0
  %4281 = vmatprep.mubr.f32.mxu0 0.0
  %4282 = vmatmul.mubr.f32.gmra.mxu0 %v3911
  %v4283 = vpop.f32.mrf.mxu0
  %v4284 = vadd.f32 0.0, %v4283
  %v4285 = vpop.f32.mrf.mxu0
  %4286 = vmatprep.mubr.f32.mxu0 0.0
  %4287 = vmatmul.mubr.f32.gmra.mxu0 %v3914
  %v4288 = vpop.f32.mrf.mxu0
  %v4289 = vadd.f32 0.0, %v4288
  %v4290 = vpop.f32.mrf.mxu0
  %4291 = vmatprep.mubr.f32.mxu0 0.0
  %4292 = vmatmul.mubr.f32.gmra.mxu0 %v3917
  %v4293 = vpop.f32.mrf.mxu0
  %v4294 = vadd.f32 0.0, %v4293
  %v4295 = vpop.f32.mrf.mxu0
  %4296 = vmatprep.mubr.f32.mxu0 0.0
  %4297 = vmatmul.mubr.f32.gmra.mxu0 %v3920
  %v4298 = vpop.f32.mrf.mxu0
  %v4299 = vadd.f32 0.0, %v4298
  %v4300 = vpop.f32.mrf.mxu0
  %4301 = vmatprep.mubr.f32.mxu0 0.0
  %4302 = vmatmul.mubr.f32.gmra.mxu0 %v3923
  %v4303 = vpop.f32.mrf.mxu0
  %v4304 = vadd.f32 0.0, %v4303
  %v4305 = vpop.f32.mrf.mxu0
  %4306 = vmatprep.mubr.f32.mxu0 0.0
  %4307 = vmatmul.mubr.f32.gmra.mxu0 %v3926
  %v4308 = vpop.f32.mrf.mxu0
  %v4309 = vadd.f32 0.0, %v4308
  %v4310 = vpop.f32.mrf.mxu0
  %4311 = vmatprep.mubr.f32.mxu0 0.0
  %4312 = vmatmul.mubr.f32.gmra.mxu0 %v3929
  %v4313 = vpop.f32.mrf.mxu0
  %v4314 = vadd.f32 0.0, %v4313
  %v4315 = vpop.f32.mrf.mxu0
  %4316 = vmatprep.mubr.f32.mxu0 0.0
  %4317 = vmatmul.mubr.f32.gmra.mxu0 %v3932
  %v4318 = vpop.f32.mrf.mxu0
  %v4319 = vadd.f32 0.0, %v4318
  %v4320 = vpop.f32.mrf.mxu0
  %4321 = vdwg.mxu0
  %v4322 = vadd.f32 %v3612, %v4004
  %v4323 = vadd.f32 %v3613, %v4009
  %v4324 = vadd.f32 %v3614, %v4014
  %v4325 = vadd.f32 %v3615, %v4019
  %v4326 = vadd.f32 %v3616, %v4024
  %v4327 = vadd.f32 %v3617, %v4029
  %v4328 = vadd.f32 %v3618, %v4034
  %v4329 = vadd.f32 %v3619, %v4039
  %v4330 = vadd.f32 %v3620, %v4044
  %v4331 = vadd.f32 %v3621, %v4049
  %v4332 = vadd.f32 %v3622, %v4054
  %v4333 = vadd.f32 %v3623, %v4059
  %v4334 = vadd.f32 %v3624, %v4064
  %v4335 = vadd.f32 %v3625, %v4069
  %v4336 = vadd.f32 %v3626, %v4074
  %v4337 = vadd.f32 %v3627, %v4079
  %v4338 = vadd.f32 %v3628, %v4084
  %v4339 = vadd.f32 %v3629, %v4089
  %v4340 = vadd.f32 %v3630, %v4094
  %v4341 = vadd.f32 %v3631, %v4099
  %v4342 = vadd.f32 %v3632, %v4104
  %v4343 = vadd.f32 %v3633, %v4109
  %v4344 = vadd.f32 %v3634, %v4114
  %v4345 = vadd.f32 %v3635, %v4119
  %v4346 = vadd.f32 %v3636, %v4124
  %v4347 = vadd.f32 %v3637, %v4129
  %v4348 = vadd.f32 %v3638, %v4134
  %v4349 = vadd.f32 %v3639, %v4139
  %v4350 = vadd.f32 %v3640, %v4144
  %v4351 = vadd.f32 %v3641, %v4149
  %v4352 = vadd.f32 %v3642, %v4154
  %v4353 = vadd.f32 %v3643, %v4159
  %v4354 = vadd.f32 %v3644, %v4164
  %v4355 = vadd.f32 %v3645, %v4169
  %v4356 = vadd.f32 %v3646, %v4174
  %v4357 = vadd.f32 %v3647, %v4179
  %v4358 = vadd.f32 %v3648, %v4184
  %v4359 = vadd.f32 %v3649, %v4189
  %v4360 = vadd.f32 %v3650, %v4194
  %v4361 = vadd.f32 %v3651, %v4199
  %v4362 = vadd.f32 %v3652, %v4204
  %v4363 = vadd.f32 %v3653, %v4209
  %v4364 = vadd.f32 %v3654, %v4214
  %v4365 = vadd.f32 %v3655, %v4219
  %v4366 = vadd.f32 %v3656, %v4224
  %v4367 = vadd.f32 %v3657, %v4229
  %v4368 = vadd.f32 %v3658, %v4234
  %v4369 = vadd.f32 %v3659, %v4239
  %v4370 = vadd.f32 %v3660, %v4244
  %v4371 = vadd.f32 %v3661, %v4249
  %v4372 = vadd.f32 %v3662, %v4254
  %v4373 = vadd.f32 %v3663, %v4259
  %v4374 = vadd.f32 %v3664, %v4264
  %v4375 = vadd.f32 %v3665, %v4269
  %v4376 = vadd.f32 %v3666, %v4274
  %v4377 = vadd.f32 %v3667, %v4279
  %v4378 = vadd.f32 %v3668, %v4284
  %v4379 = vadd.f32 %v3669, %v4289
  %v4380 = vadd.f32 %v3670, %v4294
  %v4381 = vadd.f32 %v3671, %v4299
  %v4382 = vadd.f32 %v3672, %v4304
  %v4383 = vadd.f32 %v3673, %v4309
  %v4384 = vadd.f32 %v3674, %v4314
  %v4385 = vadd.f32 %v3675, %v4319
  %s4386 = scalar_lea.vmem [#allocation2], 48
  %v4387 = vld [vmem:[%s4386] sm:$0xff]
  %v4388 = vld [vmem:[%s4386 + $0x8] sm:$0xff]
  %v4389 = vld [vmem:[%s4386 + $0x18] sm:$0xff]
  %v4390 = vld [vmem:[%s4386 + $0x20] sm:$0xff]
  %v4391 = vld [vmem:[%s4386 + $0x30] sm:$0xff]
  %v4392 = vld [vmem:[%s4386 + $0x38] sm:$0xff]
  %v4393 = vld [vmem:[%s4386 + $0x48] sm:$0xff]
  %v4394 = vld [vmem:[%s4386 + $0x50] sm:$0xff]
  %v4395 = vld [vmem:[%s4386 + $0x60] sm:$0xff]
  %v4396 = vld [vmem:[%s4386 + $0x68] sm:$0xff]
  %v4397 = vld [vmem:[%s4386 + $0x78] sm:$0xff]
  %v4398 = vld [vmem:[%s4386 + $0x80] sm:$0xff]
  %v4399 = vld [vmem:[%s4386 + $0x90] sm:$0xff]
  %v4400 = vld [vmem:[%s4386 + $0x98] sm:$0xff]
  %v4401 = vld [vmem:[%s4386 + $0xa8] sm:$0xff]
  %v4402 = vld [vmem:[%s4386 + $0xb0] sm:$0xff]
  %v4403 = vld [vmem:[%s4386 + $0xc0] sm:$0xff]
  %v4404 = vld [vmem:[%s4386 + $0xc8] sm:$0xff]
  %v4405 = vld [vmem:[%s4386 + $0xd8] sm:$0xff]
  %v4406 = vld [vmem:[%s4386 + $0xe0] sm:$0xff]
  %v4407 = vld [vmem:[%s4386 + $0xf0] sm:$0xff]
  %v4408 = vld [vmem:[%s4386 + $0xf8] sm:$0xff]
  %v4409 = vld [vmem:[%s4386 + $0x108] sm:$0xff]
  %v4410 = vld [vmem:[%s4386 + $0x110] sm:$0xff]
  %v4411 = vld [vmem:[%s4386 + $0x120] sm:$0xff]
  %v4412 = vld [vmem:[%s4386 + $0x128] sm:$0xff]
  %v4413 = vld [vmem:[%s4386 + $0x138] sm:$0xff]
  %v4414 = vld [vmem:[%s4386 + $0x140] sm:$0xff]
  %v4415 = vld [vmem:[%s4386 + $0x150] sm:$0xff]
  %v4416 = vld [vmem:[%s4386 + $0x158] sm:$0xff]
  %v4417 = vld [vmem:[%s4386 + $0x168] sm:$0xff]
  %v4418 = vld [vmem:[%s4386 + $0x170] sm:$0xff]
  %v4419 = vld [vmem:[%s4386 + $0x1b0] sm:$0xff]
  %v4420 = vld [vmem:[%s4386 + $0x1b8] sm:$0xff]
  %v4421 = vld [vmem:[%s4386 + $0x1c8] sm:$0xff]
  %v4422 = vld [vmem:[%s4386 + $0x1d0] sm:$0xff]
  %v4423 = vld [vmem:[%s4386 + $0x1e0] sm:$0xff]
  %v4424 = vld [vmem:[%s4386 + $0x1e8] sm:$0xff]
  %v4425 = vld [vmem:[%s4386 + $0x1f8] sm:$0xff]
  %v4426 = vld [vmem:[%s4386 + $0x200] sm:$0xff]
  %v4427 = vld [vmem:[%s4386 + $0x210] sm:$0xff]
  %v4428 = vld [vmem:[%s4386 + $0x218] sm:$0xff]
  %v4429 = vld [vmem:[%s4386 + $0x228] sm:$0xff]
  %v4430 = vld [vmem:[%s4386 + $0x230] sm:$0xff]
  %v4431 = vld [vmem:[%s4386 + $0x240] sm:$0xff]
  %v4432 = vld [vmem:[%s4386 + $0x248] sm:$0xff]
  %v4433 = vld [vmem:[%s4386 + $0x258] sm:$0xff]
  %v4434 = vld [vmem:[%s4386 + $0x260] sm:$0xff]
  %v4435 = vld [vmem:[%s4386 + $0x270] sm:$0xff]
  %v4436 = vld [vmem:[%s4386 + $0x278] sm:$0xff]
  %v4437 = vld [vmem:[%s4386 + $0x288] sm:$0xff]
  %v4438 = vld [vmem:[%s4386 + $0x290] sm:$0xff]
  %v4439 = vld [vmem:[%s4386 + $0x2a0] sm:$0xff]
  %v4440 = vld [vmem:[%s4386 + $0x2a8] sm:$0xff]
  %v4441 = vld [vmem:[%s4386 + $0x2b8] sm:$0xff]
  %v4442 = vld [vmem:[%s4386 + $0x2c0] sm:$0xff]
  %v4443 = vld [vmem:[%s4386 + $0x2d0] sm:$0xff]
  %v4444 = vld [vmem:[%s4386 + $0x2d8] sm:$0xff]
  %v4445 = vld [vmem:[%s4386 + $0x2e8] sm:$0xff]
  %v4446 = vld [vmem:[%s4386 + $0x2f0] sm:$0xff]
  %v4447 = vld [vmem:[%s4386 + $0x300] sm:$0xff]
  %v4448 = vld [vmem:[%s4386 + $0x308] sm:$0xff]
  %v4449 = vld [vmem:[%s4386 + $0x318] sm:$0xff]
  %v4450 = vld [vmem:[%s4386 + $0x320] sm:$0xff]
  %s4451 = scalar_lea.vmem %s1, 24
  %v4452 = vld [vmem:[%s4451] sm:$0xf]
  %v4454 = vsel %vm14, %v4387, 0
  %v4457 = vsel %vm14, %v4388, 0
  %v4460 = vsel %vm14, %v4389, 0
  %v4463 = vsel %vm14, %v4390, 0
  %v4466 = vsel %vm14, %v4391, 0
  %v4469 = vsel %vm14, %v4392, 0
  %v4472 = vsel %vm14, %v4393, 0
  %v4475 = vsel %vm14, %v4394, 0
  %v4478 = vsel %vm14, %v4395, 0
  %v4481 = vsel %vm14, %v4396, 0
  %v4484 = vsel %vm14, %v4397, 0
  %v4487 = vsel %vm14, %v4398, 0
  %v4490 = vsel %vm14, %v4399, 0
  %v4493 = vsel %vm14, %v4400, 0
  %v4496 = vsel %vm14, %v4401, 0
  %v4499 = vsel %vm14, %v4402, 0
  %v4502 = vsel %vm14, %v4403, 0
  %v4505 = vsel %vm14, %v4404, 0
  %v4508 = vsel %vm14, %v4405, 0
  %v4511 = vsel %vm14, %v4406, 0
  %v4514 = vsel %vm14, %v4407, 0
  %v4517 = vsel %vm14, %v4408, 0
  %v4520 = vsel %vm14, %v4409, 0
  %v4523 = vsel %vm14, %v4410, 0
  %v4526 = vsel %vm14, %v4411, 0
  %v4529 = vsel %vm14, %v4412, 0
  %v4532 = vsel %vm14, %v4413, 0
  %v4535 = vsel %vm14, %v4414, 0
  %v4538 = vsel %vm14, %v4415, 0
  %v4541 = vsel %vm14, %v4416, 0
  %v4544 = vsel %vm14, %v4417, 0
  %v4547 = vsel %vm14, %v4418, 0
  %v4550 = vsel %vm14, %v4419, 0
  %v4553 = vsel %vm14, %v4420, 0
  %v4556 = vsel %vm14, %v4421, 0
  %v4559 = vsel %vm14, %v4422, 0
  %v4562 = vsel %vm14, %v4423, 0
  %v4565 = vsel %vm14, %v4424, 0
  %v4568 = vsel %vm14, %v4425, 0
  %v4571 = vsel %vm14, %v4426, 0
  %v4574 = vsel %vm14, %v4427, 0
  %v4577 = vsel %vm14, %v4428, 0
  %v4580 = vsel %vm14, %v4429, 0
  %v4583 = vsel %vm14, %v4430, 0
  %v4586 = vsel %vm14, %v4431, 0
  %v4589 = vsel %vm14, %v4432, 0
  %v4592 = vsel %vm14, %v4433, 0
  %v4595 = vsel %vm14, %v4434, 0
  %v4598 = vsel %vm14, %v4435, 0
  %v4601 = vsel %vm14, %v4436, 0
  %v4604 = vsel %vm14, %v4437, 0
  %v4607 = vsel %vm14, %v4438, 0
  %v4610 = vsel %vm14, %v4439, 0
  %v4613 = vsel %vm14, %v4440, 0
  %v4616 = vsel %vm14, %v4441, 0
  %v4619 = vsel %vm14, %v4442, 0
  %v4622 = vsel %vm14, %v4443, 0
  %v4625 = vsel %vm14, %v4444, 0
  %v4628 = vsel %vm14, %v4445, 0
  %v4631 = vsel %vm14, %v4446, 0
  %v4634 = vsel %vm14, %v4447, 0
  %v4637 = vsel %vm14, %v4448, 0
  %v4640 = vsel %vm14, %v4449, 0
  %v4643 = vsel %vm14, %v4450, 0
  %v4646 = vsel %vm577, %v4452, 0
  %4648 = vmatprep.subr.mxu0 0.0
  %4649 = vmatpush1.msra.mxu0 0.0
  %4650 = vmatprep.subr.mxu0 0.0
  %4651 = vmatpush1.msra.mxu0 0.0
  %4652 = vmatprep.subr.mxu0 0.0
  %4653 = vmatpush1.msra.mxu0 0.0
  %4654 = vmatprep.subr.mxu0 0.0
  %4655 = vmatpush1.msra.mxu0 0.0
  %4656 = vmatprep.subr.mxu0 0.0
  %4657 = vmatpush1.msra.mxu0 0.0
  %4658 = vmatprep.subr.mxu0 0.0
  %4659 = vmatpush1.msra.mxu0 0.0
  %4660 = vmatprep.subr.mxu0 0.0
  %4661 = vmatpush1.msra.mxu0 0.0
  %4662 = vmatprep.subr.mxu0 0.0
  %4663 = vmatpush1.msra.mxu0 0.0
  %4664 = vmatprep.subr.mxu0 0.0
  %4665 = vmatpush1.msra.mxu0 0.0
  %4666 = vmatprep.subr.mxu0 0.0
  %4667 = vmatpush1.msra.mxu0 0.0
  %4668 = vmatprep.subr.mxu0 0.0
  %4669 = vmatpush1.msra.mxu0 0.0
  %4670 = vmatprep.subr.mxu0 0.0
  %4671 = vmatpush1.msra.mxu0 0.0
  %4672 = vmatprep.subr.mxu0 0.0
  %4673 = vmatpush1.msra.mxu0 0.0
  %4674 = vmatprep.subr.mxu0 0.0
  %4675 = vmatpush1.msra.mxu0 0.0
  %4676 = vmatprep.subr.mxu0 0.0
  %4677 = vmatpush1.msra.mxu0 0.0
  %4678 = vmatprep.subr.mxu0 0.0
  %4679 = vmatpush1.msra.mxu0 %v4646
  %4680 = vmatprep.subr.mxu0 0.0
  %4681 = vmatpush2.msra.mxu0 0.0
  %4682 = vmatprep.subr.mxu0 0.0
  %4683 = vmatpush2.msra.mxu0 0.0
  %4684 = vmatprep.subr.mxu0 0.0
  %4685 = vmatpush2.msra.mxu0 0.0
  %4686 = vmatprep.subr.mxu0 0.0
  %4687 = vmatpush2.msra.mxu0 0.0
  %4688 = vmatprep.subr.mxu0 0.0
  %4689 = vmatpush2.msra.mxu0 0.0
  %4690 = vmatprep.subr.mxu0 0.0
  %4691 = vmatpush2.msra.mxu0 0.0
  %4692 = vmatprep.subr.mxu0 0.0
  %4693 = vmatpush2.msra.mxu0 0.0
  %4694 = vmatprep.subr.mxu0 0.0
  %4695 = vmatpush2.msra.mxu0 0.0
  %4696 = vmatprep.subr.mxu0 0.0
  %4697 = vmatpush2.msra.mxu0 0.0
  %4698 = vmatprep.subr.mxu0 0.0
  %4699 = vmatpush2.msra.mxu0 0.0
  %4700 = vmatprep.subr.mxu0 0.0
  %4701 = vmatpush2.msra.mxu0 0.0
  %4702 = vmatprep.subr.mxu0 0.0
  %4703 = vmatpush2.msra.mxu0 0.0
  %4704 = vmatprep.subr.mxu0 0.0
  %4705 = vmatpush2.msra.mxu0 0.0
  %4706 = vmatprep.subr.mxu0 0.0
  %4707 = vmatpush2.msra.mxu0 0.0
  %4708 = vmatprep.subr.mxu0 0.0
  %4709 = vmatpush2.msra.mxu0 0.0
  %4710 = vmatprep.subr.mxu0 0.0
  %4711 = vmatpush2.msra.mxu0 0.0
  %4712 = vmatprep.mubr.f32.mxu0 0.0
  %4713 = vmatmul.mubr.f32.gmra.mxu0 %v4454
  %v4714 = vpop.f32.mrf.mxu0
  %v4715 = vadd.f32 0.0, %v4714
  %v4716 = vpop.f32.mrf.mxu0
  %4717 = vmatprep.mubr.f32.mxu0 0.0
  %4718 = vmatmul.mubr.f32.gmra.mxu0 %v4457
  %v4719 = vpop.f32.mrf.mxu0
  %v4720 = vadd.f32 0.0, %v4719
  %v4721 = vpop.f32.mrf.mxu0
  %4722 = vmatprep.mubr.f32.mxu0 0.0
  %4723 = vmatmul.mubr.f32.gmra.mxu0 %v4460
  %v4724 = vpop.f32.mrf.mxu0
  %v4725 = vadd.f32 0.0, %v4724
  %v4726 = vpop.f32.mrf.mxu0
  %4727 = vmatprep.mubr.f32.mxu0 0.0
  %4728 = vmatmul.mubr.f32.gmra.mxu0 %v4463
  %v4729 = vpop.f32.mrf.mxu0
  %v4730 = vadd.f32 0.0, %v4729
  %v4731 = vpop.f32.mrf.mxu0
  %4732 = vmatprep.mubr.f32.mxu0 0.0
  %4733 = vmatmul.mubr.f32.gmra.mxu0 %v4466
  %v4734 = vpop.f32.mrf.mxu0
  %v4735 = vadd.f32 0.0, %v4734
  %v4736 = vpop.f32.mrf.mxu0
  %4737 = vmatprep.mubr.f32.mxu0 0.0
  %4738 = vmatmul.mubr.f32.gmra.mxu0 %v4469
  %v4739 = vpop.f32.mrf.mxu0
  %v4740 = vadd.f32 0.0, %v4739
  %v4741 = vpop.f32.mrf.mxu0
  %4742 = vmatprep.mubr.f32.mxu0 0.0
  %4743 = vmatmul.mubr.f32.gmra.mxu0 %v4472
  %v4744 = vpop.f32.mrf.mxu0
  %v4745 = vadd.f32 0.0, %v4744
  %v4746 = vpop.f32.mrf.mxu0
  %4747 = vmatprep.mubr.f32.mxu0 0.0
  %4748 = vmatmul.mubr.f32.gmra.mxu0 %v4475
  %v4749 = vpop.f32.mrf.mxu0
  %v4750 = vadd.f32 0.0, %v4749
  %v4751 = vpop.f32.mrf.mxu0
  %4752 = vmatprep.mubr.f32.mxu0 0.0
  %4753 = vmatmul.mubr.f32.gmra.mxu0 %v4478
  %v4754 = vpop.f32.mrf.mxu0
  %v4755 = vadd.f32 0.0, %v4754
  %v4756 = vpop.f32.mrf.mxu0
  %4757 = vmatprep.mubr.f32.mxu0 0.0
  %4758 = vmatmul.mubr.f32.gmra.mxu0 %v4481
  %v4759 = vpop.f32.mrf.mxu0
  %v4760 = vadd.f32 0.0, %v4759
  %v4761 = vpop.f32.mrf.mxu0
  %4762 = vmatprep.mubr.f32.mxu0 0.0
  %4763 = vmatmul.mubr.f32.gmra.mxu0 %v4484
  %v4764 = vpop.f32.mrf.mxu0
  %v4765 = vadd.f32 0.0, %v4764
  %v4766 = vpop.f32.mrf.mxu0
  %4767 = vmatprep.mubr.f32.mxu0 0.0
  %4768 = vmatmul.mubr.f32.gmra.mxu0 %v4487
  %v4769 = vpop.f32.mrf.mxu0
  %v4770 = vadd.f32 0.0, %v4769
  %v4771 = vpop.f32.mrf.mxu0
  %4772 = vmatprep.mubr.f32.mxu0 0.0
  %4773 = vmatmul.mubr.f32.gmra.mxu0 %v4490
  %v4774 = vpop.f32.mrf.mxu0
  %v4775 = vadd.f32 0.0, %v4774
  %v4776 = vpop.f32.mrf.mxu0
  %4777 = vmatprep.mubr.f32.mxu0 0.0
  %4778 = vmatmul.mubr.f32.gmra.mxu0 %v4493
  %v4779 = vpop.f32.mrf.mxu0
  %v4780 = vadd.f32 0.0, %v4779
  %v4781 = vpop.f32.mrf.mxu0
  %4782 = vmatprep.mubr.f32.mxu0 0.0
  %4783 = vmatmul.mubr.f32.gmra.mxu0 %v4496
  %v4784 = vpop.f32.mrf.mxu0
  %v4785 = vadd.f32 0.0, %v4784
  %v4786 = vpop.f32.mrf.mxu0
  %4787 = vmatprep.mubr.f32.mxu0 0.0
  %4788 = vmatmul.mubr.f32.gmra.mxu0 %v4499
  %v4789 = vpop.f32.mrf.mxu0
  %v4790 = vadd.f32 0.0, %v4789
  %v4791 = vpop.f32.mrf.mxu0
  %4792 = vmatprep.mubr.f32.mxu0 0.0
  %4793 = vmatmul.mubr.f32.gmra.mxu0 %v4502
  %v4794 = vpop.f32.mrf.mxu0
  %v4795 = vadd.f32 0.0, %v4794
  %v4796 = vpop.f32.mrf.mxu0
  %4797 = vmatprep.mubr.f32.mxu0 0.0
  %4798 = vmatmul.mubr.f32.gmra.mxu0 %v4505
  %v4799 = vpop.f32.mrf.mxu0
  %v4800 = vadd.f32 0.0, %v4799
  %v4801 = vpop.f32.mrf.mxu0
  %4802 = vmatprep.mubr.f32.mxu0 0.0
  %4803 = vmatmul.mubr.f32.gmra.mxu0 %v4508
  %v4804 = vpop.f32.mrf.mxu0
  %v4805 = vadd.f32 0.0, %v4804
  %v4806 = vpop.f32.mrf.mxu0
  %4807 = vmatprep.mubr.f32.mxu0 0.0
  %4808 = vmatmul.mubr.f32.gmra.mxu0 %v4511
  %v4809 = vpop.f32.mrf.mxu0
  %v4810 = vadd.f32 0.0, %v4809
  %v4811 = vpop.f32.mrf.mxu0
  %4812 = vmatprep.mubr.f32.mxu0 0.0
  %4813 = vmatmul.mubr.f32.gmra.mxu0 %v4514
  %v4814 = vpop.f32.mrf.mxu0
  %v4815 = vadd.f32 0.0, %v4814
  %v4816 = vpop.f32.mrf.mxu0
  %4817 = vmatprep.mubr.f32.mxu0 0.0
  %4818 = vmatmul.mubr.f32.gmra.mxu0 %v4517
  %v4819 = vpop.f32.mrf.mxu0
  %v4820 = vadd.f32 0.0, %v4819
  %v4821 = vpop.f32.mrf.mxu0
  %4822 = vmatprep.mubr.f32.mxu0 0.0
  %4823 = vmatmul.mubr.f32.gmra.mxu0 %v4520
  %v4824 = vpop.f32.mrf.mxu0
  %v4825 = vadd.f32 0.0, %v4824
  %v4826 = vpop.f32.mrf.mxu0
  %4827 = vmatprep.mubr.f32.mxu0 0.0
  %4828 = vmatmul.mubr.f32.gmra.mxu0 %v4523
  %v4829 = vpop.f32.mrf.mxu0
  %v4830 = vadd.f32 0.0, %v4829
  %v4831 = vpop.f32.mrf.mxu0
  %4832 = vmatprep.mubr.f32.mxu0 0.0
  %4833 = vmatmul.mubr.f32.gmra.mxu0 %v4526
  %v4834 = vpop.f32.mrf.mxu0
  %v4835 = vadd.f32 0.0, %v4834
  %v4836 = vpop.f32.mrf.mxu0
  %4837 = vmatprep.mubr.f32.mxu0 0.0
  %4838 = vmatmul.mubr.f32.gmra.mxu0 %v4529
  %v4839 = vpop.f32.mrf.mxu0
  %v4840 = vadd.f32 0.0, %v4839
  %v4841 = vpop.f32.mrf.mxu0
  %4842 = vmatprep.mubr.f32.mxu0 0.0
  %4843 = vmatmul.mubr.f32.gmra.mxu0 %v4532
  %v4844 = vpop.f32.mrf.mxu0
  %v4845 = vadd.f32 0.0, %v4844
  %v4846 = vpop.f32.mrf.mxu0
  %4847 = vmatprep.mubr.f32.mxu0 0.0
  %4848 = vmatmul.mubr.f32.gmra.mxu0 %v4535
  %v4849 = vpop.f32.mrf.mxu0
  %v4850 = vadd.f32 0.0, %v4849
  %v4851 = vpop.f32.mrf.mxu0
  %4852 = vmatprep.mubr.f32.mxu0 0.0
  %4853 = vmatmul.mubr.f32.gmra.mxu0 %v4538
  %v4854 = vpop.f32.mrf.mxu0
  %v4855 = vadd.f32 0.0, %v4854
  %v4856 = vpop.f32.mrf.mxu0
  %4857 = vmatprep.mubr.f32.mxu0 0.0
  %4858 = vmatmul.mubr.f32.gmra.mxu0 %v4541
  %v4859 = vpop.f32.mrf.mxu0
  %v4860 = vadd.f32 0.0, %v4859
  %v4861 = vpop.f32.mrf.mxu0
  %4862 = vmatprep.mubr.f32.mxu0 0.0
  %4863 = vmatmul.mubr.f32.gmra.mxu0 %v4544
  %v4864 = vpop.f32.mrf.mxu0
  %v4865 = vadd.f32 0.0, %v4864
  %v4866 = vpop.f32.mrf.mxu0
  %4867 = vmatprep.mubr.f32.mxu0 0.0
  %4868 = vmatmul.mubr.f32.gmra.mxu0 %v4547
  %v4869 = vpop.f32.mrf.mxu0
  %v4870 = vadd.f32 0.0, %v4869
  %v4871 = vpop.f32.mrf.mxu0
  %4872 = vmatprep.mubr.f32.mxu0 0.0
  %4873 = vmatmul.mubr.f32.gmra.mxu0 %v4550
  %v4874 = vpop.f32.mrf.mxu0
  %v4875 = vadd.f32 0.0, %v4874
  %v4876 = vpop.f32.mrf.mxu0
  %4877 = vmatprep.mubr.f32.mxu0 0.0
  %4878 = vmatmul.mubr.f32.gmra.mxu0 %v4553
  %v4879 = vpop.f32.mrf.mxu0
  %v4880 = vadd.f32 0.0, %v4879
  %v4881 = vpop.f32.mrf.mxu0
  %4882 = vmatprep.mubr.f32.mxu0 0.0
  %4883 = vmatmul.mubr.f32.gmra.mxu0 %v4556
  %v4884 = vpop.f32.mrf.mxu0
  %v4885 = vadd.f32 0.0, %v4884
  %v4886 = vpop.f32.mrf.mxu0
  %4887 = vmatprep.mubr.f32.mxu0 0.0
  %4888 = vmatmul.mubr.f32.gmra.mxu0 %v4559
  %v4889 = vpop.f32.mrf.mxu0
  %v4890 = vadd.f32 0.0, %v4889
  %v4891 = vpop.f32.mrf.mxu0
  %4892 = vmatprep.mubr.f32.mxu0 0.0
  %4893 = vmatmul.mubr.f32.gmra.mxu0 %v4562
  %v4894 = vpop.f32.mrf.mxu0
  %v4895 = vadd.f32 0.0, %v4894
  %v4896 = vpop.f32.mrf.mxu0
  %4897 = vmatprep.mubr.f32.mxu0 0.0
  %4898 = vmatmul.mubr.f32.gmra.mxu0 %v4565
  %v4899 = vpop.f32.mrf.mxu0
  %v4900 = vadd.f32 0.0, %v4899
  %v4901 = vpop.f32.mrf.mxu0
  %4902 = vmatprep.mubr.f32.mxu0 0.0
  %4903 = vmatmul.mubr.f32.gmra.mxu0 %v4568
  %v4904 = vpop.f32.mrf.mxu0
  %v4905 = vadd.f32 0.0, %v4904
  %v4906 = vpop.f32.mrf.mxu0
  %4907 = vmatprep.mubr.f32.mxu0 0.0
  %4908 = vmatmul.mubr.f32.gmra.mxu0 %v4571
  %v4909 = vpop.f32.mrf.mxu0
  %v4910 = vadd.f32 0.0, %v4909
  %v4911 = vpop.f32.mrf.mxu0
  %4912 = vmatprep.mubr.f32.mxu0 0.0
  %4913 = vmatmul.mubr.f32.gmra.mxu0 %v4574
  %v4914 = vpop.f32.mrf.mxu0
  %v4915 = vadd.f32 0.0, %v4914
  %v4916 = vpop.f32.mrf.mxu0
  %4917 = vmatprep.mubr.f32.mxu0 0.0
  %4918 = vmatmul.mubr.f32.gmra.mxu0 %v4577
  %v4919 = vpop.f32.mrf.mxu0
  %v4920 = vadd.f32 0.0, %v4919
  %v4921 = vpop.f32.mrf.mxu0
  %4922 = vmatprep.mubr.f32.mxu0 0.0
  %4923 = vmatmul.mubr.f32.gmra.mxu0 %v4580
  %v4924 = vpop.f32.mrf.mxu0
  %v4925 = vadd.f32 0.0, %v4924
  %v4926 = vpop.f32.mrf.mxu0
  %4927 = vmatprep.mubr.f32.mxu0 0.0
  %4928 = vmatmul.mubr.f32.gmra.mxu0 %v4583
  %v4929 = vpop.f32.mrf.mxu0
  %v4930 = vadd.f32 0.0, %v4929
  %v4931 = vpop.f32.mrf.mxu0
  %4932 = vmatprep.mubr.f32.mxu0 0.0
  %4933 = vmatmul.mubr.f32.gmra.mxu0 %v4586
  %v4934 = vpop.f32.mrf.mxu0
  %v4935 = vadd.f32 0.0, %v4934
  %v4936 = vpop.f32.mrf.mxu0
  %4937 = vmatprep.mubr.f32.mxu0 0.0
  %4938 = vmatmul.mubr.f32.gmra.mxu0 %v4589
  %v4939 = vpop.f32.mrf.mxu0
  %v4940 = vadd.f32 0.0, %v4939
  %v4941 = vpop.f32.mrf.mxu0
  %4942 = vmatprep.mubr.f32.mxu0 0.0
  %4943 = vmatmul.mubr.f32.gmra.mxu0 %v4592
  %v4944 = vpop.f32.mrf.mxu0
  %v4945 = vadd.f32 0.0, %v4944
  %v4946 = vpop.f32.mrf.mxu0
  %4947 = vmatprep.mubr.f32.mxu0 0.0
  %4948 = vmatmul.mubr.f32.gmra.mxu0 %v4595
  %v4949 = vpop.f32.mrf.mxu0
  %v4950 = vadd.f32 0.0, %v4949
  %v4951 = vpop.f32.mrf.mxu0
  %4952 = vmatprep.mubr.f32.mxu0 0.0
  %4953 = vmatmul.mubr.f32.gmra.mxu0 %v4598
  %v4954 = vpop.f32.mrf.mxu0
  %v4955 = vadd.f32 0.0, %v4954
  %v4956 = vpop.f32.mrf.mxu0
  %4957 = vmatprep.mubr.f32.mxu0 0.0
  %4958 = vmatmul.mubr.f32.gmra.mxu0 %v4601
  %v4959 = vpop.f32.mrf.mxu0
  %v4960 = vadd.f32 0.0, %v4959
  %v4961 = vpop.f32.mrf.mxu0
  %4962 = vmatprep.mubr.f32.mxu0 0.0
  %4963 = vmatmul.mubr.f32.gmra.mxu0 %v4604
  %v4964 = vpop.f32.mrf.mxu0
  %v4965 = vadd.f32 0.0, %v4964
  %v4966 = vpop.f32.mrf.mxu0
  %4967 = vmatprep.mubr.f32.mxu0 0.0
  %4968 = vmatmul.mubr.f32.gmra.mxu0 %v4607
  %v4969 = vpop.f32.mrf.mxu0
  %v4970 = vadd.f32 0.0, %v4969
  %v4971 = vpop.f32.mrf.mxu0
  %4972 = vmatprep.mubr.f32.mxu0 0.0
  %4973 = vmatmul.mubr.f32.gmra.mxu0 %v4610
  %v4974 = vpop.f32.mrf.mxu0
  %v4975 = vadd.f32 0.0, %v4974
  %v4976 = vpop.f32.mrf.mxu0
  %4977 = vmatprep.mubr.f32.mxu0 0.0
  %4978 = vmatmul.mubr.f32.gmra.mxu0 %v4613
  %v4979 = vpop.f32.mrf.mxu0
  %v4980 = vadd.f32 0.0, %v4979
  %v4981 = vpop.f32.mrf.mxu0
  %4982 = vmatprep.mubr.f32.mxu0 0.0
  %4983 = vmatmul.mubr.f32.gmra.mxu0 %v4616
  %v4984 = vpop.f32.mrf.mxu0
  %v4985 = vadd.f32 0.0, %v4984
  %v4986 = vpop.f32.mrf.mxu0
  %4987 = vmatprep.mubr.f32.mxu0 0.0
  %4988 = vmatmul.mubr.f32.gmra.mxu0 %v4619
  %v4989 = vpop.f32.mrf.mxu0
  %v4990 = vadd.f32 0.0, %v4989
  %v4991 = vpop.f32.mrf.mxu0
  %4992 = vmatprep.mubr.f32.mxu0 0.0
  %4993 = vmatmul.mubr.f32.gmra.mxu0 %v4622
  %v4994 = vpop.f32.mrf.mxu0
  %v4995 = vadd.f32 0.0, %v4994
  %v4996 = vpop.f32.mrf.mxu0
  %4997 = vmatprep.mubr.f32.mxu0 0.0
  %4998 = vmatmul.mubr.f32.gmra.mxu0 %v4625
  %v4999 = vpop.f32.mrf.mxu0
  %v5000 = vadd.f32 0.0, %v4999
  %v5001 = vpop.f32.mrf.mxu0
  %5002 = vmatprep.mubr.f32.mxu0 0.0
  %5003 = vmatmul.mubr.f32.gmra.mxu0 %v4628
  %v5004 = vpop.f32.mrf.mxu0
  %v5005 = vadd.f32 0.0, %v5004
  %v5006 = vpop.f32.mrf.mxu0
  %5007 = vmatprep.mubr.f32.mxu0 0.0
  %5008 = vmatmul.mubr.f32.gmra.mxu0 %v4631
  %v5009 = vpop.f32.mrf.mxu0
  %v5010 = vadd.f32 0.0, %v5009
  %v5011 = vpop.f32.mrf.mxu0
  %5012 = vmatprep.mubr.f32.mxu0 0.0
  %5013 = vmatmul.mubr.f32.gmra.mxu0 %v4634
  %v5014 = vpop.f32.mrf.mxu0
  %v5015 = vadd.f32 0.0, %v5014
  %v5016 = vpop.f32.mrf.mxu0
  %5017 = vmatprep.mubr.f32.mxu0 0.0
  %5018 = vmatmul.mubr.f32.gmra.mxu0 %v4637
  %v5019 = vpop.f32.mrf.mxu0
  %v5020 = vadd.f32 0.0, %v5019
  %v5021 = vpop.f32.mrf.mxu0
  %5022 = vmatprep.mubr.f32.mxu0 0.0
  %5023 = vmatmul.mubr.f32.gmra.mxu0 %v4640
  %v5024 = vpop.f32.mrf.mxu0
  %v5025 = vadd.f32 0.0, %v5024
  %v5026 = vpop.f32.mrf.mxu0
  %5027 = vmatprep.mubr.f32.mxu0 0.0
  %5028 = vmatmul.mubr.f32.gmra.mxu0 %v4643
  %v5029 = vpop.f32.mrf.mxu0
  %v5030 = vadd.f32 0.0, %v5029
  %v5031 = vpop.f32.mrf.mxu0
  %5032 = vdwg.mxu0
  %v5033 = vadd.f32 %v4322, %v4715
  %v5034 = vadd.f32 %v4323, %v4720
  %v5035 = vadd.f32 %v4324, %v4725
  %v5036 = vadd.f32 %v4325, %v4730
  %v5037 = vadd.f32 %v4326, %v4735
  %v5038 = vadd.f32 %v4327, %v4740
  %v5039 = vadd.f32 %v4328, %v4745
  %v5040 = vadd.f32 %v4329, %v4750
  %v5041 = vadd.f32 %v4330, %v4755
  %v5042 = vadd.f32 %v4331, %v4760
  %v5043 = vadd.f32 %v4332, %v4765
  %v5044 = vadd.f32 %v4333, %v4770
  %v5045 = vadd.f32 %v4334, %v4775
  %v5046 = vadd.f32 %v4335, %v4780
  %v5047 = vadd.f32 %v4336, %v4785
  %v5048 = vadd.f32 %v4337, %v4790
  %v5049 = vadd.f32 %v4338, %v4795
  %v5050 = vadd.f32 %v4339, %v4800
  %v5051 = vadd.f32 %v4340, %v4805
  %v5052 = vadd.f32 %v4341, %v4810
  %v5053 = vadd.f32 %v4342, %v4815
  %v5054 = vadd.f32 %v4343, %v4820
  %v5055 = vadd.f32 %v4344, %v4825
  %v5056 = vadd.f32 %v4345, %v4830
  %v5057 = vadd.f32 %v4346, %v4835
  %v5058 = vadd.f32 %v4347, %v4840
  %v5059 = vadd.f32 %v4348, %v4845
  %v5060 = vadd.f32 %v4349, %v4850
  %v5061 = vadd.f32 %v4350, %v4855
  %v5062 = vadd.f32 %v4351, %v4860
  %v5063 = vadd.f32 %v4352, %v4865
  %v5064 = vadd.f32 %v4353, %v4870
  %v5065 = vadd.f32 %v4354, %v4875
  %v5066 = vadd.f32 %v4355, %v4880
  %v5067 = vadd.f32 %v4356, %v4885
  %v5068 = vadd.f32 %v4357, %v4890
  %v5069 = vadd.f32 %v4358, %v4895
  %v5070 = vadd.f32 %v4359, %v4900
  %v5071 = vadd.f32 %v4360, %v4905
  %v5072 = vadd.f32 %v4361, %v4910
  %v5073 = vadd.f32 %v4362, %v4915
  %v5074 = vadd.f32 %v4363, %v4920
  %v5075 = vadd.f32 %v4364, %v4925
  %v5076 = vadd.f32 %v4365, %v4930
  %v5077 = vadd.f32 %v4366, %v4935
  %v5078 = vadd.f32 %v4367, %v4940
  %v5079 = vadd.f32 %v4368, %v4945
  %v5080 = vadd.f32 %v4369, %v4950
  %v5081 = vadd.f32 %v4370, %v4955
  %v5082 = vadd.f32 %v4371, %v4960
  %v5083 = vadd.f32 %v4372, %v4965
  %v5084 = vadd.f32 %v4373, %v4970
  %v5085 = vadd.f32 %v4374, %v4975
  %v5086 = vadd.f32 %v4375, %v4980
  %v5087 = vadd.f32 %v4376, %v4985
  %v5088 = vadd.f32 %v4377, %v4990
  %v5089 = vadd.f32 %v4378, %v4995
  %v5090 = vadd.f32 %v4379, %v5000
  %v5091 = vadd.f32 %v4380, %v5005
  %v5092 = vadd.f32 %v4381, %v5010
  %v5093 = vadd.f32 %v4382, %v5015
  %v5094 = vadd.f32 %v4383, %v5020
  %v5095 = vadd.f32 %v4384, %v5025
  %v5096 = vadd.f32 %v4385, %v5030
  %v5097 = vld [vmem:[%s4386 + $0x1] sm:$0xff]
  %v5098 = vld [vmem:[%s4386 + $0x9] sm:$0xff]
  %v5099 = vld [vmem:[%s4386 + $0x19] sm:$0xff]
  %v5100 = vld [vmem:[%s4386 + $0x21] sm:$0xff]
  %v5101 = vld [vmem:[%s4386 + $0x31] sm:$0xff]
  %v5102 = vld [vmem:[%s4386 + $0x39] sm:$0xff]
  %v5103 = vld [vmem:[%s4386 + $0x49] sm:$0xff]
  %v5104 = vld [vmem:[%s4386 + $0x51] sm:$0xff]
  %v5105 = vld [vmem:[%s4386 + $0x61] sm:$0xff]
  %v5106 = vld [vmem:[%s4386 + $0x69] sm:$0xff]
  %v5107 = vld [vmem:[%s4386 + $0x79] sm:$0xff]
  %v5108 = vld [vmem:[%s4386 + $0x81] sm:$0xff]
  %v5109 = vld [vmem:[%s4386 + $0x91] sm:$0xff]
  %v5110 = vld [vmem:[%s4386 + $0x99] sm:$0xff]
  %v5111 = vld [vmem:[%s4386 + $0xa9] sm:$0xff]
  %v5112 = vld [vmem:[%s4386 + $0xb1] sm:$0xff]
  %v5113 = vld [vmem:[%s4386 + $0xc1] sm:$0xff]
  %v5114 = vld [vmem:[%s4386 + $0xc9] sm:$0xff]
  %v5115 = vld [vmem:[%s4386 + $0xd9] sm:$0xff]
  %v5116 = vld [vmem:[%s4386 + $0xe1] sm:$0xff]
  %v5117 = vld [vmem:[%s4386 + $0xf1] sm:$0xff]
  %v5118 = vld [vmem:[%s4386 + $0xf9] sm:$0xff]
  %v5119 = vld [vmem:[%s4386 + $0x109] sm:$0xff]
  %v5120 = vld [vmem:[%s4386 + $0x111] sm:$0xff]
  %v5121 = vld [vmem:[%s4386 + $0x121] sm:$0xff]
  %v5122 = vld [vmem:[%s4386 + $0x129] sm:$0xff]
  %v5123 = vld [vmem:[%s4386 + $0x139] sm:$0xff]
  %v5124 = vld [vmem:[%s4386 + $0x141] sm:$0xff]
  %v5125 = vld [vmem:[%s4386 + $0x151] sm:$0xff]
  %v5126 = vld [vmem:[%s4386 + $0x159] sm:$0xff]
  %v5127 = vld [vmem:[%s4386 + $0x169] sm:$0xff]
  %v5128 = vld [vmem:[%s4386 + $0x171] sm:$0xff]
  %v5129 = vld [vmem:[%s4386 + $0x1b1] sm:$0xff]
  %v5130 = vld [vmem:[%s4386 + $0x1b9] sm:$0xff]
  %v5131 = vld [vmem:[%s4386 + $0x1c9] sm:$0xff]
  %v5132 = vld [vmem:[%s4386 + $0x1d1] sm:$0xff]
  %v5133 = vld [vmem:[%s4386 + $0x1e1] sm:$0xff]
  %v5134 = vld [vmem:[%s4386 + $0x1e9] sm:$0xff]
  %v5135 = vld [vmem:[%s4386 + $0x1f9] sm:$0xff]
  %v5136 = vld [vmem:[%s4386 + $0x201] sm:$0xff]
  %v5137 = vld [vmem:[%s4386 + $0x211] sm:$0xff]
  %v5138 = vld [vmem:[%s4386 + $0x219] sm:$0xff]
  %v5139 = vld [vmem:[%s4386 + $0x229] sm:$0xff]
  %v5140 = vld [vmem:[%s4386 + $0x231] sm:$0xff]
  %v5141 = vld [vmem:[%s4386 + $0x241] sm:$0xff]
  %v5142 = vld [vmem:[%s4386 + $0x249] sm:$0xff]
  %v5143 = vld [vmem:[%s4386 + $0x259] sm:$0xff]
  %v5144 = vld [vmem:[%s4386 + $0x261] sm:$0xff]
  %v5145 = vld [vmem:[%s4386 + $0x271] sm:$0xff]
  %v5146 = vld [vmem:[%s4386 + $0x279] sm:$0xff]
  %v5147 = vld [vmem:[%s4386 + $0x289] sm:$0xff]
  %v5148 = vld [vmem:[%s4386 + $0x291] sm:$0xff]
  %v5149 = vld [vmem:[%s4386 + $0x2a1] sm:$0xff]
  %v5150 = vld [vmem:[%s4386 + $0x2a9] sm:$0xff]
  %v5151 = vld [vmem:[%s4386 + $0x2b9] sm:$0xff]
  %v5152 = vld [vmem:[%s4386 + $0x2c1] sm:$0xff]
  %v5153 = vld [vmem:[%s4386 + $0x2d1] sm:$0xff]
  %v5154 = vld [vmem:[%s4386 + $0x2d9] sm:$0xff]
  %v5155 = vld [vmem:[%s4386 + $0x2e9] sm:$0xff]
  %v5156 = vld [vmem:[%s4386 + $0x2f1] sm:$0xff]
  %v5157 = vld [vmem:[%s4386 + $0x301] sm:$0xff]
  %v5158 = vld [vmem:[%s4386 + $0x309] sm:$0xff]
  %v5159 = vld [vmem:[%s4386 + $0x319] sm:$0xff]
  %v5160 = vld [vmem:[%s4386 + $0x321] sm:$0xff]
  %s5161 = scalar_lea.vmem %s1, 28
  %v5162 = vld [vmem:[%s5161] sm:$0xf]
  %v5164 = vsel %vm14, %v5097, 0
  %v5167 = vsel %vm14, %v5098, 0
  %v5170 = vsel %vm14, %v5099, 0
  %v5173 = vsel %vm14, %v5100, 0
  %v5176 = vsel %vm14, %v5101, 0
  %v5179 = vsel %vm14, %v5102, 0
  %v5182 = vsel %vm14, %v5103, 0
  %v5185 = vsel %vm14, %v5104, 0
  %v5188 = vsel %vm14, %v5105, 0
  %v5191 = vsel %vm14, %v5106, 0
  %v5194 = vsel %vm14, %v5107, 0
  %v5197 = vsel %vm14, %v5108, 0
  %v5200 = vsel %vm14, %v5109, 0
  %v5203 = vsel %vm14, %v5110, 0
  %v5206 = vsel %vm14, %v5111, 0
  %v5209 = vsel %vm14, %v5112, 0
  %v5212 = vsel %vm14, %v5113, 0
  %v5215 = vsel %vm14, %v5114, 0
  %v5218 = vsel %vm14, %v5115, 0
  %v5221 = vsel %vm14, %v5116, 0
  %v5224 = vsel %vm14, %v5117, 0
  %v5227 = vsel %vm14, %v5118, 0
  %v5230 = vsel %vm14, %v5119, 0
  %v5233 = vsel %vm14, %v5120, 0
  %v5236 = vsel %vm14, %v5121, 0
  %v5239 = vsel %vm14, %v5122, 0
  %v5242 = vsel %vm14, %v5123, 0
  %v5245 = vsel %vm14, %v5124, 0
  %v5248 = vsel %vm14, %v5125, 0
  %v5251 = vsel %vm14, %v5126, 0
  %v5254 = vsel %vm14, %v5127, 0
  %v5257 = vsel %vm14, %v5128, 0
  %v5260 = vsel %vm14, %v5129, 0
  %v5263 = vsel %vm14, %v5130, 0
  %v5266 = vsel %vm14, %v5131, 0
  %v5269 = vsel %vm14, %v5132, 0
  %v5272 = vsel %vm14, %v5133, 0
  %v5275 = vsel %vm14, %v5134, 0
  %v5278 = vsel %vm14, %v5135, 0
  %v5281 = vsel %vm14, %v5136, 0
  %v5284 = vsel %vm14, %v5137, 0
  %v5287 = vsel %vm14, %v5138, 0
  %v5290 = vsel %vm14, %v5139, 0
  %v5293 = vsel %vm14, %v5140, 0
  %v5296 = vsel %vm14, %v5141, 0
  %v5299 = vsel %vm14, %v5142, 0
  %v5302 = vsel %vm14, %v5143, 0
  %v5305 = vsel %vm14, %v5144, 0
  %v5308 = vsel %vm14, %v5145, 0
  %v5311 = vsel %vm14, %v5146, 0
  %v5314 = vsel %vm14, %v5147, 0
  %v5317 = vsel %vm14, %v5148, 0
  %v5320 = vsel %vm14, %v5149, 0
  %v5323 = vsel %vm14, %v5150, 0
  %v5326 = vsel %vm14, %v5151, 0
  %v5329 = vsel %vm14, %v5152, 0
  %v5332 = vsel %vm14, %v5153, 0
  %v5335 = vsel %vm14, %v5154, 0
  %v5338 = vsel %vm14, %v5155, 0
  %v5341 = vsel %vm14, %v5156, 0
  %v5344 = vsel %vm14, %v5157, 0
  %v5347 = vsel %vm14, %v5158, 0
  %v5350 = vsel %vm14, %v5159, 0
  %v5353 = vsel %vm14, %v5160, 0
  %v5356 = vsel %vm577, %v5162, 0
  %5358 = vmatprep.subr.mxu0 0.0
  %5359 = vmatpush1.msra.mxu0 0.0
  %5360 = vmatprep.subr.mxu0 0.0
  %5361 = vmatpush1.msra.mxu0 0.0
  %5362 = vmatprep.subr.mxu0 0.0
  %5363 = vmatpush1.msra.mxu0 0.0
  %5364 = vmatprep.subr.mxu0 0.0
  %5365 = vmatpush1.msra.mxu0 0.0
  %5366 = vmatprep.subr.mxu0 0.0
  %5367 = vmatpush1.msra.mxu0 0.0
  %5368 = vmatprep.subr.mxu0 0.0
  %5369 = vmatpush1.msra.mxu0 0.0
  %5370 = vmatprep.subr.mxu0 0.0
  %5371 = vmatpush1.msra.mxu0 0.0
  %5372 = vmatprep.subr.mxu0 0.0
  %5373 = vmatpush1.msra.mxu0 0.0
  %5374 = vmatprep.subr.mxu0 0.0
  %5375 = vmatpush1.msra.mxu0 0.0
  %5376 = vmatprep.subr.mxu0 0.0
  %5377 = vmatpush1.msra.mxu0 0.0
  %5378 = vmatprep.subr.mxu0 0.0
  %5379 = vmatpush1.msra.mxu0 0.0
  %5380 = vmatprep.subr.mxu0 0.0
  %5381 = vmatpush1.msra.mxu0 0.0
  %5382 = vmatprep.subr.mxu0 0.0
  %5383 = vmatpush1.msra.mxu0 0.0
  %5384 = vmatprep.subr.mxu0 0.0
  %5385 = vmatpush1.msra.mxu0 0.0
  %5386 = vmatprep.subr.mxu0 0.0
  %5387 = vmatpush1.msra.mxu0 0.0
  %5388 = vmatprep.subr.mxu0 0.0
  %5389 = vmatpush1.msra.mxu0 %v5356
  %5390 = vmatprep.subr.mxu0 0.0
  %5391 = vmatpush2.msra.mxu0 0.0
  %5392 = vmatprep.subr.mxu0 0.0
  %5393 = vmatpush2.msra.mxu0 0.0
  %5394 = vmatprep.subr.mxu0 0.0
  %5395 = vmatpush2.msra.mxu0 0.0
  %5396 = vmatprep.subr.mxu0 0.0
  %5397 = vmatpush2.msra.mxu0 0.0
  %5398 = vmatprep.subr.mxu0 0.0
  %5399 = vmatpush2.msra.mxu0 0.0
  %5400 = vmatprep.subr.mxu0 0.0
  %5401 = vmatpush2.msra.mxu0 0.0
  %5402 = vmatprep.subr.mxu0 0.0
  %5403 = vmatpush2.msra.mxu0 0.0
  %5404 = vmatprep.subr.mxu0 0.0
  %5405 = vmatpush2.msra.mxu0 0.0
  %5406 = vmatprep.subr.mxu0 0.0
  %5407 = vmatpush2.msra.mxu0 0.0
  %5408 = vmatprep.subr.mxu0 0.0
  %5409 = vmatpush2.msra.mxu0 0.0
  %5410 = vmatprep.subr.mxu0 0.0
  %5411 = vmatpush2.msra.mxu0 0.0
  %5412 = vmatprep.subr.mxu0 0.0
  %5413 = vmatpush2.msra.mxu0 0.0
  %5414 = vmatprep.subr.mxu0 0.0
  %5415 = vmatpush2.msra.mxu0 0.0
  %5416 = vmatprep.subr.mxu0 0.0
  %5417 = vmatpush2.msra.mxu0 0.0
  %5418 = vmatprep.subr.mxu0 0.0
  %5419 = vmatpush2.msra.mxu0 0.0
  %5420 = vmatprep.subr.mxu0 0.0
  %5421 = vmatpush2.msra.mxu0 0.0
  %5422 = vmatprep.mubr.f32.mxu0 0.0
  %5423 = vmatmul.mubr.f32.gmra.mxu0 %v5164
  %v5424 = vpop.f32.mrf.mxu0
  %v5425 = vadd.f32 0.0, %v5424
  %v5426 = vpop.f32.mrf.mxu0
  %5427 = vmatprep.mubr.f32.mxu0 0.0
  %5428 = vmatmul.mubr.f32.gmra.mxu0 %v5167
  %v5429 = vpop.f32.mrf.mxu0
  %v5430 = vadd.f32 0.0, %v5429
  %v5431 = vpop.f32.mrf.mxu0
  %5432 = vmatprep.mubr.f32.mxu0 0.0
  %5433 = vmatmul.mubr.f32.gmra.mxu0 %v5170
  %v5434 = vpop.f32.mrf.mxu0
  %v5435 = vadd.f32 0.0, %v5434
  %v5436 = vpop.f32.mrf.mxu0
  %5437 = vmatprep.mubr.f32.mxu0 0.0
  %5438 = vmatmul.mubr.f32.gmra.mxu0 %v5173
  %v5439 = vpop.f32.mrf.mxu0
  %v5440 = vadd.f32 0.0, %v5439
  %v5441 = vpop.f32.mrf.mxu0
  %5442 = vmatprep.mubr.f32.mxu0 0.0
  %5443 = vmatmul.mubr.f32.gmra.mxu0 %v5176
  %v5444 = vpop.f32.mrf.mxu0
  %v5445 = vadd.f32 0.0, %v5444
  %v5446 = vpop.f32.mrf.mxu0
  %5447 = vmatprep.mubr.f32.mxu0 0.0
  %5448 = vmatmul.mubr.f32.gmra.mxu0 %v5179
  %v5449 = vpop.f32.mrf.mxu0
  %v5450 = vadd.f32 0.0, %v5449
  %v5451 = vpop.f32.mrf.mxu0
  %5452 = vmatprep.mubr.f32.mxu0 0.0
  %5453 = vmatmul.mubr.f32.gmra.mxu0 %v5182
  %v5454 = vpop.f32.mrf.mxu0
  %v5455 = vadd.f32 0.0, %v5454
  %v5456 = vpop.f32.mrf.mxu0
  %5457 = vmatprep.mubr.f32.mxu0 0.0
  %5458 = vmatmul.mubr.f32.gmra.mxu0 %v5185
  %v5459 = vpop.f32.mrf.mxu0
  %v5460 = vadd.f32 0.0, %v5459
  %v5461 = vpop.f32.mrf.mxu0
  %5462 = vmatprep.mubr.f32.mxu0 0.0
  %5463 = vmatmul.mubr.f32.gmra.mxu0 %v5188
  %v5464 = vpop.f32.mrf.mxu0
  %v5465 = vadd.f32 0.0, %v5464
  %v5466 = vpop.f32.mrf.mxu0
  %5467 = vmatprep.mubr.f32.mxu0 0.0
  %5468 = vmatmul.mubr.f32.gmra.mxu0 %v5191
  %v5469 = vpop.f32.mrf.mxu0
  %v5470 = vadd.f32 0.0, %v5469
  %v5471 = vpop.f32.mrf.mxu0
  %5472 = vmatprep.mubr.f32.mxu0 0.0
  %5473 = vmatmul.mubr.f32.gmra.mxu0 %v5194
  %v5474 = vpop.f32.mrf.mxu0
  %v5475 = vadd.f32 0.0, %v5474
  %v5476 = vpop.f32.mrf.mxu0
  %5477 = vmatprep.mubr.f32.mxu0 0.0
  %5478 = vmatmul.mubr.f32.gmra.mxu0 %v5197
  %v5479 = vpop.f32.mrf.mxu0
  %v5480 = vadd.f32 0.0, %v5479
  %v5481 = vpop.f32.mrf.mxu0
  %5482 = vmatprep.mubr.f32.mxu0 0.0
  %5483 = vmatmul.mubr.f32.gmra.mxu0 %v5200
  %v5484 = vpop.f32.mrf.mxu0
  %v5485 = vadd.f32 0.0, %v5484
  %v5486 = vpop.f32.mrf.mxu0
  %5487 = vmatprep.mubr.f32.mxu0 0.0
  %5488 = vmatmul.mubr.f32.gmra.mxu0 %v5203
  %v5489 = vpop.f32.mrf.mxu0
  %v5490 = vadd.f32 0.0, %v5489
  %v5491 = vpop.f32.mrf.mxu0
  %5492 = vmatprep.mubr.f32.mxu0 0.0
  %5493 = vmatmul.mubr.f32.gmra.mxu0 %v5206
  %v5494 = vpop.f32.mrf.mxu0
  %v5495 = vadd.f32 0.0, %v5494
  %v5496 = vpop.f32.mrf.mxu0
  %5497 = vmatprep.mubr.f32.mxu0 0.0
  %5498 = vmatmul.mubr.f32.gmra.mxu0 %v5209
  %v5499 = vpop.f32.mrf.mxu0
  %v5500 = vadd.f32 0.0, %v5499
  %v5501 = vpop.f32.mrf.mxu0
  %5502 = vmatprep.mubr.f32.mxu0 0.0
  %5503 = vmatmul.mubr.f32.gmra.mxu0 %v5212
  %v5504 = vpop.f32.mrf.mxu0
  %v5505 = vadd.f32 0.0, %v5504
  %v5506 = vpop.f32.mrf.mxu0
  %5507 = vmatprep.mubr.f32.mxu0 0.0
  %5508 = vmatmul.mubr.f32.gmra.mxu0 %v5215
  %v5509 = vpop.f32.mrf.mxu0
  %v5510 = vadd.f32 0.0, %v5509
  %v5511 = vpop.f32.mrf.mxu0
  %5512 = vmatprep.mubr.f32.mxu0 0.0
  %5513 = vmatmul.mubr.f32.gmra.mxu0 %v5218
  %v5514 = vpop.f32.mrf.mxu0
  %v5515 = vadd.f32 0.0, %v5514
  %v5516 = vpop.f32.mrf.mxu0
  %5517 = vmatprep.mubr.f32.mxu0 0.0
  %5518 = vmatmul.mubr.f32.gmra.mxu0 %v5221
  %v5519 = vpop.f32.mrf.mxu0
  %v5520 = vadd.f32 0.0, %v5519
  %v5521 = vpop.f32.mrf.mxu0
  %5522 = vmatprep.mubr.f32.mxu0 0.0
  %5523 = vmatmul.mubr.f32.gmra.mxu0 %v5224
  %v5524 = vpop.f32.mrf.mxu0
  %v5525 = vadd.f32 0.0, %v5524
  %v5526 = vpop.f32.mrf.mxu0
  %5527 = vmatprep.mubr.f32.mxu0 0.0
  %5528 = vmatmul.mubr.f32.gmra.mxu0 %v5227
  %v5529 = vpop.f32.mrf.mxu0
  %v5530 = vadd.f32 0.0, %v5529
  %v5531 = vpop.f32.mrf.mxu0
  %5532 = vmatprep.mubr.f32.mxu0 0.0
  %5533 = vmatmul.mubr.f32.gmra.mxu0 %v5230
  %v5534 = vpop.f32.mrf.mxu0
  %v5535 = vadd.f32 0.0, %v5534
  %v5536 = vpop.f32.mrf.mxu0
  %5537 = vmatprep.mubr.f32.mxu0 0.0
  %5538 = vmatmul.mubr.f32.gmra.mxu0 %v5233
  %v5539 = vpop.f32.mrf.mxu0
  %v5540 = vadd.f32 0.0, %v5539
  %v5541 = vpop.f32.mrf.mxu0
  %5542 = vmatprep.mubr.f32.mxu0 0.0
  %5543 = vmatmul.mubr.f32.gmra.mxu0 %v5236
  %v5544 = vpop.f32.mrf.mxu0
  %v5545 = vadd.f32 0.0, %v5544
  %v5546 = vpop.f32.mrf.mxu0
  %5547 = vmatprep.mubr.f32.mxu0 0.0
  %5548 = vmatmul.mubr.f32.gmra.mxu0 %v5239
  %v5549 = vpop.f32.mrf.mxu0
  %v5550 = vadd.f32 0.0, %v5549
  %v5551 = vpop.f32.mrf.mxu0
  %5552 = vmatprep.mubr.f32.mxu0 0.0
  %5553 = vmatmul.mubr.f32.gmra.mxu0 %v5242
  %v5554 = vpop.f32.mrf.mxu0
  %v5555 = vadd.f32 0.0, %v5554
  %v5556 = vpop.f32.mrf.mxu0
  %5557 = vmatprep.mubr.f32.mxu0 0.0
  %5558 = vmatmul.mubr.f32.gmra.mxu0 %v5245
  %v5559 = vpop.f32.mrf.mxu0
  %v5560 = vadd.f32 0.0, %v5559
  %v5561 = vpop.f32.mrf.mxu0
  %5562 = vmatprep.mubr.f32.mxu0 0.0
  %5563 = vmatmul.mubr.f32.gmra.mxu0 %v5248
  %v5564 = vpop.f32.mrf.mxu0
  %v5565 = vadd.f32 0.0, %v5564
  %v5566 = vpop.f32.mrf.mxu0
  %5567 = vmatprep.mubr.f32.mxu0 0.0
  %5568 = vmatmul.mubr.f32.gmra.mxu0 %v5251
  %v5569 = vpop.f32.mrf.mxu0
  %v5570 = vadd.f32 0.0, %v5569
  %v5571 = vpop.f32.mrf.mxu0
  %5572 = vmatprep.mubr.f32.mxu0 0.0
  %5573 = vmatmul.mubr.f32.gmra.mxu0 %v5254
  %v5574 = vpop.f32.mrf.mxu0
  %v5575 = vadd.f32 0.0, %v5574
  %v5576 = vpop.f32.mrf.mxu0
  %5577 = vmatprep.mubr.f32.mxu0 0.0
  %5578 = vmatmul.mubr.f32.gmra.mxu0 %v5257
  %v5579 = vpop.f32.mrf.mxu0
  %v5580 = vadd.f32 0.0, %v5579
  %v5581 = vpop.f32.mrf.mxu0
  %5582 = vmatprep.mubr.f32.mxu0 0.0
  %5583 = vmatmul.mubr.f32.gmra.mxu0 %v5260
  %v5584 = vpop.f32.mrf.mxu0
  %v5585 = vadd.f32 0.0, %v5584
  %v5586 = vpop.f32.mrf.mxu0
  %5587 = vmatprep.mubr.f32.mxu0 0.0
  %5588 = vmatmul.mubr.f32.gmra.mxu0 %v5263
  %v5589 = vpop.f32.mrf.mxu0
  %v5590 = vadd.f32 0.0, %v5589
  %v5591 = vpop.f32.mrf.mxu0
  %5592 = vmatprep.mubr.f32.mxu0 0.0
  %5593 = vmatmul.mubr.f32.gmra.mxu0 %v5266
  %v5594 = vpop.f32.mrf.mxu0
  %v5595 = vadd.f32 0.0, %v5594
  %v5596 = vpop.f32.mrf.mxu0
  %5597 = vmatprep.mubr.f32.mxu0 0.0
  %5598 = vmatmul.mubr.f32.gmra.mxu0 %v5269
  %v5599 = vpop.f32.mrf.mxu0
  %v5600 = vadd.f32 0.0, %v5599
  %v5601 = vpop.f32.mrf.mxu0
  %5602 = vmatprep.mubr.f32.mxu0 0.0
  %5603 = vmatmul.mubr.f32.gmra.mxu0 %v5272
  %v5604 = vpop.f32.mrf.mxu0
  %v5605 = vadd.f32 0.0, %v5604
  %v5606 = vpop.f32.mrf.mxu0
  %5607 = vmatprep.mubr.f32.mxu0 0.0
  %5608 = vmatmul.mubr.f32.gmra.mxu0 %v5275
  %v5609 = vpop.f32.mrf.mxu0
  %v5610 = vadd.f32 0.0, %v5609
  %v5611 = vpop.f32.mrf.mxu0
  %5612 = vmatprep.mubr.f32.mxu0 0.0
  %5613 = vmatmul.mubr.f32.gmra.mxu0 %v5278
  %v5614 = vpop.f32.mrf.mxu0
  %v5615 = vadd.f32 0.0, %v5614
  %v5616 = vpop.f32.mrf.mxu0
  %5617 = vmatprep.mubr.f32.mxu0 0.0
  %5618 = vmatmul.mubr.f32.gmra.mxu0 %v5281
  %v5619 = vpop.f32.mrf.mxu0
  %v5620 = vadd.f32 0.0, %v5619
  %v5621 = vpop.f32.mrf.mxu0
  %5622 = vmatprep.mubr.f32.mxu0 0.0
  %5623 = vmatmul.mubr.f32.gmra.mxu0 %v5284
  %v5624 = vpop.f32.mrf.mxu0
  %v5625 = vadd.f32 0.0, %v5624
  %v5626 = vpop.f32.mrf.mxu0
  %5627 = vmatprep.mubr.f32.mxu0 0.0
  %5628 = vmatmul.mubr.f32.gmra.mxu0 %v5287
  %v5629 = vpop.f32.mrf.mxu0
  %v5630 = vadd.f32 0.0, %v5629
  %v5631 = vpop.f32.mrf.mxu0
  %5632 = vmatprep.mubr.f32.mxu0 0.0
  %5633 = vmatmul.mubr.f32.gmra.mxu0 %v5290
  %v5634 = vpop.f32.mrf.mxu0
  %v5635 = vadd.f32 0.0, %v5634
  %v5636 = vpop.f32.mrf.mxu0
  %5637 = vmatprep.mubr.f32.mxu0 0.0
  %5638 = vmatmul.mubr.f32.gmra.mxu0 %v5293
  %v5639 = vpop.f32.mrf.mxu0
  %v5640 = vadd.f32 0.0, %v5639
  %v5641 = vpop.f32.mrf.mxu0
  %5642 = vmatprep.mubr.f32.mxu0 0.0
  %5643 = vmatmul.mubr.f32.gmra.mxu0 %v5296
  %v5644 = vpop.f32.mrf.mxu0
  %v5645 = vadd.f32 0.0, %v5644
  %v5646 = vpop.f32.mrf.mxu0
  %5647 = vmatprep.mubr.f32.mxu0 0.0
  %5648 = vmatmul.mubr.f32.gmra.mxu0 %v5299
  %v5649 = vpop.f32.mrf.mxu0
  %v5650 = vadd.f32 0.0, %v5649
  %v5651 = vpop.f32.mrf.mxu0
  %5652 = vmatprep.mubr.f32.mxu0 0.0
  %5653 = vmatmul.mubr.f32.gmra.mxu0 %v5302
  %v5654 = vpop.f32.mrf.mxu0
  %v5655 = vadd.f32 0.0, %v5654
  %v5656 = vpop.f32.mrf.mxu0
  %5657 = vmatprep.mubr.f32.mxu0 0.0
  %5658 = vmatmul.mubr.f32.gmra.mxu0 %v5305
  %v5659 = vpop.f32.mrf.mxu0
  %v5660 = vadd.f32 0.0, %v5659
  %v5661 = vpop.f32.mrf.mxu0
  %5662 = vmatprep.mubr.f32.mxu0 0.0
  %5663 = vmatmul.mubr.f32.gmra.mxu0 %v5308
  %v5664 = vpop.f32.mrf.mxu0
  %v5665 = vadd.f32 0.0, %v5664
  %v5666 = vpop.f32.mrf.mxu0
  %5667 = vmatprep.mubr.f32.mxu0 0.0
  %5668 = vmatmul.mubr.f32.gmra.mxu0 %v5311
  %v5669 = vpop.f32.mrf.mxu0
  %v5670 = vadd.f32 0.0, %v5669
  %v5671 = vpop.f32.mrf.mxu0
  %5672 = vmatprep.mubr.f32.mxu0 0.0
  %5673 = vmatmul.mubr.f32.gmra.mxu0 %v5314
  %v5674 = vpop.f32.mrf.mxu0
  %v5675 = vadd.f32 0.0, %v5674
  %v5676 = vpop.f32.mrf.mxu0
  %5677 = vmatprep.mubr.f32.mxu0 0.0
  %5678 = vmatmul.mubr.f32.gmra.mxu0 %v5317
  %v5679 = vpop.f32.mrf.mxu0
  %v5680 = vadd.f32 0.0, %v5679
  %v5681 = vpop.f32.mrf.mxu0
  %5682 = vmatprep.mubr.f32.mxu0 0.0
  %5683 = vmatmul.mubr.f32.gmra.mxu0 %v5320
  %v5684 = vpop.f32.mrf.mxu0
  %v5685 = vadd.f32 0.0, %v5684
  %v5686 = vpop.f32.mrf.mxu0
  %5687 = vmatprep.mubr.f32.mxu0 0.0
  %5688 = vmatmul.mubr.f32.gmra.mxu0 %v5323
  %v5689 = vpop.f32.mrf.mxu0
  %v5690 = vadd.f32 0.0, %v5689
  %v5691 = vpop.f32.mrf.mxu0
  %5692 = vmatprep.mubr.f32.mxu0 0.0
  %5693 = vmatmul.mubr.f32.gmra.mxu0 %v5326
  %v5694 = vpop.f32.mrf.mxu0
  %v5695 = vadd.f32 0.0, %v5694
  %v5696 = vpop.f32.mrf.mxu0
  %5697 = vmatprep.mubr.f32.mxu0 0.0
  %5698 = vmatmul.mubr.f32.gmra.mxu0 %v5329
  %v5699 = vpop.f32.mrf.mxu0
  %v5700 = vadd.f32 0.0, %v5699
  %v5701 = vpop.f32.mrf.mxu0
  %5702 = vmatprep.mubr.f32.mxu0 0.0
  %5703 = vmatmul.mubr.f32.gmra.mxu0 %v5332
  %v5704 = vpop.f32.mrf.mxu0
  %v5705 = vadd.f32 0.0, %v5704
  %v5706 = vpop.f32.mrf.mxu0
  %5707 = vmatprep.mubr.f32.mxu0 0.0
  %5708 = vmatmul.mubr.f32.gmra.mxu0 %v5335
  %v5709 = vpop.f32.mrf.mxu0
  %v5710 = vadd.f32 0.0, %v5709
  %v5711 = vpop.f32.mrf.mxu0
  %5712 = vmatprep.mubr.f32.mxu0 0.0
  %5713 = vmatmul.mubr.f32.gmra.mxu0 %v5338
  %v5714 = vpop.f32.mrf.mxu0
  %v5715 = vadd.f32 0.0, %v5714
  %v5716 = vpop.f32.mrf.mxu0
  %5717 = vmatprep.mubr.f32.mxu0 0.0
  %5718 = vmatmul.mubr.f32.gmra.mxu0 %v5341
  %v5719 = vpop.f32.mrf.mxu0
  %v5720 = vadd.f32 0.0, %v5719
  %v5721 = vpop.f32.mrf.mxu0
  %5722 = vmatprep.mubr.f32.mxu0 0.0
  %5723 = vmatmul.mubr.f32.gmra.mxu0 %v5344
  %v5724 = vpop.f32.mrf.mxu0
  %v5725 = vadd.f32 0.0, %v5724
  %v5726 = vpop.f32.mrf.mxu0
  %5727 = vmatprep.mubr.f32.mxu0 0.0
  %5728 = vmatmul.mubr.f32.gmra.mxu0 %v5347
  %v5729 = vpop.f32.mrf.mxu0
  %v5730 = vadd.f32 0.0, %v5729
  %v5731 = vpop.f32.mrf.mxu0
  %5732 = vmatprep.mubr.f32.mxu0 0.0
  %5733 = vmatmul.mubr.f32.gmra.mxu0 %v5350
  %v5734 = vpop.f32.mrf.mxu0
  %v5735 = vadd.f32 0.0, %v5734
  %v5736 = vpop.f32.mrf.mxu0
  %5737 = vmatprep.mubr.f32.mxu0 0.0
  %5738 = vmatmul.mubr.f32.gmra.mxu0 %v5353
  %v5739 = vpop.f32.mrf.mxu0
  %v5740 = vadd.f32 0.0, %v5739
  %v5741 = vpop.f32.mrf.mxu0
  %5742 = vdwg.mxu0
  %v5743 = vadd.f32 %v5033, %v5425
  %v5744 = vadd.f32 %v5034, %v5430
  %v5745 = vadd.f32 %v5035, %v5435
  %v5746 = vadd.f32 %v5036, %v5440
  %v5747 = vadd.f32 %v5037, %v5445
  %v5748 = vadd.f32 %v5038, %v5450
  %v5749 = vadd.f32 %v5039, %v5455
  %v5750 = vadd.f32 %v5040, %v5460
  %v5751 = vadd.f32 %v5041, %v5465
  %v5752 = vadd.f32 %v5042, %v5470
  %v5753 = vadd.f32 %v5043, %v5475
  %v5754 = vadd.f32 %v5044, %v5480
  %v5755 = vadd.f32 %v5045, %v5485
  %v5756 = vadd.f32 %v5046, %v5490
  %v5757 = vadd.f32 %v5047, %v5495
  %v5758 = vadd.f32 %v5048, %v5500
  %v5759 = vadd.f32 %v5049, %v5505
  %v5760 = vadd.f32 %v5050, %v5510
  %v5761 = vadd.f32 %v5051, %v5515
  %v5762 = vadd.f32 %v5052, %v5520
  %v5763 = vadd.f32 %v5053, %v5525
  %v5764 = vadd.f32 %v5054, %v5530
  %v5765 = vadd.f32 %v5055, %v5535
  %v5766 = vadd.f32 %v5056, %v5540
  %v5767 = vadd.f32 %v5057, %v5545
  %v5768 = vadd.f32 %v5058, %v5550
  %v5769 = vadd.f32 %v5059, %v5555
  %v5770 = vadd.f32 %v5060, %v5560
  %v5771 = vadd.f32 %v5061, %v5565
  %v5772 = vadd.f32 %v5062, %v5570
  %v5773 = vadd.f32 %v5063, %v5575
  %v5774 = vadd.f32 %v5064, %v5580
  %v5775 = vadd.f32 %v5065, %v5585
  %v5776 = vadd.f32 %v5066, %v5590
  %v5777 = vadd.f32 %v5067, %v5595
  %v5778 = vadd.f32 %v5068, %v5600
  %v5779 = vadd.f32 %v5069, %v5605
  %v5780 = vadd.f32 %v5070, %v5610
  %v5781 = vadd.f32 %v5071, %v5615
  %v5782 = vadd.f32 %v5072, %v5620
  %v5783 = vadd.f32 %v5073, %v5625
  %v5784 = vadd.f32 %v5074, %v5630
  %v5785 = vadd.f32 %v5075, %v5635
  %v5786 = vadd.f32 %v5076, %v5640
  %v5787 = vadd.f32 %v5077, %v5645
  %v5788 = vadd.f32 %v5078, %v5650
  %v5789 = vadd.f32 %v5079, %v5655
  %v5790 = vadd.f32 %v5080, %v5660
  %v5791 = vadd.f32 %v5081, %v5665
  %v5792 = vadd.f32 %v5082, %v5670
  %v5793 = vadd.f32 %v5083, %v5675
  %v5794 = vadd.f32 %v5084, %v5680
  %v5795 = vadd.f32 %v5085, %v5685
  %v5796 = vadd.f32 %v5086, %v5690
  %v5797 = vadd.f32 %v5087, %v5695
  %v5798 = vadd.f32 %v5088, %v5700
  %v5799 = vadd.f32 %v5089, %v5705
  %v5800 = vadd.f32 %v5090, %v5710
  %v5801 = vadd.f32 %v5091, %v5715
  %v5802 = vadd.f32 %v5092, %v5720
  %v5803 = vadd.f32 %v5093, %v5725
  %v5804 = vadd.f32 %v5094, %v5730
  %v5805 = vadd.f32 %v5095, %v5735
  %v5806 = vadd.f32 %v5096, %v5740
  %v5807 = vld [vmem:[%s4386 + $0x2] sm:$0xff]
  %v5808 = vld [vmem:[%s4386 + $0xa] sm:$0xff]
  %v5809 = vld [vmem:[%s4386 + $0x1a] sm:$0xff]
  %v5810 = vld [vmem:[%s4386 + $0x22] sm:$0xff]
  %v5811 = vld [vmem:[%s4386 + $0x32] sm:$0xff]
  %v5812 = vld [vmem:[%s4386 + $0x3a] sm:$0xff]
  %v5813 = vld [vmem:[%s4386 + $0x4a] sm:$0xff]
  %v5814 = vld [vmem:[%s4386 + $0x52] sm:$0xff]
  %v5815 = vld [vmem:[%s4386 + $0x62] sm:$0xff]
  %v5816 = vld [vmem:[%s4386 + $0x6a] sm:$0xff]
  %v5817 = vld [vmem:[%s4386 + $0x7a] sm:$0xff]
  %v5818 = vld [vmem:[%s4386 + $0x82] sm:$0xff]
  %v5819 = vld [vmem:[%s4386 + $0x92] sm:$0xff]
  %v5820 = vld [vmem:[%s4386 + $0x9a] sm:$0xff]
  %v5821 = vld [vmem:[%s4386 + $0xaa] sm:$0xff]
  %v5822 = vld [vmem:[%s4386 + $0xb2] sm:$0xff]
  %v5823 = vld [vmem:[%s4386 + $0xc2] sm:$0xff]
  %v5824 = vld [vmem:[%s4386 + $0xca] sm:$0xff]
  %v5825 = vld [vmem:[%s4386 + $0xda] sm:$0xff]
  %v5826 = vld [vmem:[%s4386 + $0xe2] sm:$0xff]
  %v5827 = vld [vmem:[%s4386 + $0xf2] sm:$0xff]
  %v5828 = vld [vmem:[%s4386 + $0xfa] sm:$0xff]
  %v5829 = vld [vmem:[%s4386 + $0x10a] sm:$0xff]
  %v5830 = vld [vmem:[%s4386 + $0x112] sm:$0xff]
  %v5831 = vld [vmem:[%s4386 + $0x122] sm:$0xff]
  %v5832 = vld [vmem:[%s4386 + $0x12a] sm:$0xff]
  %v5833 = vld [vmem:[%s4386 + $0x13a] sm:$0xff]
  %v5834 = vld [vmem:[%s4386 + $0x142] sm:$0xff]
  %v5835 = vld [vmem:[%s4386 + $0x152] sm:$0xff]
  %v5836 = vld [vmem:[%s4386 + $0x15a] sm:$0xff]
  %v5837 = vld [vmem:[%s4386 + $0x16a] sm:$0xff]
  %v5838 = vld [vmem:[%s4386 + $0x172] sm:$0xff]
  %v5839 = vld [vmem:[%s4386 + $0x1b2] sm:$0xff]
  %v5840 = vld [vmem:[%s4386 + $0x1ba] sm:$0xff]
  %v5841 = vld [vmem:[%s4386 + $0x1ca] sm:$0xff]
  %v5842 = vld [vmem:[%s4386 + $0x1d2] sm:$0xff]
  %v5843 = vld [vmem:[%s4386 + $0x1e2] sm:$0xff]
  %v5844 = vld [vmem:[%s4386 + $0x1ea] sm:$0xff]
  %v5845 = vld [vmem:[%s4386 + $0x1fa] sm:$0xff]
  %v5846 = vld [vmem:[%s4386 + $0x202] sm:$0xff]
  %v5847 = vld [vmem:[%s4386 + $0x212] sm:$0xff]
  %v5848 = vld [vmem:[%s4386 + $0x21a] sm:$0xff]
  %v5849 = vld [vmem:[%s4386 + $0x22a] sm:$0xff]
  %v5850 = vld [vmem:[%s4386 + $0x232] sm:$0xff]
  %v5851 = vld [vmem:[%s4386 + $0x242] sm:$0xff]
  %v5852 = vld [vmem:[%s4386 + $0x24a] sm:$0xff]
  %v5853 = vld [vmem:[%s4386 + $0x25a] sm:$0xff]
  %v5854 = vld [vmem:[%s4386 + $0x262] sm:$0xff]
  %v5855 = vld [vmem:[%s4386 + $0x272] sm:$0xff]
  %v5856 = vld [vmem:[%s4386 + $0x27a] sm:$0xff]
  %v5857 = vld [vmem:[%s4386 + $0x28a] sm:$0xff]
  %v5858 = vld [vmem:[%s4386 + $0x292] sm:$0xff]
  %v5859 = vld [vmem:[%s4386 + $0x2a2] sm:$0xff]
  %v5860 = vld [vmem:[%s4386 + $0x2aa] sm:$0xff]
  %v5861 = vld [vmem:[%s4386 + $0x2ba] sm:$0xff]
  %v5862 = vld [vmem:[%s4386 + $0x2c2] sm:$0xff]
  %v5863 = vld [vmem:[%s4386 + $0x2d2] sm:$0xff]
  %v5864 = vld [vmem:[%s4386 + $0x2da] sm:$0xff]
  %v5865 = vld [vmem:[%s4386 + $0x2ea] sm:$0xff]
  %v5866 = vld [vmem:[%s4386 + $0x2f2] sm:$0xff]
  %v5867 = vld [vmem:[%s4386 + $0x302] sm:$0xff]
  %v5868 = vld [vmem:[%s4386 + $0x30a] sm:$0xff]
  %v5869 = vld [vmem:[%s4386 + $0x31a] sm:$0xff]
  %v5870 = vld [vmem:[%s4386 + $0x322] sm:$0xff]
  %s5871 = scalar_lea.vmem %s1, 32
  %v5872 = vld [vmem:[%s5871] sm:$0xf]
  %v5874 = vsel %vm14, %v5807, 0
  %v5877 = vsel %vm14, %v5808, 0
  %v5880 = vsel %vm14, %v5809, 0
  %v5883 = vsel %vm14, %v5810, 0
  %v5886 = vsel %vm14, %v5811, 0
  %v5889 = vsel %vm14, %v5812, 0
  %v5892 = vsel %vm14, %v5813, 0
  %v5895 = vsel %vm14, %v5814, 0
  %v5898 = vsel %vm14, %v5815, 0
  %v5901 = vsel %vm14, %v5816, 0
  %v5904 = vsel %vm14, %v5817, 0
  %v5907 = vsel %vm14, %v5818, 0
  %v5910 = vsel %vm14, %v5819, 0
  %v5913 = vsel %vm14, %v5820, 0
  %v5916 = vsel %vm14, %v5821, 0
  %v5919 = vsel %vm14, %v5822, 0
  %v5922 = vsel %vm14, %v5823, 0
  %v5925 = vsel %vm14, %v5824, 0
  %v5928 = vsel %vm14, %v5825, 0
  %v5931 = vsel %vm14, %v5826, 0
  %v5934 = vsel %vm14, %v5827, 0
  %v5937 = vsel %vm14, %v5828, 0
  %v5940 = vsel %vm14, %v5829, 0
  %v5943 = vsel %vm14, %v5830, 0
  %v5946 = vsel %vm14, %v5831, 0
  %v5949 = vsel %vm14, %v5832, 0
  %v5952 = vsel %vm14, %v5833, 0
  %v5955 = vsel %vm14, %v5834, 0
  %v5958 = vsel %vm14, %v5835, 0
  %v5961 = vsel %vm14, %v5836, 0
  %v5964 = vsel %vm14, %v5837, 0
  %v5967 = vsel %vm14, %v5838, 0
  %v5970 = vsel %vm14, %v5839, 0
  %v5973 = vsel %vm14, %v5840, 0
  %v5976 = vsel %vm14, %v5841, 0
  %v5979 = vsel %vm14, %v5842, 0
  %v5982 = vsel %vm14, %v5843, 0
  %v5985 = vsel %vm14, %v5844, 0
  %v5988 = vsel %vm14, %v5845, 0
  %v5991 = vsel %vm14, %v5846, 0
  %v5994 = vsel %vm14, %v5847, 0
  %v5997 = vsel %vm14, %v5848, 0
  %v6000 = vsel %vm14, %v5849, 0
  %v6003 = vsel %vm14, %v5850, 0
  %v6006 = vsel %vm14, %v5851, 0
  %v6009 = vsel %vm14, %v5852, 0
  %v6012 = vsel %vm14, %v5853, 0
  %v6015 = vsel %vm14, %v5854, 0
  %v6018 = vsel %vm14, %v5855, 0
  %v6021 = vsel %vm14, %v5856, 0
  %v6024 = vsel %vm14, %v5857, 0
  %v6027 = vsel %vm14, %v5858, 0
  %v6030 = vsel %vm14, %v5859, 0
  %v6033 = vsel %vm14, %v5860, 0
  %v6036 = vsel %vm14, %v5861, 0
  %v6039 = vsel %vm14, %v5862, 0
  %v6042 = vsel %vm14, %v5863, 0
  %v6045 = vsel %vm14, %v5864, 0
  %v6048 = vsel %vm14, %v5865, 0
  %v6051 = vsel %vm14, %v5866, 0
  %v6054 = vsel %vm14, %v5867, 0
  %v6057 = vsel %vm14, %v5868, 0
  %v6060 = vsel %vm14, %v5869, 0
  %v6063 = vsel %vm14, %v5870, 0
  %v6066 = vsel %vm577, %v5872, 0
  %6068 = vmatprep.subr.mxu0 0.0
  %6069 = vmatpush1.msra.mxu0 0.0
  %6070 = vmatprep.subr.mxu0 0.0
  %6071 = vmatpush1.msra.mxu0 0.0
  %6072 = vmatprep.subr.mxu0 0.0
  %6073 = vmatpush1.msra.mxu0 0.0
  %6074 = vmatprep.subr.mxu0 0.0
  %6075 = vmatpush1.msra.mxu0 0.0
  %6076 = vmatprep.subr.mxu0 0.0
  %6077 = vmatpush1.msra.mxu0 0.0
  %6078 = vmatprep.subr.mxu0 0.0
  %6079 = vmatpush1.msra.mxu0 0.0
  %6080 = vmatprep.subr.mxu0 0.0
  %6081 = vmatpush1.msra.mxu0 0.0
  %6082 = vmatprep.subr.mxu0 0.0
  %6083 = vmatpush1.msra.mxu0 0.0
  %6084 = vmatprep.subr.mxu0 0.0
  %6085 = vmatpush1.msra.mxu0 0.0
  %6086 = vmatprep.subr.mxu0 0.0
  %6087 = vmatpush1.msra.mxu0 0.0
  %6088 = vmatprep.subr.mxu0 0.0
  %6089 = vmatpush1.msra.mxu0 0.0
  %6090 = vmatprep.subr.mxu0 0.0
  %6091 = vmatpush1.msra.mxu0 0.0
  %6092 = vmatprep.subr.mxu0 0.0
  %6093 = vmatpush1.msra.mxu0 0.0
  %6094 = vmatprep.subr.mxu0 0.0
  %6095 = vmatpush1.msra.mxu0 0.0
  %6096 = vmatprep.subr.mxu0 0.0
  %6097 = vmatpush1.msra.mxu0 0.0
  %6098 = vmatprep.subr.mxu0 0.0
  %6099 = vmatpush1.msra.mxu0 %v6066
  %6100 = vmatprep.subr.mxu0 0.0
  %6101 = vmatpush2.msra.mxu0 0.0
  %6102 = vmatprep.subr.mxu0 0.0
  %6103 = vmatpush2.msra.mxu0 0.0
  %6104 = vmatprep.subr.mxu0 0.0
  %6105 = vmatpush2.msra.mxu0 0.0
  %6106 = vmatprep.subr.mxu0 0.0
  %6107 = vmatpush2.msra.mxu0 0.0
  %6108 = vmatprep.subr.mxu0 0.0
  %6109 = vmatpush2.msra.mxu0 0.0
  %6110 = vmatprep.subr.mxu0 0.0
  %6111 = vmatpush2.msra.mxu0 0.0
  %6112 = vmatprep.subr.mxu0 0.0
  %6113 = vmatpush2.msra.mxu0 0.0
  %6114 = vmatprep.subr.mxu0 0.0
  %6115 = vmatpush2.msra.mxu0 0.0
  %6116 = vmatprep.subr.mxu0 0.0
  %6117 = vmatpush2.msra.mxu0 0.0
  %6118 = vmatprep.subr.mxu0 0.0
  %6119 = vmatpush2.msra.mxu0 0.0
  %6120 = vmatprep.subr.mxu0 0.0
  %6121 = vmatpush2.msra.mxu0 0.0
  %6122 = vmatprep.subr.mxu0 0.0
  %6123 = vmatpush2.msra.mxu0 0.0
  %6124 = vmatprep.subr.mxu0 0.0
  %6125 = vmatpush2.msra.mxu0 0.0
  %6126 = vmatprep.subr.mxu0 0.0
  %6127 = vmatpush2.msra.mxu0 0.0
  %6128 = vmatprep.subr.mxu0 0.0
  %6129 = vmatpush2.msra.mxu0 0.0
  %6130 = vmatprep.subr.mxu0 0.0
  %6131 = vmatpush2.msra.mxu0 0.0
  %6132 = vmatprep.mubr.f32.mxu0 0.0
  %6133 = vmatmul.mubr.f32.gmra.mxu0 %v5874
  %v6134 = vpop.f32.mrf.mxu0
  %v6135 = vadd.f32 0.0, %v6134
  %v6136 = vpop.f32.mrf.mxu0
  %6137 = vmatprep.mubr.f32.mxu0 0.0
  %6138 = vmatmul.mubr.f32.gmra.mxu0 %v5877
  %v6139 = vpop.f32.mrf.mxu0
  %v6140 = vadd.f32 0.0, %v6139
  %v6141 = vpop.f32.mrf.mxu0
  %6142 = vmatprep.mubr.f32.mxu0 0.0
  %6143 = vmatmul.mubr.f32.gmra.mxu0 %v5880
  %v6144 = vpop.f32.mrf.mxu0
  %v6145 = vadd.f32 0.0, %v6144
  %v6146 = vpop.f32.mrf.mxu0
  %6147 = vmatprep.mubr.f32.mxu0 0.0
  %6148 = vmatmul.mubr.f32.gmra.mxu0 %v5883
  %v6149 = vpop.f32.mrf.mxu0
  %v6150 = vadd.f32 0.0, %v6149
  %v6151 = vpop.f32.mrf.mxu0
  %6152 = vmatprep.mubr.f32.mxu0 0.0
  %6153 = vmatmul.mubr.f32.gmra.mxu0 %v5886
  %v6154 = vpop.f32.mrf.mxu0
  %v6155 = vadd.f32 0.0, %v6154
  %v6156 = vpop.f32.mrf.mxu0
  %6157 = vmatprep.mubr.f32.mxu0 0.0
  %6158 = vmatmul.mubr.f32.gmra.mxu0 %v5889
  %v6159 = vpop.f32.mrf.mxu0
  %v6160 = vadd.f32 0.0, %v6159
  %v6161 = vpop.f32.mrf.mxu0
  %6162 = vmatprep.mubr.f32.mxu0 0.0
  %6163 = vmatmul.mubr.f32.gmra.mxu0 %v5892
  %v6164 = vpop.f32.mrf.mxu0
  %v6165 = vadd.f32 0.0, %v6164
  %v6166 = vpop.f32.mrf.mxu0
  %6167 = vmatprep.mubr.f32.mxu0 0.0
  %6168 = vmatmul.mubr.f32.gmra.mxu0 %v5895
  %v6169 = vpop.f32.mrf.mxu0
  %v6170 = vadd.f32 0.0, %v6169
  %v6171 = vpop.f32.mrf.mxu0
  %6172 = vmatprep.mubr.f32.mxu0 0.0
  %6173 = vmatmul.mubr.f32.gmra.mxu0 %v5898
  %v6174 = vpop.f32.mrf.mxu0
  %v6175 = vadd.f32 0.0, %v6174
  %v6176 = vpop.f32.mrf.mxu0
  %6177 = vmatprep.mubr.f32.mxu0 0.0
  %6178 = vmatmul.mubr.f32.gmra.mxu0 %v5901
  %v6179 = vpop.f32.mrf.mxu0
  %v6180 = vadd.f32 0.0, %v6179
  %v6181 = vpop.f32.mrf.mxu0
  %6182 = vmatprep.mubr.f32.mxu0 0.0
  %6183 = vmatmul.mubr.f32.gmra.mxu0 %v5904
  %v6184 = vpop.f32.mrf.mxu0
  %v6185 = vadd.f32 0.0, %v6184
  %v6186 = vpop.f32.mrf.mxu0
  %6187 = vmatprep.mubr.f32.mxu0 0.0
  %6188 = vmatmul.mubr.f32.gmra.mxu0 %v5907
  %v6189 = vpop.f32.mrf.mxu0
  %v6190 = vadd.f32 0.0, %v6189
  %v6191 = vpop.f32.mrf.mxu0
  %6192 = vmatprep.mubr.f32.mxu0 0.0
  %6193 = vmatmul.mubr.f32.gmra.mxu0 %v5910
  %v6194 = vpop.f32.mrf.mxu0
  %v6195 = vadd.f32 0.0, %v6194
  %v6196 = vpop.f32.mrf.mxu0
  %6197 = vmatprep.mubr.f32.mxu0 0.0
  %6198 = vmatmul.mubr.f32.gmra.mxu0 %v5913
  %v6199 = vpop.f32.mrf.mxu0
  %v6200 = vadd.f32 0.0, %v6199
  %v6201 = vpop.f32.mrf.mxu0
  %6202 = vmatprep.mubr.f32.mxu0 0.0
  %6203 = vmatmul.mubr.f32.gmra.mxu0 %v5916
  %v6204 = vpop.f32.mrf.mxu0
  %v6205 = vadd.f32 0.0, %v6204
  %v6206 = vpop.f32.mrf.mxu0
  %6207 = vmatprep.mubr.f32.mxu0 0.0
  %6208 = vmatmul.mubr.f32.gmra.mxu0 %v5919
  %v6209 = vpop.f32.mrf.mxu0
  %v6210 = vadd.f32 0.0, %v6209
  %v6211 = vpop.f32.mrf.mxu0
  %6212 = vmatprep.mubr.f32.mxu0 0.0
  %6213 = vmatmul.mubr.f32.gmra.mxu0 %v5922
  %v6214 = vpop.f32.mrf.mxu0
  %v6215 = vadd.f32 0.0, %v6214
  %v6216 = vpop.f32.mrf.mxu0
  %6217 = vmatprep.mubr.f32.mxu0 0.0
  %6218 = vmatmul.mubr.f32.gmra.mxu0 %v5925
  %v6219 = vpop.f32.mrf.mxu0
  %v6220 = vadd.f32 0.0, %v6219
  %v6221 = vpop.f32.mrf.mxu0
  %6222 = vmatprep.mubr.f32.mxu0 0.0
  %6223 = vmatmul.mubr.f32.gmra.mxu0 %v5928
  %v6224 = vpop.f32.mrf.mxu0
  %v6225 = vadd.f32 0.0, %v6224
  %v6226 = vpop.f32.mrf.mxu0
  %6227 = vmatprep.mubr.f32.mxu0 0.0
  %6228 = vmatmul.mubr.f32.gmra.mxu0 %v5931
  %v6229 = vpop.f32.mrf.mxu0
  %v6230 = vadd.f32 0.0, %v6229
  %v6231 = vpop.f32.mrf.mxu0
  %6232 = vmatprep.mubr.f32.mxu0 0.0
  %6233 = vmatmul.mubr.f32.gmra.mxu0 %v5934
  %v6234 = vpop.f32.mrf.mxu0
  %v6235 = vadd.f32 0.0, %v6234
  %v6236 = vpop.f32.mrf.mxu0
  %6237 = vmatprep.mubr.f32.mxu0 0.0
  %6238 = vmatmul.mubr.f32.gmra.mxu0 %v5937
  %v6239 = vpop.f32.mrf.mxu0
  %v6240 = vadd.f32 0.0, %v6239
  %v6241 = vpop.f32.mrf.mxu0
  %6242 = vmatprep.mubr.f32.mxu0 0.0
  %6243 = vmatmul.mubr.f32.gmra.mxu0 %v5940
  %v6244 = vpop.f32.mrf.mxu0
  %v6245 = vadd.f32 0.0, %v6244
  %v6246 = vpop.f32.mrf.mxu0
  %6247 = vmatprep.mubr.f32.mxu0 0.0
  %6248 = vmatmul.mubr.f32.gmra.mxu0 %v5943
  %v6249 = vpop.f32.mrf.mxu0
  %v6250 = vadd.f32 0.0, %v6249
  %v6251 = vpop.f32.mrf.mxu0
  %6252 = vmatprep.mubr.f32.mxu0 0.0
  %6253 = vmatmul.mubr.f32.gmra.mxu0 %v5946
  %v6254 = vpop.f32.mrf.mxu0
  %v6255 = vadd.f32 0.0, %v6254
  %v6256 = vpop.f32.mrf.mxu0
  %6257 = vmatprep.mubr.f32.mxu0 0.0
  %6258 = vmatmul.mubr.f32.gmra.mxu0 %v5949
  %v6259 = vpop.f32.mrf.mxu0
  %v6260 = vadd.f32 0.0, %v6259
  %v6261 = vpop.f32.mrf.mxu0
  %6262 = vmatprep.mubr.f32.mxu0 0.0
  %6263 = vmatmul.mubr.f32.gmra.mxu0 %v5952
  %v6264 = vpop.f32.mrf.mxu0
  %v6265 = vadd.f32 0.0, %v6264
  %v6266 = vpop.f32.mrf.mxu0
  %6267 = vmatprep.mubr.f32.mxu0 0.0
  %6268 = vmatmul.mubr.f32.gmra.mxu0 %v5955
  %v6269 = vpop.f32.mrf.mxu0
  %v6270 = vadd.f32 0.0, %v6269
  %v6271 = vpop.f32.mrf.mxu0
  %6272 = vmatprep.mubr.f32.mxu0 0.0
  %6273 = vmatmul.mubr.f32.gmra.mxu0 %v5958
  %v6274 = vpop.f32.mrf.mxu0
  %v6275 = vadd.f32 0.0, %v6274
  %v6276 = vpop.f32.mrf.mxu0
  %6277 = vmatprep.mubr.f32.mxu0 0.0
  %6278 = vmatmul.mubr.f32.gmra.mxu0 %v5961
  %v6279 = vpop.f32.mrf.mxu0
  %v6280 = vadd.f32 0.0, %v6279
  %v6281 = vpop.f32.mrf.mxu0
  %6282 = vmatprep.mubr.f32.mxu0 0.0
  %6283 = vmatmul.mubr.f32.gmra.mxu0 %v5964
  %v6284 = vpop.f32.mrf.mxu0
  %v6285 = vadd.f32 0.0, %v6284
  %v6286 = vpop.f32.mrf.mxu0
  %6287 = vmatprep.mubr.f32.mxu0 0.0
  %6288 = vmatmul.mubr.f32.gmra.mxu0 %v5967
  %v6289 = vpop.f32.mrf.mxu0
  %v6290 = vadd.f32 0.0, %v6289
  %v6291 = vpop.f32.mrf.mxu0
  %6292 = vmatprep.mubr.f32.mxu0 0.0
  %6293 = vmatmul.mubr.f32.gmra.mxu0 %v5970
  %v6294 = vpop.f32.mrf.mxu0
  %v6295 = vadd.f32 0.0, %v6294
  %v6296 = vpop.f32.mrf.mxu0
  %6297 = vmatprep.mubr.f32.mxu0 0.0
  %6298 = vmatmul.mubr.f32.gmra.mxu0 %v5973
  %v6299 = vpop.f32.mrf.mxu0
  %v6300 = vadd.f32 0.0, %v6299
  %v6301 = vpop.f32.mrf.mxu0
  %6302 = vmatprep.mubr.f32.mxu0 0.0
  %6303 = vmatmul.mubr.f32.gmra.mxu0 %v5976
  %v6304 = vpop.f32.mrf.mxu0
  %v6305 = vadd.f32 0.0, %v6304
  %v6306 = vpop.f32.mrf.mxu0
  %6307 = vmatprep.mubr.f32.mxu0 0.0
  %6308 = vmatmul.mubr.f32.gmra.mxu0 %v5979
  %v6309 = vpop.f32.mrf.mxu0
  %v6310 = vadd.f32 0.0, %v6309
  %v6311 = vpop.f32.mrf.mxu0
  %6312 = vmatprep.mubr.f32.mxu0 0.0
  %6313 = vmatmul.mubr.f32.gmra.mxu0 %v5982
  %v6314 = vpop.f32.mrf.mxu0
  %v6315 = vadd.f32 0.0, %v6314
  %v6316 = vpop.f32.mrf.mxu0
  %6317 = vmatprep.mubr.f32.mxu0 0.0
  %6318 = vmatmul.mubr.f32.gmra.mxu0 %v5985
  %v6319 = vpop.f32.mrf.mxu0
  %v6320 = vadd.f32 0.0, %v6319
  %v6321 = vpop.f32.mrf.mxu0
  %6322 = vmatprep.mubr.f32.mxu0 0.0
  %6323 = vmatmul.mubr.f32.gmra.mxu0 %v5988
  %v6324 = vpop.f32.mrf.mxu0
  %v6325 = vadd.f32 0.0, %v6324
  %v6326 = vpop.f32.mrf.mxu0
  %6327 = vmatprep.mubr.f32.mxu0 0.0
  %6328 = vmatmul.mubr.f32.gmra.mxu0 %v5991
  %v6329 = vpop.f32.mrf.mxu0
  %v6330 = vadd.f32 0.0, %v6329
  %v6331 = vpop.f32.mrf.mxu0
  %6332 = vmatprep.mubr.f32.mxu0 0.0
  %6333 = vmatmul.mubr.f32.gmra.mxu0 %v5994
  %v6334 = vpop.f32.mrf.mxu0
  %v6335 = vadd.f32 0.0, %v6334
  %v6336 = vpop.f32.mrf.mxu0
  %6337 = vmatprep.mubr.f32.mxu0 0.0
  %6338 = vmatmul.mubr.f32.gmra.mxu0 %v5997
  %v6339 = vpop.f32.mrf.mxu0
  %v6340 = vadd.f32 0.0, %v6339
  %v6341 = vpop.f32.mrf.mxu0
  %6342 = vmatprep.mubr.f32.mxu0 0.0
  %6343 = vmatmul.mubr.f32.gmra.mxu0 %v6000
  %v6344 = vpop.f32.mrf.mxu0
  %v6345 = vadd.f32 0.0, %v6344
  %v6346 = vpop.f32.mrf.mxu0
  %6347 = vmatprep.mubr.f32.mxu0 0.0
  %6348 = vmatmul.mubr.f32.gmra.mxu0 %v6003
  %v6349 = vpop.f32.mrf.mxu0
  %v6350 = vadd.f32 0.0, %v6349
  %v6351 = vpop.f32.mrf.mxu0
  %6352 = vmatprep.mubr.f32.mxu0 0.0
  %6353 = vmatmul.mubr.f32.gmra.mxu0 %v6006
  %v6354 = vpop.f32.mrf.mxu0
  %v6355 = vadd.f32 0.0, %v6354
  %v6356 = vpop.f32.mrf.mxu0
  %6357 = vmatprep.mubr.f32.mxu0 0.0
  %6358 = vmatmul.mubr.f32.gmra.mxu0 %v6009
  %v6359 = vpop.f32.mrf.mxu0
  %v6360 = vadd.f32 0.0, %v6359
  %v6361 = vpop.f32.mrf.mxu0
  %6362 = vmatprep.mubr.f32.mxu0 0.0
  %6363 = vmatmul.mubr.f32.gmra.mxu0 %v6012
  %v6364 = vpop.f32.mrf.mxu0
  %v6365 = vadd.f32 0.0, %v6364
  %v6366 = vpop.f32.mrf.mxu0
  %6367 = vmatprep.mubr.f32.mxu0 0.0
  %6368 = vmatmul.mubr.f32.gmra.mxu0 %v6015
  %v6369 = vpop.f32.mrf.mxu0
  %v6370 = vadd.f32 0.0, %v6369
  %v6371 = vpop.f32.mrf.mxu0
  %6372 = vmatprep.mubr.f32.mxu0 0.0
  %6373 = vmatmul.mubr.f32.gmra.mxu0 %v6018
  %v6374 = vpop.f32.mrf.mxu0
  %v6375 = vadd.f32 0.0, %v6374
  %v6376 = vpop.f32.mrf.mxu0
  %6377 = vmatprep.mubr.f32.mxu0 0.0
  %6378 = vmatmul.mubr.f32.gmra.mxu0 %v6021
  %v6379 = vpop.f32.mrf.mxu0
  %v6380 = vadd.f32 0.0, %v6379
  %v6381 = vpop.f32.mrf.mxu0
  %6382 = vmatprep.mubr.f32.mxu0 0.0
  %6383 = vmatmul.mubr.f32.gmra.mxu0 %v6024
  %v6384 = vpop.f32.mrf.mxu0
  %v6385 = vadd.f32 0.0, %v6384
  %v6386 = vpop.f32.mrf.mxu0
  %6387 = vmatprep.mubr.f32.mxu0 0.0
  %6388 = vmatmul.mubr.f32.gmra.mxu0 %v6027
  %v6389 = vpop.f32.mrf.mxu0
  %v6390 = vadd.f32 0.0, %v6389
  %v6391 = vpop.f32.mrf.mxu0
  %6392 = vmatprep.mubr.f32.mxu0 0.0
  %6393 = vmatmul.mubr.f32.gmra.mxu0 %v6030
  %v6394 = vpop.f32.mrf.mxu0
  %v6395 = vadd.f32 0.0, %v6394
  %v6396 = vpop.f32.mrf.mxu0
  %6397 = vmatprep.mubr.f32.mxu0 0.0
  %6398 = vmatmul.mubr.f32.gmra.mxu0 %v6033
  %v6399 = vpop.f32.mrf.mxu0
  %v6400 = vadd.f32 0.0, %v6399
  %v6401 = vpop.f32.mrf.mxu0
  %6402 = vmatprep.mubr.f32.mxu0 0.0
  %6403 = vmatmul.mubr.f32.gmra.mxu0 %v6036
  %v6404 = vpop.f32.mrf.mxu0
  %v6405 = vadd.f32 0.0, %v6404
  %v6406 = vpop.f32.mrf.mxu0
  %6407 = vmatprep.mubr.f32.mxu0 0.0
  %6408 = vmatmul.mubr.f32.gmra.mxu0 %v6039
  %v6409 = vpop.f32.mrf.mxu0
  %v6410 = vadd.f32 0.0, %v6409
  %v6411 = vpop.f32.mrf.mxu0
  %6412 = vmatprep.mubr.f32.mxu0 0.0
  %6413 = vmatmul.mubr.f32.gmra.mxu0 %v6042
  %v6414 = vpop.f32.mrf.mxu0
  %v6415 = vadd.f32 0.0, %v6414
  %v6416 = vpop.f32.mrf.mxu0
  %6417 = vmatprep.mubr.f32.mxu0 0.0
  %6418 = vmatmul.mubr.f32.gmra.mxu0 %v6045
  %v6419 = vpop.f32.mrf.mxu0
  %v6420 = vadd.f32 0.0, %v6419
  %v6421 = vpop.f32.mrf.mxu0
  %6422 = vmatprep.mubr.f32.mxu0 0.0
  %6423 = vmatmul.mubr.f32.gmra.mxu0 %v6048
  %v6424 = vpop.f32.mrf.mxu0
  %v6425 = vadd.f32 0.0, %v6424
  %v6426 = vpop.f32.mrf.mxu0
  %6427 = vmatprep.mubr.f32.mxu0 0.0
  %6428 = vmatmul.mubr.f32.gmra.mxu0 %v6051
  %v6429 = vpop.f32.mrf.mxu0
  %v6430 = vadd.f32 0.0, %v6429
  %v6431 = vpop.f32.mrf.mxu0
  %6432 = vmatprep.mubr.f32.mxu0 0.0
  %6433 = vmatmul.mubr.f32.gmra.mxu0 %v6054
  %v6434 = vpop.f32.mrf.mxu0
  %v6435 = vadd.f32 0.0, %v6434
  %v6436 = vpop.f32.mrf.mxu0
  %6437 = vmatprep.mubr.f32.mxu0 0.0
  %6438 = vmatmul.mubr.f32.gmra.mxu0 %v6057
  %v6439 = vpop.f32.mrf.mxu0
  %v6440 = vadd.f32 0.0, %v6439
  %v6441 = vpop.f32.mrf.mxu0
  %6442 = vmatprep.mubr.f32.mxu0 0.0
  %6443 = vmatmul.mubr.f32.gmra.mxu0 %v6060
  %v6444 = vpop.f32.mrf.mxu0
  %v6445 = vadd.f32 0.0, %v6444
  %v6446 = vpop.f32.mrf.mxu0
  %6447 = vmatprep.mubr.f32.mxu0 0.0
  %6448 = vmatmul.mubr.f32.gmra.mxu0 %v6063
  %v6449 = vpop.f32.mrf.mxu0
  %v6450 = vadd.f32 0.0, %v6449
  %v6451 = vpop.f32.mrf.mxu0
  %6452 = vdwg.mxu0
  %v6453 = vadd.f32 %v5743, %v6135
  %v6454 = vadd.f32 %v5744, %v6140
  %v6455 = vadd.f32 %v5745, %v6145
  %v6456 = vadd.f32 %v5746, %v6150
  %v6457 = vadd.f32 %v5747, %v6155
  %v6458 = vadd.f32 %v5748, %v6160
  %v6459 = vadd.f32 %v5749, %v6165
  %v6460 = vadd.f32 %v5750, %v6170
  %v6461 = vadd.f32 %v5751, %v6175
  %v6462 = vadd.f32 %v5752, %v6180
  %v6463 = vadd.f32 %v5753, %v6185
  %v6464 = vadd.f32 %v5754, %v6190
  %v6465 = vadd.f32 %v5755, %v6195
  %v6466 = vadd.f32 %v5756, %v6200
  %v6467 = vadd.f32 %v5757, %v6205
  %v6468 = vadd.f32 %v5758, %v6210
  %v6469 = vadd.f32 %v5759, %v6215
  %v6470 = vadd.f32 %v5760, %v6220
  %v6471 = vadd.f32 %v5761, %v6225
  %v6472 = vadd.f32 %v5762, %v6230
  %v6473 = vadd.f32 %v5763, %v6235
  %v6474 = vadd.f32 %v5764, %v6240
  %v6475 = vadd.f32 %v5765, %v6245
  %v6476 = vadd.f32 %v5766, %v6250
  %v6477 = vadd.f32 %v5767, %v6255
  %v6478 = vadd.f32 %v5768, %v6260
  %v6479 = vadd.f32 %v5769, %v6265
  %v6480 = vadd.f32 %v5770, %v6270
  %v6481 = vadd.f32 %v5771, %v6275
  %v6482 = vadd.f32 %v5772, %v6280
  %v6483 = vadd.f32 %v5773, %v6285
  %v6484 = vadd.f32 %v5774, %v6290
  %v6485 = vadd.f32 %v5775, %v6295
  %v6486 = vadd.f32 %v5776, %v6300
  %v6487 = vadd.f32 %v5777, %v6305
  %v6488 = vadd.f32 %v5778, %v6310
  %v6489 = vadd.f32 %v5779, %v6315
  %v6490 = vadd.f32 %v5780, %v6320
  %v6491 = vadd.f32 %v5781, %v6325
  %v6492 = vadd.f32 %v5782, %v6330
  %v6493 = vadd.f32 %v5783, %v6335
  %v6494 = vadd.f32 %v5784, %v6340
  %v6495 = vadd.f32 %v5785, %v6345
  %v6496 = vadd.f32 %v5786, %v6350
  %v6497 = vadd.f32 %v5787, %v6355
  %v6498 = vadd.f32 %v5788, %v6360
  %v6499 = vadd.f32 %v5789, %v6365
  %v6500 = vadd.f32 %v5790, %v6370
  %v6501 = vadd.f32 %v5791, %v6375
  %v6502 = vadd.f32 %v5792, %v6380
  %v6503 = vadd.f32 %v5793, %v6385
  %v6504 = vadd.f32 %v5794, %v6390
  %v6505 = vadd.f32 %v5795, %v6395
  %v6506 = vadd.f32 %v5796, %v6400
  %v6507 = vadd.f32 %v5797, %v6405
  %v6508 = vadd.f32 %v5798, %v6410
  %v6509 = vadd.f32 %v5799, %v6415
  %v6510 = vadd.f32 %v5800, %v6420
  %v6511 = vadd.f32 %v5801, %v6425
  %v6512 = vadd.f32 %v5802, %v6430
  %v6513 = vadd.f32 %v5803, %v6435
  %v6514 = vadd.f32 %v5804, %v6440
  %v6515 = vadd.f32 %v5805, %v6445
  %v6516 = vadd.f32 %v5806, %v6450
  %v6517 = vsel %vm14, %v6453, 0.0
  %v6518 = vsel %vm14, %v6454, 0.0
  %v6519 = vadd.f32 %v6517, %v6518
  %v6520 = vsel %vm14, %v6455, 0.0
  %v6521 = vadd.f32 %v6519, %v6520
  %v6522 = vsel %vm14, %v6456, 0.0
  %v6523 = vadd.f32 %v6521, %v6522
  %v6524 = vsel %vm14, %v6457, 0.0
  %v6525 = vadd.f32 %v6523, %v6524
  %v6526 = vsel %vm14, %v6458, 0.0
  %v6527 = vadd.f32 %v6525, %v6526
  %v6528 = vsel %vm14, %v6459, 0.0
  %v6529 = vadd.f32 %v6527, %v6528
  %v6530 = vsel %vm14, %v6460, 0.0
  %v6531 = vadd.f32 %v6529, %v6530
  %v6532 = vsel %vm14, %v6461, 0.0
  %v6533 = vadd.f32 %v6531, %v6532
  %v6534 = vsel %vm14, %v6462, 0.0
  %v6535 = vadd.f32 %v6533, %v6534
  %v6536 = vsel %vm14, %v6463, 0.0
  %v6537 = vadd.f32 %v6535, %v6536
  %v6538 = vsel %vm14, %v6464, 0.0
  %v6539 = vadd.f32 %v6537, %v6538
  %v6540 = vsel %vm14, %v6465, 0.0
  %v6541 = vadd.f32 %v6539, %v6540
  %v6542 = vsel %vm14, %v6466, 0.0
  %v6543 = vadd.f32 %v6541, %v6542
  %v6544 = vsel %vm14, %v6467, 0.0
  %v6545 = vadd.f32 %v6543, %v6544
  %v6546 = vsel %vm14, %v6468, 0.0
  %v6547 = vadd.f32 %v6545, %v6546
  %v6548 = vsel %vm14, %v6469, 0.0
  %v6549 = vadd.f32 %v6547, %v6548
  %v6550 = vsel %vm14, %v6470, 0.0
  %v6551 = vadd.f32 %v6549, %v6550
  %v6552 = vsel %vm14, %v6471, 0.0
  %v6553 = vadd.f32 %v6551, %v6552
  %v6554 = vsel %vm14, %v6472, 0.0
  %v6555 = vadd.f32 %v6553, %v6554
  %v6556 = vsel %vm14, %v6473, 0.0
  %v6557 = vadd.f32 %v6555, %v6556
  %v6558 = vsel %vm14, %v6474, 0.0
  %v6559 = vadd.f32 %v6557, %v6558
  %v6560 = vsel %vm14, %v6475, 0.0
  %v6561 = vadd.f32 %v6559, %v6560
  %v6562 = vsel %vm14, %v6476, 0.0
  %v6563 = vadd.f32 %v6561, %v6562
  %v6564 = vsel %vm14, %v6477, 0.0
  %v6565 = vadd.f32 %v6563, %v6564
  %v6566 = vsel %vm14, %v6478, 0.0
  %v6567 = vadd.f32 %v6565, %v6566
  %v6568 = vsel %vm14, %v6479, 0.0
  %v6569 = vadd.f32 %v6567, %v6568
  %v6570 = vsel %vm14, %v6480, 0.0
  %v6571 = vadd.f32 %v6569, %v6570
  %v6572 = vsel %vm14, %v6481, 0.0
  %v6573 = vadd.f32 %v6571, %v6572
  %v6574 = vsel %vm14, %v6482, 0.0
  %v6575 = vadd.f32 %v6573, %v6574
  %v6576 = vsel %vm14, %v6483, 0.0
  %v6577 = vadd.f32 %v6575, %v6576
  %v6578 = vsel %vm14, %v6484, 0.0
  %v6579 = vadd.f32 %v6577, %v6578
  %v6580 = vsel %vm14, %v6485, 0.0
  %v6581 = vadd.f32 %v6579, %v6580
  %v6582 = vsel %vm14, %v6486, 0.0
  %v6583 = vadd.f32 %v6581, %v6582
  %v6584 = vsel %vm14, %v6487, 0.0
  %v6585 = vadd.f32 %v6583, %v6584
  %v6586 = vsel %vm14, %v6488, 0.0
  %v6587 = vadd.f32 %v6585, %v6586
  %v6588 = vsel %vm14, %v6489, 0.0
  %v6589 = vadd.f32 %v6587, %v6588
  %v6590 = vsel %vm14, %v6490, 0.0
  %v6591 = vadd.f32 %v6589, %v6590
  %v6592 = vsel %vm14, %v6491, 0.0
  %v6593 = vadd.f32 %v6591, %v6592
  %v6594 = vsel %vm14, %v6492, 0.0
  %v6595 = vadd.f32 %v6593, %v6594
  %v6596 = vsel %vm14, %v6493, 0.0
  %v6597 = vadd.f32 %v6595, %v6596
  %v6598 = vsel %vm14, %v6494, 0.0
  %v6599 = vadd.f32 %v6597, %v6598
  %v6600 = vsel %vm14, %v6495, 0.0
  %v6601 = vadd.f32 %v6599, %v6600
  %v6602 = vsel %vm14, %v6496, 0.0
  %v6603 = vadd.f32 %v6601, %v6602
  %v6604 = vsel %vm14, %v6497, 0.0
  %v6605 = vadd.f32 %v6603, %v6604
  %v6606 = vsel %vm14, %v6498, 0.0
  %v6607 = vadd.f32 %v6605, %v6606
  %v6608 = vsel %vm14, %v6499, 0.0
  %v6609 = vadd.f32 %v6607, %v6608
  %v6610 = vsel %vm14, %v6500, 0.0
  %v6611 = vadd.f32 %v6609, %v6610
  %v6612 = vsel %vm14, %v6501, 0.0
  %v6613 = vadd.f32 %v6611, %v6612
  %v6614 = vsel %vm14, %v6502, 0.0
  %v6615 = vadd.f32 %v6613, %v6614
  %v6616 = vsel %vm14, %v6503, 0.0
  %v6617 = vadd.f32 %v6615, %v6616
  %v6618 = vsel %vm14, %v6504, 0.0
  %v6619 = vadd.f32 %v6617, %v6618
  %v6620 = vsel %vm14, %v6505, 0.0
  %v6621 = vadd.f32 %v6619, %v6620
  %v6622 = vsel %vm14, %v6506, 0.0
  %v6623 = vadd.f32 %v6621, %v6622
  %v6624 = vsel %vm14, %v6507, 0.0
  %v6625 = vadd.f32 %v6623, %v6624
  %v6626 = vsel %vm14, %v6508, 0.0
  %v6627 = vadd.f32 %v6625, %v6626
  %v6628 = vsel %vm14, %v6509, 0.0
  %v6629 = vadd.f32 %v6627, %v6628
  %v6630 = vsel %vm14, %v6510, 0.0
  %v6631 = vadd.f32 %v6629, %v6630
  %v6632 = vsel %vm14, %v6511, 0.0
  %v6633 = vadd.f32 %v6631, %v6632
  %v6634 = vsel %vm14, %v6512, 0.0
  %v6635 = vadd.f32 %v6633, %v6634
  %v6636 = vsel %vm14, %v6513, 0.0
  %v6637 = vadd.f32 %v6635, %v6636
  %v6638 = vsel %vm14, %v6514, 0.0
  %v6639 = vadd.f32 %v6637, %v6638
  %v6640 = vsel %vm14, %v6515, 0.0
  %v6641 = vadd.f32 %v6639, %v6640
  %v6642 = vsel %vm14, %v6516, 0.0
  %v6643 = vadd.f32 %v6641, %v6642
  %v6644 = vrot.slane %v6643, 4
  %v6645 = vadd.f32 %v6643, %v6644
  %v6646 = vrot.slane %v6645, 2
  %v6647 = vadd.f32 %v6645, %v6646
  %v6648 = vrot.slane %v6647, 1
  %v6649 = vadd.f32 %v6647, %v6648
  %v6650 = vmul.f32 %v6649, 0.001953125
  %v6651 = vmul.f32 %v6453, %v6453
  %v6652 = vmul.f32 %v6454, %v6454
  %v6653 = vmul.f32 %v6455, %v6455
  %v6654 = vmul.f32 %v6456, %v6456
  %v6655 = vmul.f32 %v6457, %v6457
  %v6656 = vmul.f32 %v6458, %v6458
  %v6657 = vmul.f32 %v6459, %v6459
  %v6658 = vmul.f32 %v6460, %v6460
  %v6659 = vmul.f32 %v6461, %v6461
  %v6660 = vmul.f32 %v6462, %v6462
  %v6661 = vmul.f32 %v6463, %v6463
  %v6662 = vmul.f32 %v6464, %v6464
  %v6663 = vmul.f32 %v6465, %v6465
  %v6664 = vmul.f32 %v6466, %v6466
  %v6665 = vmul.f32 %v6467, %v6467
  %v6666 = vmul.f32 %v6468, %v6468
  %v6667 = vmul.f32 %v6469, %v6469
  %v6668 = vmul.f32 %v6470, %v6470
  %v6669 = vmul.f32 %v6471, %v6471
  %v6670 = vmul.f32 %v6472, %v6472
  %v6671 = vmul.f32 %v6473, %v6473
  %v6672 = vmul.f32 %v6474, %v6474
  %v6673 = vmul.f32 %v6475, %v6475
  %v6674 = vmul.f32 %v6476, %v6476
  %v6675 = vmul.f32 %v6477, %v6477
  %v6676 = vmul.f32 %v6478, %v6478
  %v6677 = vmul.f32 %v6479, %v6479
  %v6678 = vmul.f32 %v6480, %v6480
  %v6679 = vmul.f32 %v6481, %v6481
  %v6680 = vmul.f32 %v6482, %v6482
  %v6681 = vmul.f32 %v6483, %v6483
  %v6682 = vmul.f32 %v6484, %v6484
  %v6683 = vmul.f32 %v6485, %v6485
  %v6684 = vmul.f32 %v6486, %v6486
  %v6685 = vmul.f32 %v6487, %v6487
  %v6686 = vmul.f32 %v6488, %v6488
  %v6687 = vmul.f32 %v6489, %v6489
  %v6688 = vmul.f32 %v6490, %v6490
  %v6689 = vmul.f32 %v6491, %v6491
  %v6690 = vmul.f32 %v6492, %v6492
  %v6691 = vmul.f32 %v6493, %v6493
  %v6692 = vmul.f32 %v6494, %v6494
  %v6693 = vmul.f32 %v6495, %v6495
  %v6694 = vmul.f32 %v6496, %v6496
  %v6695 = vmul.f32 %v6497, %v6497
  %v6696 = vmul.f32 %v6498, %v6498
  %v6697 = vmul.f32 %v6499, %v6499
  %v6698 = vmul.f32 %v6500, %v6500
  %v6699 = vmul.f32 %v6501, %v6501
  %v6700 = vmul.f32 %v6502, %v6502
  %v6701 = vmul.f32 %v6503, %v6503
  %v6702 = vmul.f32 %v6504, %v6504
  %v6703 = vmul.f32 %v6505, %v6505
  %v6704 = vmul.f32 %v6506, %v6506
  %v6705 = vmul.f32 %v6507, %v6507
  %v6706 = vmul.f32 %v6508, %v6508
  %v6707 = vmul.f32 %v6509, %v6509
  %v6708 = vmul.f32 %v6510, %v6510
  %v6709 = vmul.f32 %v6511, %v6511
  %v6710 = vmul.f32 %v6512, %v6512
  %v6711 = vmul.f32 %v6513, %v6513
  %v6712 = vmul.f32 %v6514, %v6514
  %v6713 = vmul.f32 %v6515, %v6515
  %v6714 = vmul.f32 %v6516, %v6516
  %v6715 = vsel %vm14, %v6651, 0.0
  %v6716 = vsel %vm14, %v6652, 0.0
  %v6717 = vadd.f32 %v6715, %v6716
  %v6718 = vsel %vm14, %v6653, 0.0
  %v6719 = vadd.f32 %v6717, %v6718
  %v6720 = vsel %vm14, %v6654, 0.0
  %v6721 = vadd.f32 %v6719, %v6720
  %v6722 = vsel %vm14, %v6655, 0.0
  %v6723 = vadd.f32 %v6721, %v6722
  %v6724 = vsel %vm14, %v6656, 0.0
  %v6725 = vadd.f32 %v6723, %v6724
  %v6726 = vsel %vm14, %v6657, 0.0
  %v6727 = vadd.f32 %v6725, %v6726
  %v6728 = vsel %vm14, %v6658, 0.0
  %v6729 = vadd.f32 %v6727, %v6728
  %v6730 = vsel %vm14, %v6659, 0.0
  %v6731 = vadd.f32 %v6729, %v6730
  %v6732 = vsel %vm14, %v6660, 0.0
  %v6733 = vadd.f32 %v6731, %v6732
  %v6734 = vsel %vm14, %v6661, 0.0
  %v6735 = vadd.f32 %v6733, %v6734
  %v6736 = vsel %vm14, %v6662, 0.0
  %v6737 = vadd.f32 %v6735, %v6736
  %v6738 = vsel %vm14, %v6663, 0.0
  %v6739 = vadd.f32 %v6737, %v6738
  %v6740 = vsel %vm14, %v6664, 0.0
  %v6741 = vadd.f32 %v6739, %v6740
  %v6742 = vsel %vm14, %v6665, 0.0
  %v6743 = vadd.f32 %v6741, %v6742
  %v6744 = vsel %vm14, %v6666, 0.0
  %v6745 = vadd.f32 %v6743, %v6744
  %v6746 = vsel %vm14, %v6667, 0.0
  %v6747 = vadd.f32 %v6745, %v6746
  %v6748 = vsel %vm14, %v6668, 0.0
  %v6749 = vadd.f32 %v6747, %v6748
  %v6750 = vsel %vm14, %v6669, 0.0
  %v6751 = vadd.f32 %v6749, %v6750
  %v6752 = vsel %vm14, %v6670, 0.0
  %v6753 = vadd.f32 %v6751, %v6752
  %v6754 = vsel %vm14, %v6671, 0.0
  %v6755 = vadd.f32 %v6753, %v6754
  %v6756 = vsel %vm14, %v6672, 0.0
  %v6757 = vadd.f32 %v6755, %v6756
  %v6758 = vsel %vm14, %v6673, 0.0
  %v6759 = vadd.f32 %v6757, %v6758
  %v6760 = vsel %vm14, %v6674, 0.0
  %v6761 = vadd.f32 %v6759, %v6760
  %v6762 = vsel %vm14, %v6675, 0.0
  %v6763 = vadd.f32 %v6761, %v6762
  %v6764 = vsel %vm14, %v6676, 0.0
  %v6765 = vadd.f32 %v6763, %v6764
  %v6766 = vsel %vm14, %v6677, 0.0
  %v6767 = vadd.f32 %v6765, %v6766
  %v6768 = vsel %vm14, %v6678, 0.0
  %v6769 = vadd.f32 %v6767, %v6768
  %v6770 = vsel %vm14, %v6679, 0.0
  %v6771 = vadd.f32 %v6769, %v6770
  %v6772 = vsel %vm14, %v6680, 0.0
  %v6773 = vadd.f32 %v6771, %v6772
  %v6774 = vsel %vm14, %v6681, 0.0
  %v6775 = vadd.f32 %v6773, %v6774
  %v6776 = vsel %vm14, %v6682, 0.0
  %v6777 = vadd.f32 %v6775, %v6776
  %v6778 = vsel %vm14, %v6683, 0.0
  %v6779 = vadd.f32 %v6777, %v6778
  %v6780 = vsel %vm14, %v6684, 0.0
  %v6781 = vadd.f32 %v6779, %v6780
  %v6782 = vsel %vm14, %v6685, 0.0
  %v6783 = vadd.f32 %v6781, %v6782
  %v6784 = vsel %vm14, %v6686, 0.0
  %v6785 = vadd.f32 %v6783, %v6784
  %v6786 = vsel %vm14, %v6687, 0.0
  %v6787 = vadd.f32 %v6785, %v6786
  %v6788 = vsel %vm14, %v6688, 0.0
  %v6789 = vadd.f32 %v6787, %v6788
  %v6790 = vsel %vm14, %v6689, 0.0
  %v6791 = vadd.f32 %v6789, %v6790
  %v6792 = vsel %vm14, %v6690, 0.0
  %v6793 = vadd.f32 %v6791, %v6792
  %v6794 = vsel %vm14, %v6691, 0.0
  %v6795 = vadd.f32 %v6793, %v6794
  %v6796 = vsel %vm14, %v6692, 0.0
  %v6797 = vadd.f32 %v6795, %v6796
  %v6798 = vsel %vm14, %v6693, 0.0
  %v6799 = vadd.f32 %v6797, %v6798
  %v6800 = vsel %vm14, %v6694, 0.0
  %v6801 = vadd.f32 %v6799, %v6800
  %v6802 = vsel %vm14, %v6695, 0.0
  %v6803 = vadd.f32 %v6801, %v6802
  %v6804 = vsel %vm14, %v6696, 0.0
  %v6805 = vadd.f32 %v6803, %v6804
  %v6806 = vsel %vm14, %v6697, 0.0
  %v6807 = vadd.f32 %v6805, %v6806
  %v6808 = vsel %vm14, %v6698, 0.0
  %v6809 = vadd.f32 %v6807, %v6808
  %v6810 = vsel %vm14, %v6699, 0.0
  %v6811 = vadd.f32 %v6809, %v6810
  %v6812 = vsel %vm14, %v6700, 0.0
  %v6813 = vadd.f32 %v6811, %v6812
  %v6814 = vsel %vm14, %v6701, 0.0
  %v6815 = vadd.f32 %v6813, %v6814
  %v6816 = vsel %vm14, %v6702, 0.0
  %v6817 = vadd.f32 %v6815, %v6816
  %v6818 = vsel %vm14, %v6703, 0.0
  %v6819 = vadd.f32 %v6817, %v6818
  %v6820 = vsel %vm14, %v6704, 0.0
  %v6821 = vadd.f32 %v6819, %v6820
  %v6822 = vsel %vm14, %v6705, 0.0
  %v6823 = vadd.f32 %v6821, %v6822
  %v6824 = vsel %vm14, %v6706, 0.0
  %v6825 = vadd.f32 %v6823, %v6824
  %v6826 = vsel %vm14, %v6707, 0.0
  %v6827 = vadd.f32 %v6825, %v6826
  %v6828 = vsel %vm14, %v6708, 0.0
  %v6829 = vadd.f32 %v6827, %v6828
  %v6830 = vsel %vm14, %v6709, 0.0
  %v6831 = vadd.f32 %v6829, %v6830
  %v6832 = vsel %vm14, %v6710, 0.0
  %v6833 = vadd.f32 %v6831, %v6832
  %v6834 = vsel %vm14, %v6711, 0.0
  %v6835 = vadd.f32 %v6833, %v6834
  %v6836 = vsel %vm14, %v6712, 0.0
  %v6837 = vadd.f32 %v6835, %v6836
  %v6838 = vsel %vm14, %v6713, 0.0
  %v6839 = vadd.f32 %v6837, %v6838
  %v6840 = vsel %vm14, %v6714, 0.0
  %v6841 = vadd.f32 %v6839, %v6840
  %v6842 = vrot.slane %v6841, 4
  %v6843 = vadd.f32 %v6841, %v6842
  %v6844 = vrot.slane %v6843, 2
  %v6845 = vadd.f32 %v6843, %v6844
  %v6846 = vrot.slane %v6845, 1
  %v6847 = vadd.f32 %v6845, %v6846
  %v6848 = vmul.f32 %v6847, 0.001953125
  %v6849 = vmul.f32 %v6650, %v6650
  %v6850 = vsub.f32 %v6848, %v6849
  %v6851 = vmax.f32 %v6850, 0.0
  %v6852 = vadd.f32 %v6851, 1e-05
  %v6853 = vrsqrt.pop %v6852
  %v6854 = vmul.f32 %v124, %v6853
  %v6855 = vmul.f32 %v6650, %v6854
  %v6857 = vrot.slane %v6855, 7
  %v6859 = vsub.f32 %v124, %v6857
  %v6860 = vlaneseq
  %v6861 = vshrl.u32 %v6860, 7
  %v6862 = vsub.s32 0, %v6861
  %v6863 = vrot.slane %v6854, %v6862
  %v6864 = vmul.f32 %v6453, %v6863
  %v6865 = vmul.f32 %v6454, %v6863
  %v6866 = vmul.f32 %v6455, %v6863
  %v6867 = vmul.f32 %v6456, %v6863
  %v6868 = vmul.f32 %v6457, %v6863
  %v6869 = vmul.f32 %v6458, %v6863
  %v6870 = vmul.f32 %v6459, %v6863
  %v6871 = vmul.f32 %v6460, %v6863
  %v6872 = vmul.f32 %v6461, %v6863
  %v6873 = vmul.f32 %v6462, %v6863
  %v6874 = vmul.f32 %v6463, %v6863
  %v6875 = vmul.f32 %v6464, %v6863
  %v6876 = vmul.f32 %v6465, %v6863
  %v6877 = vmul.f32 %v6466, %v6863
  %v6878 = vmul.f32 %v6467, %v6863
  %v6879 = vmul.f32 %v6468, %v6863
  %v6880 = vmul.f32 %v6469, %v6863
  %v6881 = vmul.f32 %v6470, %v6863
  %v6882 = vmul.f32 %v6471, %v6863
  %v6883 = vmul.f32 %v6472, %v6863
  %v6884 = vmul.f32 %v6473, %v6863
  %v6885 = vmul.f32 %v6474, %v6863
  %v6886 = vmul.f32 %v6475, %v6863
  %v6887 = vmul.f32 %v6476, %v6863
  %v6888 = vmul.f32 %v6477, %v6863
  %v6889 = vmul.f32 %v6478, %v6863
  %v6890 = vmul.f32 %v6479, %v6863
  %v6891 = vmul.f32 %v6480, %v6863
  %v6892 = vmul.f32 %v6481, %v6863
  %v6893 = vmul.f32 %v6482, %v6863
  %v6894 = vmul.f32 %v6483, %v6863
  %v6895 = vmul.f32 %v6484, %v6863
  %v6896 = vmul.f32 %v6485, %v6863
  %v6897 = vmul.f32 %v6486, %v6863
  %v6898 = vmul.f32 %v6487, %v6863
  %v6899 = vmul.f32 %v6488, %v6863
  %v6900 = vmul.f32 %v6489, %v6863
  %v6901 = vmul.f32 %v6490, %v6863
  %v6902 = vmul.f32 %v6491, %v6863
  %v6903 = vmul.f32 %v6492, %v6863
  %v6904 = vmul.f32 %v6493, %v6863
  %v6905 = vmul.f32 %v6494, %v6863
  %v6906 = vmul.f32 %v6495, %v6863
  %v6907 = vmul.f32 %v6496, %v6863
  %v6908 = vmul.f32 %v6497, %v6863
  %v6909 = vmul.f32 %v6498, %v6863
  %v6910 = vmul.f32 %v6499, %v6863
  %v6911 = vmul.f32 %v6500, %v6863
  %v6912 = vmul.f32 %v6501, %v6863
  %v6913 = vmul.f32 %v6502, %v6863
  %v6914 = vmul.f32 %v6503, %v6863
  %v6915 = vmul.f32 %v6504, %v6863
  %v6916 = vmul.f32 %v6505, %v6863
  %v6917 = vmul.f32 %v6506, %v6863
  %v6918 = vmul.f32 %v6507, %v6863
  %v6919 = vmul.f32 %v6508, %v6863
  %v6920 = vmul.f32 %v6509, %v6863
  %v6921 = vmul.f32 %v6510, %v6863
  %v6922 = vmul.f32 %v6511, %v6863
  %v6923 = vmul.f32 %v6512, %v6863
  %v6924 = vmul.f32 %v6513, %v6863
  %v6925 = vmul.f32 %v6514, %v6863
  %v6926 = vmul.f32 %v6515, %v6863
  %v6927 = vmul.f32 %v6516, %v6863
  %v6928 = vlaneseq
  %v6929 = vshrl.u32 %v6928, 7
  %v6930 = vsub.s32 1, %v6929
  %v6931 = vrot.slane %v6859, %v6930
  %v6932 = vadd.f32 %v6864, %v6931
  %v6933 = vadd.f32 %v6865, %v6931
  %v6934 = vadd.f32 %v6866, %v6931
  %v6935 = vadd.f32 %v6867, %v6931
  %v6936 = vadd.f32 %v6868, %v6931
  %v6937 = vadd.f32 %v6869, %v6931
  %v6938 = vadd.f32 %v6870, %v6931
  %v6939 = vadd.f32 %v6871, %v6931
  %v6940 = vadd.f32 %v6872, %v6931
  %v6941 = vadd.f32 %v6873, %v6931
  %v6942 = vadd.f32 %v6874, %v6931
  %v6943 = vadd.f32 %v6875, %v6931
  %v6944 = vadd.f32 %v6876, %v6931
  %v6945 = vadd.f32 %v6877, %v6931
  %v6946 = vadd.f32 %v6878, %v6931
  %v6947 = vadd.f32 %v6879, %v6931
  %v6948 = vadd.f32 %v6880, %v6931
  %v6949 = vadd.f32 %v6881, %v6931
  %v6950 = vadd.f32 %v6882, %v6931
  %v6951 = vadd.f32 %v6883, %v6931
  %v6952 = vadd.f32 %v6884, %v6931
  %v6953 = vadd.f32 %v6885, %v6931
  %v6954 = vadd.f32 %v6886, %v6931
  %v6955 = vadd.f32 %v6887, %v6931
  %v6956 = vadd.f32 %v6888, %v6931
  %v6957 = vadd.f32 %v6889, %v6931
  %v6958 = vadd.f32 %v6890, %v6931
  %v6959 = vadd.f32 %v6891, %v6931
  %v6960 = vadd.f32 %v6892, %v6931
  %v6961 = vadd.f32 %v6893, %v6931
  %v6962 = vadd.f32 %v6894, %v6931
  %v6963 = vadd.f32 %v6895, %v6931
  %v6964 = vadd.f32 %v6896, %v6931
  %v6965 = vadd.f32 %v6897, %v6931
  %v6966 = vadd.f32 %v6898, %v6931
  %v6967 = vadd.f32 %v6899, %v6931
  %v6968 = vadd.f32 %v6900, %v6931
  %v6969 = vadd.f32 %v6901, %v6931
  %v6970 = vadd.f32 %v6902, %v6931
  %v6971 = vadd.f32 %v6903, %v6931
  %v6972 = vadd.f32 %v6904, %v6931
  %v6973 = vadd.f32 %v6905, %v6931
  %v6974 = vadd.f32 %v6906, %v6931
  %v6975 = vadd.f32 %v6907, %v6931
  %v6976 = vadd.f32 %v6908, %v6931
  %v6977 = vadd.f32 %v6909, %v6931
  %v6978 = vadd.f32 %v6910, %v6931
  %v6979 = vadd.f32 %v6911, %v6931
  %v6980 = vadd.f32 %v6912, %v6931
  %v6981 = vadd.f32 %v6913, %v6931
  %v6982 = vadd.f32 %v6914, %v6931
  %v6983 = vadd.f32 %v6915, %v6931
  %v6984 = vadd.f32 %v6916, %v6931
  %v6985 = vadd.f32 %v6917, %v6931
  %v6986 = vadd.f32 %v6918, %v6931
  %v6987 = vadd.f32 %v6919, %v6931
  %v6988 = vadd.f32 %v6920, %v6931
  %v6989 = vadd.f32 %v6921, %v6931
  %v6990 = vadd.f32 %v6922, %v6931
  %v6991 = vadd.f32 %v6923, %v6931
  %v6992 = vadd.f32 %v6924, %v6931
  %v6993 = vadd.f32 %v6925, %v6931
  %v6994 = vadd.f32 %v6926, %v6931
  %v6995 = vadd.f32 %v6927, %v6931
  %v6996 = vmax.f32 %v6932, 0.0
  %v6997 = vmax.f32 %v6933, 0.0
  %v6998 = vmax.f32 %v6934, 0.0
  %v6999 = vmax.f32 %v6935, 0.0
  %v7000 = vmax.f32 %v6936, 0.0
  %v7001 = vmax.f32 %v6937, 0.0
  %v7002 = vmax.f32 %v6938, 0.0
  %v7003 = vmax.f32 %v6939, 0.0
  %v7004 = vmax.f32 %v6940, 0.0
  %v7005 = vmax.f32 %v6941, 0.0
  %v7006 = vmax.f32 %v6942, 0.0
  %v7007 = vmax.f32 %v6943, 0.0
  %v7008 = vmax.f32 %v6944, 0.0
  %v7009 = vmax.f32 %v6945, 0.0
  %v7010 = vmax.f32 %v6946, 0.0
  %v7011 = vmax.f32 %v6947, 0.0
  %v7012 = vmax.f32 %v6948, 0.0
  %v7013 = vmax.f32 %v6949, 0.0
  %v7014 = vmax.f32 %v6950, 0.0
  %v7015 = vmax.f32 %v6951, 0.0
  %v7016 = vmax.f32 %v6952, 0.0
  %v7017 = vmax.f32 %v6953, 0.0
  %v7018 = vmax.f32 %v6954, 0.0
  %v7019 = vmax.f32 %v6955, 0.0
  %v7020 = vmax.f32 %v6956, 0.0
  %v7021 = vmax.f32 %v6957, 0.0
  %v7022 = vmax.f32 %v6958, 0.0
  %v7023 = vmax.f32 %v6959, 0.0
  %v7024 = vmax.f32 %v6960, 0.0
  %v7025 = vmax.f32 %v6961, 0.0
  %v7026 = vmax.f32 %v6962, 0.0
  %v7027 = vmax.f32 %v6963, 0.0
  %v7028 = vmax.f32 %v6964, 0.0
  %v7029 = vmax.f32 %v6965, 0.0
  %v7030 = vmax.f32 %v6966, 0.0
  %v7031 = vmax.f32 %v6967, 0.0
  %v7032 = vmax.f32 %v6968, 0.0
  %v7033 = vmax.f32 %v6969, 0.0
  %v7034 = vmax.f32 %v6970, 0.0
  %v7035 = vmax.f32 %v6971, 0.0
  %v7036 = vmax.f32 %v6972, 0.0
  %v7037 = vmax.f32 %v6973, 0.0
  %v7038 = vmax.f32 %v6974, 0.0
  %v7039 = vmax.f32 %v6975, 0.0
  %v7040 = vmax.f32 %v6976, 0.0
  %v7041 = vmax.f32 %v6977, 0.0
  %v7042 = vmax.f32 %v6978, 0.0
  %v7043 = vmax.f32 %v6979, 0.0
  %v7044 = vmax.f32 %v6980, 0.0
  %v7045 = vmax.f32 %v6981, 0.0
  %v7046 = vmax.f32 %v6982, 0.0
  %v7047 = vmax.f32 %v6983, 0.0
  %v7048 = vmax.f32 %v6984, 0.0
  %v7049 = vmax.f32 %v6985, 0.0
  %v7050 = vmax.f32 %v6986, 0.0
  %v7051 = vmax.f32 %v6987, 0.0
  %v7052 = vmax.f32 %v6988, 0.0
  %v7053 = vmax.f32 %v6989, 0.0
  %v7054 = vmax.f32 %v6990, 0.0
  %v7055 = vmax.f32 %v6991, 0.0
  %v7056 = vmax.f32 %v6992, 0.0
  %v7057 = vmax.f32 %v6993, 0.0
  %v7058 = vmax.f32 %v6994, 0.0
  %v7059 = vmax.f32 %v6995, 0.0
  %7060 = vst.msk [vmem:[%s189 + $0x1] sm:$0xff] %vm14, %v6996
  %7061 = vst.msk [vmem:[%s189 + $0x9] sm:$0xff] %vm14, %v6997
  %7062 = vst.msk [vmem:[%s189 + $0x19] sm:$0xff] %vm14, %v6998
  %7063 = vst.msk [vmem:[%s189 + $0x21] sm:$0xff] %vm14, %v6999
  %7064 = vst.msk [vmem:[%s189 + $0x31] sm:$0xff] %vm14, %v7000
  %7065 = vst.msk [vmem:[%s189 + $0x39] sm:$0xff] %vm14, %v7001
  %7066 = vst.msk [vmem:[%s189 + $0x49] sm:$0xff] %vm14, %v7002
  %7067 = vst.msk [vmem:[%s189 + $0x51] sm:$0xff] %vm14, %v7003
  %7068 = vst.msk [vmem:[%s189 + $0x61] sm:$0xff] %vm14, %v7004
  %7069 = vst.msk [vmem:[%s189 + $0x69] sm:$0xff] %vm14, %v7005
  %7070 = vst.msk [vmem:[%s189 + $0x79] sm:$0xff] %vm14, %v7006
  %7071 = vst.msk [vmem:[%s189 + $0x81] sm:$0xff] %vm14, %v7007
  %7072 = vst.msk [vmem:[%s189 + $0x91] sm:$0xff] %vm14, %v7008
  %7073 = vst.msk [vmem:[%s189 + $0x99] sm:$0xff] %vm14, %v7009
  %7074 = vst.msk [vmem:[%s189 + $0xa9] sm:$0xff] %vm14, %v7010
  %7075 = vst.msk [vmem:[%s189 + $0xb1] sm:$0xff] %vm14, %v7011
  %7076 = vst.msk [vmem:[%s189 + $0xc1] sm:$0xff] %vm14, %v7012
  %7077 = vst.msk [vmem:[%s189 + $0xc9] sm:$0xff] %vm14, %v7013
  %7078 = vst.msk [vmem:[%s189 + $0xd9] sm:$0xff] %vm14, %v7014
  %7079 = vst.msk [vmem:[%s189 + $0xe1] sm:$0xff] %vm14, %v7015
  %7080 = vst.msk [vmem:[%s189 + $0xf1] sm:$0xff] %vm14, %v7016
  %7081 = vst.msk [vmem:[%s189 + $0xf9] sm:$0xff] %vm14, %v7017
  %7082 = vst.msk [vmem:[%s189 + $0x109] sm:$0xff] %vm14, %v7018
  %7083 = vst.msk [vmem:[%s189 + $0x111] sm:$0xff] %vm14, %v7019
  %7084 = vst.msk [vmem:[%s189 + $0x121] sm:$0xff] %vm14, %v7020
  %7085 = vst.msk [vmem:[%s189 + $0x129] sm:$0xff] %vm14, %v7021
  %7086 = vst.msk [vmem:[%s189 + $0x139] sm:$0xff] %vm14, %v7022
  %7087 = vst.msk [vmem:[%s189 + $0x141] sm:$0xff] %vm14, %v7023
  %7088 = vst.msk [vmem:[%s189 + $0x151] sm:$0xff] %vm14, %v7024
  %7089 = vst.msk [vmem:[%s189 + $0x159] sm:$0xff] %vm14, %v7025
  %7090 = vst.msk [vmem:[%s189 + $0x169] sm:$0xff] %vm14, %v7026
  %7091 = vst.msk [vmem:[%s189 + $0x171] sm:$0xff] %vm14, %v7027
  %7092 = vst.msk [vmem:[%s189 + $0x1b1] sm:$0xff] %vm14, %v7028
  %7093 = vst.msk [vmem:[%s189 + $0x1b9] sm:$0xff] %vm14, %v7029
  %7094 = vst.msk [vmem:[%s189 + $0x1c9] sm:$0xff] %vm14, %v7030
  %7095 = vst.msk [vmem:[%s189 + $0x1d1] sm:$0xff] %vm14, %v7031
  %7096 = vst.msk [vmem:[%s189 + $0x1e1] sm:$0xff] %vm14, %v7032
  %7097 = vst.msk [vmem:[%s189 + $0x1e9] sm:$0xff] %vm14, %v7033
  %7098 = vst.msk [vmem:[%s189 + $0x1f9] sm:$0xff] %vm14, %v7034
  %7099 = vst.msk [vmem:[%s189 + $0x201] sm:$0xff] %vm14, %v7035
  %7100 = vst.msk [vmem:[%s189 + $0x211] sm:$0xff] %vm14, %v7036
  %7101 = vst.msk [vmem:[%s189 + $0x219] sm:$0xff] %vm14, %v7037
  %7102 = vst.msk [vmem:[%s189 + $0x229] sm:$0xff] %vm14, %v7038
  %7103 = vst.msk [vmem:[%s189 + $0x231] sm:$0xff] %vm14, %v7039
  %7104 = vst.msk [vmem:[%s189 + $0x241] sm:$0xff] %vm14, %v7040
  %7105 = vst.msk [vmem:[%s189 + $0x249] sm:$0xff] %vm14, %v7041
  %7106 = vst.msk [vmem:[%s189 + $0x259] sm:$0xff] %vm14, %v7042
  %7107 = vst.msk [vmem:[%s189 + $0x261] sm:$0xff] %vm14, %v7043
  %7108 = vst.msk [vmem:[%s189 + $0x271] sm:$0xff] %vm14, %v7044
  %7109 = vst.msk [vmem:[%s189 + $0x279] sm:$0xff] %vm14, %v7045
  %7110 = vst.msk [vmem:[%s189 + $0x289] sm:$0xff] %vm14, %v7046
  %7111 = vst.msk [vmem:[%s189 + $0x291] sm:$0xff] %vm14, %v7047
  %7112 = vst.msk [vmem:[%s189 + $0x2a1] sm:$0xff] %vm14, %v7048
  %7113 = vst.msk [vmem:[%s189 + $0x2a9] sm:$0xff] %vm14, %v7049
  %7114 = vst.msk [vmem:[%s189 + $0x2b9] sm:$0xff] %vm14, %v7050
  %7115 = vst.msk [vmem:[%s189 + $0x2c1] sm:$0xff] %vm14, %v7051
  %7116 = vst.msk [vmem:[%s189 + $0x2d1] sm:$0xff] %vm14, %v7052
  %7117 = vst.msk [vmem:[%s189 + $0x2d9] sm:$0xff] %vm14, %v7053
  %7118 = vst.msk [vmem:[%s189 + $0x2e9] sm:$0xff] %vm14, %v7054
  %7119 = vst.msk [vmem:[%s189 + $0x2f1] sm:$0xff] %vm14, %v7055
  %7120 = vst.msk [vmem:[%s189 + $0x301] sm:$0xff] %vm14, %v7056
  %7121 = vst.msk [vmem:[%s189 + $0x309] sm:$0xff] %vm14, %v7057
  %7122 = vst.msk [vmem:[%s189 + $0x319] sm:$0xff] %vm14, %v7058
  %7123 = vst.msk [vmem:[%s189 + $0x321] sm:$0xff] %vm14, %v7059
  %v7124 = vld [vmem:[#allocation2] sm:$0xff]
  %v7125 = vld [vmem:[#allocation2 + $0x8] sm:$0xff]
  %v7126 = vld [vmem:[#allocation2 + $0x18] sm:$0xff]
  %v7127 = vld [vmem:[#allocation2 + $0x20] sm:$0xff]
  %v7128 = vld [vmem:[#allocation2 + $0x30] sm:$0xff]
  %v7129 = vld [vmem:[#allocation2 + $0x38] sm:$0xff]
  %v7130 = vld [vmem:[#allocation2 + $0x48] sm:$0xff]
  %v7131 = vld [vmem:[#allocation2 + $0x50] sm:$0xff]
  %v7132 = vld [vmem:[#allocation2 + $0x60] sm:$0xff]
  %v7133 = vld [vmem:[#allocation2 + $0x68] sm:$0xff]
  %v7134 = vld [vmem:[#allocation2 + $0x78] sm:$0xff]
  %v7135 = vld [vmem:[#allocation2 + $0x80] sm:$0xff]
  %v7136 = vld [vmem:[#allocation2 + $0x90] sm:$0xff]
  %v7137 = vld [vmem:[#allocation2 + $0x98] sm:$0xff]
  %v7138 = vld [vmem:[#allocation2 + $0xa8] sm:$0xff]
  %v7139 = vld [vmem:[#allocation2 + $0xb0] sm:$0xff]
  %v7140 = vld [vmem:[#allocation2 + $0xc0] sm:$0xff]
  %v7141 = vld [vmem:[#allocation2 + $0xc8] sm:$0xff]
  %v7142 = vld [vmem:[#allocation2 + $0xd8] sm:$0xff]
  %v7143 = vld [vmem:[#allocation2 + $0xe0] sm:$0xff]
  %v7144 = vld [vmem:[#allocation2 + $0xf0] sm:$0xff]
  %v7145 = vld [vmem:[#allocation2 + $0xf8] sm:$0xff]
  %v7146 = vld [vmem:[#allocation2 + $0x108] sm:$0xff]
  %v7147 = vld [vmem:[#allocation2 + $0x110] sm:$0xff]
  %v7148 = vld [vmem:[#allocation2 + $0x120] sm:$0xff]
  %v7149 = vld [vmem:[#allocation2 + $0x128] sm:$0xff]
  %v7150 = vld [vmem:[#allocation2 + $0x138] sm:$0xff]
  %v7151 = vld [vmem:[#allocation2 + $0x140] sm:$0xff]
  %v7152 = vld [vmem:[#allocation2 + $0x150] sm:$0xff]
  %v7153 = vld [vmem:[#allocation2 + $0x158] sm:$0xff]
  %v7154 = vld [vmem:[#allocation2 + $0x168] sm:$0xff]
  %v7155 = vld [vmem:[#allocation2 + $0x170] sm:$0xff]
  %v7156 = vld [vmem:[#allocation2 + $0x1b0] sm:$0xff]
  %v7157 = vld [vmem:[#allocation2 + $0x1b8] sm:$0xff]
  %v7158 = vld [vmem:[#allocation2 + $0x1c8] sm:$0xff]
  %v7159 = vld [vmem:[#allocation2 + $0x1d0] sm:$0xff]
  %v7160 = vld [vmem:[#allocation2 + $0x1e0] sm:$0xff]
  %v7161 = vld [vmem:[#allocation2 + $0x1e8] sm:$0xff]
  %v7162 = vld [vmem:[#allocation2 + $0x1f8] sm:$0xff]
  %v7163 = vld [vmem:[#allocation2 + $0x200] sm:$0xff]
  %v7164 = vld [vmem:[#allocation2 + $0x210] sm:$0xff]
  %v7165 = vld [vmem:[#allocation2 + $0x218] sm:$0xff]
  %v7166 = vld [vmem:[#allocation2 + $0x228] sm:$0xff]
  %v7167 = vld [vmem:[#allocation2 + $0x230] sm:$0xff]
  %v7168 = vld [vmem:[#allocation2 + $0x240] sm:$0xff]
  %v7169 = vld [vmem:[#allocation2 + $0x248] sm:$0xff]
  %v7170 = vld [vmem:[#allocation2 + $0x258] sm:$0xff]
  %v7171 = vld [vmem:[#allocation2 + $0x260] sm:$0xff]
  %v7172 = vld [vmem:[#allocation2 + $0x270] sm:$0xff]
  %v7173 = vld [vmem:[#allocation2 + $0x278] sm:$0xff]
  %v7174 = vld [vmem:[#allocation2 + $0x288] sm:$0xff]
  %v7175 = vld [vmem:[#allocation2 + $0x290] sm:$0xff]
  %v7176 = vld [vmem:[#allocation2 + $0x2a0] sm:$0xff]
  %v7177 = vld [vmem:[#allocation2 + $0x2a8] sm:$0xff]
  %v7178 = vld [vmem:[#allocation2 + $0x2b8] sm:$0xff]
  %v7179 = vld [vmem:[#allocation2 + $0x2c0] sm:$0xff]
  %v7180 = vld [vmem:[#allocation2 + $0x2d0] sm:$0xff]
  %v7181 = vld [vmem:[#allocation2 + $0x2d8] sm:$0xff]
  %v7182 = vld [vmem:[#allocation2 + $0x2e8] sm:$0xff]
  %v7183 = vld [vmem:[#allocation2 + $0x2f0] sm:$0xff]
  %v7184 = vld [vmem:[#allocation2 + $0x300] sm:$0xff]
  %v7185 = vld [vmem:[#allocation2 + $0x308] sm:$0xff]
  %v7186 = vld [vmem:[#allocation2 + $0x318] sm:$0xff]
  %v7187 = vld [vmem:[#allocation2 + $0x320] sm:$0xff]
  %s7188 = scalar_lea.vmem %s1, 36
  %v7189 = vld [vmem:[%s7188] sm:$0xf]
  %v7190 = vld [vmem:[#allocation2 + $0x1] sm:$0xff]
  %v7191 = vld [vmem:[#allocation2 + $0x9] sm:$0xff]
  %v7192 = vld [vmem:[#allocation2 + $0x19] sm:$0xff]
  %v7193 = vld [vmem:[#allocation2 + $0x21] sm:$0xff]
  %v7194 = vld [vmem:[#allocation2 + $0x31] sm:$0xff]
  %v7195 = vld [vmem:[#allocation2 + $0x39] sm:$0xff]
  %v7196 = vld [vmem:[#allocation2 + $0x49] sm:$0xff]
  %v7197 = vld [vmem:[#allocation2 + $0x51] sm:$0xff]
  %v7198 = vld [vmem:[#allocation2 + $0x61] sm:$0xff]
  %v7199 = vld [vmem:[#allocation2 + $0x69] sm:$0xff]
  %v7200 = vld [vmem:[#allocation2 + $0x79] sm:$0xff]
  %v7201 = vld [vmem:[#allocation2 + $0x81] sm:$0xff]
  %v7202 = vld [vmem:[#allocation2 + $0x91] sm:$0xff]
  %v7203 = vld [vmem:[#allocation2 + $0x99] sm:$0xff]
  %v7204 = vld [vmem:[#allocation2 + $0xa9] sm:$0xff]
  %v7205 = vld [vmem:[#allocation2 + $0xb1] sm:$0xff]
  %v7206 = vld [vmem:[#allocation2 + $0xc1] sm:$0xff]
  %v7207 = vld [vmem:[#allocation2 + $0xc9] sm:$0xff]
  %v7208 = vld [vmem:[#allocation2 + $0xd9] sm:$0xff]
  %v7209 = vld [vmem:[#allocation2 + $0xe1] sm:$0xff]
  %v7210 = vld [vmem:[#allocation2 + $0xf1] sm:$0xff]
  %v7211 = vld [vmem:[#allocation2 + $0xf9] sm:$0xff]
  %v7212 = vld [vmem:[#allocation2 + $0x109] sm:$0xff]
  %v7213 = vld [vmem:[#allocation2 + $0x111] sm:$0xff]
  %v7214 = vld [vmem:[#allocation2 + $0x121] sm:$0xff]
  %v7215 = vld [vmem:[#allocation2 + $0x129] sm:$0xff]
  %v7216 = vld [vmem:[#allocation2 + $0x139] sm:$0xff]
  %v7217 = vld [vmem:[#allocation2 + $0x141] sm:$0xff]
  %v7218 = vld [vmem:[#allocation2 + $0x151] sm:$0xff]
  %v7219 = vld [vmem:[#allocation2 + $0x159] sm:$0xff]
  %v7220 = vld [vmem:[#allocation2 + $0x169] sm:$0xff]
  %v7221 = vld [vmem:[#allocation2 + $0x171] sm:$0xff]
  %v7222 = vld [vmem:[#allocation2 + $0x1b1] sm:$0xff]
  %v7223 = vld [vmem:[#allocation2 + $0x1b9] sm:$0xff]
  %v7224 = vld [vmem:[#allocation2 + $0x1c9] sm:$0xff]
  %v7225 = vld [vmem:[#allocation2 + $0x1d1] sm:$0xff]
  %v7226 = vld [vmem:[#allocation2 + $0x1e1] sm:$0xff]
  %v7227 = vld [vmem:[#allocation2 + $0x1e9] sm:$0xff]
  %v7228 = vld [vmem:[#allocation2 + $0x1f9] sm:$0xff]
  %v7229 = vld [vmem:[#allocation2 + $0x201] sm:$0xff]
  %v7230 = vld [vmem:[#allocation2 + $0x211] sm:$0xff]
  %v7231 = vld [vmem:[#allocation2 + $0x219] sm:$0xff]
  %v7232 = vld [vmem:[#allocation2 + $0x229] sm:$0xff]
  %v7233 = vld [vmem:[#allocation2 + $0x231] sm:$0xff]
  %v7234 = vld [vmem:[#allocation2 + $0x241] sm:$0xff]
  %v7235 = vld [vmem:[#allocation2 + $0x249] sm:$0xff]
  %v7236 = vld [vmem:[#allocation2 + $0x259] sm:$0xff]
  %v7237 = vld [vmem:[#allocation2 + $0x261] sm:$0xff]
  %v7238 = vld [vmem:[#allocation2 + $0x271] sm:$0xff]
  %v7239 = vld [vmem:[#allocation2 + $0x279] sm:$0xff]
  %v7240 = vld [vmem:[#allocation2 + $0x289] sm:$0xff]
  %v7241 = vld [vmem:[#allocation2 + $0x291] sm:$0xff]
  %v7242 = vld [vmem:[#allocation2 + $0x2a1] sm:$0xff]
  %v7243 = vld [vmem:[#allocation2 + $0x2a9] sm:$0xff]
  %v7244 = vld [vmem:[#allocation2 + $0x2b9] sm:$0xff]
  %v7245 = vld [vmem:[#allocation2 + $0x2c1] sm:$0xff]
  %v7246 = vld [vmem:[#allocation2 + $0x2d1] sm:$0xff]
  %v7247 = vld [vmem:[#allocation2 + $0x2d9] sm:$0xff]
  %v7248 = vld [vmem:[#allocation2 + $0x2e9] sm:$0xff]
  %v7249 = vld [vmem:[#allocation2 + $0x2f1] sm:$0xff]
  %v7250 = vld [vmem:[#allocation2 + $0x301] sm:$0xff]
  %v7251 = vld [vmem:[#allocation2 + $0x309] sm:$0xff]
  %v7252 = vld [vmem:[#allocation2 + $0x319] sm:$0xff]
  %v7253 = vld [vmem:[#allocation2 + $0x321] sm:$0xff]
  %s7254 = scalar_lea.vmem %s1, 40
  %v7255 = vld [vmem:[%s7254] sm:$0xf]
  %v7257 = vsel %vm14, %v7190, 0
  %v7260 = vsel %vm14, %v7191, 0
  %v7263 = vsel %vm14, %v7192, 0
  %v7266 = vsel %vm14, %v7193, 0
  %v7269 = vsel %vm14, %v7194, 0
  %v7272 = vsel %vm14, %v7195, 0
  %v7275 = vsel %vm14, %v7196, 0
  %v7278 = vsel %vm14, %v7197, 0
  %v7281 = vsel %vm14, %v7198, 0
  %v7284 = vsel %vm14, %v7199, 0
  %v7287 = vsel %vm14, %v7200, 0
  %v7290 = vsel %vm14, %v7201, 0
  %v7293 = vsel %vm14, %v7202, 0
  %v7296 = vsel %vm14, %v7203, 0
  %v7299 = vsel %vm14, %v7204, 0
  %v7302 = vsel %vm14, %v7205, 0
  %v7305 = vsel %vm14, %v7206, 0
  %v7308 = vsel %vm14, %v7207, 0
  %v7311 = vsel %vm14, %v7208, 0
  %v7314 = vsel %vm14, %v7209, 0
  %v7317 = vsel %vm14, %v7210, 0
  %v7320 = vsel %vm14, %v7211, 0
  %v7323 = vsel %vm14, %v7212, 0
  %v7326 = vsel %vm14, %v7213, 0
  %v7329 = vsel %vm14, %v7214, 0
  %v7332 = vsel %vm14, %v7215, 0
  %v7335 = vsel %vm14, %v7216, 0
  %v7338 = vsel %vm14, %v7217, 0
  %v7341 = vsel %vm14, %v7218, 0
  %v7344 = vsel %vm14, %v7219, 0
  %v7347 = vsel %vm14, %v7220, 0
  %v7350 = vsel %vm14, %v7221, 0
  %v7353 = vsel %vm14, %v7222, 0
  %v7356 = vsel %vm14, %v7223, 0
  %v7359 = vsel %vm14, %v7224, 0
  %v7362 = vsel %vm14, %v7225, 0
  %v7365 = vsel %vm14, %v7226, 0
  %v7368 = vsel %vm14, %v7227, 0
  %v7371 = vsel %vm14, %v7228, 0
  %v7374 = vsel %vm14, %v7229, 0
  %v7377 = vsel %vm14, %v7230, 0
  %v7380 = vsel %vm14, %v7231, 0
  %v7383 = vsel %vm14, %v7232, 0
  %v7386 = vsel %vm14, %v7233, 0
  %v7389 = vsel %vm14, %v7234, 0
  %v7392 = vsel %vm14, %v7235, 0
  %v7395 = vsel %vm14, %v7236, 0
  %v7398 = vsel %vm14, %v7237, 0
  %v7401 = vsel %vm14, %v7238, 0
  %v7404 = vsel %vm14, %v7239, 0
  %v7407 = vsel %vm14, %v7240, 0
  %v7410 = vsel %vm14, %v7241, 0
  %v7413 = vsel %vm14, %v7242, 0
  %v7416 = vsel %vm14, %v7243, 0
  %v7419 = vsel %vm14, %v7244, 0
  %v7422 = vsel %vm14, %v7245, 0
  %v7425 = vsel %vm14, %v7246, 0
  %v7428 = vsel %vm14, %v7247, 0
  %v7431 = vsel %vm14, %v7248, 0
  %v7434 = vsel %vm14, %v7249, 0
  %v7437 = vsel %vm14, %v7250, 0
  %v7440 = vsel %vm14, %v7251, 0
  %v7443 = vsel %vm14, %v7252, 0
  %v7446 = vsel %vm14, %v7253, 0
  %v7449 = vsel %vm577, %v7255, 0
  %7451 = vmatprep.subr.mxu0 0.0
  %7452 = vmatpush1.msra.mxu0 0.0
  %7453 = vmatprep.subr.mxu0 0.0
  %7454 = vmatpush1.msra.mxu0 0.0
  %7455 = vmatprep.subr.mxu0 0.0
  %7456 = vmatpush1.msra.mxu0 0.0
  %7457 = vmatprep.subr.mxu0 0.0
  %7458 = vmatpush1.msra.mxu0 0.0
  %7459 = vmatprep.subr.mxu0 0.0
  %7460 = vmatpush1.msra.mxu0 0.0
  %7461 = vmatprep.subr.mxu0 0.0
  %7462 = vmatpush1.msra.mxu0 0.0
  %7463 = vmatprep.subr.mxu0 0.0
  %7464 = vmatpush1.msra.mxu0 0.0
  %7465 = vmatprep.subr.mxu0 0.0
  %7466 = vmatpush1.msra.mxu0 0.0
  %7467 = vmatprep.subr.mxu0 0.0
  %7468 = vmatpush1.msra.mxu0 0.0
  %7469 = vmatprep.subr.mxu0 0.0
  %7470 = vmatpush1.msra.mxu0 0.0
  %7471 = vmatprep.subr.mxu0 0.0
  %7472 = vmatpush1.msra.mxu0 0.0
  %7473 = vmatprep.subr.mxu0 0.0
  %7474 = vmatpush1.msra.mxu0 0.0
  %7475 = vmatprep.subr.mxu0 0.0
  %7476 = vmatpush1.msra.mxu0 0.0
  %7477 = vmatprep.subr.mxu0 0.0
  %7478 = vmatpush1.msra.mxu0 0.0
  %7479 = vmatprep.subr.mxu0 0.0
  %7480 = vmatpush1.msra.mxu0 0.0
  %7481 = vmatprep.subr.mxu0 0.0
  %7482 = vmatpush1.msra.mxu0 %v7449
  %7483 = vmatprep.subr.mxu0 0.0
  %7484 = vmatpush2.msra.mxu0 0.0
  %7485 = vmatprep.subr.mxu0 0.0
  %7486 = vmatpush2.msra.mxu0 0.0
  %7487 = vmatprep.subr.mxu0 0.0
  %7488 = vmatpush2.msra.mxu0 0.0
  %7489 = vmatprep.subr.mxu0 0.0
  %7490 = vmatpush2.msra.mxu0 0.0
  %7491 = vmatprep.subr.mxu0 0.0
  %7492 = vmatpush2.msra.mxu0 0.0
  %7493 = vmatprep.subr.mxu0 0.0
  %7494 = vmatpush2.msra.mxu0 0.0
  %7495 = vmatprep.subr.mxu0 0.0
  %7496 = vmatpush2.msra.mxu0 0.0
  %7497 = vmatprep.subr.mxu0 0.0
  %7498 = vmatpush2.msra.mxu0 0.0
  %7499 = vmatprep.subr.mxu0 0.0
  %7500 = vmatpush2.msra.mxu0 0.0
  %7501 = vmatprep.subr.mxu0 0.0
  %7502 = vmatpush2.msra.mxu0 0.0
  %7503 = vmatprep.subr.mxu0 0.0
  %7504 = vmatpush2.msra.mxu0 0.0
  %7505 = vmatprep.subr.mxu0 0.0
  %7506 = vmatpush2.msra.mxu0 0.0
  %7507 = vmatprep.subr.mxu0 0.0
  %7508 = vmatpush2.msra.mxu0 0.0
  %7509 = vmatprep.subr.mxu0 0.0
  %7510 = vmatpush2.msra.mxu0 0.0
  %7511 = vmatprep.subr.mxu0 0.0
  %7512 = vmatpush2.msra.mxu0 0.0
  %7513 = vmatprep.subr.mxu0 0.0
  %7514 = vmatpush2.msra.mxu0 0.0
  %7515 = vmatprep.mubr.f32.mxu0 0.0
  %7516 = vmatmul.mubr.f32.gmra.mxu0 %v7257
  %v7517 = vpop.f32.mrf.mxu0
  %v7518 = vadd.f32 0.0, %v7517
  %v7519 = vpop.f32.mrf.mxu0
  %7520 = vmatprep.mubr.f32.mxu0 0.0
  %7521 = vmatmul.mubr.f32.gmra.mxu0 %v7260
  %v7522 = vpop.f32.mrf.mxu0
  %v7523 = vadd.f32 0.0, %v7522
  %v7524 = vpop.f32.mrf.mxu0
  %7525 = vmatprep.mubr.f32.mxu0 0.0
  %7526 = vmatmul.mubr.f32.gmra.mxu0 %v7263
  %v7527 = vpop.f32.mrf.mxu0
  %v7528 = vadd.f32 0.0, %v7527
  %v7529 = vpop.f32.mrf.mxu0
  %7530 = vmatprep.mubr.f32.mxu0 0.0
  %7531 = vmatmul.mubr.f32.gmra.mxu0 %v7266
  %v7532 = vpop.f32.mrf.mxu0
  %v7533 = vadd.f32 0.0, %v7532
  %v7534 = vpop.f32.mrf.mxu0
  %7535 = vmatprep.mubr.f32.mxu0 0.0
  %7536 = vmatmul.mubr.f32.gmra.mxu0 %v7269
  %v7537 = vpop.f32.mrf.mxu0
  %v7538 = vadd.f32 0.0, %v7537
  %v7539 = vpop.f32.mrf.mxu0
  %7540 = vmatprep.mubr.f32.mxu0 0.0
  %7541 = vmatmul.mubr.f32.gmra.mxu0 %v7272
  %v7542 = vpop.f32.mrf.mxu0
  %v7543 = vadd.f32 0.0, %v7542
  %v7544 = vpop.f32.mrf.mxu0
  %7545 = vmatprep.mubr.f32.mxu0 0.0
  %7546 = vmatmul.mubr.f32.gmra.mxu0 %v7275
  %v7547 = vpop.f32.mrf.mxu0
  %v7548 = vadd.f32 0.0, %v7547
  %v7549 = vpop.f32.mrf.mxu0
  %7550 = vmatprep.mubr.f32.mxu0 0.0
  %7551 = vmatmul.mubr.f32.gmra.mxu0 %v7278
  %v7552 = vpop.f32.mrf.mxu0
  %v7553 = vadd.f32 0.0, %v7552
  %v7554 = vpop.f32.mrf.mxu0
  %7555 = vmatprep.mubr.f32.mxu0 0.0
  %7556 = vmatmul.mubr.f32.gmra.mxu0 %v7281
  %v7557 = vpop.f32.mrf.mxu0
  %v7558 = vadd.f32 0.0, %v7557
  %v7559 = vpop.f32.mrf.mxu0
  %7560 = vmatprep.mubr.f32.mxu0 0.0
  %7561 = vmatmul.mubr.f32.gmra.mxu0 %v7284
  %v7562 = vpop.f32.mrf.mxu0
  %v7563 = vadd.f32 0.0, %v7562
  %v7564 = vpop.f32.mrf.mxu0
  %7565 = vmatprep.mubr.f32.mxu0 0.0
  %7566 = vmatmul.mubr.f32.gmra.mxu0 %v7287
  %v7567 = vpop.f32.mrf.mxu0
  %v7568 = vadd.f32 0.0, %v7567
  %v7569 = vpop.f32.mrf.mxu0
  %7570 = vmatprep.mubr.f32.mxu0 0.0
  %7571 = vmatmul.mubr.f32.gmra.mxu0 %v7290
  %v7572 = vpop.f32.mrf.mxu0
  %v7573 = vadd.f32 0.0, %v7572
  %v7574 = vpop.f32.mrf.mxu0
  %7575 = vmatprep.mubr.f32.mxu0 0.0
  %7576 = vmatmul.mubr.f32.gmra.mxu0 %v7293
  %v7577 = vpop.f32.mrf.mxu0
  %v7578 = vadd.f32 0.0, %v7577
  %v7579 = vpop.f32.mrf.mxu0
  %7580 = vmatprep.mubr.f32.mxu0 0.0
  %7581 = vmatmul.mubr.f32.gmra.mxu0 %v7296
  %v7582 = vpop.f32.mrf.mxu0
  %v7583 = vadd.f32 0.0, %v7582
  %v7584 = vpop.f32.mrf.mxu0
  %7585 = vmatprep.mubr.f32.mxu0 0.0
  %7586 = vmatmul.mubr.f32.gmra.mxu0 %v7299
  %v7587 = vpop.f32.mrf.mxu0
  %v7588 = vadd.f32 0.0, %v7587
  %v7589 = vpop.f32.mrf.mxu0
  %7590 = vmatprep.mubr.f32.mxu0 0.0
  %7591 = vmatmul.mubr.f32.gmra.mxu0 %v7302
  %v7592 = vpop.f32.mrf.mxu0
  %v7593 = vadd.f32 0.0, %v7592
  %v7594 = vpop.f32.mrf.mxu0
  %7595 = vmatprep.mubr.f32.mxu0 0.0
  %7596 = vmatmul.mubr.f32.gmra.mxu0 %v7305
  %v7597 = vpop.f32.mrf.mxu0
  %v7598 = vadd.f32 0.0, %v7597
  %v7599 = vpop.f32.mrf.mxu0
  %7600 = vmatprep.mubr.f32.mxu0 0.0
  %7601 = vmatmul.mubr.f32.gmra.mxu0 %v7308
  %v7602 = vpop.f32.mrf.mxu0
  %v7603 = vadd.f32 0.0, %v7602
  %v7604 = vpop.f32.mrf.mxu0
  %7605 = vmatprep.mubr.f32.mxu0 0.0
  %7606 = vmatmul.mubr.f32.gmra.mxu0 %v7311
  %v7607 = vpop.f32.mrf.mxu0
  %v7608 = vadd.f32 0.0, %v7607
  %v7609 = vpop.f32.mrf.mxu0
  %7610 = vmatprep.mubr.f32.mxu0 0.0
  %7611 = vmatmul.mubr.f32.gmra.mxu0 %v7314
  %v7612 = vpop.f32.mrf.mxu0
  %v7613 = vadd.f32 0.0, %v7612
  %v7614 = vpop.f32.mrf.mxu0
  %7615 = vmatprep.mubr.f32.mxu0 0.0
  %7616 = vmatmul.mubr.f32.gmra.mxu0 %v7317
  %v7617 = vpop.f32.mrf.mxu0
  %v7618 = vadd.f32 0.0, %v7617
  %v7619 = vpop.f32.mrf.mxu0
  %7620 = vmatprep.mubr.f32.mxu0 0.0
  %7621 = vmatmul.mubr.f32.gmra.mxu0 %v7320
  %v7622 = vpop.f32.mrf.mxu0
  %v7623 = vadd.f32 0.0, %v7622
  %v7624 = vpop.f32.mrf.mxu0
  %7625 = vmatprep.mubr.f32.mxu0 0.0
  %7626 = vmatmul.mubr.f32.gmra.mxu0 %v7323
  %v7627 = vpop.f32.mrf.mxu0
  %v7628 = vadd.f32 0.0, %v7627
  %v7629 = vpop.f32.mrf.mxu0
  %7630 = vmatprep.mubr.f32.mxu0 0.0
  %7631 = vmatmul.mubr.f32.gmra.mxu0 %v7326
  %v7632 = vpop.f32.mrf.mxu0
  %v7633 = vadd.f32 0.0, %v7632
  %v7634 = vpop.f32.mrf.mxu0
  %7635 = vmatprep.mubr.f32.mxu0 0.0
  %7636 = vmatmul.mubr.f32.gmra.mxu0 %v7329
  %v7637 = vpop.f32.mrf.mxu0
  %v7638 = vadd.f32 0.0, %v7637
  %v7639 = vpop.f32.mrf.mxu0
  %7640 = vmatprep.mubr.f32.mxu0 0.0
  %7641 = vmatmul.mubr.f32.gmra.mxu0 %v7332
  %v7642 = vpop.f32.mrf.mxu0
  %v7643 = vadd.f32 0.0, %v7642
  %v7644 = vpop.f32.mrf.mxu0
  %7645 = vmatprep.mubr.f32.mxu0 0.0
  %7646 = vmatmul.mubr.f32.gmra.mxu0 %v7335
  %v7647 = vpop.f32.mrf.mxu0
  %v7648 = vadd.f32 0.0, %v7647
  %v7649 = vpop.f32.mrf.mxu0
  %7650 = vmatprep.mubr.f32.mxu0 0.0
  %7651 = vmatmul.mubr.f32.gmra.mxu0 %v7338
  %v7652 = vpop.f32.mrf.mxu0
  %v7653 = vadd.f32 0.0, %v7652
  %v7654 = vpop.f32.mrf.mxu0
  %7655 = vmatprep.mubr.f32.mxu0 0.0
  %7656 = vmatmul.mubr.f32.gmra.mxu0 %v7341
  %v7657 = vpop.f32.mrf.mxu0
  %v7658 = vadd.f32 0.0, %v7657
  %v7659 = vpop.f32.mrf.mxu0
  %7660 = vmatprep.mubr.f32.mxu0 0.0
  %7661 = vmatmul.mubr.f32.gmra.mxu0 %v7344
  %v7662 = vpop.f32.mrf.mxu0
  %v7663 = vadd.f32 0.0, %v7662
  %v7664 = vpop.f32.mrf.mxu0
  %7665 = vmatprep.mubr.f32.mxu0 0.0
  %7666 = vmatmul.mubr.f32.gmra.mxu0 %v7347
  %v7667 = vpop.f32.mrf.mxu0
  %v7668 = vadd.f32 0.0, %v7667
  %v7669 = vpop.f32.mrf.mxu0
  %7670 = vmatprep.mubr.f32.mxu0 0.0
  %7671 = vmatmul.mubr.f32.gmra.mxu0 %v7350
  %v7672 = vpop.f32.mrf.mxu0
  %v7673 = vadd.f32 0.0, %v7672
  %v7674 = vpop.f32.mrf.mxu0
  %7675 = vmatprep.mubr.f32.mxu0 0.0
  %7676 = vmatmul.mubr.f32.gmra.mxu0 %v7353
  %v7677 = vpop.f32.mrf.mxu0
  %v7678 = vadd.f32 0.0, %v7677
  %v7679 = vpop.f32.mrf.mxu0
  %7680 = vmatprep.mubr.f32.mxu0 0.0
  %7681 = vmatmul.mubr.f32.gmra.mxu0 %v7356
  %v7682 = vpop.f32.mrf.mxu0
  %v7683 = vadd.f32 0.0, %v7682
  %v7684 = vpop.f32.mrf.mxu0
  %7685 = vmatprep.mubr.f32.mxu0 0.0
  %7686 = vmatmul.mubr.f32.gmra.mxu0 %v7359
  %v7687 = vpop.f32.mrf.mxu0
  %v7688 = vadd.f32 0.0, %v7687
  %v7689 = vpop.f32.mrf.mxu0
  %7690 = vmatprep.mubr.f32.mxu0 0.0
  %7691 = vmatmul.mubr.f32.gmra.mxu0 %v7362
  %v7692 = vpop.f32.mrf.mxu0
  %v7693 = vadd.f32 0.0, %v7692
  %v7694 = vpop.f32.mrf.mxu0
  %7695 = vmatprep.mubr.f32.mxu0 0.0
  %7696 = vmatmul.mubr.f32.gmra.mxu0 %v7365
  %v7697 = vpop.f32.mrf.mxu0
  %v7698 = vadd.f32 0.0, %v7697
  %v7699 = vpop.f32.mrf.mxu0
  %7700 = vmatprep.mubr.f32.mxu0 0.0
  %7701 = vmatmul.mubr.f32.gmra.mxu0 %v7368
  %v7702 = vpop.f32.mrf.mxu0
  %v7703 = vadd.f32 0.0, %v7702
  %v7704 = vpop.f32.mrf.mxu0
  %7705 = vmatprep.mubr.f32.mxu0 0.0
  %7706 = vmatmul.mubr.f32.gmra.mxu0 %v7371
  %v7707 = vpop.f32.mrf.mxu0
  %v7708 = vadd.f32 0.0, %v7707
  %v7709 = vpop.f32.mrf.mxu0
  %7710 = vmatprep.mubr.f32.mxu0 0.0
  %7711 = vmatmul.mubr.f32.gmra.mxu0 %v7374
  %v7712 = vpop.f32.mrf.mxu0
  %v7713 = vadd.f32 0.0, %v7712
  %v7714 = vpop.f32.mrf.mxu0
  %7715 = vmatprep.mubr.f32.mxu0 0.0
  %7716 = vmatmul.mubr.f32.gmra.mxu0 %v7377
  %v7717 = vpop.f32.mrf.mxu0
  %v7718 = vadd.f32 0.0, %v7717
  %v7719 = vpop.f32.mrf.mxu0
  %7720 = vmatprep.mubr.f32.mxu0 0.0
  %7721 = vmatmul.mubr.f32.gmra.mxu0 %v7380
  %v7722 = vpop.f32.mrf.mxu0
  %v7723 = vadd.f32 0.0, %v7722
  %v7724 = vpop.f32.mrf.mxu0
  %7725 = vmatprep.mubr.f32.mxu0 0.0
  %7726 = vmatmul.mubr.f32.gmra.mxu0 %v7383
  %v7727 = vpop.f32.mrf.mxu0
  %v7728 = vadd.f32 0.0, %v7727
  %v7729 = vpop.f32.mrf.mxu0
  %7730 = vmatprep.mubr.f32.mxu0 0.0
  %7731 = vmatmul.mubr.f32.gmra.mxu0 %v7386
  %v7732 = vpop.f32.mrf.mxu0
  %v7733 = vadd.f32 0.0, %v7732
  %v7734 = vpop.f32.mrf.mxu0
  %7735 = vmatprep.mubr.f32.mxu0 0.0
  %7736 = vmatmul.mubr.f32.gmra.mxu0 %v7389
  %v7737 = vpop.f32.mrf.mxu0
  %v7738 = vadd.f32 0.0, %v7737
  %v7739 = vpop.f32.mrf.mxu0
  %7740 = vmatprep.mubr.f32.mxu0 0.0
  %7741 = vmatmul.mubr.f32.gmra.mxu0 %v7392
  %v7742 = vpop.f32.mrf.mxu0
  %v7743 = vadd.f32 0.0, %v7742
  %v7744 = vpop.f32.mrf.mxu0
  %7745 = vmatprep.mubr.f32.mxu0 0.0
  %7746 = vmatmul.mubr.f32.gmra.mxu0 %v7395
  %v7747 = vpop.f32.mrf.mxu0
  %v7748 = vadd.f32 0.0, %v7747
  %v7749 = vpop.f32.mrf.mxu0
  %7750 = vmatprep.mubr.f32.mxu0 0.0
  %7751 = vmatmul.mubr.f32.gmra.mxu0 %v7398
  %v7752 = vpop.f32.mrf.mxu0
  %v7753 = vadd.f32 0.0, %v7752
  %v7754 = vpop.f32.mrf.mxu0
  %7755 = vmatprep.mubr.f32.mxu0 0.0
  %7756 = vmatmul.mubr.f32.gmra.mxu0 %v7401
  %v7757 = vpop.f32.mrf.mxu0
  %v7758 = vadd.f32 0.0, %v7757
  %v7759 = vpop.f32.mrf.mxu0
  %7760 = vmatprep.mubr.f32.mxu0 0.0
  %7761 = vmatmul.mubr.f32.gmra.mxu0 %v7404
  %v7762 = vpop.f32.mrf.mxu0
  %v7763 = vadd.f32 0.0, %v7762
  %v7764 = vpop.f32.mrf.mxu0
  %7765 = vmatprep.mubr.f32.mxu0 0.0
  %7766 = vmatmul.mubr.f32.gmra.mxu0 %v7407
  %v7767 = vpop.f32.mrf.mxu0
  %v7768 = vadd.f32 0.0, %v7767
  %v7769 = vpop.f32.mrf.mxu0
  %7770 = vmatprep.mubr.f32.mxu0 0.0
  %7771 = vmatmul.mubr.f32.gmra.mxu0 %v7410
  %v7772 = vpop.f32.mrf.mxu0
  %v7773 = vadd.f32 0.0, %v7772
  %v7774 = vpop.f32.mrf.mxu0
  %7775 = vmatprep.mubr.f32.mxu0 0.0
  %7776 = vmatmul.mubr.f32.gmra.mxu0 %v7413
  %v7777 = vpop.f32.mrf.mxu0
  %v7778 = vadd.f32 0.0, %v7777
  %v7779 = vpop.f32.mrf.mxu0
  %7780 = vmatprep.mubr.f32.mxu0 0.0
  %7781 = vmatmul.mubr.f32.gmra.mxu0 %v7416
  %v7782 = vpop.f32.mrf.mxu0
  %v7783 = vadd.f32 0.0, %v7782
  %v7784 = vpop.f32.mrf.mxu0
  %7785 = vmatprep.mubr.f32.mxu0 0.0
  %7786 = vmatmul.mubr.f32.gmra.mxu0 %v7419
  %v7787 = vpop.f32.mrf.mxu0
  %v7788 = vadd.f32 0.0, %v7787
  %v7789 = vpop.f32.mrf.mxu0
  %7790 = vmatprep.mubr.f32.mxu0 0.0
  %7791 = vmatmul.mubr.f32.gmra.mxu0 %v7422
  %v7792 = vpop.f32.mrf.mxu0
  %v7793 = vadd.f32 0.0, %v7792
  %v7794 = vpop.f32.mrf.mxu0
  %7795 = vmatprep.mubr.f32.mxu0 0.0
  %7796 = vmatmul.mubr.f32.gmra.mxu0 %v7425
  %v7797 = vpop.f32.mrf.mxu0
  %v7798 = vadd.f32 0.0, %v7797
  %v7799 = vpop.f32.mrf.mxu0
  %7800 = vmatprep.mubr.f32.mxu0 0.0
  %7801 = vmatmul.mubr.f32.gmra.mxu0 %v7428
  %v7802 = vpop.f32.mrf.mxu0
  %v7803 = vadd.f32 0.0, %v7802
  %v7804 = vpop.f32.mrf.mxu0
  %7805 = vmatprep.mubr.f32.mxu0 0.0
  %7806 = vmatmul.mubr.f32.gmra.mxu0 %v7431
  %v7807 = vpop.f32.mrf.mxu0
  %v7808 = vadd.f32 0.0, %v7807
  %v7809 = vpop.f32.mrf.mxu0
  %7810 = vmatprep.mubr.f32.mxu0 0.0
  %7811 = vmatmul.mubr.f32.gmra.mxu0 %v7434
  %v7812 = vpop.f32.mrf.mxu0
  %v7813 = vadd.f32 0.0, %v7812
  %v7814 = vpop.f32.mrf.mxu0
  %7815 = vmatprep.mubr.f32.mxu0 0.0
  %7816 = vmatmul.mubr.f32.gmra.mxu0 %v7437
  %v7817 = vpop.f32.mrf.mxu0
  %v7818 = vadd.f32 0.0, %v7817
  %v7819 = vpop.f32.mrf.mxu0
  %7820 = vmatprep.mubr.f32.mxu0 0.0
  %7821 = vmatmul.mubr.f32.gmra.mxu0 %v7440
  %v7822 = vpop.f32.mrf.mxu0
  %v7823 = vadd.f32 0.0, %v7822
  %v7824 = vpop.f32.mrf.mxu0
  %7825 = vmatprep.mubr.f32.mxu0 0.0
  %7826 = vmatmul.mubr.f32.gmra.mxu0 %v7443
  %v7827 = vpop.f32.mrf.mxu0
  %v7828 = vadd.f32 0.0, %v7827
  %v7829 = vpop.f32.mrf.mxu0
  %7830 = vmatprep.mubr.f32.mxu0 0.0
  %7831 = vmatmul.mubr.f32.gmra.mxu0 %v7446
  %v7832 = vpop.f32.mrf.mxu0
  %v7833 = vadd.f32 0.0, %v7832
  %v7834 = vpop.f32.mrf.mxu0
  %7835 = vdwg.mxu0
  %v7837 = vsel %vm14, %v7124, 0
  %v7840 = vsel %vm14, %v7125, 0
  %v7843 = vsel %vm14, %v7126, 0
  %v7846 = vsel %vm14, %v7127, 0
  %v7849 = vsel %vm14, %v7128, 0
  %v7852 = vsel %vm14, %v7129, 0
  %v7855 = vsel %vm14, %v7130, 0
  %v7858 = vsel %vm14, %v7131, 0
  %v7861 = vsel %vm14, %v7132, 0
  %v7864 = vsel %vm14, %v7133, 0
  %v7867 = vsel %vm14, %v7134, 0
  %v7870 = vsel %vm14, %v7135, 0
  %v7873 = vsel %vm14, %v7136, 0
  %v7876 = vsel %vm14, %v7137, 0
  %v7879 = vsel %vm14, %v7138, 0
  %v7882 = vsel %vm14, %v7139, 0
  %v7885 = vsel %vm14, %v7140, 0
  %v7888 = vsel %vm14, %v7141, 0
  %v7891 = vsel %vm14, %v7142, 0
  %v7894 = vsel %vm14, %v7143, 0
  %v7897 = vsel %vm14, %v7144, 0
  %v7900 = vsel %vm14, %v7145, 0
  %v7903 = vsel %vm14, %v7146, 0
  %v7906 = vsel %vm14, %v7147, 0
  %v7909 = vsel %vm14, %v7148, 0
  %v7912 = vsel %vm14, %v7149, 0
  %v7915 = vsel %vm14, %v7150, 0
  %v7918 = vsel %vm14, %v7151, 0
  %v7921 = vsel %vm14, %v7152, 0
  %v7924 = vsel %vm14, %v7153, 0
  %v7927 = vsel %vm14, %v7154, 0
  %v7930 = vsel %vm14, %v7155, 0
  %v7933 = vsel %vm14, %v7156, 0
  %v7936 = vsel %vm14, %v7157, 0
  %v7939 = vsel %vm14, %v7158, 0
  %v7942 = vsel %vm14, %v7159, 0
  %v7945 = vsel %vm14, %v7160, 0
  %v7948 = vsel %vm14, %v7161, 0
  %v7951 = vsel %vm14, %v7162, 0
  %v7954 = vsel %vm14, %v7163, 0
  %v7957 = vsel %vm14, %v7164, 0
  %v7960 = vsel %vm14, %v7165, 0
  %v7963 = vsel %vm14, %v7166, 0
  %v7966 = vsel %vm14, %v7167, 0
  %v7969 = vsel %vm14, %v7168, 0
  %v7972 = vsel %vm14, %v7169, 0
  %v7975 = vsel %vm14, %v7170, 0
  %v7978 = vsel %vm14, %v7171, 0
  %v7981 = vsel %vm14, %v7172, 0
  %v7984 = vsel %vm14, %v7173, 0
  %v7987 = vsel %vm14, %v7174, 0
  %v7990 = vsel %vm14, %v7175, 0
  %v7993 = vsel %vm14, %v7176, 0
  %v7996 = vsel %vm14, %v7177, 0
  %v7999 = vsel %vm14, %v7178, 0
  %v8002 = vsel %vm14, %v7179, 0
  %v8005 = vsel %vm14, %v7180, 0
  %v8008 = vsel %vm14, %v7181, 0
  %v8011 = vsel %vm14, %v7182, 0
  %v8014 = vsel %vm14, %v7183, 0
  %v8017 = vsel %vm14, %v7184, 0
  %v8020 = vsel %vm14, %v7185, 0
  %v8023 = vsel %vm14, %v7186, 0
  %v8026 = vsel %vm14, %v7187, 0
  %v8029 = vsel %vm577, %v7189, 0
  %8031 = vmatprep.subr.mxu0 0.0
  %8032 = vmatpush1.msra.mxu0 0.0
  %8033 = vmatprep.subr.mxu0 0.0
  %8034 = vmatpush1.msra.mxu0 0.0
  %8035 = vmatprep.subr.mxu0 0.0
  %8036 = vmatpush1.msra.mxu0 0.0
  %8037 = vmatprep.subr.mxu0 0.0
  %8038 = vmatpush1.msra.mxu0 0.0
  %8039 = vmatprep.subr.mxu0 0.0
  %8040 = vmatpush1.msra.mxu0 0.0
  %8041 = vmatprep.subr.mxu0 0.0
  %8042 = vmatpush1.msra.mxu0 0.0
  %8043 = vmatprep.subr.mxu0 0.0
  %8044 = vmatpush1.msra.mxu0 0.0
  %8045 = vmatprep.subr.mxu0 0.0
  %8046 = vmatpush1.msra.mxu0 0.0
  %8047 = vmatprep.subr.mxu0 0.0
  %8048 = vmatpush1.msra.mxu0 0.0
  %8049 = vmatprep.subr.mxu0 0.0
  %8050 = vmatpush1.msra.mxu0 0.0
  %8051 = vmatprep.subr.mxu0 0.0
  %8052 = vmatpush1.msra.mxu0 0.0
  %8053 = vmatprep.subr.mxu0 0.0
  %8054 = vmatpush1.msra.mxu0 0.0
  %8055 = vmatprep.subr.mxu0 0.0
  %8056 = vmatpush1.msra.mxu0 0.0
  %8057 = vmatprep.subr.mxu0 0.0
  %8058 = vmatpush1.msra.mxu0 0.0
  %8059 = vmatprep.subr.mxu0 0.0
  %8060 = vmatpush1.msra.mxu0 0.0
  %8061 = vmatprep.subr.mxu0 0.0
  %8062 = vmatpush1.msra.mxu0 %v8029
  %8063 = vmatprep.subr.mxu0 0.0
  %8064 = vmatpush2.msra.mxu0 0.0
  %8065 = vmatprep.subr.mxu0 0.0
  %8066 = vmatpush2.msra.mxu0 0.0
  %8067 = vmatprep.subr.mxu0 0.0
  %8068 = vmatpush2.msra.mxu0 0.0
  %8069 = vmatprep.subr.mxu0 0.0
  %8070 = vmatpush2.msra.mxu0 0.0
  %8071 = vmatprep.subr.mxu0 0.0
  %8072 = vmatpush2.msra.mxu0 0.0
  %8073 = vmatprep.subr.mxu0 0.0
  %8074 = vmatpush2.msra.mxu0 0.0
  %8075 = vmatprep.subr.mxu0 0.0
  %8076 = vmatpush2.msra.mxu0 0.0
  %8077 = vmatprep.subr.mxu0 0.0
  %8078 = vmatpush2.msra.mxu0 0.0
  %8079 = vmatprep.subr.mxu0 0.0
  %8080 = vmatpush2.msra.mxu0 0.0
  %8081 = vmatprep.subr.mxu0 0.0
  %8082 = vmatpush2.msra.mxu0 0.0
  %8083 = vmatprep.subr.mxu0 0.0
  %8084 = vmatpush2.msra.mxu0 0.0
  %8085 = vmatprep.subr.mxu0 0.0
  %8086 = vmatpush2.msra.mxu0 0.0
  %8087 = vmatprep.subr.mxu0 0.0
  %8088 = vmatpush2.msra.mxu0 0.0
  %8089 = vmatprep.subr.mxu0 0.0
  %8090 = vmatpush2.msra.mxu0 0.0
  %8091 = vmatprep.subr.mxu0 0.0
  %8092 = vmatpush2.msra.mxu0 0.0
  %8093 = vmatprep.subr.mxu0 0.0
  %8094 = vmatpush2.msra.mxu0 0.0
  %8095 = vmatprep.mubr.f32.mxu0 0.0
  %8096 = vmatmul.mubr.f32.gmra.mxu0 %v7837
  %v8097 = vpop.f32.mrf.mxu0
  %v8098 = vadd.f32 %v7518, %v8097
  %v8099 = vpop.f32.mrf.mxu0
  %8100 = vmatprep.mubr.f32.mxu0 0.0
  %8101 = vmatmul.mubr.f32.gmra.mxu0 %v7840
  %v8102 = vpop.f32.mrf.mxu0
  %v8103 = vadd.f32 %v7523, %v8102
  %v8104 = vpop.f32.mrf.mxu0
  %8105 = vmatprep.mubr.f32.mxu0 0.0
  %8106 = vmatmul.mubr.f32.gmra.mxu0 %v7843
  %v8107 = vpop.f32.mrf.mxu0
  %v8108 = vadd.f32 %v7528, %v8107
  %v8109 = vpop.f32.mrf.mxu0
  %8110 = vmatprep.mubr.f32.mxu0 0.0
  %8111 = vmatmul.mubr.f32.gmra.mxu0 %v7846
  %v8112 = vpop.f32.mrf.mxu0
  %v8113 = vadd.f32 %v7533, %v8112
  %v8114 = vpop.f32.mrf.mxu0
  %8115 = vmatprep.mubr.f32.mxu0 0.0
  %8116 = vmatmul.mubr.f32.gmra.mxu0 %v7849
  %v8117 = vpop.f32.mrf.mxu0
  %v8118 = vadd.f32 %v7538, %v8117
  %v8119 = vpop.f32.mrf.mxu0
  %8120 = vmatprep.mubr.f32.mxu0 0.0
  %8121 = vmatmul.mubr.f32.gmra.mxu0 %v7852
  %v8122 = vpop.f32.mrf.mxu0
  %v8123 = vadd.f32 %v7543, %v8122
  %v8124 = vpop.f32.mrf.mxu0
  %8125 = vmatprep.mubr.f32.mxu0 0.0
  %8126 = vmatmul.mubr.f32.gmra.mxu0 %v7855
  %v8127 = vpop.f32.mrf.mxu0
  %v8128 = vadd.f32 %v7548, %v8127
  %v8129 = vpop.f32.mrf.mxu0
  %8130 = vmatprep.mubr.f32.mxu0 0.0
  %8131 = vmatmul.mubr.f32.gmra.mxu0 %v7858
  %v8132 = vpop.f32.mrf.mxu0
  %v8133 = vadd.f32 %v7553, %v8132
  %v8134 = vpop.f32.mrf.mxu0
  %8135 = vmatprep.mubr.f32.mxu0 0.0
  %8136 = vmatmul.mubr.f32.gmra.mxu0 %v7861
  %v8137 = vpop.f32.mrf.mxu0
  %v8138 = vadd.f32 %v7558, %v8137
  %v8139 = vpop.f32.mrf.mxu0
  %8140 = vmatprep.mubr.f32.mxu0 0.0
  %8141 = vmatmul.mubr.f32.gmra.mxu0 %v7864
  %v8142 = vpop.f32.mrf.mxu0
  %v8143 = vadd.f32 %v7563, %v8142
  %v8144 = vpop.f32.mrf.mxu0
  %8145 = vmatprep.mubr.f32.mxu0 0.0
  %8146 = vmatmul.mubr.f32.gmra.mxu0 %v7867
  %v8147 = vpop.f32.mrf.mxu0
  %v8148 = vadd.f32 %v7568, %v8147
  %v8149 = vpop.f32.mrf.mxu0
  %8150 = vmatprep.mubr.f32.mxu0 0.0
  %8151 = vmatmul.mubr.f32.gmra.mxu0 %v7870
  %v8152 = vpop.f32.mrf.mxu0
  %v8153 = vadd.f32 %v7573, %v8152
  %v8154 = vpop.f32.mrf.mxu0
  %8155 = vmatprep.mubr.f32.mxu0 0.0
  %8156 = vmatmul.mubr.f32.gmra.mxu0 %v7873
  %v8157 = vpop.f32.mrf.mxu0
  %v8158 = vadd.f32 %v7578, %v8157
  %v8159 = vpop.f32.mrf.mxu0
  %8160 = vmatprep.mubr.f32.mxu0 0.0
  %8161 = vmatmul.mubr.f32.gmra.mxu0 %v7876
  %v8162 = vpop.f32.mrf.mxu0
  %v8163 = vadd.f32 %v7583, %v8162
  %v8164 = vpop.f32.mrf.mxu0
  %8165 = vmatprep.mubr.f32.mxu0 0.0
  %8166 = vmatmul.mubr.f32.gmra.mxu0 %v7879
  %v8167 = vpop.f32.mrf.mxu0
  %v8168 = vadd.f32 %v7588, %v8167
  %v8169 = vpop.f32.mrf.mxu0
  %8170 = vmatprep.mubr.f32.mxu0 0.0
  %8171 = vmatmul.mubr.f32.gmra.mxu0 %v7882
  %v8172 = vpop.f32.mrf.mxu0
  %v8173 = vadd.f32 %v7593, %v8172
  %v8174 = vpop.f32.mrf.mxu0
  %8175 = vmatprep.mubr.f32.mxu0 0.0
  %8176 = vmatmul.mubr.f32.gmra.mxu0 %v7885
  %v8177 = vpop.f32.mrf.mxu0
  %v8178 = vadd.f32 %v7598, %v8177
  %v8179 = vpop.f32.mrf.mxu0
  %8180 = vmatprep.mubr.f32.mxu0 0.0
  %8181 = vmatmul.mubr.f32.gmra.mxu0 %v7888
  %v8182 = vpop.f32.mrf.mxu0
  %v8183 = vadd.f32 %v7603, %v8182
  %v8184 = vpop.f32.mrf.mxu0
  %8185 = vmatprep.mubr.f32.mxu0 0.0
  %8186 = vmatmul.mubr.f32.gmra.mxu0 %v7891
  %v8187 = vpop.f32.mrf.mxu0
  %v8188 = vadd.f32 %v7608, %v8187
  %v8189 = vpop.f32.mrf.mxu0
  %8190 = vmatprep.mubr.f32.mxu0 0.0
  %8191 = vmatmul.mubr.f32.gmra.mxu0 %v7894
  %v8192 = vpop.f32.mrf.mxu0
  %v8193 = vadd.f32 %v7613, %v8192
  %v8194 = vpop.f32.mrf.mxu0
  %8195 = vmatprep.mubr.f32.mxu0 0.0
  %8196 = vmatmul.mubr.f32.gmra.mxu0 %v7897
  %v8197 = vpop.f32.mrf.mxu0
  %v8198 = vadd.f32 %v7618, %v8197
  %v8199 = vpop.f32.mrf.mxu0
  %8200 = vmatprep.mubr.f32.mxu0 0.0
  %8201 = vmatmul.mubr.f32.gmra.mxu0 %v7900
  %v8202 = vpop.f32.mrf.mxu0
  %v8203 = vadd.f32 %v7623, %v8202
  %v8204 = vpop.f32.mrf.mxu0
  %8205 = vmatprep.mubr.f32.mxu0 0.0
  %8206 = vmatmul.mubr.f32.gmra.mxu0 %v7903
  %v8207 = vpop.f32.mrf.mxu0
  %v8208 = vadd.f32 %v7628, %v8207
  %v8209 = vpop.f32.mrf.mxu0
  %8210 = vmatprep.mubr.f32.mxu0 0.0
  %8211 = vmatmul.mubr.f32.gmra.mxu0 %v7906
  %v8212 = vpop.f32.mrf.mxu0
  %v8213 = vadd.f32 %v7633, %v8212
  %v8214 = vpop.f32.mrf.mxu0
  %8215 = vmatprep.mubr.f32.mxu0 0.0
  %8216 = vmatmul.mubr.f32.gmra.mxu0 %v7909
  %v8217 = vpop.f32.mrf.mxu0
  %v8218 = vadd.f32 %v7638, %v8217
  %v8219 = vpop.f32.mrf.mxu0
  %8220 = vmatprep.mubr.f32.mxu0 0.0
  %8221 = vmatmul.mubr.f32.gmra.mxu0 %v7912
  %v8222 = vpop.f32.mrf.mxu0
  %v8223 = vadd.f32 %v7643, %v8222
  %v8224 = vpop.f32.mrf.mxu0
  %8225 = vmatprep.mubr.f32.mxu0 0.0
  %8226 = vmatmul.mubr.f32.gmra.mxu0 %v7915
  %v8227 = vpop.f32.mrf.mxu0
  %v8228 = vadd.f32 %v7648, %v8227
  %v8229 = vpop.f32.mrf.mxu0
  %8230 = vmatprep.mubr.f32.mxu0 0.0
  %8231 = vmatmul.mubr.f32.gmra.mxu0 %v7918
  %v8232 = vpop.f32.mrf.mxu0
  %v8233 = vadd.f32 %v7653, %v8232
  %v8234 = vpop.f32.mrf.mxu0
  %8235 = vmatprep.mubr.f32.mxu0 0.0
  %8236 = vmatmul.mubr.f32.gmra.mxu0 %v7921
  %v8237 = vpop.f32.mrf.mxu0
  %v8238 = vadd.f32 %v7658, %v8237
  %v8239 = vpop.f32.mrf.mxu0
  %8240 = vmatprep.mubr.f32.mxu0 0.0
  %8241 = vmatmul.mubr.f32.gmra.mxu0 %v7924
  %v8242 = vpop.f32.mrf.mxu0
  %v8243 = vadd.f32 %v7663, %v8242
  %v8244 = vpop.f32.mrf.mxu0
  %8245 = vmatprep.mubr.f32.mxu0 0.0
  %8246 = vmatmul.mubr.f32.gmra.mxu0 %v7927
  %v8247 = vpop.f32.mrf.mxu0
  %v8248 = vadd.f32 %v7668, %v8247
  %v8249 = vpop.f32.mrf.mxu0
  %8250 = vmatprep.mubr.f32.mxu0 0.0
  %8251 = vmatmul.mubr.f32.gmra.mxu0 %v7930
  %v8252 = vpop.f32.mrf.mxu0
  %v8253 = vadd.f32 %v7673, %v8252
  %v8254 = vpop.f32.mrf.mxu0
  %8255 = vmatprep.mubr.f32.mxu0 0.0
  %8256 = vmatmul.mubr.f32.gmra.mxu0 %v7933
  %v8257 = vpop.f32.mrf.mxu0
  %v8258 = vadd.f32 %v7678, %v8257
  %v8259 = vpop.f32.mrf.mxu0
  %8260 = vmatprep.mubr.f32.mxu0 0.0
  %8261 = vmatmul.mubr.f32.gmra.mxu0 %v7936
  %v8262 = vpop.f32.mrf.mxu0
  %v8263 = vadd.f32 %v7683, %v8262
  %v8264 = vpop.f32.mrf.mxu0
  %8265 = vmatprep.mubr.f32.mxu0 0.0
  %8266 = vmatmul.mubr.f32.gmra.mxu0 %v7939
  %v8267 = vpop.f32.mrf.mxu0
  %v8268 = vadd.f32 %v7688, %v8267
  %v8269 = vpop.f32.mrf.mxu0
  %8270 = vmatprep.mubr.f32.mxu0 0.0
  %8271 = vmatmul.mubr.f32.gmra.mxu0 %v7942
  %v8272 = vpop.f32.mrf.mxu0
  %v8273 = vadd.f32 %v7693, %v8272
  %v8274 = vpop.f32.mrf.mxu0
  %8275 = vmatprep.mubr.f32.mxu0 0.0
  %8276 = vmatmul.mubr.f32.gmra.mxu0 %v7945
  %v8277 = vpop.f32.mrf.mxu0
  %v8278 = vadd.f32 %v7698, %v8277
  %v8279 = vpop.f32.mrf.mxu0
  %8280 = vmatprep.mubr.f32.mxu0 0.0
  %8281 = vmatmul.mubr.f32.gmra.mxu0 %v7948
  %v8282 = vpop.f32.mrf.mxu0
  %v8283 = vadd.f32 %v7703, %v8282
  %v8284 = vpop.f32.mrf.mxu0
  %8285 = vmatprep.mubr.f32.mxu0 0.0
  %8286 = vmatmul.mubr.f32.gmra.mxu0 %v7951
  %v8287 = vpop.f32.mrf.mxu0
  %v8288 = vadd.f32 %v7708, %v8287
  %v8289 = vpop.f32.mrf.mxu0
  %8290 = vmatprep.mubr.f32.mxu0 0.0
  %8291 = vmatmul.mubr.f32.gmra.mxu0 %v7954
  %v8292 = vpop.f32.mrf.mxu0
  %v8293 = vadd.f32 %v7713, %v8292
  %v8294 = vpop.f32.mrf.mxu0
  %8295 = vmatprep.mubr.f32.mxu0 0.0
  %8296 = vmatmul.mubr.f32.gmra.mxu0 %v7957
  %v8297 = vpop.f32.mrf.mxu0
  %v8298 = vadd.f32 %v7718, %v8297
  %v8299 = vpop.f32.mrf.mxu0
  %8300 = vmatprep.mubr.f32.mxu0 0.0
  %8301 = vmatmul.mubr.f32.gmra.mxu0 %v7960
  %v8302 = vpop.f32.mrf.mxu0
  %v8303 = vadd.f32 %v7723, %v8302
  %v8304 = vpop.f32.mrf.mxu0
  %8305 = vmatprep.mubr.f32.mxu0 0.0
  %8306 = vmatmul.mubr.f32.gmra.mxu0 %v7963
  %v8307 = vpop.f32.mrf.mxu0
  %v8308 = vadd.f32 %v7728, %v8307
  %v8309 = vpop.f32.mrf.mxu0
  %8310 = vmatprep.mubr.f32.mxu0 0.0
  %8311 = vmatmul.mubr.f32.gmra.mxu0 %v7966
  %v8312 = vpop.f32.mrf.mxu0
  %v8313 = vadd.f32 %v7733, %v8312
  %v8314 = vpop.f32.mrf.mxu0
  %8315 = vmatprep.mubr.f32.mxu0 0.0
  %8316 = vmatmul.mubr.f32.gmra.mxu0 %v7969
  %v8317 = vpop.f32.mrf.mxu0
  %v8318 = vadd.f32 %v7738, %v8317
  %v8319 = vpop.f32.mrf.mxu0
  %8320 = vmatprep.mubr.f32.mxu0 0.0
  %8321 = vmatmul.mubr.f32.gmra.mxu0 %v7972
  %v8322 = vpop.f32.mrf.mxu0
  %v8323 = vadd.f32 %v7743, %v8322
  %v8324 = vpop.f32.mrf.mxu0
  %8325 = vmatprep.mubr.f32.mxu0 0.0
  %8326 = vmatmul.mubr.f32.gmra.mxu0 %v7975
  %v8327 = vpop.f32.mrf.mxu0
  %v8328 = vadd.f32 %v7748, %v8327
  %v8329 = vpop.f32.mrf.mxu0
  %8330 = vmatprep.mubr.f32.mxu0 0.0
  %8331 = vmatmul.mubr.f32.gmra.mxu0 %v7978
  %v8332 = vpop.f32.mrf.mxu0
  %v8333 = vadd.f32 %v7753, %v8332
  %v8334 = vpop.f32.mrf.mxu0
  %8335 = vmatprep.mubr.f32.mxu0 0.0
  %8336 = vmatmul.mubr.f32.gmra.mxu0 %v7981
  %v8337 = vpop.f32.mrf.mxu0
  %v8338 = vadd.f32 %v7758, %v8337
  %v8339 = vpop.f32.mrf.mxu0
  %8340 = vmatprep.mubr.f32.mxu0 0.0
  %8341 = vmatmul.mubr.f32.gmra.mxu0 %v7984
  %v8342 = vpop.f32.mrf.mxu0
  %v8343 = vadd.f32 %v7763, %v8342
  %v8344 = vpop.f32.mrf.mxu0
  %8345 = vmatprep.mubr.f32.mxu0 0.0
  %8346 = vmatmul.mubr.f32.gmra.mxu0 %v7987
  %v8347 = vpop.f32.mrf.mxu0
  %v8348 = vadd.f32 %v7768, %v8347
  %v8349 = vpop.f32.mrf.mxu0
  %8350 = vmatprep.mubr.f32.mxu0 0.0
  %8351 = vmatmul.mubr.f32.gmra.mxu0 %v7990
  %v8352 = vpop.f32.mrf.mxu0
  %v8353 = vadd.f32 %v7773, %v8352
  %v8354 = vpop.f32.mrf.mxu0
  %8355 = vmatprep.mubr.f32.mxu0 0.0
  %8356 = vmatmul.mubr.f32.gmra.mxu0 %v7993
  %v8357 = vpop.f32.mrf.mxu0
  %v8358 = vadd.f32 %v7778, %v8357
  %v8359 = vpop.f32.mrf.mxu0
  %8360 = vmatprep.mubr.f32.mxu0 0.0
  %8361 = vmatmul.mubr.f32.gmra.mxu0 %v7996
  %v8362 = vpop.f32.mrf.mxu0
  %v8363 = vadd.f32 %v7783, %v8362
  %v8364 = vpop.f32.mrf.mxu0
  %8365 = vmatprep.mubr.f32.mxu0 0.0
  %8366 = vmatmul.mubr.f32.gmra.mxu0 %v7999
  %v8367 = vpop.f32.mrf.mxu0
  %v8368 = vadd.f32 %v7788, %v8367
  %v8369 = vpop.f32.mrf.mxu0
  %8370 = vmatprep.mubr.f32.mxu0 0.0
  %8371 = vmatmul.mubr.f32.gmra.mxu0 %v8002
  %v8372 = vpop.f32.mrf.mxu0
  %v8373 = vadd.f32 %v7793, %v8372
  %v8374 = vpop.f32.mrf.mxu0
  %8375 = vmatprep.mubr.f32.mxu0 0.0
  %8376 = vmatmul.mubr.f32.gmra.mxu0 %v8005
  %v8377 = vpop.f32.mrf.mxu0
  %v8378 = vadd.f32 %v7798, %v8377
  %v8379 = vpop.f32.mrf.mxu0
  %8380 = vmatprep.mubr.f32.mxu0 0.0
  %8381 = vmatmul.mubr.f32.gmra.mxu0 %v8008
  %v8382 = vpop.f32.mrf.mxu0
  %v8383 = vadd.f32 %v7803, %v8382
  %v8384 = vpop.f32.mrf.mxu0
  %8385 = vmatprep.mubr.f32.mxu0 0.0
  %8386 = vmatmul.mubr.f32.gmra.mxu0 %v8011
  %v8387 = vpop.f32.mrf.mxu0
  %v8388 = vadd.f32 %v7808, %v8387
  %v8389 = vpop.f32.mrf.mxu0
  %8390 = vmatprep.mubr.f32.mxu0 0.0
  %8391 = vmatmul.mubr.f32.gmra.mxu0 %v8014
  %v8392 = vpop.f32.mrf.mxu0
  %v8393 = vadd.f32 %v7813, %v8392
  %v8394 = vpop.f32.mrf.mxu0
  %8395 = vmatprep.mubr.f32.mxu0 0.0
  %8396 = vmatmul.mubr.f32.gmra.mxu0 %v8017
  %v8397 = vpop.f32.mrf.mxu0
  %v8398 = vadd.f32 %v7818, %v8397
  %v8399 = vpop.f32.mrf.mxu0
  %8400 = vmatprep.mubr.f32.mxu0 0.0
  %8401 = vmatmul.mubr.f32.gmra.mxu0 %v8020
  %v8402 = vpop.f32.mrf.mxu0
  %v8403 = vadd.f32 %v7823, %v8402
  %v8404 = vpop.f32.mrf.mxu0
  %8405 = vmatprep.mubr.f32.mxu0 0.0
  %8406 = vmatmul.mubr.f32.gmra.mxu0 %v8023
  %v8407 = vpop.f32.mrf.mxu0
  %v8408 = vadd.f32 %v7828, %v8407
  %v8409 = vpop.f32.mrf.mxu0
  %8410 = vmatprep.mubr.f32.mxu0 0.0
  %8411 = vmatmul.mubr.f32.gmra.mxu0 %v8026
  %v8412 = vpop.f32.mrf.mxu0
  %v8413 = vadd.f32 %v7833, %v8412
  %v8414 = vpop.f32.mrf.mxu0
  %8415 = vdwg.mxu0
  %v8416 = vld [vmem:[#allocation2 + $0x2] sm:$0xff]
  %v8417 = vld [vmem:[#allocation2 + $0xa] sm:$0xff]
  %v8418 = vld [vmem:[#allocation2 + $0x1a] sm:$0xff]
  %v8419 = vld [vmem:[#allocation2 + $0x22] sm:$0xff]
  %v8420 = vld [vmem:[#allocation2 + $0x32] sm:$0xff]
  %v8421 = vld [vmem:[#allocation2 + $0x3a] sm:$0xff]
  %v8422 = vld [vmem:[#allocation2 + $0x4a] sm:$0xff]
  %v8423 = vld [vmem:[#allocation2 + $0x52] sm:$0xff]
  %v8424 = vld [vmem:[#allocation2 + $0x62] sm:$0xff]
  %v8425 = vld [vmem:[#allocation2 + $0x6a] sm:$0xff]
  %v8426 = vld [vmem:[#allocation2 + $0x7a] sm:$0xff]
  %v8427 = vld [vmem:[#allocation2 + $0x82] sm:$0xff]
  %v8428 = vld [vmem:[#allocation2 + $0x92] sm:$0xff]
  %v8429 = vld [vmem:[#allocation2 + $0x9a] sm:$0xff]
  %v8430 = vld [vmem:[#allocation2 + $0xaa] sm:$0xff]
  %v8431 = vld [vmem:[#allocation2 + $0xb2] sm:$0xff]
  %v8432 = vld [vmem:[#allocation2 + $0xc2] sm:$0xff]
  %v8433 = vld [vmem:[#allocation2 + $0xca] sm:$0xff]
  %v8434 = vld [vmem:[#allocation2 + $0xda] sm:$0xff]
  %v8435 = vld [vmem:[#allocation2 + $0xe2] sm:$0xff]
  %v8436 = vld [vmem:[#allocation2 + $0xf2] sm:$0xff]
  %v8437 = vld [vmem:[#allocation2 + $0xfa] sm:$0xff]
  %v8438 = vld [vmem:[#allocation2 + $0x10a] sm:$0xff]
  %v8439 = vld [vmem:[#allocation2 + $0x112] sm:$0xff]
  %v8440 = vld [vmem:[#allocation2 + $0x122] sm:$0xff]
  %v8441 = vld [vmem:[#allocation2 + $0x12a] sm:$0xff]
  %v8442 = vld [vmem:[#allocation2 + $0x13a] sm:$0xff]
  %v8443 = vld [vmem:[#allocation2 + $0x142] sm:$0xff]
  %v8444 = vld [vmem:[#allocation2 + $0x152] sm:$0xff]
  %v8445 = vld [vmem:[#allocation2 + $0x15a] sm:$0xff]
  %v8446 = vld [vmem:[#allocation2 + $0x16a] sm:$0xff]
  %v8447 = vld [vmem:[#allocation2 + $0x172] sm:$0xff]
  %v8448 = vld [vmem:[#allocation2 + $0x1b2] sm:$0xff]
  %v8449 = vld [vmem:[#allocation2 + $0x1ba] sm:$0xff]
  %v8450 = vld [vmem:[#allocation2 + $0x1ca] sm:$0xff]
  %v8451 = vld [vmem:[#allocation2 + $0x1d2] sm:$0xff]
  %v8452 = vld [vmem:[#allocation2 + $0x1e2] sm:$0xff]
  %v8453 = vld [vmem:[#allocation2 + $0x1ea] sm:$0xff]
  %v8454 = vld [vmem:[#allocation2 + $0x1fa] sm:$0xff]
  %v8455 = vld [vmem:[#allocation2 + $0x202] sm:$0xff]
  %v8456 = vld [vmem:[#allocation2 + $0x212] sm:$0xff]
  %v8457 = vld [vmem:[#allocation2 + $0x21a] sm:$0xff]
  %v8458 = vld [vmem:[#allocation2 + $0x22a] sm:$0xff]
  %v8459 = vld [vmem:[#allocation2 + $0x232] sm:$0xff]
  %v8460 = vld [vmem:[#allocation2 + $0x242] sm:$0xff]
  %v8461 = vld [vmem:[#allocation2 + $0x24a] sm:$0xff]
  %v8462 = vld [vmem:[#allocation2 + $0x25a] sm:$0xff]
  %v8463 = vld [vmem:[#allocation2 + $0x262] sm:$0xff]
  %v8464 = vld [vmem:[#allocation2 + $0x272] sm:$0xff]
  %v8465 = vld [vmem:[#allocation2 + $0x27a] sm:$0xff]
  %v8466 = vld [vmem:[#allocation2 + $0x28a] sm:$0xff]
  %v8467 = vld [vmem:[#allocation2 + $0x292] sm:$0xff]
  %v8468 = vld [vmem:[#allocation2 + $0x2a2] sm:$0xff]
  %v8469 = vld [vmem:[#allocation2 + $0x2aa] sm:$0xff]
  %v8470 = vld [vmem:[#allocation2 + $0x2ba] sm:$0xff]
  %v8471 = vld [vmem:[#allocation2 + $0x2c2] sm:$0xff]
  %v8472 = vld [vmem:[#allocation2 + $0x2d2] sm:$0xff]
  %v8473 = vld [vmem:[#allocation2 + $0x2da] sm:$0xff]
  %v8474 = vld [vmem:[#allocation2 + $0x2ea] sm:$0xff]
  %v8475 = vld [vmem:[#allocation2 + $0x2f2] sm:$0xff]
  %v8476 = vld [vmem:[#allocation2 + $0x302] sm:$0xff]
  %v8477 = vld [vmem:[#allocation2 + $0x30a] sm:$0xff]
  %v8478 = vld [vmem:[#allocation2 + $0x31a] sm:$0xff]
  %v8479 = vld [vmem:[#allocation2 + $0x322] sm:$0xff]
  %s8480 = scalar_lea.vmem %s1, 44
  %v8481 = vld [vmem:[%s8480] sm:$0xf]
  %v8483 = vsel %vm14, %v8416, 0
  %v8486 = vsel %vm14, %v8417, 0
  %v8489 = vsel %vm14, %v8418, 0
  %v8492 = vsel %vm14, %v8419, 0
  %v8495 = vsel %vm14, %v8420, 0
  %v8498 = vsel %vm14, %v8421, 0
  %v8501 = vsel %vm14, %v8422, 0
  %v8504 = vsel %vm14, %v8423, 0
  %v8507 = vsel %vm14, %v8424, 0
  %v8510 = vsel %vm14, %v8425, 0
  %v8513 = vsel %vm14, %v8426, 0
  %v8516 = vsel %vm14, %v8427, 0
  %v8519 = vsel %vm14, %v8428, 0
  %v8522 = vsel %vm14, %v8429, 0
  %v8525 = vsel %vm14, %v8430, 0
  %v8528 = vsel %vm14, %v8431, 0
  %v8531 = vsel %vm14, %v8432, 0
  %v8534 = vsel %vm14, %v8433, 0
  %v8537 = vsel %vm14, %v8434, 0
  %v8540 = vsel %vm14, %v8435, 0
  %v8543 = vsel %vm14, %v8436, 0
  %v8546 = vsel %vm14, %v8437, 0
  %v8549 = vsel %vm14, %v8438, 0
  %v8552 = vsel %vm14, %v8439, 0
  %v8555 = vsel %vm14, %v8440, 0
  %v8558 = vsel %vm14, %v8441, 0
  %v8561 = vsel %vm14, %v8442, 0
  %v8564 = vsel %vm14, %v8443, 0
  %v8567 = vsel %vm14, %v8444, 0
  %v8570 = vsel %vm14, %v8445, 0
  %v8573 = vsel %vm14, %v8446, 0
  %v8576 = vsel %vm14, %v8447, 0
  %v8579 = vsel %vm14, %v8448, 0
  %v8582 = vsel %vm14, %v8449, 0
  %v8585 = vsel %vm14, %v8450, 0
  %v8588 = vsel %vm14, %v8451, 0
  %v8591 = vsel %vm14, %v8452, 0
  %v8594 = vsel %vm14, %v8453, 0
  %v8597 = vsel %vm14, %v8454, 0
  %v8600 = vsel %vm14, %v8455, 0
  %v8603 = vsel %vm14, %v8456, 0
  %v8606 = vsel %vm14, %v8457, 0
  %v8609 = vsel %vm14, %v8458, 0
  %v8612 = vsel %vm14, %v8459, 0
  %v8615 = vsel %vm14, %v8460, 0
  %v8618 = vsel %vm14, %v8461, 0
  %v8621 = vsel %vm14, %v8462, 0
  %v8624 = vsel %vm14, %v8463, 0
  %v8627 = vsel %vm14, %v8464, 0
  %v8630 = vsel %vm14, %v8465, 0
  %v8633 = vsel %vm14, %v8466, 0
  %v8636 = vsel %vm14, %v8467, 0
  %v8639 = vsel %vm14, %v8468, 0
  %v8642 = vsel %vm14, %v8469, 0
  %v8645 = vsel %vm14, %v8470, 0
  %v8648 = vsel %vm14, %v8471, 0
  %v8651 = vsel %vm14, %v8472, 0
  %v8654 = vsel %vm14, %v8473, 0
  %v8657 = vsel %vm14, %v8474, 0
  %v8660 = vsel %vm14, %v8475, 0
  %v8663 = vsel %vm14, %v8476, 0
  %v8666 = vsel %vm14, %v8477, 0
  %v8669 = vsel %vm14, %v8478, 0
  %v8672 = vsel %vm14, %v8479, 0
  %v8675 = vsel %vm577, %v8481, 0
  %8677 = vmatprep.subr.mxu0 0.0
  %8678 = vmatpush1.msra.mxu0 0.0
  %8679 = vmatprep.subr.mxu0 0.0
  %8680 = vmatpush1.msra.mxu0 0.0
  %8681 = vmatprep.subr.mxu0 0.0
  %8682 = vmatpush1.msra.mxu0 0.0
  %8683 = vmatprep.subr.mxu0 0.0
  %8684 = vmatpush1.msra.mxu0 0.0
  %8685 = vmatprep.subr.mxu0 0.0
  %8686 = vmatpush1.msra.mxu0 0.0
  %8687 = vmatprep.subr.mxu0 0.0
  %8688 = vmatpush1.msra.mxu0 0.0
  %8689 = vmatprep.subr.mxu0 0.0
  %8690 = vmatpush1.msra.mxu0 0.0
  %8691 = vmatprep.subr.mxu0 0.0
  %8692 = vmatpush1.msra.mxu0 0.0
  %8693 = vmatprep.subr.mxu0 0.0
  %8694 = vmatpush1.msra.mxu0 0.0
  %8695 = vmatprep.subr.mxu0 0.0
  %8696 = vmatpush1.msra.mxu0 0.0
  %8697 = vmatprep.subr.mxu0 0.0
  %8698 = vmatpush1.msra.mxu0 0.0
  %8699 = vmatprep.subr.mxu0 0.0
  %8700 = vmatpush1.msra.mxu0 0.0
  %8701 = vmatprep.subr.mxu0 0.0
  %8702 = vmatpush1.msra.mxu0 0.0
  %8703 = vmatprep.subr.mxu0 0.0
  %8704 = vmatpush1.msra.mxu0 0.0
  %8705 = vmatprep.subr.mxu0 0.0
  %8706 = vmatpush1.msra.mxu0 0.0
  %8707 = vmatprep.subr.mxu0 0.0
  %8708 = vmatpush1.msra.mxu0 %v8675
  %8709 = vmatprep.subr.mxu0 0.0
  %8710 = vmatpush2.msra.mxu0 0.0
  %8711 = vmatprep.subr.mxu0 0.0
  %8712 = vmatpush2.msra.mxu0 0.0
  %8713 = vmatprep.subr.mxu0 0.0
  %8714 = vmatpush2.msra.mxu0 0.0
  %8715 = vmatprep.subr.mxu0 0.0
  %8716 = vmatpush2.msra.mxu0 0.0
  %8717 = vmatprep.subr.mxu0 0.0
  %8718 = vmatpush2.msra.mxu0 0.0
  %8719 = vmatprep.subr.mxu0 0.0
  %8720 = vmatpush2.msra.mxu0 0.0
  %8721 = vmatprep.subr.mxu0 0.0
  %8722 = vmatpush2.msra.mxu0 0.0
  %8723 = vmatprep.subr.mxu0 0.0
  %8724 = vmatpush2.msra.mxu0 0.0
  %8725 = vmatprep.subr.mxu0 0.0
  %8726 = vmatpush2.msra.mxu0 0.0
  %8727 = vmatprep.subr.mxu0 0.0
  %8728 = vmatpush2.msra.mxu0 0.0
  %8729 = vmatprep.subr.mxu0 0.0
  %8730 = vmatpush2.msra.mxu0 0.0
  %8731 = vmatprep.subr.mxu0 0.0
  %8732 = vmatpush2.msra.mxu0 0.0
  %8733 = vmatprep.subr.mxu0 0.0
  %8734 = vmatpush2.msra.mxu0 0.0
  %8735 = vmatprep.subr.mxu0 0.0
  %8736 = vmatpush2.msra.mxu0 0.0
  %8737 = vmatprep.subr.mxu0 0.0
  %8738 = vmatpush2.msra.mxu0 0.0
  %8739 = vmatprep.subr.mxu0 0.0
  %8740 = vmatpush2.msra.mxu0 0.0
  %8741 = vmatprep.mubr.f32.mxu0 0.0
  %8742 = vmatmul.mubr.f32.gmra.mxu0 %v8483
  %v8743 = vpop.f32.mrf.mxu0
  %v8744 = vadd.f32 0.0, %v8743
  %v8745 = vpop.f32.mrf.mxu0
  %8746 = vmatprep.mubr.f32.mxu0 0.0
  %8747 = vmatmul.mubr.f32.gmra.mxu0 %v8486
  %v8748 = vpop.f32.mrf.mxu0
  %v8749 = vadd.f32 0.0, %v8748
  %v8750 = vpop.f32.mrf.mxu0
  %8751 = vmatprep.mubr.f32.mxu0 0.0
  %8752 = vmatmul.mubr.f32.gmra.mxu0 %v8489
  %v8753 = vpop.f32.mrf.mxu0
  %v8754 = vadd.f32 0.0, %v8753
  %v8755 = vpop.f32.mrf.mxu0
  %8756 = vmatprep.mubr.f32.mxu0 0.0
  %8757 = vmatmul.mubr.f32.gmra.mxu0 %v8492
  %v8758 = vpop.f32.mrf.mxu0
  %v8759 = vadd.f32 0.0, %v8758
  %v8760 = vpop.f32.mrf.mxu0
  %8761 = vmatprep.mubr.f32.mxu0 0.0
  %8762 = vmatmul.mubr.f32.gmra.mxu0 %v8495
  %v8763 = vpop.f32.mrf.mxu0
  %v8764 = vadd.f32 0.0, %v8763
  %v8765 = vpop.f32.mrf.mxu0
  %8766 = vmatprep.mubr.f32.mxu0 0.0
  %8767 = vmatmul.mubr.f32.gmra.mxu0 %v8498
  %v8768 = vpop.f32.mrf.mxu0
  %v8769 = vadd.f32 0.0, %v8768
  %v8770 = vpop.f32.mrf.mxu0
  %8771 = vmatprep.mubr.f32.mxu0 0.0
  %8772 = vmatmul.mubr.f32.gmra.mxu0 %v8501
  %v8773 = vpop.f32.mrf.mxu0
  %v8774 = vadd.f32 0.0, %v8773
  %v8775 = vpop.f32.mrf.mxu0
  %8776 = vmatprep.mubr.f32.mxu0 0.0
  %8777 = vmatmul.mubr.f32.gmra.mxu0 %v8504
  %v8778 = vpop.f32.mrf.mxu0
  %v8779 = vadd.f32 0.0, %v8778
  %v8780 = vpop.f32.mrf.mxu0
  %8781 = vmatprep.mubr.f32.mxu0 0.0
  %8782 = vmatmul.mubr.f32.gmra.mxu0 %v8507
  %v8783 = vpop.f32.mrf.mxu0
  %v8784 = vadd.f32 0.0, %v8783
  %v8785 = vpop.f32.mrf.mxu0
  %8786 = vmatprep.mubr.f32.mxu0 0.0
  %8787 = vmatmul.mubr.f32.gmra.mxu0 %v8510
  %v8788 = vpop.f32.mrf.mxu0
  %v8789 = vadd.f32 0.0, %v8788
  %v8790 = vpop.f32.mrf.mxu0
  %8791 = vmatprep.mubr.f32.mxu0 0.0
  %8792 = vmatmul.mubr.f32.gmra.mxu0 %v8513
  %v8793 = vpop.f32.mrf.mxu0
  %v8794 = vadd.f32 0.0, %v8793
  %v8795 = vpop.f32.mrf.mxu0
  %8796 = vmatprep.mubr.f32.mxu0 0.0
  %8797 = vmatmul.mubr.f32.gmra.mxu0 %v8516
  %v8798 = vpop.f32.mrf.mxu0
  %v8799 = vadd.f32 0.0, %v8798
  %v8800 = vpop.f32.mrf.mxu0
  %8801 = vmatprep.mubr.f32.mxu0 0.0
  %8802 = vmatmul.mubr.f32.gmra.mxu0 %v8519
  %v8803 = vpop.f32.mrf.mxu0
  %v8804 = vadd.f32 0.0, %v8803
  %v8805 = vpop.f32.mrf.mxu0
  %8806 = vmatprep.mubr.f32.mxu0 0.0
  %8807 = vmatmul.mubr.f32.gmra.mxu0 %v8522
  %v8808 = vpop.f32.mrf.mxu0
  %v8809 = vadd.f32 0.0, %v8808
  %v8810 = vpop.f32.mrf.mxu0
  %8811 = vmatprep.mubr.f32.mxu0 0.0
  %8812 = vmatmul.mubr.f32.gmra.mxu0 %v8525
  %v8813 = vpop.f32.mrf.mxu0
  %v8814 = vadd.f32 0.0, %v8813
  %v8815 = vpop.f32.mrf.mxu0
  %8816 = vmatprep.mubr.f32.mxu0 0.0
  %8817 = vmatmul.mubr.f32.gmra.mxu0 %v8528
  %v8818 = vpop.f32.mrf.mxu0
  %v8819 = vadd.f32 0.0, %v8818
  %v8820 = vpop.f32.mrf.mxu0
  %8821 = vmatprep.mubr.f32.mxu0 0.0
  %8822 = vmatmul.mubr.f32.gmra.mxu0 %v8531
  %v8823 = vpop.f32.mrf.mxu0
  %v8824 = vadd.f32 0.0, %v8823
  %v8825 = vpop.f32.mrf.mxu0
  %8826 = vmatprep.mubr.f32.mxu0 0.0
  %8827 = vmatmul.mubr.f32.gmra.mxu0 %v8534
  %v8828 = vpop.f32.mrf.mxu0
  %v8829 = vadd.f32 0.0, %v8828
  %v8830 = vpop.f32.mrf.mxu0
  %8831 = vmatprep.mubr.f32.mxu0 0.0
  %8832 = vmatmul.mubr.f32.gmra.mxu0 %v8537
  %v8833 = vpop.f32.mrf.mxu0
  %v8834 = vadd.f32 0.0, %v8833
  %v8835 = vpop.f32.mrf.mxu0
  %8836 = vmatprep.mubr.f32.mxu0 0.0
  %8837 = vmatmul.mubr.f32.gmra.mxu0 %v8540
  %v8838 = vpop.f32.mrf.mxu0
  %v8839 = vadd.f32 0.0, %v8838
  %v8840 = vpop.f32.mrf.mxu0
  %8841 = vmatprep.mubr.f32.mxu0 0.0
  %8842 = vmatmul.mubr.f32.gmra.mxu0 %v8543
  %v8843 = vpop.f32.mrf.mxu0
  %v8844 = vadd.f32 0.0, %v8843
  %v8845 = vpop.f32.mrf.mxu0
  %8846 = vmatprep.mubr.f32.mxu0 0.0
  %8847 = vmatmul.mubr.f32.gmra.mxu0 %v8546
  %v8848 = vpop.f32.mrf.mxu0
  %v8849 = vadd.f32 0.0, %v8848
  %v8850 = vpop.f32.mrf.mxu0
  %8851 = vmatprep.mubr.f32.mxu0 0.0
  %8852 = vmatmul.mubr.f32.gmra.mxu0 %v8549
  %v8853 = vpop.f32.mrf.mxu0
  %v8854 = vadd.f32 0.0, %v8853
  %v8855 = vpop.f32.mrf.mxu0
  %8856 = vmatprep.mubr.f32.mxu0 0.0
  %8857 = vmatmul.mubr.f32.gmra.mxu0 %v8552
  %v8858 = vpop.f32.mrf.mxu0
  %v8859 = vadd.f32 0.0, %v8858
  %v8860 = vpop.f32.mrf.mxu0
  %8861 = vmatprep.mubr.f32.mxu0 0.0
  %8862 = vmatmul.mubr.f32.gmra.mxu0 %v8555
  %v8863 = vpop.f32.mrf.mxu0
  %v8864 = vadd.f32 0.0, %v8863
  %v8865 = vpop.f32.mrf.mxu0
  %8866 = vmatprep.mubr.f32.mxu0 0.0
  %8867 = vmatmul.mubr.f32.gmra.mxu0 %v8558
  %v8868 = vpop.f32.mrf.mxu0
  %v8869 = vadd.f32 0.0, %v8868
  %v8870 = vpop.f32.mrf.mxu0
  %8871 = vmatprep.mubr.f32.mxu0 0.0
  %8872 = vmatmul.mubr.f32.gmra.mxu0 %v8561
  %v8873 = vpop.f32.mrf.mxu0
  %v8874 = vadd.f32 0.0, %v8873
  %v8875 = vpop.f32.mrf.mxu0
  %8876 = vmatprep.mubr.f32.mxu0 0.0
  %8877 = vmatmul.mubr.f32.gmra.mxu0 %v8564
  %v8878 = vpop.f32.mrf.mxu0
  %v8879 = vadd.f32 0.0, %v8878
  %v8880 = vpop.f32.mrf.mxu0
  %8881 = vmatprep.mubr.f32.mxu0 0.0
  %8882 = vmatmul.mubr.f32.gmra.mxu0 %v8567
  %v8883 = vpop.f32.mrf.mxu0
  %v8884 = vadd.f32 0.0, %v8883
  %v8885 = vpop.f32.mrf.mxu0
  %8886 = vmatprep.mubr.f32.mxu0 0.0
  %8887 = vmatmul.mubr.f32.gmra.mxu0 %v8570
  %v8888 = vpop.f32.mrf.mxu0
  %v8889 = vadd.f32 0.0, %v8888
  %v8890 = vpop.f32.mrf.mxu0
  %8891 = vmatprep.mubr.f32.mxu0 0.0
  %8892 = vmatmul.mubr.f32.gmra.mxu0 %v8573
  %v8893 = vpop.f32.mrf.mxu0
  %v8894 = vadd.f32 0.0, %v8893
  %v8895 = vpop.f32.mrf.mxu0
  %8896 = vmatprep.mubr.f32.mxu0 0.0
  %8897 = vmatmul.mubr.f32.gmra.mxu0 %v8576
  %v8898 = vpop.f32.mrf.mxu0
  %v8899 = vadd.f32 0.0, %v8898
  %v8900 = vpop.f32.mrf.mxu0
  %8901 = vmatprep.mubr.f32.mxu0 0.0
  %8902 = vmatmul.mubr.f32.gmra.mxu0 %v8579
  %v8903 = vpop.f32.mrf.mxu0
  %v8904 = vadd.f32 0.0, %v8903
  %v8905 = vpop.f32.mrf.mxu0
  %8906 = vmatprep.mubr.f32.mxu0 0.0
  %8907 = vmatmul.mubr.f32.gmra.mxu0 %v8582
  %v8908 = vpop.f32.mrf.mxu0
  %v8909 = vadd.f32 0.0, %v8908
  %v8910 = vpop.f32.mrf.mxu0
  %8911 = vmatprep.mubr.f32.mxu0 0.0
  %8912 = vmatmul.mubr.f32.gmra.mxu0 %v8585
  %v8913 = vpop.f32.mrf.mxu0
  %v8914 = vadd.f32 0.0, %v8913
  %v8915 = vpop.f32.mrf.mxu0
  %8916 = vmatprep.mubr.f32.mxu0 0.0
  %8917 = vmatmul.mubr.f32.gmra.mxu0 %v8588
  %v8918 = vpop.f32.mrf.mxu0
  %v8919 = vadd.f32 0.0, %v8918
  %v8920 = vpop.f32.mrf.mxu0
  %8921 = vmatprep.mubr.f32.mxu0 0.0
  %8922 = vmatmul.mubr.f32.gmra.mxu0 %v8591
  %v8923 = vpop.f32.mrf.mxu0
  %v8924 = vadd.f32 0.0, %v8923
  %v8925 = vpop.f32.mrf.mxu0
  %8926 = vmatprep.mubr.f32.mxu0 0.0
  %8927 = vmatmul.mubr.f32.gmra.mxu0 %v8594
  %v8928 = vpop.f32.mrf.mxu0
  %v8929 = vadd.f32 0.0, %v8928
  %v8930 = vpop.f32.mrf.mxu0
  %8931 = vmatprep.mubr.f32.mxu0 0.0
  %8932 = vmatmul.mubr.f32.gmra.mxu0 %v8597
  %v8933 = vpop.f32.mrf.mxu0
  %v8934 = vadd.f32 0.0, %v8933
  %v8935 = vpop.f32.mrf.mxu0
  %8936 = vmatprep.mubr.f32.mxu0 0.0
  %8937 = vmatmul.mubr.f32.gmra.mxu0 %v8600
  %v8938 = vpop.f32.mrf.mxu0
  %v8939 = vadd.f32 0.0, %v8938
  %v8940 = vpop.f32.mrf.mxu0
  %8941 = vmatprep.mubr.f32.mxu0 0.0
  %8942 = vmatmul.mubr.f32.gmra.mxu0 %v8603
  %v8943 = vpop.f32.mrf.mxu0
  %v8944 = vadd.f32 0.0, %v8943
  %v8945 = vpop.f32.mrf.mxu0
  %8946 = vmatprep.mubr.f32.mxu0 0.0
  %8947 = vmatmul.mubr.f32.gmra.mxu0 %v8606
  %v8948 = vpop.f32.mrf.mxu0
  %v8949 = vadd.f32 0.0, %v8948
  %v8950 = vpop.f32.mrf.mxu0
  %8951 = vmatprep.mubr.f32.mxu0 0.0
  %8952 = vmatmul.mubr.f32.gmra.mxu0 %v8609
  %v8953 = vpop.f32.mrf.mxu0
  %v8954 = vadd.f32 0.0, %v8953
  %v8955 = vpop.f32.mrf.mxu0
  %8956 = vmatprep.mubr.f32.mxu0 0.0
  %8957 = vmatmul.mubr.f32.gmra.mxu0 %v8612
  %v8958 = vpop.f32.mrf.mxu0
  %v8959 = vadd.f32 0.0, %v8958
  %v8960 = vpop.f32.mrf.mxu0
  %8961 = vmatprep.mubr.f32.mxu0 0.0
  %8962 = vmatmul.mubr.f32.gmra.mxu0 %v8615
  %v8963 = vpop.f32.mrf.mxu0
  %v8964 = vadd.f32 0.0, %v8963
  %v8965 = vpop.f32.mrf.mxu0
  %8966 = vmatprep.mubr.f32.mxu0 0.0
  %8967 = vmatmul.mubr.f32.gmra.mxu0 %v8618
  %v8968 = vpop.f32.mrf.mxu0
  %v8969 = vadd.f32 0.0, %v8968
  %v8970 = vpop.f32.mrf.mxu0
  %8971 = vmatprep.mubr.f32.mxu0 0.0
  %8972 = vmatmul.mubr.f32.gmra.mxu0 %v8621
  %v8973 = vpop.f32.mrf.mxu0
  %v8974 = vadd.f32 0.0, %v8973
  %v8975 = vpop.f32.mrf.mxu0
  %8976 = vmatprep.mubr.f32.mxu0 0.0
  %8977 = vmatmul.mubr.f32.gmra.mxu0 %v8624
  %v8978 = vpop.f32.mrf.mxu0
  %v8979 = vadd.f32 0.0, %v8978
  %v8980 = vpop.f32.mrf.mxu0
  %8981 = vmatprep.mubr.f32.mxu0 0.0
  %8982 = vmatmul.mubr.f32.gmra.mxu0 %v8627
  %v8983 = vpop.f32.mrf.mxu0
  %v8984 = vadd.f32 0.0, %v8983
  %v8985 = vpop.f32.mrf.mxu0
  %8986 = vmatprep.mubr.f32.mxu0 0.0
  %8987 = vmatmul.mubr.f32.gmra.mxu0 %v8630
  %v8988 = vpop.f32.mrf.mxu0
  %v8989 = vadd.f32 0.0, %v8988
  %v8990 = vpop.f32.mrf.mxu0
  %8991 = vmatprep.mubr.f32.mxu0 0.0
  %8992 = vmatmul.mubr.f32.gmra.mxu0 %v8633
  %v8993 = vpop.f32.mrf.mxu0
  %v8994 = vadd.f32 0.0, %v8993
  %v8995 = vpop.f32.mrf.mxu0
  %8996 = vmatprep.mubr.f32.mxu0 0.0
  %8997 = vmatmul.mubr.f32.gmra.mxu0 %v8636
  %v8998 = vpop.f32.mrf.mxu0
  %v8999 = vadd.f32 0.0, %v8998
  %v9000 = vpop.f32.mrf.mxu0
  %9001 = vmatprep.mubr.f32.mxu0 0.0
  %9002 = vmatmul.mubr.f32.gmra.mxu0 %v8639
  %v9003 = vpop.f32.mrf.mxu0
  %v9004 = vadd.f32 0.0, %v9003
  %v9005 = vpop.f32.mrf.mxu0
  %9006 = vmatprep.mubr.f32.mxu0 0.0
  %9007 = vmatmul.mubr.f32.gmra.mxu0 %v8642
  %v9008 = vpop.f32.mrf.mxu0
  %v9009 = vadd.f32 0.0, %v9008
  %v9010 = vpop.f32.mrf.mxu0
  %9011 = vmatprep.mubr.f32.mxu0 0.0
  %9012 = vmatmul.mubr.f32.gmra.mxu0 %v8645
  %v9013 = vpop.f32.mrf.mxu0
  %v9014 = vadd.f32 0.0, %v9013
  %v9015 = vpop.f32.mrf.mxu0
  %9016 = vmatprep.mubr.f32.mxu0 0.0
  %9017 = vmatmul.mubr.f32.gmra.mxu0 %v8648
  %v9018 = vpop.f32.mrf.mxu0
  %v9019 = vadd.f32 0.0, %v9018
  %v9020 = vpop.f32.mrf.mxu0
  %9021 = vmatprep.mubr.f32.mxu0 0.0
  %9022 = vmatmul.mubr.f32.gmra.mxu0 %v8651
  %v9023 = vpop.f32.mrf.mxu0
  %v9024 = vadd.f32 0.0, %v9023
  %v9025 = vpop.f32.mrf.mxu0
  %9026 = vmatprep.mubr.f32.mxu0 0.0
  %9027 = vmatmul.mubr.f32.gmra.mxu0 %v8654
  %v9028 = vpop.f32.mrf.mxu0
  %v9029 = vadd.f32 0.0, %v9028
  %v9030 = vpop.f32.mrf.mxu0
  %9031 = vmatprep.mubr.f32.mxu0 0.0
  %9032 = vmatmul.mubr.f32.gmra.mxu0 %v8657
  %v9033 = vpop.f32.mrf.mxu0
  %v9034 = vadd.f32 0.0, %v9033
  %v9035 = vpop.f32.mrf.mxu0
  %9036 = vmatprep.mubr.f32.mxu0 0.0
  %9037 = vmatmul.mubr.f32.gmra.mxu0 %v8660
  %v9038 = vpop.f32.mrf.mxu0
  %v9039 = vadd.f32 0.0, %v9038
  %v9040 = vpop.f32.mrf.mxu0
  %9041 = vmatprep.mubr.f32.mxu0 0.0
  %9042 = vmatmul.mubr.f32.gmra.mxu0 %v8663
  %v9043 = vpop.f32.mrf.mxu0
  %v9044 = vadd.f32 0.0, %v9043
  %v9045 = vpop.f32.mrf.mxu0
  %9046 = vmatprep.mubr.f32.mxu0 0.0
  %9047 = vmatmul.mubr.f32.gmra.mxu0 %v8666
  %v9048 = vpop.f32.mrf.mxu0
  %v9049 = vadd.f32 0.0, %v9048
  %v9050 = vpop.f32.mrf.mxu0
  %9051 = vmatprep.mubr.f32.mxu0 0.0
  %9052 = vmatmul.mubr.f32.gmra.mxu0 %v8669
  %v9053 = vpop.f32.mrf.mxu0
  %v9054 = vadd.f32 0.0, %v9053
  %v9055 = vpop.f32.mrf.mxu0
  %9056 = vmatprep.mubr.f32.mxu0 0.0
  %9057 = vmatmul.mubr.f32.gmra.mxu0 %v8672
  %v9058 = vpop.f32.mrf.mxu0
  %v9059 = vadd.f32 0.0, %v9058
  %v9060 = vpop.f32.mrf.mxu0
  %9061 = vdwg.mxu0
  %v9062 = vadd.f32 %v8098, %v8744
  %v9063 = vadd.f32 %v8103, %v8749
  %v9064 = vadd.f32 %v8108, %v8754
  %v9065 = vadd.f32 %v8113, %v8759
  %v9066 = vadd.f32 %v8118, %v8764
  %v9067 = vadd.f32 %v8123, %v8769
  %v9068 = vadd.f32 %v8128, %v8774
  %v9069 = vadd.f32 %v8133, %v8779
  %v9070 = vadd.f32 %v8138, %v8784
  %v9071 = vadd.f32 %v8143, %v8789
  %v9072 = vadd.f32 %v8148, %v8794
  %v9073 = vadd.f32 %v8153, %v8799
  %v9074 = vadd.f32 %v8158, %v8804
  %v9075 = vadd.f32 %v8163, %v8809
  %v9076 = vadd.f32 %v8168, %v8814
  %v9077 = vadd.f32 %v8173, %v8819
  %v9078 = vadd.f32 %v8178, %v8824
  %v9079 = vadd.f32 %v8183, %v8829
  %v9080 = vadd.f32 %v8188, %v8834
  %v9081 = vadd.f32 %v8193, %v8839
  %v9082 = vadd.f32 %v8198, %v8844
  %v9083 = vadd.f32 %v8203, %v8849
  %v9084 = vadd.f32 %v8208, %v8854
  %v9085 = vadd.f32 %v8213, %v8859
  %v9086 = vadd.f32 %v8218, %v8864
  %v9087 = vadd.f32 %v8223, %v8869
  %v9088 = vadd.f32 %v8228, %v8874
  %v9089 = vadd.f32 %v8233, %v8879
  %v9090 = vadd.f32 %v8238, %v8884
  %v9091 = vadd.f32 %v8243, %v8889
  %v9092 = vadd.f32 %v8248, %v8894
  %v9093 = vadd.f32 %v8253, %v8899
  %v9094 = vadd.f32 %v8258, %v8904
  %v9095 = vadd.f32 %v8263, %v8909
  %v9096 = vadd.f32 %v8268, %v8914
  %v9097 = vadd.f32 %v8273, %v8919
  %v9098 = vadd.f32 %v8278, %v8924
  %v9099 = vadd.f32 %v8283, %v8929
  %v9100 = vadd.f32 %v8288, %v8934
  %v9101 = vadd.f32 %v8293, %v8939
  %v9102 = vadd.f32 %v8298, %v8944
  %v9103 = vadd.f32 %v8303, %v8949
  %v9104 = vadd.f32 %v8308, %v8954
  %v9105 = vadd.f32 %v8313, %v8959
  %v9106 = vadd.f32 %v8318, %v8964
  %v9107 = vadd.f32 %v8323, %v8969
  %v9108 = vadd.f32 %v8328, %v8974
  %v9109 = vadd.f32 %v8333, %v8979
  %v9110 = vadd.f32 %v8338, %v8984
  %v9111 = vadd.f32 %v8343, %v8989
  %v9112 = vadd.f32 %v8348, %v8994
  %v9113 = vadd.f32 %v8353, %v8999
  %v9114 = vadd.f32 %v8358, %v9004
  %v9115 = vadd.f32 %v8363, %v9009
  %v9116 = vadd.f32 %v8368, %v9014
  %v9117 = vadd.f32 %v8373, %v9019
  %v9118 = vadd.f32 %v8378, %v9024
  %v9119 = vadd.f32 %v8383, %v9029
  %v9120 = vadd.f32 %v8388, %v9034
  %v9121 = vadd.f32 %v8393, %v9039
  %v9122 = vadd.f32 %v8398, %v9044
  %v9123 = vadd.f32 %v8403, %v9049
  %v9124 = vadd.f32 %v8408, %v9054
  %v9125 = vadd.f32 %v8413, %v9059
  %v9126 = vld [vmem:[%s189] sm:$0xff]
  %v9127 = vld [vmem:[%s189 + $0x8] sm:$0xff]
  %v9128 = vld [vmem:[%s189 + $0x18] sm:$0xff]
  %v9129 = vld [vmem:[%s189 + $0x20] sm:$0xff]
  %v9130 = vld [vmem:[%s189 + $0x30] sm:$0xff]
  %v9131 = vld [vmem:[%s189 + $0x38] sm:$0xff]
  %v9132 = vld [vmem:[%s189 + $0x48] sm:$0xff]
  %v9133 = vld [vmem:[%s189 + $0x50] sm:$0xff]
  %v9134 = vld [vmem:[%s189 + $0x60] sm:$0xff]
  %v9135 = vld [vmem:[%s189 + $0x68] sm:$0xff]
  %v9136 = vld [vmem:[%s189 + $0x78] sm:$0xff]
  %v9137 = vld [vmem:[%s189 + $0x80] sm:$0xff]
  %v9138 = vld [vmem:[%s189 + $0x90] sm:$0xff]
  %v9139 = vld [vmem:[%s189 + $0x98] sm:$0xff]
  %v9140 = vld [vmem:[%s189 + $0xa8] sm:$0xff]
  %v9141 = vld [vmem:[%s189 + $0xb0] sm:$0xff]
  %v9142 = vld [vmem:[%s189 + $0xc0] sm:$0xff]
  %v9143 = vld [vmem:[%s189 + $0xc8] sm:$0xff]
  %v9144 = vld [vmem:[%s189 + $0xd8] sm:$0xff]
  %v9145 = vld [vmem:[%s189 + $0xe0] sm:$0xff]
  %v9146 = vld [vmem:[%s189 + $0xf0] sm:$0xff]
  %v9147 = vld [vmem:[%s189 + $0xf8] sm:$0xff]
  %v9148 = vld [vmem:[%s189 + $0x108] sm:$0xff]
  %v9149 = vld [vmem:[%s189 + $0x110] sm:$0xff]
  %v9150 = vld [vmem:[%s189 + $0x120] sm:$0xff]
  %v9151 = vld [vmem:[%s189 + $0x128] sm:$0xff]
  %v9152 = vld [vmem:[%s189 + $0x138] sm:$0xff]
  %v9153 = vld [vmem:[%s189 + $0x140] sm:$0xff]
  %v9154 = vld [vmem:[%s189 + $0x150] sm:$0xff]
  %v9155 = vld [vmem:[%s189 + $0x158] sm:$0xff]
  %v9156 = vld [vmem:[%s189 + $0x168] sm:$0xff]
  %v9157 = vld [vmem:[%s189 + $0x170] sm:$0xff]
  %v9158 = vld [vmem:[%s189 + $0x1b0] sm:$0xff]
  %v9159 = vld [vmem:[%s189 + $0x1b8] sm:$0xff]
  %v9160 = vld [vmem:[%s189 + $0x1c8] sm:$0xff]
  %v9161 = vld [vmem:[%s189 + $0x1d0] sm:$0xff]
  %v9162 = vld [vmem:[%s189 + $0x1e0] sm:$0xff]
  %v9163 = vld [vmem:[%s189 + $0x1e8] sm:$0xff]
  %v9164 = vld [vmem:[%s189 + $0x1f8] sm:$0xff]
  %v9165 = vld [vmem:[%s189 + $0x200] sm:$0xff]
  %v9166 = vld [vmem:[%s189 + $0x210] sm:$0xff]
  %v9167 = vld [vmem:[%s189 + $0x218] sm:$0xff]
  %v9168 = vld [vmem:[%s189 + $0x228] sm:$0xff]
  %v9169 = vld [vmem:[%s189 + $0x230] sm:$0xff]
  %v9170 = vld [vmem:[%s189 + $0x240] sm:$0xff]
  %v9171 = vld [vmem:[%s189 + $0x248] sm:$0xff]
  %v9172 = vld [vmem:[%s189 + $0x258] sm:$0xff]
  %v9173 = vld [vmem:[%s189 + $0x260] sm:$0xff]
  %v9174 = vld [vmem:[%s189 + $0x270] sm:$0xff]
  %v9175 = vld [vmem:[%s189 + $0x278] sm:$0xff]
  %v9176 = vld [vmem:[%s189 + $0x288] sm:$0xff]
  %v9177 = vld [vmem:[%s189 + $0x290] sm:$0xff]
  %v9178 = vld [vmem:[%s189 + $0x2a0] sm:$0xff]
  %v9179 = vld [vmem:[%s189 + $0x2a8] sm:$0xff]
  %v9180 = vld [vmem:[%s189 + $0x2b8] sm:$0xff]
  %v9181 = vld [vmem:[%s189 + $0x2c0] sm:$0xff]
  %v9182 = vld [vmem:[%s189 + $0x2d0] sm:$0xff]
  %v9183 = vld [vmem:[%s189 + $0x2d8] sm:$0xff]
  %v9184 = vld [vmem:[%s189 + $0x2e8] sm:$0xff]
  %v9185 = vld [vmem:[%s189 + $0x2f0] sm:$0xff]
  %v9186 = vld [vmem:[%s189 + $0x300] sm:$0xff]
  %v9187 = vld [vmem:[%s189 + $0x308] sm:$0xff]
  %v9188 = vld [vmem:[%s189 + $0x318] sm:$0xff]
  %v9189 = vld [vmem:[%s189 + $0x320] sm:$0xff]
  %s9190 = scalar_lea.vmem %s1, 48
  %v9191 = vld [vmem:[%s9190] sm:$0xf]
  %v9193 = vsel %vm14, %v9126, 0
  %v9196 = vsel %vm14, %v9127, 0
  %v9199 = vsel %vm14, %v9128, 0
  %v9202 = vsel %vm14, %v9129, 0
  %v9205 = vsel %vm14, %v9130, 0
  %v9208 = vsel %vm14, %v9131, 0
  %v9211 = vsel %vm14, %v9132, 0
  %v9214 = vsel %vm14, %v9133, 0
  %v9217 = vsel %vm14, %v9134, 0
  %v9220 = vsel %vm14, %v9135, 0
  %v9223 = vsel %vm14, %v9136, 0
  %v9226 = vsel %vm14, %v9137, 0
  %v9229 = vsel %vm14, %v9138, 0
  %v9232 = vsel %vm14, %v9139, 0
  %v9235 = vsel %vm14, %v9140, 0
  %v9238 = vsel %vm14, %v9141, 0
  %v9241 = vsel %vm14, %v9142, 0
  %v9244 = vsel %vm14, %v9143, 0
  %v9247 = vsel %vm14, %v9144, 0
  %v9250 = vsel %vm14, %v9145, 0
  %v9253 = vsel %vm14, %v9146, 0
  %v9256 = vsel %vm14, %v9147, 0
  %v9259 = vsel %vm14, %v9148, 0
  %v9262 = vsel %vm14, %v9149, 0
  %v9265 = vsel %vm14, %v9150, 0
  %v9268 = vsel %vm14, %v9151, 0
  %v9271 = vsel %vm14, %v9152, 0
  %v9274 = vsel %vm14, %v9153, 0
  %v9277 = vsel %vm14, %v9154, 0
  %v9280 = vsel %vm14, %v9155, 0
  %v9283 = vsel %vm14, %v9156, 0
  %v9286 = vsel %vm14, %v9157, 0
  %v9289 = vsel %vm14, %v9158, 0
  %v9292 = vsel %vm14, %v9159, 0
  %v9295 = vsel %vm14, %v9160, 0
  %v9298 = vsel %vm14, %v9161, 0
  %v9301 = vsel %vm14, %v9162, 0
  %v9304 = vsel %vm14, %v9163, 0
  %v9307 = vsel %vm14, %v9164, 0
  %v9310 = vsel %vm14, %v9165, 0
  %v9313 = vsel %vm14, %v9166, 0
  %v9316 = vsel %vm14, %v9167, 0
  %v9319 = vsel %vm14, %v9168, 0
  %v9322 = vsel %vm14, %v9169, 0
  %v9325 = vsel %vm14, %v9170, 0
  %v9328 = vsel %vm14, %v9171, 0
  %v9331 = vsel %vm14, %v9172, 0
  %v9334 = vsel %vm14, %v9173, 0
  %v9337 = vsel %vm14, %v9174, 0
  %v9340 = vsel %vm14, %v9175, 0
  %v9343 = vsel %vm14, %v9176, 0
  %v9346 = vsel %vm14, %v9177, 0
  %v9349 = vsel %vm14, %v9178, 0
  %v9352 = vsel %vm14, %v9179, 0
  %v9355 = vsel %vm14, %v9180, 0
  %v9358 = vsel %vm14, %v9181, 0
  %v9361 = vsel %vm14, %v9182, 0
  %v9364 = vsel %vm14, %v9183, 0
  %v9367 = vsel %vm14, %v9184, 0
  %v9370 = vsel %vm14, %v9185, 0
  %v9373 = vsel %vm14, %v9186, 0
  %v9376 = vsel %vm14, %v9187, 0
  %v9379 = vsel %vm14, %v9188, 0
  %v9382 = vsel %vm14, %v9189, 0
  %v9385 = vsel %vm577, %v9191, 0
  %9387 = vmatprep.subr.mxu0 0.0
  %9388 = vmatpush1.msra.mxu0 0.0
  %9389 = vmatprep.subr.mxu0 0.0
  %9390 = vmatpush1.msra.mxu0 0.0
  %9391 = vmatprep.subr.mxu0 0.0
  %9392 = vmatpush1.msra.mxu0 0.0
  %9393 = vmatprep.subr.mxu0 0.0
  %9394 = vmatpush1.msra.mxu0 0.0
  %9395 = vmatprep.subr.mxu0 0.0
  %9396 = vmatpush1.msra.mxu0 0.0
  %9397 = vmatprep.subr.mxu0 0.0
  %9398 = vmatpush1.msra.mxu0 0.0
  %9399 = vmatprep.subr.mxu0 0.0
  %9400 = vmatpush1.msra.mxu0 0.0
  %9401 = vmatprep.subr.mxu0 0.0
  %9402 = vmatpush1.msra.mxu0 0.0
  %9403 = vmatprep.subr.mxu0 0.0
  %9404 = vmatpush1.msra.mxu0 0.0
  %9405 = vmatprep.subr.mxu0 0.0
  %9406 = vmatpush1.msra.mxu0 0.0
  %9407 = vmatprep.subr.mxu0 0.0
  %9408 = vmatpush1.msra.mxu0 0.0
  %9409 = vmatprep.subr.mxu0 0.0
  %9410 = vmatpush1.msra.mxu0 0.0
  %9411 = vmatprep.subr.mxu0 0.0
  %9412 = vmatpush1.msra.mxu0 0.0
  %9413 = vmatprep.subr.mxu0 0.0
  %9414 = vmatpush1.msra.mxu0 0.0
  %9415 = vmatprep.subr.mxu0 0.0
  %9416 = vmatpush1.msra.mxu0 0.0
  %9417 = vmatprep.subr.mxu0 0.0
  %9418 = vmatpush1.msra.mxu0 %v9385
  %9419 = vmatprep.subr.mxu0 0.0
  %9420 = vmatpush2.msra.mxu0 0.0
  %9421 = vmatprep.subr.mxu0 0.0
  %9422 = vmatpush2.msra.mxu0 0.0
  %9423 = vmatprep.subr.mxu0 0.0
  %9424 = vmatpush2.msra.mxu0 0.0
  %9425 = vmatprep.subr.mxu0 0.0
  %9426 = vmatpush2.msra.mxu0 0.0
  %9427 = vmatprep.subr.mxu0 0.0
  %9428 = vmatpush2.msra.mxu0 0.0
  %9429 = vmatprep.subr.mxu0 0.0
  %9430 = vmatpush2.msra.mxu0 0.0
  %9431 = vmatprep.subr.mxu0 0.0
  %9432 = vmatpush2.msra.mxu0 0.0
  %9433 = vmatprep.subr.mxu0 0.0
  %9434 = vmatpush2.msra.mxu0 0.0
  %9435 = vmatprep.subr.mxu0 0.0
  %9436 = vmatpush2.msra.mxu0 0.0
  %9437 = vmatprep.subr.mxu0 0.0
  %9438 = vmatpush2.msra.mxu0 0.0
  %9439 = vmatprep.subr.mxu0 0.0
  %9440 = vmatpush2.msra.mxu0 0.0
  %9441 = vmatprep.subr.mxu0 0.0
  %9442 = vmatpush2.msra.mxu0 0.0
  %9443 = vmatprep.subr.mxu0 0.0
  %9444 = vmatpush2.msra.mxu0 0.0
  %9445 = vmatprep.subr.mxu0 0.0
  %9446 = vmatpush2.msra.mxu0 0.0
  %9447 = vmatprep.subr.mxu0 0.0
  %9448 = vmatpush2.msra.mxu0 0.0
  %9449 = vmatprep.subr.mxu0 0.0
  %9450 = vmatpush2.msra.mxu0 0.0
  %9451 = vmatprep.mubr.f32.mxu0 0.0
  %9452 = vmatmul.mubr.f32.gmra.mxu0 %v9193
  %v9453 = vpop.f32.mrf.mxu0
  %v9454 = vadd.f32 0.0, %v9453
  %v9455 = vpop.f32.mrf.mxu0
  %9456 = vmatprep.mubr.f32.mxu0 0.0
  %9457 = vmatmul.mubr.f32.gmra.mxu0 %v9196
  %v9458 = vpop.f32.mrf.mxu0
  %v9459 = vadd.f32 0.0, %v9458
  %v9460 = vpop.f32.mrf.mxu0
  %9461 = vmatprep.mubr.f32.mxu0 0.0
  %9462 = vmatmul.mubr.f32.gmra.mxu0 %v9199
  %v9463 = vpop.f32.mrf.mxu0
  %v9464 = vadd.f32 0.0, %v9463
  %v9465 = vpop.f32.mrf.mxu0
  %9466 = vmatprep.mubr.f32.mxu0 0.0
  %9467 = vmatmul.mubr.f32.gmra.mxu0 %v9202
  %v9468 = vpop.f32.mrf.mxu0
  %v9469 = vadd.f32 0.0, %v9468
  %v9470 = vpop.f32.mrf.mxu0
  %9471 = vmatprep.mubr.f32.mxu0 0.0
  %9472 = vmatmul.mubr.f32.gmra.mxu0 %v9205
  %v9473 = vpop.f32.mrf.mxu0
  %v9474 = vadd.f32 0.0, %v9473
  %v9475 = vpop.f32.mrf.mxu0
  %9476 = vmatprep.mubr.f32.mxu0 0.0
  %9477 = vmatmul.mubr.f32.gmra.mxu0 %v9208
  %v9478 = vpop.f32.mrf.mxu0
  %v9479 = vadd.f32 0.0, %v9478
  %v9480 = vpop.f32.mrf.mxu0
  %9481 = vmatprep.mubr.f32.mxu0 0.0
  %9482 = vmatmul.mubr.f32.gmra.mxu0 %v9211
  %v9483 = vpop.f32.mrf.mxu0
  %v9484 = vadd.f32 0.0, %v9483
  %v9485 = vpop.f32.mrf.mxu0
  %9486 = vmatprep.mubr.f32.mxu0 0.0
  %9487 = vmatmul.mubr.f32.gmra.mxu0 %v9214
  %v9488 = vpop.f32.mrf.mxu0
  %v9489 = vadd.f32 0.0, %v9488
  %v9490 = vpop.f32.mrf.mxu0
  %9491 = vmatprep.mubr.f32.mxu0 0.0
  %9492 = vmatmul.mubr.f32.gmra.mxu0 %v9217
  %v9493 = vpop.f32.mrf.mxu0
  %v9494 = vadd.f32 0.0, %v9493
  %v9495 = vpop.f32.mrf.mxu0
  %9496 = vmatprep.mubr.f32.mxu0 0.0
  %9497 = vmatmul.mubr.f32.gmra.mxu0 %v9220
  %v9498 = vpop.f32.mrf.mxu0
  %v9499 = vadd.f32 0.0, %v9498
  %v9500 = vpop.f32.mrf.mxu0
  %9501 = vmatprep.mubr.f32.mxu0 0.0
  %9502 = vmatmul.mubr.f32.gmra.mxu0 %v9223
  %v9503 = vpop.f32.mrf.mxu0
  %v9504 = vadd.f32 0.0, %v9503
  %v9505 = vpop.f32.mrf.mxu0
  %9506 = vmatprep.mubr.f32.mxu0 0.0
  %9507 = vmatmul.mubr.f32.gmra.mxu0 %v9226
  %v9508 = vpop.f32.mrf.mxu0
  %v9509 = vadd.f32 0.0, %v9508
  %v9510 = vpop.f32.mrf.mxu0
  %9511 = vmatprep.mubr.f32.mxu0 0.0
  %9512 = vmatmul.mubr.f32.gmra.mxu0 %v9229
  %v9513 = vpop.f32.mrf.mxu0
  %v9514 = vadd.f32 0.0, %v9513
  %v9515 = vpop.f32.mrf.mxu0
  %9516 = vmatprep.mubr.f32.mxu0 0.0
  %9517 = vmatmul.mubr.f32.gmra.mxu0 %v9232
  %v9518 = vpop.f32.mrf.mxu0
  %v9519 = vadd.f32 0.0, %v9518
  %v9520 = vpop.f32.mrf.mxu0
  %9521 = vmatprep.mubr.f32.mxu0 0.0
  %9522 = vmatmul.mubr.f32.gmra.mxu0 %v9235
  %v9523 = vpop.f32.mrf.mxu0
  %v9524 = vadd.f32 0.0, %v9523
  %v9525 = vpop.f32.mrf.mxu0
  %9526 = vmatprep.mubr.f32.mxu0 0.0
  %9527 = vmatmul.mubr.f32.gmra.mxu0 %v9238
  %v9528 = vpop.f32.mrf.mxu0
  %v9529 = vadd.f32 0.0, %v9528
  %v9530 = vpop.f32.mrf.mxu0
  %9531 = vmatprep.mubr.f32.mxu0 0.0
  %9532 = vmatmul.mubr.f32.gmra.mxu0 %v9241
  %v9533 = vpop.f32.mrf.mxu0
  %v9534 = vadd.f32 0.0, %v9533
  %v9535 = vpop.f32.mrf.mxu0
  %9536 = vmatprep.mubr.f32.mxu0 0.0
  %9537 = vmatmul.mubr.f32.gmra.mxu0 %v9244
  %v9538 = vpop.f32.mrf.mxu0
  %v9539 = vadd.f32 0.0, %v9538
  %v9540 = vpop.f32.mrf.mxu0
  %9541 = vmatprep.mubr.f32.mxu0 0.0
  %9542 = vmatmul.mubr.f32.gmra.mxu0 %v9247
  %v9543 = vpop.f32.mrf.mxu0
  %v9544 = vadd.f32 0.0, %v9543
  %v9545 = vpop.f32.mrf.mxu0
  %9546 = vmatprep.mubr.f32.mxu0 0.0
  %9547 = vmatmul.mubr.f32.gmra.mxu0 %v9250
  %v9548 = vpop.f32.mrf.mxu0
  %v9549 = vadd.f32 0.0, %v9548
  %v9550 = vpop.f32.mrf.mxu0
  %9551 = vmatprep.mubr.f32.mxu0 0.0
  %9552 = vmatmul.mubr.f32.gmra.mxu0 %v9253
  %v9553 = vpop.f32.mrf.mxu0
  %v9554 = vadd.f32 0.0, %v9553
  %v9555 = vpop.f32.mrf.mxu0
  %9556 = vmatprep.mubr.f32.mxu0 0.0
  %9557 = vmatmul.mubr.f32.gmra.mxu0 %v9256
  %v9558 = vpop.f32.mrf.mxu0
  %v9559 = vadd.f32 0.0, %v9558
  %v9560 = vpop.f32.mrf.mxu0
  %9561 = vmatprep.mubr.f32.mxu0 0.0
  %9562 = vmatmul.mubr.f32.gmra.mxu0 %v9259
  %v9563 = vpop.f32.mrf.mxu0
  %v9564 = vadd.f32 0.0, %v9563
  %v9565 = vpop.f32.mrf.mxu0
  %9566 = vmatprep.mubr.f32.mxu0 0.0
  %9567 = vmatmul.mubr.f32.gmra.mxu0 %v9262
  %v9568 = vpop.f32.mrf.mxu0
  %v9569 = vadd.f32 0.0, %v9568
  %v9570 = vpop.f32.mrf.mxu0
  %9571 = vmatprep.mubr.f32.mxu0 0.0
  %9572 = vmatmul.mubr.f32.gmra.mxu0 %v9265
  %v9573 = vpop.f32.mrf.mxu0
  %v9574 = vadd.f32 0.0, %v9573
  %v9575 = vpop.f32.mrf.mxu0
  %9576 = vmatprep.mubr.f32.mxu0 0.0
  %9577 = vmatmul.mubr.f32.gmra.mxu0 %v9268
  %v9578 = vpop.f32.mrf.mxu0
  %v9579 = vadd.f32 0.0, %v9578
  %v9580 = vpop.f32.mrf.mxu0
  %9581 = vmatprep.mubr.f32.mxu0 0.0
  %9582 = vmatmul.mubr.f32.gmra.mxu0 %v9271
  %v9583 = vpop.f32.mrf.mxu0
  %v9584 = vadd.f32 0.0, %v9583
  %v9585 = vpop.f32.mrf.mxu0
  %9586 = vmatprep.mubr.f32.mxu0 0.0
  %9587 = vmatmul.mubr.f32.gmra.mxu0 %v9274
  %v9588 = vpop.f32.mrf.mxu0
  %v9589 = vadd.f32 0.0, %v9588
  %v9590 = vpop.f32.mrf.mxu0
  %9591 = vmatprep.mubr.f32.mxu0 0.0
  %9592 = vmatmul.mubr.f32.gmra.mxu0 %v9277
  %v9593 = vpop.f32.mrf.mxu0
  %v9594 = vadd.f32 0.0, %v9593
  %v9595 = vpop.f32.mrf.mxu0
  %9596 = vmatprep.mubr.f32.mxu0 0.0
  %9597 = vmatmul.mubr.f32.gmra.mxu0 %v9280
  %v9598 = vpop.f32.mrf.mxu0
  %v9599 = vadd.f32 0.0, %v9598
  %v9600 = vpop.f32.mrf.mxu0
  %9601 = vmatprep.mubr.f32.mxu0 0.0
  %9602 = vmatmul.mubr.f32.gmra.mxu0 %v9283
  %v9603 = vpop.f32.mrf.mxu0
  %v9604 = vadd.f32 0.0, %v9603
  %v9605 = vpop.f32.mrf.mxu0
  %9606 = vmatprep.mubr.f32.mxu0 0.0
  %9607 = vmatmul.mubr.f32.gmra.mxu0 %v9286
  %v9608 = vpop.f32.mrf.mxu0
  %v9609 = vadd.f32 0.0, %v9608
  %v9610 = vpop.f32.mrf.mxu0
  %9611 = vmatprep.mubr.f32.mxu0 0.0
  %9612 = vmatmul.mubr.f32.gmra.mxu0 %v9289
  %v9613 = vpop.f32.mrf.mxu0
  %v9614 = vadd.f32 0.0, %v9613
  %v9615 = vpop.f32.mrf.mxu0
  %9616 = vmatprep.mubr.f32.mxu0 0.0
  %9617 = vmatmul.mubr.f32.gmra.mxu0 %v9292
  %v9618 = vpop.f32.mrf.mxu0
  %v9619 = vadd.f32 0.0, %v9618
  %v9620 = vpop.f32.mrf.mxu0
  %9621 = vmatprep.mubr.f32.mxu0 0.0
  %9622 = vmatmul.mubr.f32.gmra.mxu0 %v9295
  %v9623 = vpop.f32.mrf.mxu0
  %v9624 = vadd.f32 0.0, %v9623
  %v9625 = vpop.f32.mrf.mxu0
  %9626 = vmatprep.mubr.f32.mxu0 0.0
  %9627 = vmatmul.mubr.f32.gmra.mxu0 %v9298
  %v9628 = vpop.f32.mrf.mxu0
  %v9629 = vadd.f32 0.0, %v9628
  %v9630 = vpop.f32.mrf.mxu0
  %9631 = vmatprep.mubr.f32.mxu0 0.0
  %9632 = vmatmul.mubr.f32.gmra.mxu0 %v9301
  %v9633 = vpop.f32.mrf.mxu0
  %v9634 = vadd.f32 0.0, %v9633
  %v9635 = vpop.f32.mrf.mxu0
  %9636 = vmatprep.mubr.f32.mxu0 0.0
  %9637 = vmatmul.mubr.f32.gmra.mxu0 %v9304
  %v9638 = vpop.f32.mrf.mxu0
  %v9639 = vadd.f32 0.0, %v9638
  %v9640 = vpop.f32.mrf.mxu0
  %9641 = vmatprep.mubr.f32.mxu0 0.0
  %9642 = vmatmul.mubr.f32.gmra.mxu0 %v9307
  %v9643 = vpop.f32.mrf.mxu0
  %v9644 = vadd.f32 0.0, %v9643
  %v9645 = vpop.f32.mrf.mxu0
  %9646 = vmatprep.mubr.f32.mxu0 0.0
  %9647 = vmatmul.mubr.f32.gmra.mxu0 %v9310
  %v9648 = vpop.f32.mrf.mxu0
  %v9649 = vadd.f32 0.0, %v9648
  %v9650 = vpop.f32.mrf.mxu0
  %9651 = vmatprep.mubr.f32.mxu0 0.0
  %9652 = vmatmul.mubr.f32.gmra.mxu0 %v9313
  %v9653 = vpop.f32.mrf.mxu0
  %v9654 = vadd.f32 0.0, %v9653
  %v9655 = vpop.f32.mrf.mxu0
  %9656 = vmatprep.mubr.f32.mxu0 0.0
  %9657 = vmatmul.mubr.f32.gmra.mxu0 %v9316
  %v9658 = vpop.f32.mrf.mxu0
  %v9659 = vadd.f32 0.0, %v9658
  %v9660 = vpop.f32.mrf.mxu0
  %9661 = vmatprep.mubr.f32.mxu0 0.0
  %9662 = vmatmul.mubr.f32.gmra.mxu0 %v9319
  %v9663 = vpop.f32.mrf.mxu0
  %v9664 = vadd.f32 0.0, %v9663
  %v9665 = vpop.f32.mrf.mxu0
  %9666 = vmatprep.mubr.f32.mxu0 0.0
  %9667 = vmatmul.mubr.f32.gmra.mxu0 %v9322
  %v9668 = vpop.f32.mrf.mxu0
  %v9669 = vadd.f32 0.0, %v9668
  %v9670 = vpop.f32.mrf.mxu0
  %9671 = vmatprep.mubr.f32.mxu0 0.0
  %9672 = vmatmul.mubr.f32.gmra.mxu0 %v9325
  %v9673 = vpop.f32.mrf.mxu0
  %v9674 = vadd.f32 0.0, %v9673
  %v9675 = vpop.f32.mrf.mxu0
  %9676 = vmatprep.mubr.f32.mxu0 0.0
  %9677 = vmatmul.mubr.f32.gmra.mxu0 %v9328
  %v9678 = vpop.f32.mrf.mxu0
  %v9679 = vadd.f32 0.0, %v9678
  %v9680 = vpop.f32.mrf.mxu0
  %9681 = vmatprep.mubr.f32.mxu0 0.0
  %9682 = vmatmul.mubr.f32.gmra.mxu0 %v9331
  %v9683 = vpop.f32.mrf.mxu0
  %v9684 = vadd.f32 0.0, %v9683
  %v9685 = vpop.f32.mrf.mxu0
  %9686 = vmatprep.mubr.f32.mxu0 0.0
  %9687 = vmatmul.mubr.f32.gmra.mxu0 %v9334
  %v9688 = vpop.f32.mrf.mxu0
  %v9689 = vadd.f32 0.0, %v9688
  %v9690 = vpop.f32.mrf.mxu0
  %9691 = vmatprep.mubr.f32.mxu0 0.0
  %9692 = vmatmul.mubr.f32.gmra.mxu0 %v9337
  %v9693 = vpop.f32.mrf.mxu0
  %v9694 = vadd.f32 0.0, %v9693
  %v9695 = vpop.f32.mrf.mxu0
  %9696 = vmatprep.mubr.f32.mxu0 0.0
  %9697 = vmatmul.mubr.f32.gmra.mxu0 %v9340
  %v9698 = vpop.f32.mrf.mxu0
  %v9699 = vadd.f32 0.0, %v9698
  %v9700 = vpop.f32.mrf.mxu0
  %9701 = vmatprep.mubr.f32.mxu0 0.0
  %9702 = vmatmul.mubr.f32.gmra.mxu0 %v9343
  %v9703 = vpop.f32.mrf.mxu0
  %v9704 = vadd.f32 0.0, %v9703
  %v9705 = vpop.f32.mrf.mxu0
  %9706 = vmatprep.mubr.f32.mxu0 0.0
  %9707 = vmatmul.mubr.f32.gmra.mxu0 %v9346
  %v9708 = vpop.f32.mrf.mxu0
  %v9709 = vadd.f32 0.0, %v9708
  %v9710 = vpop.f32.mrf.mxu0
  %9711 = vmatprep.mubr.f32.mxu0 0.0
  %9712 = vmatmul.mubr.f32.gmra.mxu0 %v9349
  %v9713 = vpop.f32.mrf.mxu0
  %v9714 = vadd.f32 0.0, %v9713
  %v9715 = vpop.f32.mrf.mxu0
  %9716 = vmatprep.mubr.f32.mxu0 0.0
  %9717 = vmatmul.mubr.f32.gmra.mxu0 %v9352
  %v9718 = vpop.f32.mrf.mxu0
  %v9719 = vadd.f32 0.0, %v9718
  %v9720 = vpop.f32.mrf.mxu0
  %9721 = vmatprep.mubr.f32.mxu0 0.0
  %9722 = vmatmul.mubr.f32.gmra.mxu0 %v9355
  %v9723 = vpop.f32.mrf.mxu0
  %v9724 = vadd.f32 0.0, %v9723
  %v9725 = vpop.f32.mrf.mxu0
  %9726 = vmatprep.mubr.f32.mxu0 0.0
  %9727 = vmatmul.mubr.f32.gmra.mxu0 %v9358
  %v9728 = vpop.f32.mrf.mxu0
  %v9729 = vadd.f32 0.0, %v9728
  %v9730 = vpop.f32.mrf.mxu0
  %9731 = vmatprep.mubr.f32.mxu0 0.0
  %9732 = vmatmul.mubr.f32.gmra.mxu0 %v9361
  %v9733 = vpop.f32.mrf.mxu0
  %v9734 = vadd.f32 0.0, %v9733
  %v9735 = vpop.f32.mrf.mxu0
  %9736 = vmatprep.mubr.f32.mxu0 0.0
  %9737 = vmatmul.mubr.f32.gmra.mxu0 %v9364
  %v9738 = vpop.f32.mrf.mxu0
  %v9739 = vadd.f32 0.0, %v9738
  %v9740 = vpop.f32.mrf.mxu0
  %9741 = vmatprep.mubr.f32.mxu0 0.0
  %9742 = vmatmul.mubr.f32.gmra.mxu0 %v9367
  %v9743 = vpop.f32.mrf.mxu0
  %v9744 = vadd.f32 0.0, %v9743
  %v9745 = vpop.f32.mrf.mxu0
  %9746 = vmatprep.mubr.f32.mxu0 0.0
  %9747 = vmatmul.mubr.f32.gmra.mxu0 %v9370
  %v9748 = vpop.f32.mrf.mxu0
  %v9749 = vadd.f32 0.0, %v9748
  %v9750 = vpop.f32.mrf.mxu0
  %9751 = vmatprep.mubr.f32.mxu0 0.0
  %9752 = vmatmul.mubr.f32.gmra.mxu0 %v9373
  %v9753 = vpop.f32.mrf.mxu0
  %v9754 = vadd.f32 0.0, %v9753
  %v9755 = vpop.f32.mrf.mxu0
  %9756 = vmatprep.mubr.f32.mxu0 0.0
  %9757 = vmatmul.mubr.f32.gmra.mxu0 %v9376
  %v9758 = vpop.f32.mrf.mxu0
  %v9759 = vadd.f32 0.0, %v9758
  %v9760 = vpop.f32.mrf.mxu0
  %9761 = vmatprep.mubr.f32.mxu0 0.0
  %9762 = vmatmul.mubr.f32.gmra.mxu0 %v9379
  %v9763 = vpop.f32.mrf.mxu0
  %v9764 = vadd.f32 0.0, %v9763
  %v9765 = vpop.f32.mrf.mxu0
  %9766 = vmatprep.mubr.f32.mxu0 0.0
  %9767 = vmatmul.mubr.f32.gmra.mxu0 %v9382
  %v9768 = vpop.f32.mrf.mxu0
  %v9769 = vadd.f32 0.0, %v9768
  %v9770 = vpop.f32.mrf.mxu0
  %9771 = vdwg.mxu0
  %v9772 = vadd.f32 %v9062, %v9454
  %v9773 = vadd.f32 %v9063, %v9459
  %v9774 = vadd.f32 %v9064, %v9464
  %v9775 = vadd.f32 %v9065, %v9469
  %v9776 = vadd.f32 %v9066, %v9474
  %v9777 = vadd.f32 %v9067, %v9479
  %v9778 = vadd.f32 %v9068, %v9484
  %v9779 = vadd.f32 %v9069, %v9489
  %v9780 = vadd.f32 %v9070, %v9494
  %v9781 = vadd.f32 %v9071, %v9499
  %v9782 = vadd.f32 %v9072, %v9504
  %v9783 = vadd.f32 %v9073, %v9509
  %v9784 = vadd.f32 %v9074, %v9514
  %v9785 = vadd.f32 %v9075, %v9519
  %v9786 = vadd.f32 %v9076, %v9524
  %v9787 = vadd.f32 %v9077, %v9529
  %v9788 = vadd.f32 %v9078, %v9534
  %v9789 = vadd.f32 %v9079, %v9539
  %v9790 = vadd.f32 %v9080, %v9544
  %v9791 = vadd.f32 %v9081, %v9549
  %v9792 = vadd.f32 %v9082, %v9554
  %v9793 = vadd.f32 %v9083, %v9559
  %v9794 = vadd.f32 %v9084, %v9564
  %v9795 = vadd.f32 %v9085, %v9569
  %v9796 = vadd.f32 %v9086, %v9574
  %v9797 = vadd.f32 %v9087, %v9579
  %v9798 = vadd.f32 %v9088, %v9584
  %v9799 = vadd.f32 %v9089, %v9589
  %v9800 = vadd.f32 %v9090, %v9594
  %v9801 = vadd.f32 %v9091, %v9599
  %v9802 = vadd.f32 %v9092, %v9604
  %v9803 = vadd.f32 %v9093, %v9609
  %v9804 = vadd.f32 %v9094, %v9614
  %v9805 = vadd.f32 %v9095, %v9619
  %v9806 = vadd.f32 %v9096, %v9624
  %v9807 = vadd.f32 %v9097, %v9629
  %v9808 = vadd.f32 %v9098, %v9634
  %v9809 = vadd.f32 %v9099, %v9639
  %v9810 = vadd.f32 %v9100, %v9644
  %v9811 = vadd.f32 %v9101, %v9649
  %v9812 = vadd.f32 %v9102, %v9654
  %v9813 = vadd.f32 %v9103, %v9659
  %v9814 = vadd.f32 %v9104, %v9664
  %v9815 = vadd.f32 %v9105, %v9669
  %v9816 = vadd.f32 %v9106, %v9674
  %v9817 = vadd.f32 %v9107, %v9679
  %v9818 = vadd.f32 %v9108, %v9684
  %v9819 = vadd.f32 %v9109, %v9689
  %v9820 = vadd.f32 %v9110, %v9694
  %v9821 = vadd.f32 %v9111, %v9699
  %v9822 = vadd.f32 %v9112, %v9704
  %v9823 = vadd.f32 %v9113, %v9709
  %v9824 = vadd.f32 %v9114, %v9714
  %v9825 = vadd.f32 %v9115, %v9719
  %v9826 = vadd.f32 %v9116, %v9724
  %v9827 = vadd.f32 %v9117, %v9729
  %v9828 = vadd.f32 %v9118, %v9734
  %v9829 = vadd.f32 %v9119, %v9739
  %v9830 = vadd.f32 %v9120, %v9744
  %v9831 = vadd.f32 %v9121, %v9749
  %v9832 = vadd.f32 %v9122, %v9754
  %v9833 = vadd.f32 %v9123, %v9759
  %v9834 = vadd.f32 %v9124, %v9764
  %v9835 = vadd.f32 %v9125, %v9769
  %v9836 = vld [vmem:[%s189 + $0x1] sm:$0xff]
  %v9837 = vld [vmem:[%s189 + $0x9] sm:$0xff]
  %v9838 = vld [vmem:[%s189 + $0x19] sm:$0xff]
  %v9839 = vld [vmem:[%s189 + $0x21] sm:$0xff]
  %v9840 = vld [vmem:[%s189 + $0x31] sm:$0xff]
  %v9841 = vld [vmem:[%s189 + $0x39] sm:$0xff]
  %v9842 = vld [vmem:[%s189 + $0x49] sm:$0xff]
  %v9843 = vld [vmem:[%s189 + $0x51] sm:$0xff]
  %v9844 = vld [vmem:[%s189 + $0x61] sm:$0xff]
  %v9845 = vld [vmem:[%s189 + $0x69] sm:$0xff]
  %v9846 = vld [vmem:[%s189 + $0x79] sm:$0xff]
  %v9847 = vld [vmem:[%s189 + $0x81] sm:$0xff]
  %v9848 = vld [vmem:[%s189 + $0x91] sm:$0xff]
  %v9849 = vld [vmem:[%s189 + $0x99] sm:$0xff]
  %v9850 = vld [vmem:[%s189 + $0xa9] sm:$0xff]
  %v9851 = vld [vmem:[%s189 + $0xb1] sm:$0xff]
  %v9852 = vld [vmem:[%s189 + $0xc1] sm:$0xff]
  %v9853 = vld [vmem:[%s189 + $0xc9] sm:$0xff]
  %v9854 = vld [vmem:[%s189 + $0xd9] sm:$0xff]
  %v9855 = vld [vmem:[%s189 + $0xe1] sm:$0xff]
  %v9856 = vld [vmem:[%s189 + $0xf1] sm:$0xff]
  %v9857 = vld [vmem:[%s189 + $0xf9] sm:$0xff]
  %v9858 = vld [vmem:[%s189 + $0x109] sm:$0xff]
  %v9859 = vld [vmem:[%s189 + $0x111] sm:$0xff]
  %v9860 = vld [vmem:[%s189 + $0x121] sm:$0xff]
  %v9861 = vld [vmem:[%s189 + $0x129] sm:$0xff]
  %v9862 = vld [vmem:[%s189 + $0x139] sm:$0xff]
  %v9863 = vld [vmem:[%s189 + $0x141] sm:$0xff]
  %v9864 = vld [vmem:[%s189 + $0x151] sm:$0xff]
  %v9865 = vld [vmem:[%s189 + $0x159] sm:$0xff]
  %v9866 = vld [vmem:[%s189 + $0x169] sm:$0xff]
  %v9867 = vld [vmem:[%s189 + $0x171] sm:$0xff]
  %v9868 = vld [vmem:[%s189 + $0x1b1] sm:$0xff]
  %v9869 = vld [vmem:[%s189 + $0x1b9] sm:$0xff]
  %v9870 = vld [vmem:[%s189 + $0x1c9] sm:$0xff]
  %v9871 = vld [vmem:[%s189 + $0x1d1] sm:$0xff]
  %v9872 = vld [vmem:[%s189 + $0x1e1] sm:$0xff]
  %v9873 = vld [vmem:[%s189 + $0x1e9] sm:$0xff]
  %v9874 = vld [vmem:[%s189 + $0x1f9] sm:$0xff]
  %v9875 = vld [vmem:[%s189 + $0x201] sm:$0xff]
  %v9876 = vld [vmem:[%s189 + $0x211] sm:$0xff]
  %v9877 = vld [vmem:[%s189 + $0x219] sm:$0xff]
  %v9878 = vld [vmem:[%s189 + $0x229] sm:$0xff]
  %v9879 = vld [vmem:[%s189 + $0x231] sm:$0xff]
  %v9880 = vld [vmem:[%s189 + $0x241] sm:$0xff]
  %v9881 = vld [vmem:[%s189 + $0x249] sm:$0xff]
  %v9882 = vld [vmem:[%s189 + $0x259] sm:$0xff]
  %v9883 = vld [vmem:[%s189 + $0x261] sm:$0xff]
  %v9884 = vld [vmem:[%s189 + $0x271] sm:$0xff]
  %v9885 = vld [vmem:[%s189 + $0x279] sm:$0xff]
  %v9886 = vld [vmem:[%s189 + $0x289] sm:$0xff]
  %v9887 = vld [vmem:[%s189 + $0x291] sm:$0xff]
  %v9888 = vld [vmem:[%s189 + $0x2a1] sm:$0xff]
  %v9889 = vld [vmem:[%s189 + $0x2a9] sm:$0xff]
  %v9890 = vld [vmem:[%s189 + $0x2b9] sm:$0xff]
  %v9891 = vld [vmem:[%s189 + $0x2c1] sm:$0xff]
  %v9892 = vld [vmem:[%s189 + $0x2d1] sm:$0xff]
  %v9893 = vld [vmem:[%s189 + $0x2d9] sm:$0xff]
  %v9894 = vld [vmem:[%s189 + $0x2e9] sm:$0xff]
  %v9895 = vld [vmem:[%s189 + $0x2f1] sm:$0xff]
  %v9896 = vld [vmem:[%s189 + $0x301] sm:$0xff]
  %v9897 = vld [vmem:[%s189 + $0x309] sm:$0xff]
  %v9898 = vld [vmem:[%s189 + $0x319] sm:$0xff]
  %v9899 = vld [vmem:[%s189 + $0x321] sm:$0xff]
  %s9900 = scalar_lea.vmem %s1, 52
  %v9901 = vld [vmem:[%s9900] sm:$0xf]
  %v9903 = vsel %vm14, %v9836, 0
  %v9906 = vsel %vm14, %v9837, 0
  %v9909 = vsel %vm14, %v9838, 0
  %v9912 = vsel %vm14, %v9839, 0
  %v9915 = vsel %vm14, %v9840, 0
  %v9918 = vsel %vm14, %v9841, 0
  %v9921 = vsel %vm14, %v9842, 0
  %v9924 = vsel %vm14, %v9843, 0
  %v9927 = vsel %vm14, %v9844, 0
  %v9930 = vsel %vm14, %v9845, 0
  %v9933 = vsel %vm14, %v9846, 0
  %v9936 = vsel %vm14, %v9847, 0
  %v9939 = vsel %vm14, %v9848, 0
  %v9942 = vsel %vm14, %v9849, 0
  %v9945 = vsel %vm14, %v9850, 0
  %v9948 = vsel %vm14, %v9851, 0
  %v9951 = vsel %vm14, %v9852, 0
  %v9954 = vsel %vm14, %v9853, 0
  %v9957 = vsel %vm14, %v9854, 0
  %v9960 = vsel %vm14, %v9855, 0
  %v9963 = vsel %vm14, %v9856, 0
  %v9966 = vsel %vm14, %v9857, 0
  %v9969 = vsel %vm14, %v9858, 0
  %v9972 = vsel %vm14, %v9859, 0
  %v9975 = vsel %vm14, %v9860, 0
  %v9978 = vsel %vm14, %v9861, 0
  %v9981 = vsel %vm14, %v9862, 0
  %v9984 = vsel %vm14, %v9863, 0
  %v9987 = vsel %vm14, %v9864, 0
  %v9990 = vsel %vm14, %v9865, 0
  %v9993 = vsel %vm14, %v9866, 0
  %v9996 = vsel %vm14, %v9867, 0
  %v9999 = vsel %vm14, %v9868, 0
  %v10002 = vsel %vm14, %v9869, 0
  %v10005 = vsel %vm14, %v9870, 0
  %v10008 = vsel %vm14, %v9871, 0
  %v10011 = vsel %vm14, %v9872, 0
  %v10014 = vsel %vm14, %v9873, 0
  %v10017 = vsel %vm14, %v9874, 0
  %v10020 = vsel %vm14, %v9875, 0
  %v10023 = vsel %vm14, %v9876, 0
  %v10026 = vsel %vm14, %v9877, 0
  %v10029 = vsel %vm14, %v9878, 0
  %v10032 = vsel %vm14, %v9879, 0
  %v10035 = vsel %vm14, %v9880, 0
  %v10038 = vsel %vm14, %v9881, 0
  %v10041 = vsel %vm14, %v9882, 0
  %v10044 = vsel %vm14, %v9883, 0
  %v10047 = vsel %vm14, %v9884, 0
  %v10050 = vsel %vm14, %v9885, 0
  %v10053 = vsel %vm14, %v9886, 0
  %v10056 = vsel %vm14, %v9887, 0
  %v10059 = vsel %vm14, %v9888, 0
  %v10062 = vsel %vm14, %v9889, 0
  %v10065 = vsel %vm14, %v9890, 0
  %v10068 = vsel %vm14, %v9891, 0
  %v10071 = vsel %vm14, %v9892, 0
  %v10074 = vsel %vm14, %v9893, 0
  %v10077 = vsel %vm14, %v9894, 0
  %v10080 = vsel %vm14, %v9895, 0
  %v10083 = vsel %vm14, %v9896, 0
  %v10086 = vsel %vm14, %v9897, 0
  %v10089 = vsel %vm14, %v9898, 0
  %v10092 = vsel %vm14, %v9899, 0
  %v10095 = vsel %vm577, %v9901, 0
  %10097 = vmatprep.subr.mxu0 0.0
  %10098 = vmatpush1.msra.mxu0 0.0
  %10099 = vmatprep.subr.mxu0 0.0
  %10100 = vmatpush1.msra.mxu0 0.0
  %10101 = vmatprep.subr.mxu0 0.0
  %10102 = vmatpush1.msra.mxu0 0.0
  %10103 = vmatprep.subr.mxu0 0.0
  %10104 = vmatpush1.msra.mxu0 0.0
  %10105 = vmatprep.subr.mxu0 0.0
  %10106 = vmatpush1.msra.mxu0 0.0
  %10107 = vmatprep.subr.mxu0 0.0
  %10108 = vmatpush1.msra.mxu0 0.0
  %10109 = vmatprep.subr.mxu0 0.0
  %10110 = vmatpush1.msra.mxu0 0.0
  %10111 = vmatprep.subr.mxu0 0.0
  %10112 = vmatpush1.msra.mxu0 0.0
  %10113 = vmatprep.subr.mxu0 0.0
  %10114 = vmatpush1.msra.mxu0 0.0
  %10115 = vmatprep.subr.mxu0 0.0
  %10116 = vmatpush1.msra.mxu0 0.0
  %10117 = vmatprep.subr.mxu0 0.0
  %10118 = vmatpush1.msra.mxu0 0.0
  %10119 = vmatprep.subr.mxu0 0.0
  %10120 = vmatpush1.msra.mxu0 0.0
  %10121 = vmatprep.subr.mxu0 0.0
  %10122 = vmatpush1.msra.mxu0 0.0
  %10123 = vmatprep.subr.mxu0 0.0
  %10124 = vmatpush1.msra.mxu0 0.0
  %10125 = vmatprep.subr.mxu0 0.0
  %10126 = vmatpush1.msra.mxu0 0.0
  %10127 = vmatprep.subr.mxu0 0.0
  %10128 = vmatpush1.msra.mxu0 %v10095
  %10129 = vmatprep.subr.mxu0 0.0
  %10130 = vmatpush2.msra.mxu0 0.0
  %10131 = vmatprep.subr.mxu0 0.0
  %10132 = vmatpush2.msra.mxu0 0.0
  %10133 = vmatprep.subr.mxu0 0.0
  %10134 = vmatpush2.msra.mxu0 0.0
  %10135 = vmatprep.subr.mxu0 0.0
  %10136 = vmatpush2.msra.mxu0 0.0
  %10137 = vmatprep.subr.mxu0 0.0
  %10138 = vmatpush2.msra.mxu0 0.0
  %10139 = vmatprep.subr.mxu0 0.0
  %10140 = vmatpush2.msra.mxu0 0.0
  %10141 = vmatprep.subr.mxu0 0.0
  %10142 = vmatpush2.msra.mxu0 0.0
  %10143 = vmatprep.subr.mxu0 0.0
  %10144 = vmatpush2.msra.mxu0 0.0
  %10145 = vmatprep.subr.mxu0 0.0
  %10146 = vmatpush2.msra.mxu0 0.0
  %10147 = vmatprep.subr.mxu0 0.0
  %10148 = vmatpush2.msra.mxu0 0.0
  %10149 = vmatprep.subr.mxu0 0.0
  %10150 = vmatpush2.msra.mxu0 0.0
  %10151 = vmatprep.subr.mxu0 0.0
  %10152 = vmatpush2.msra.mxu0 0.0
  %10153 = vmatprep.subr.mxu0 0.0
  %10154 = vmatpush2.msra.mxu0 0.0
  %10155 = vmatprep.subr.mxu0 0.0
  %10156 = vmatpush2.msra.mxu0 0.0
  %10157 = vmatprep.subr.mxu0 0.0
  %10158 = vmatpush2.msra.mxu0 0.0
  %10159 = vmatprep.subr.mxu0 0.0
  %10160 = vmatpush2.msra.mxu0 0.0
  %10161 = vmatprep.mubr.f32.mxu0 0.0
  %10162 = vmatmul.mubr.f32.gmra.mxu0 %v9903
  %v10163 = vpop.f32.mrf.mxu0
  %v10164 = vadd.f32 0.0, %v10163
  %v10165 = vpop.f32.mrf.mxu0
  %10166 = vmatprep.mubr.f32.mxu0 0.0
  %10167 = vmatmul.mubr.f32.gmra.mxu0 %v9906
  %v10168 = vpop.f32.mrf.mxu0
  %v10169 = vadd.f32 0.0, %v10168
  %v10170 = vpop.f32.mrf.mxu0
  %10171 = vmatprep.mubr.f32.mxu0 0.0
  %10172 = vmatmul.mubr.f32.gmra.mxu0 %v9909
  %v10173 = vpop.f32.mrf.mxu0
  %v10174 = vadd.f32 0.0, %v10173
  %v10175 = vpop.f32.mrf.mxu0
  %10176 = vmatprep.mubr.f32.mxu0 0.0
  %10177 = vmatmul.mubr.f32.gmra.mxu0 %v9912
  %v10178 = vpop.f32.mrf.mxu0
  %v10179 = vadd.f32 0.0, %v10178
  %v10180 = vpop.f32.mrf.mxu0
  %10181 = vmatprep.mubr.f32.mxu0 0.0
  %10182 = vmatmul.mubr.f32.gmra.mxu0 %v9915
  %v10183 = vpop.f32.mrf.mxu0
  %v10184 = vadd.f32 0.0, %v10183
  %v10185 = vpop.f32.mrf.mxu0
  %10186 = vmatprep.mubr.f32.mxu0 0.0
  %10187 = vmatmul.mubr.f32.gmra.mxu0 %v9918
  %v10188 = vpop.f32.mrf.mxu0
  %v10189 = vadd.f32 0.0, %v10188
  %v10190 = vpop.f32.mrf.mxu0
  %10191 = vmatprep.mubr.f32.mxu0 0.0
  %10192 = vmatmul.mubr.f32.gmra.mxu0 %v9921
  %v10193 = vpop.f32.mrf.mxu0
  %v10194 = vadd.f32 0.0, %v10193
  %v10195 = vpop.f32.mrf.mxu0
  %10196 = vmatprep.mubr.f32.mxu0 0.0
  %10197 = vmatmul.mubr.f32.gmra.mxu0 %v9924
  %v10198 = vpop.f32.mrf.mxu0
  %v10199 = vadd.f32 0.0, %v10198
  %v10200 = vpop.f32.mrf.mxu0
  %10201 = vmatprep.mubr.f32.mxu0 0.0
  %10202 = vmatmul.mubr.f32.gmra.mxu0 %v9927
  %v10203 = vpop.f32.mrf.mxu0
  %v10204 = vadd.f32 0.0, %v10203
  %v10205 = vpop.f32.mrf.mxu0
  %10206 = vmatprep.mubr.f32.mxu0 0.0
  %10207 = vmatmul.mubr.f32.gmra.mxu0 %v9930
  %v10208 = vpop.f32.mrf.mxu0
  %v10209 = vadd.f32 0.0, %v10208
  %v10210 = vpop.f32.mrf.mxu0
  %10211 = vmatprep.mubr.f32.mxu0 0.0
  %10212 = vmatmul.mubr.f32.gmra.mxu0 %v9933
  %v10213 = vpop.f32.mrf.mxu0
  %v10214 = vadd.f32 0.0, %v10213
  %v10215 = vpop.f32.mrf.mxu0
  %10216 = vmatprep.mubr.f32.mxu0 0.0
  %10217 = vmatmul.mubr.f32.gmra.mxu0 %v9936
  %v10218 = vpop.f32.mrf.mxu0
  %v10219 = vadd.f32 0.0, %v10218
  %v10220 = vpop.f32.mrf.mxu0
  %10221 = vmatprep.mubr.f32.mxu0 0.0
  %10222 = vmatmul.mubr.f32.gmra.mxu0 %v9939
  %v10223 = vpop.f32.mrf.mxu0
  %v10224 = vadd.f32 0.0, %v10223
  %v10225 = vpop.f32.mrf.mxu0
  %10226 = vmatprep.mubr.f32.mxu0 0.0
  %10227 = vmatmul.mubr.f32.gmra.mxu0 %v9942
  %v10228 = vpop.f32.mrf.mxu0
  %v10229 = vadd.f32 0.0, %v10228
  %v10230 = vpop.f32.mrf.mxu0
  %10231 = vmatprep.mubr.f32.mxu0 0.0
  %10232 = vmatmul.mubr.f32.gmra.mxu0 %v9945
  %v10233 = vpop.f32.mrf.mxu0
  %v10234 = vadd.f32 0.0, %v10233
  %v10235 = vpop.f32.mrf.mxu0
  %10236 = vmatprep.mubr.f32.mxu0 0.0
  %10237 = vmatmul.mubr.f32.gmra.mxu0 %v9948
  %v10238 = vpop.f32.mrf.mxu0
  %v10239 = vadd.f32 0.0, %v10238
  %v10240 = vpop.f32.mrf.mxu0
  %10241 = vmatprep.mubr.f32.mxu0 0.0
  %10242 = vmatmul.mubr.f32.gmra.mxu0 %v9951
  %v10243 = vpop.f32.mrf.mxu0
  %v10244 = vadd.f32 0.0, %v10243
  %v10245 = vpop.f32.mrf.mxu0
  %10246 = vmatprep.mubr.f32.mxu0 0.0
  %10247 = vmatmul.mubr.f32.gmra.mxu0 %v9954
  %v10248 = vpop.f32.mrf.mxu0
  %v10249 = vadd.f32 0.0, %v10248
  %v10250 = vpop.f32.mrf.mxu0
  %10251 = vmatprep.mubr.f32.mxu0 0.0
  %10252 = vmatmul.mubr.f32.gmra.mxu0 %v9957
  %v10253 = vpop.f32.mrf.mxu0
  %v10254 = vadd.f32 0.0, %v10253
  %v10255 = vpop.f32.mrf.mxu0
  %10256 = vmatprep.mubr.f32.mxu0 0.0
  %10257 = vmatmul.mubr.f32.gmra.mxu0 %v9960
  %v10258 = vpop.f32.mrf.mxu0
  %v10259 = vadd.f32 0.0, %v10258
  %v10260 = vpop.f32.mrf.mxu0
  %10261 = vmatprep.mubr.f32.mxu0 0.0
  %10262 = vmatmul.mubr.f32.gmra.mxu0 %v9963
  %v10263 = vpop.f32.mrf.mxu0
  %v10264 = vadd.f32 0.0, %v10263
  %v10265 = vpop.f32.mrf.mxu0
  %10266 = vmatprep.mubr.f32.mxu0 0.0
  %10267 = vmatmul.mubr.f32.gmra.mxu0 %v9966
  %v10268 = vpop.f32.mrf.mxu0
  %v10269 = vadd.f32 0.0, %v10268
  %v10270 = vpop.f32.mrf.mxu0
  %10271 = vmatprep.mubr.f32.mxu0 0.0
  %10272 = vmatmul.mubr.f32.gmra.mxu0 %v9969
  %v10273 = vpop.f32.mrf.mxu0
  %v10274 = vadd.f32 0.0, %v10273
  %v10275 = vpop.f32.mrf.mxu0
  %10276 = vmatprep.mubr.f32.mxu0 0.0
  %10277 = vmatmul.mubr.f32.gmra.mxu0 %v9972
  %v10278 = vpop.f32.mrf.mxu0
  %v10279 = vadd.f32 0.0, %v10278
  %v10280 = vpop.f32.mrf.mxu0
  %10281 = vmatprep.mubr.f32.mxu0 0.0
  %10282 = vmatmul.mubr.f32.gmra.mxu0 %v9975
  %v10283 = vpop.f32.mrf.mxu0
  %v10284 = vadd.f32 0.0, %v10283
  %v10285 = vpop.f32.mrf.mxu0
  %10286 = vmatprep.mubr.f32.mxu0 0.0
  %10287 = vmatmul.mubr.f32.gmra.mxu0 %v9978
  %v10288 = vpop.f32.mrf.mxu0
  %v10289 = vadd.f32 0.0, %v10288
  %v10290 = vpop.f32.mrf.mxu0
  %10291 = vmatprep.mubr.f32.mxu0 0.0
  %10292 = vmatmul.mubr.f32.gmra.mxu0 %v9981
  %v10293 = vpop.f32.mrf.mxu0
  %v10294 = vadd.f32 0.0, %v10293
  %v10295 = vpop.f32.mrf.mxu0
  %10296 = vmatprep.mubr.f32.mxu0 0.0
  %10297 = vmatmul.mubr.f32.gmra.mxu0 %v9984
  %v10298 = vpop.f32.mrf.mxu0
  %v10299 = vadd.f32 0.0, %v10298
  %v10300 = vpop.f32.mrf.mxu0
  %10301 = vmatprep.mubr.f32.mxu0 0.0
  %10302 = vmatmul.mubr.f32.gmra.mxu0 %v9987
  %v10303 = vpop.f32.mrf.mxu0
  %v10304 = vadd.f32 0.0, %v10303
  %v10305 = vpop.f32.mrf.mxu0
  %10306 = vmatprep.mubr.f32.mxu0 0.0
  %10307 = vmatmul.mubr.f32.gmra.mxu0 %v9990
  %v10308 = vpop.f32.mrf.mxu0
  %v10309 = vadd.f32 0.0, %v10308
  %v10310 = vpop.f32.mrf.mxu0
  %10311 = vmatprep.mubr.f32.mxu0 0.0
  %10312 = vmatmul.mubr.f32.gmra.mxu0 %v9993
  %v10313 = vpop.f32.mrf.mxu0
  %v10314 = vadd.f32 0.0, %v10313
  %v10315 = vpop.f32.mrf.mxu0
  %10316 = vmatprep.mubr.f32.mxu0 0.0
  %10317 = vmatmul.mubr.f32.gmra.mxu0 %v9996
  %v10318 = vpop.f32.mrf.mxu0
  %v10319 = vadd.f32 0.0, %v10318
  %v10320 = vpop.f32.mrf.mxu0
  %10321 = vmatprep.mubr.f32.mxu0 0.0
  %10322 = vmatmul.mubr.f32.gmra.mxu0 %v9999
  %v10323 = vpop.f32.mrf.mxu0
  %v10324 = vadd.f32 0.0, %v10323
  %v10325 = vpop.f32.mrf.mxu0
  %10326 = vmatprep.mubr.f32.mxu0 0.0
  %10327 = vmatmul.mubr.f32.gmra.mxu0 %v10002
  %v10328 = vpop.f32.mrf.mxu0
  %v10329 = vadd.f32 0.0, %v10328
  %v10330 = vpop.f32.mrf.mxu0
  %10331 = vmatprep.mubr.f32.mxu0 0.0
  %10332 = vmatmul.mubr.f32.gmra.mxu0 %v10005
  %v10333 = vpop.f32.mrf.mxu0
  %v10334 = vadd.f32 0.0, %v10333
  %v10335 = vpop.f32.mrf.mxu0
  %10336 = vmatprep.mubr.f32.mxu0 0.0
  %10337 = vmatmul.mubr.f32.gmra.mxu0 %v10008
  %v10338 = vpop.f32.mrf.mxu0
  %v10339 = vadd.f32 0.0, %v10338
  %v10340 = vpop.f32.mrf.mxu0
  %10341 = vmatprep.mubr.f32.mxu0 0.0
  %10342 = vmatmul.mubr.f32.gmra.mxu0 %v10011
  %v10343 = vpop.f32.mrf.mxu0
  %v10344 = vadd.f32 0.0, %v10343
  %v10345 = vpop.f32.mrf.mxu0
  %10346 = vmatprep.mubr.f32.mxu0 0.0
  %10347 = vmatmul.mubr.f32.gmra.mxu0 %v10014
  %v10348 = vpop.f32.mrf.mxu0
  %v10349 = vadd.f32 0.0, %v10348
  %v10350 = vpop.f32.mrf.mxu0
  %10351 = vmatprep.mubr.f32.mxu0 0.0
  %10352 = vmatmul.mubr.f32.gmra.mxu0 %v10017
  %v10353 = vpop.f32.mrf.mxu0
  %v10354 = vadd.f32 0.0, %v10353
  %v10355 = vpop.f32.mrf.mxu0
  %10356 = vmatprep.mubr.f32.mxu0 0.0
  %10357 = vmatmul.mubr.f32.gmra.mxu0 %v10020
  %v10358 = vpop.f32.mrf.mxu0
  %v10359 = vadd.f32 0.0, %v10358
  %v10360 = vpop.f32.mrf.mxu0
  %10361 = vmatprep.mubr.f32.mxu0 0.0
  %10362 = vmatmul.mubr.f32.gmra.mxu0 %v10023
  %v10363 = vpop.f32.mrf.mxu0
  %v10364 = vadd.f32 0.0, %v10363
  %v10365 = vpop.f32.mrf.mxu0
  %10366 = vmatprep.mubr.f32.mxu0 0.0
  %10367 = vmatmul.mubr.f32.gmra.mxu0 %v10026
  %v10368 = vpop.f32.mrf.mxu0
  %v10369 = vadd.f32 0.0, %v10368
  %v10370 = vpop.f32.mrf.mxu0
  %10371 = vmatprep.mubr.f32.mxu0 0.0
  %10372 = vmatmul.mubr.f32.gmra.mxu0 %v10029
  %v10373 = vpop.f32.mrf.mxu0
  %v10374 = vadd.f32 0.0, %v10373
  %v10375 = vpop.f32.mrf.mxu0
  %10376 = vmatprep.mubr.f32.mxu0 0.0
  %10377 = vmatmul.mubr.f32.gmra.mxu0 %v10032
  %v10378 = vpop.f32.mrf.mxu0
  %v10379 = vadd.f32 0.0, %v10378
  %v10380 = vpop.f32.mrf.mxu0
  %10381 = vmatprep.mubr.f32.mxu0 0.0
  %10382 = vmatmul.mubr.f32.gmra.mxu0 %v10035
  %v10383 = vpop.f32.mrf.mxu0
  %v10384 = vadd.f32 0.0, %v10383
  %v10385 = vpop.f32.mrf.mxu0
  %10386 = vmatprep.mubr.f32.mxu0 0.0
  %10387 = vmatmul.mubr.f32.gmra.mxu0 %v10038
  %v10388 = vpop.f32.mrf.mxu0
  %v10389 = vadd.f32 0.0, %v10388
  %v10390 = vpop.f32.mrf.mxu0
  %10391 = vmatprep.mubr.f32.mxu0 0.0
  %10392 = vmatmul.mubr.f32.gmra.mxu0 %v10041
  %v10393 = vpop.f32.mrf.mxu0
  %v10394 = vadd.f32 0.0, %v10393
  %v10395 = vpop.f32.mrf.mxu0
  %10396 = vmatprep.mubr.f32.mxu0 0.0
  %10397 = vmatmul.mubr.f32.gmra.mxu0 %v10044
  %v10398 = vpop.f32.mrf.mxu0
  %v10399 = vadd.f32 0.0, %v10398
  %v10400 = vpop.f32.mrf.mxu0
  %10401 = vmatprep.mubr.f32.mxu0 0.0
  %10402 = vmatmul.mubr.f32.gmra.mxu0 %v10047
  %v10403 = vpop.f32.mrf.mxu0
  %v10404 = vadd.f32 0.0, %v10403
  %v10405 = vpop.f32.mrf.mxu0
  %10406 = vmatprep.mubr.f32.mxu0 0.0
  %10407 = vmatmul.mubr.f32.gmra.mxu0 %v10050
  %v10408 = vpop.f32.mrf.mxu0
  %v10409 = vadd.f32 0.0, %v10408
  %v10410 = vpop.f32.mrf.mxu0
  %10411 = vmatprep.mubr.f32.mxu0 0.0
  %10412 = vmatmul.mubr.f32.gmra.mxu0 %v10053
  %v10413 = vpop.f32.mrf.mxu0
  %v10414 = vadd.f32 0.0, %v10413
  %v10415 = vpop.f32.mrf.mxu0
  %10416 = vmatprep.mubr.f32.mxu0 0.0
  %10417 = vmatmul.mubr.f32.gmra.mxu0 %v10056
  %v10418 = vpop.f32.mrf.mxu0
  %v10419 = vadd.f32 0.0, %v10418
  %v10420 = vpop.f32.mrf.mxu0
  %10421 = vmatprep.mubr.f32.mxu0 0.0
  %10422 = vmatmul.mubr.f32.gmra.mxu0 %v10059
  %v10423 = vpop.f32.mrf.mxu0
  %v10424 = vadd.f32 0.0, %v10423
  %v10425 = vpop.f32.mrf.mxu0
  %10426 = vmatprep.mubr.f32.mxu0 0.0
  %10427 = vmatmul.mubr.f32.gmra.mxu0 %v10062
  %v10428 = vpop.f32.mrf.mxu0
  %v10429 = vadd.f32 0.0, %v10428
  %v10430 = vpop.f32.mrf.mxu0
  %10431 = vmatprep.mubr.f32.mxu0 0.0
  %10432 = vmatmul.mubr.f32.gmra.mxu0 %v10065
  %v10433 = vpop.f32.mrf.mxu0
  %v10434 = vadd.f32 0.0, %v10433
  %v10435 = vpop.f32.mrf.mxu0
  %10436 = vmatprep.mubr.f32.mxu0 0.0
  %10437 = vmatmul.mubr.f32.gmra.mxu0 %v10068
  %v10438 = vpop.f32.mrf.mxu0
  %v10439 = vadd.f32 0.0, %v10438
  %v10440 = vpop.f32.mrf.mxu0
  %10441 = vmatprep.mubr.f32.mxu0 0.0
  %10442 = vmatmul.mubr.f32.gmra.mxu0 %v10071
  %v10443 = vpop.f32.mrf.mxu0
  %v10444 = vadd.f32 0.0, %v10443
  %v10445 = vpop.f32.mrf.mxu0
  %10446 = vmatprep.mubr.f32.mxu0 0.0
  %10447 = vmatmul.mubr.f32.gmra.mxu0 %v10074
  %v10448 = vpop.f32.mrf.mxu0
  %v10449 = vadd.f32 0.0, %v10448
  %v10450 = vpop.f32.mrf.mxu0
  %10451 = vmatprep.mubr.f32.mxu0 0.0
  %10452 = vmatmul.mubr.f32.gmra.mxu0 %v10077
  %v10453 = vpop.f32.mrf.mxu0
  %v10454 = vadd.f32 0.0, %v10453
  %v10455 = vpop.f32.mrf.mxu0
  %10456 = vmatprep.mubr.f32.mxu0 0.0
  %10457 = vmatmul.mubr.f32.gmra.mxu0 %v10080
  %v10458 = vpop.f32.mrf.mxu0
  %v10459 = vadd.f32 0.0, %v10458
  %v10460 = vpop.f32.mrf.mxu0
  %10461 = vmatprep.mubr.f32.mxu0 0.0
  %10462 = vmatmul.mubr.f32.gmra.mxu0 %v10083
  %v10463 = vpop.f32.mrf.mxu0
  %v10464 = vadd.f32 0.0, %v10463
  %v10465 = vpop.f32.mrf.mxu0
  %10466 = vmatprep.mubr.f32.mxu0 0.0
  %10467 = vmatmul.mubr.f32.gmra.mxu0 %v10086
  %v10468 = vpop.f32.mrf.mxu0
  %v10469 = vadd.f32 0.0, %v10468
  %v10470 = vpop.f32.mrf.mxu0
  %10471 = vmatprep.mubr.f32.mxu0 0.0
  %10472 = vmatmul.mubr.f32.gmra.mxu0 %v10089
  %v10473 = vpop.f32.mrf.mxu0
  %v10474 = vadd.f32 0.0, %v10473
  %v10475 = vpop.f32.mrf.mxu0
  %10476 = vmatprep.mubr.f32.mxu0 0.0
  %10477 = vmatmul.mubr.f32.gmra.mxu0 %v10092
  %v10478 = vpop.f32.mrf.mxu0
  %v10479 = vadd.f32 0.0, %v10478
  %v10480 = vpop.f32.mrf.mxu0
  %10481 = vdwg.mxu0
  %v10482 = vadd.f32 %v9772, %v10164
  %v10483 = vadd.f32 %v9773, %v10169
  %v10484 = vadd.f32 %v9774, %v10174
  %v10485 = vadd.f32 %v9775, %v10179
  %v10486 = vadd.f32 %v9776, %v10184
  %v10487 = vadd.f32 %v9777, %v10189
  %v10488 = vadd.f32 %v9778, %v10194
  %v10489 = vadd.f32 %v9779, %v10199
  %v10490 = vadd.f32 %v9780, %v10204
  %v10491 = vadd.f32 %v9781, %v10209
  %v10492 = vadd.f32 %v9782, %v10214
  %v10493 = vadd.f32 %v9783, %v10219
  %v10494 = vadd.f32 %v9784, %v10224
  %v10495 = vadd.f32 %v9785, %v10229
  %v10496 = vadd.f32 %v9786, %v10234
  %v10497 = vadd.f32 %v9787, %v10239
  %v10498 = vadd.f32 %v9788, %v10244
  %v10499 = vadd.f32 %v9789, %v10249
  %v10500 = vadd.f32 %v9790, %v10254
  %v10501 = vadd.f32 %v9791, %v10259
  %v10502 = vadd.f32 %v9792, %v10264
  %v10503 = vadd.f32 %v9793, %v10269
  %v10504 = vadd.f32 %v9794, %v10274
  %v10505 = vadd.f32 %v9795, %v10279
  %v10506 = vadd.f32 %v9796, %v10284
  %v10507 = vadd.f32 %v9797, %v10289
  %v10508 = vadd.f32 %v9798, %v10294
  %v10509 = vadd.f32 %v9799, %v10299
  %v10510 = vadd.f32 %v9800, %v10304
  %v10511 = vadd.f32 %v9801, %v10309
  %v10512 = vadd.f32 %v9802, %v10314
  %v10513 = vadd.f32 %v9803, %v10319
  %v10514 = vadd.f32 %v9804, %v10324
  %v10515 = vadd.f32 %v9805, %v10329
  %v10516 = vadd.f32 %v9806, %v10334
  %v10517 = vadd.f32 %v9807, %v10339
  %v10518 = vadd.f32 %v9808, %v10344
  %v10519 = vadd.f32 %v9809, %v10349
  %v10520 = vadd.f32 %v9810, %v10354
  %v10521 = vadd.f32 %v9811, %v10359
  %v10522 = vadd.f32 %v9812, %v10364
  %v10523 = vadd.f32 %v9813, %v10369
  %v10524 = vadd.f32 %v9814, %v10374
  %v10525 = vadd.f32 %v9815, %v10379
  %v10526 = vadd.f32 %v9816, %v10384
  %v10527 = vadd.f32 %v9817, %v10389
  %v10528 = vadd.f32 %v9818, %v10394
  %v10529 = vadd.f32 %v9819, %v10399
  %v10530 = vadd.f32 %v9820, %v10404
  %v10531 = vadd.f32 %v9821, %v10409
  %v10532 = vadd.f32 %v9822, %v10414
  %v10533 = vadd.f32 %v9823, %v10419
  %v10534 = vadd.f32 %v9824, %v10424
  %v10535 = vadd.f32 %v9825, %v10429
  %v10536 = vadd.f32 %v9826, %v10434
  %v10537 = vadd.f32 %v9827, %v10439
  %v10538 = vadd.f32 %v9828, %v10444
  %v10539 = vadd.f32 %v9829, %v10449
  %v10540 = vadd.f32 %v9830, %v10454
  %v10541 = vadd.f32 %v9831, %v10459
  %v10542 = vadd.f32 %v9832, %v10464
  %v10543 = vadd.f32 %v9833, %v10469
  %v10544 = vadd.f32 %v9834, %v10474
  %v10545 = vadd.f32 %v9835, %v10479
  %v10546 = vld [vmem:[%s189 + $0x2] sm:$0xff]
  %v10547 = vld [vmem:[%s189 + $0xa] sm:$0xff]
  %v10548 = vld [vmem:[%s189 + $0x1a] sm:$0xff]
  %v10549 = vld [vmem:[%s189 + $0x22] sm:$0xff]
  %v10550 = vld [vmem:[%s189 + $0x32] sm:$0xff]
  %v10551 = vld [vmem:[%s189 + $0x3a] sm:$0xff]
  %v10552 = vld [vmem:[%s189 + $0x4a] sm:$0xff]
  %v10553 = vld [vmem:[%s189 + $0x52] sm:$0xff]
  %v10554 = vld [vmem:[%s189 + $0x62] sm:$0xff]
  %v10555 = vld [vmem:[%s189 + $0x6a] sm:$0xff]
  %v10556 = vld [vmem:[%s189 + $0x7a] sm:$0xff]
  %v10557 = vld [vmem:[%s189 + $0x82] sm:$0xff]
  %v10558 = vld [vmem:[%s189 + $0x92] sm:$0xff]
  %v10559 = vld [vmem:[%s189 + $0x9a] sm:$0xff]
  %v10560 = vld [vmem:[%s189 + $0xaa] sm:$0xff]
  %v10561 = vld [vmem:[%s189 + $0xb2] sm:$0xff]
  %v10562 = vld [vmem:[%s189 + $0xc2] sm:$0xff]
  %v10563 = vld [vmem:[%s189 + $0xca] sm:$0xff]
  %v10564 = vld [vmem:[%s189 + $0xda] sm:$0xff]
  %v10565 = vld [vmem:[%s189 + $0xe2] sm:$0xff]
  %v10566 = vld [vmem:[%s189 + $0xf2] sm:$0xff]
  %v10567 = vld [vmem:[%s189 + $0xfa] sm:$0xff]
  %v10568 = vld [vmem:[%s189 + $0x10a] sm:$0xff]
  %v10569 = vld [vmem:[%s189 + $0x112] sm:$0xff]
  %v10570 = vld [vmem:[%s189 + $0x122] sm:$0xff]
  %v10571 = vld [vmem:[%s189 + $0x12a] sm:$0xff]
  %v10572 = vld [vmem:[%s189 + $0x13a] sm:$0xff]
  %v10573 = vld [vmem:[%s189 + $0x142] sm:$0xff]
  %v10574 = vld [vmem:[%s189 + $0x152] sm:$0xff]
  %v10575 = vld [vmem:[%s189 + $0x15a] sm:$0xff]
  %v10576 = vld [vmem:[%s189 + $0x16a] sm:$0xff]
  %v10577 = vld [vmem:[%s189 + $0x172] sm:$0xff]
  %v10578 = vld [vmem:[%s189 + $0x1b2] sm:$0xff]
  %v10579 = vld [vmem:[%s189 + $0x1ba] sm:$0xff]
  %v10580 = vld [vmem:[%s189 + $0x1ca] sm:$0xff]
  %v10581 = vld [vmem:[%s189 + $0x1d2] sm:$0xff]
  %v10582 = vld [vmem:[%s189 + $0x1e2] sm:$0xff]
  %v10583 = vld [vmem:[%s189 + $0x1ea] sm:$0xff]
  %v10584 = vld [vmem:[%s189 + $0x1fa] sm:$0xff]
  %v10585 = vld [vmem:[%s189 + $0x202] sm:$0xff]
  %v10586 = vld [vmem:[%s189 + $0x212] sm:$0xff]
  %v10587 = vld [vmem:[%s189 + $0x21a] sm:$0xff]
  %v10588 = vld [vmem:[%s189 + $0x22a] sm:$0xff]
  %v10589 = vld [vmem:[%s189 + $0x232] sm:$0xff]
  %v10590 = vld [vmem:[%s189 + $0x242] sm:$0xff]
  %v10591 = vld [vmem:[%s189 + $0x24a] sm:$0xff]
  %v10592 = vld [vmem:[%s189 + $0x25a] sm:$0xff]
  %v10593 = vld [vmem:[%s189 + $0x262] sm:$0xff]
  %v10594 = vld [vmem:[%s189 + $0x272] sm:$0xff]
  %v10595 = vld [vmem:[%s189 + $0x27a] sm:$0xff]
  %v10596 = vld [vmem:[%s189 + $0x28a] sm:$0xff]
  %v10597 = vld [vmem:[%s189 + $0x292] sm:$0xff]
  %v10598 = vld [vmem:[%s189 + $0x2a2] sm:$0xff]
  %v10599 = vld [vmem:[%s189 + $0x2aa] sm:$0xff]
  %v10600 = vld [vmem:[%s189 + $0x2ba] sm:$0xff]
  %v10601 = vld [vmem:[%s189 + $0x2c2] sm:$0xff]
  %v10602 = vld [vmem:[%s189 + $0x2d2] sm:$0xff]
  %v10603 = vld [vmem:[%s189 + $0x2da] sm:$0xff]
  %v10604 = vld [vmem:[%s189 + $0x2ea] sm:$0xff]
  %v10605 = vld [vmem:[%s189 + $0x2f2] sm:$0xff]
  %v10606 = vld [vmem:[%s189 + $0x302] sm:$0xff]
  %v10607 = vld [vmem:[%s189 + $0x30a] sm:$0xff]
  %v10608 = vld [vmem:[%s189 + $0x31a] sm:$0xff]
  %v10609 = vld [vmem:[%s189 + $0x322] sm:$0xff]
  %s10610 = scalar_lea.vmem %s1, 56
  %v10611 = vld [vmem:[%s10610] sm:$0xf]
  %v10613 = vsel %vm14, %v10546, 0
  %v10616 = vsel %vm14, %v10547, 0
  %v10619 = vsel %vm14, %v10548, 0
  %v10622 = vsel %vm14, %v10549, 0
  %v10625 = vsel %vm14, %v10550, 0
  %v10628 = vsel %vm14, %v10551, 0
  %v10631 = vsel %vm14, %v10552, 0
  %v10634 = vsel %vm14, %v10553, 0
  %v10637 = vsel %vm14, %v10554, 0
  %v10640 = vsel %vm14, %v10555, 0
  %v10643 = vsel %vm14, %v10556, 0
  %v10646 = vsel %vm14, %v10557, 0
  %v10649 = vsel %vm14, %v10558, 0
  %v10652 = vsel %vm14, %v10559, 0
  %v10655 = vsel %vm14, %v10560, 0
  %v10658 = vsel %vm14, %v10561, 0
  %v10661 = vsel %vm14, %v10562, 0
  %v10664 = vsel %vm14, %v10563, 0
  %v10667 = vsel %vm14, %v10564, 0
  %v10670 = vsel %vm14, %v10565, 0
  %v10673 = vsel %vm14, %v10566, 0
  %v10676 = vsel %vm14, %v10567, 0
  %v10679 = vsel %vm14, %v10568, 0
  %v10682 = vsel %vm14, %v10569, 0
  %v10685 = vsel %vm14, %v10570, 0
  %v10688 = vsel %vm14, %v10571, 0
  %v10691 = vsel %vm14, %v10572, 0
  %v10694 = vsel %vm14, %v10573, 0
  %v10697 = vsel %vm14, %v10574, 0
  %v10700 = vsel %vm14, %v10575, 0
  %v10703 = vsel %vm14, %v10576, 0
  %v10706 = vsel %vm14, %v10577, 0
  %v10709 = vsel %vm14, %v10578, 0
  %v10712 = vsel %vm14, %v10579, 0
  %v10715 = vsel %vm14, %v10580, 0
  %v10718 = vsel %vm14, %v10581, 0
  %v10721 = vsel %vm14, %v10582, 0
  %v10724 = vsel %vm14, %v10583, 0
  %v10727 = vsel %vm14, %v10584, 0
  %v10730 = vsel %vm14, %v10585, 0
  %v10733 = vsel %vm14, %v10586, 0
  %v10736 = vsel %vm14, %v10587, 0
  %v10739 = vsel %vm14, %v10588, 0
  %v10742 = vsel %vm14, %v10589, 0
  %v10745 = vsel %vm14, %v10590, 0
  %v10748 = vsel %vm14, %v10591, 0
  %v10751 = vsel %vm14, %v10592, 0
  %v10754 = vsel %vm14, %v10593, 0
  %v10757 = vsel %vm14, %v10594, 0
  %v10760 = vsel %vm14, %v10595, 0
  %v10763 = vsel %vm14, %v10596, 0
  %v10766 = vsel %vm14, %v10597, 0
  %v10769 = vsel %vm14, %v10598, 0
  %v10772 = vsel %vm14, %v10599, 0
  %v10775 = vsel %vm14, %v10600, 0
  %v10778 = vsel %vm14, %v10601, 0
  %v10781 = vsel %vm14, %v10602, 0
  %v10784 = vsel %vm14, %v10603, 0
  %v10787 = vsel %vm14, %v10604, 0
  %v10790 = vsel %vm14, %v10605, 0
  %v10793 = vsel %vm14, %v10606, 0
  %v10796 = vsel %vm14, %v10607, 0
  %v10799 = vsel %vm14, %v10608, 0
  %v10802 = vsel %vm14, %v10609, 0
  %v10805 = vsel %vm577, %v10611, 0
  %10807 = vmatprep.subr.mxu0 0.0
  %10808 = vmatpush1.msra.mxu0 0.0
  %10809 = vmatprep.subr.mxu0 0.0
  %10810 = vmatpush1.msra.mxu0 0.0
  %10811 = vmatprep.subr.mxu0 0.0
  %10812 = vmatpush1.msra.mxu0 0.0
  %10813 = vmatprep.subr.mxu0 0.0
  %10814 = vmatpush1.msra.mxu0 0.0
  %10815 = vmatprep.subr.mxu0 0.0
  %10816 = vmatpush1.msra.mxu0 0.0
  %10817 = vmatprep.subr.mxu0 0.0
  %10818 = vmatpush1.msra.mxu0 0.0
  %10819 = vmatprep.subr.mxu0 0.0
  %10820 = vmatpush1.msra.mxu0 0.0
  %10821 = vmatprep.subr.mxu0 0.0
  %10822 = vmatpush1.msra.mxu0 0.0
  %10823 = vmatprep.subr.mxu0 0.0
  %10824 = vmatpush1.msra.mxu0 0.0
  %10825 = vmatprep.subr.mxu0 0.0
  %10826 = vmatpush1.msra.mxu0 0.0
  %10827 = vmatprep.subr.mxu0 0.0
  %10828 = vmatpush1.msra.mxu0 0.0
  %10829 = vmatprep.subr.mxu0 0.0
  %10830 = vmatpush1.msra.mxu0 0.0
  %10831 = vmatprep.subr.mxu0 0.0
  %10832 = vmatpush1.msra.mxu0 0.0
  %10833 = vmatprep.subr.mxu0 0.0
  %10834 = vmatpush1.msra.mxu0 0.0
  %10835 = vmatprep.subr.mxu0 0.0
  %10836 = vmatpush1.msra.mxu0 0.0
  %10837 = vmatprep.subr.mxu0 0.0
  %10838 = vmatpush1.msra.mxu0 %v10805
  %10839 = vmatprep.subr.mxu0 0.0
  %10840 = vmatpush2.msra.mxu0 0.0
  %10841 = vmatprep.subr.mxu0 0.0
  %10842 = vmatpush2.msra.mxu0 0.0
  %10843 = vmatprep.subr.mxu0 0.0
  %10844 = vmatpush2.msra.mxu0 0.0
  %10845 = vmatprep.subr.mxu0 0.0
  %10846 = vmatpush2.msra.mxu0 0.0
  %10847 = vmatprep.subr.mxu0 0.0
  %10848 = vmatpush2.msra.mxu0 0.0
  %10849 = vmatprep.subr.mxu0 0.0
  %10850 = vmatpush2.msra.mxu0 0.0
  %10851 = vmatprep.subr.mxu0 0.0
  %10852 = vmatpush2.msra.mxu0 0.0
  %10853 = vmatprep.subr.mxu0 0.0
  %10854 = vmatpush2.msra.mxu0 0.0
  %10855 = vmatprep.subr.mxu0 0.0
  %10856 = vmatpush2.msra.mxu0 0.0
  %10857 = vmatprep.subr.mxu0 0.0
  %10858 = vmatpush2.msra.mxu0 0.0
  %10859 = vmatprep.subr.mxu0 0.0
  %10860 = vmatpush2.msra.mxu0 0.0
  %10861 = vmatprep.subr.mxu0 0.0
  %10862 = vmatpush2.msra.mxu0 0.0
  %10863 = vmatprep.subr.mxu0 0.0
  %10864 = vmatpush2.msra.mxu0 0.0
  %10865 = vmatprep.subr.mxu0 0.0
  %10866 = vmatpush2.msra.mxu0 0.0
  %10867 = vmatprep.subr.mxu0 0.0
  %10868 = vmatpush2.msra.mxu0 0.0
  %10869 = vmatprep.subr.mxu0 0.0
  %10870 = vmatpush2.msra.mxu0 0.0
  %10871 = vmatprep.mubr.f32.mxu0 0.0
  %10872 = vmatmul.mubr.f32.gmra.mxu0 %v10613
  %v10873 = vpop.f32.mrf.mxu0
  %v10874 = vadd.f32 0.0, %v10873
  %v10875 = vpop.f32.mrf.mxu0
  %10876 = vmatprep.mubr.f32.mxu0 0.0
  %10877 = vmatmul.mubr.f32.gmra.mxu0 %v10616
  %v10878 = vpop.f32.mrf.mxu0
  %v10879 = vadd.f32 0.0, %v10878
  %v10880 = vpop.f32.mrf.mxu0
  %10881 = vmatprep.mubr.f32.mxu0 0.0
  %10882 = vmatmul.mubr.f32.gmra.mxu0 %v10619
  %v10883 = vpop.f32.mrf.mxu0
  %v10884 = vadd.f32 0.0, %v10883
  %v10885 = vpop.f32.mrf.mxu0
  %10886 = vmatprep.mubr.f32.mxu0 0.0
  %10887 = vmatmul.mubr.f32.gmra.mxu0 %v10622
  %v10888 = vpop.f32.mrf.mxu0
  %v10889 = vadd.f32 0.0, %v10888
  %v10890 = vpop.f32.mrf.mxu0
  %10891 = vmatprep.mubr.f32.mxu0 0.0
  %10892 = vmatmul.mubr.f32.gmra.mxu0 %v10625
  %v10893 = vpop.f32.mrf.mxu0
  %v10894 = vadd.f32 0.0, %v10893
  %v10895 = vpop.f32.mrf.mxu0
  %10896 = vmatprep.mubr.f32.mxu0 0.0
  %10897 = vmatmul.mubr.f32.gmra.mxu0 %v10628
  %v10898 = vpop.f32.mrf.mxu0
  %v10899 = vadd.f32 0.0, %v10898
  %v10900 = vpop.f32.mrf.mxu0
  %10901 = vmatprep.mubr.f32.mxu0 0.0
  %10902 = vmatmul.mubr.f32.gmra.mxu0 %v10631
  %v10903 = vpop.f32.mrf.mxu0
  %v10904 = vadd.f32 0.0, %v10903
  %v10905 = vpop.f32.mrf.mxu0
  %10906 = vmatprep.mubr.f32.mxu0 0.0
  %10907 = vmatmul.mubr.f32.gmra.mxu0 %v10634
  %v10908 = vpop.f32.mrf.mxu0
  %v10909 = vadd.f32 0.0, %v10908
  %v10910 = vpop.f32.mrf.mxu0
  %10911 = vmatprep.mubr.f32.mxu0 0.0
  %10912 = vmatmul.mubr.f32.gmra.mxu0 %v10637
  %v10913 = vpop.f32.mrf.mxu0
  %v10914 = vadd.f32 0.0, %v10913
  %v10915 = vpop.f32.mrf.mxu0
  %10916 = vmatprep.mubr.f32.mxu0 0.0
  %10917 = vmatmul.mubr.f32.gmra.mxu0 %v10640
  %v10918 = vpop.f32.mrf.mxu0
  %v10919 = vadd.f32 0.0, %v10918
  %v10920 = vpop.f32.mrf.mxu0
  %10921 = vmatprep.mubr.f32.mxu0 0.0
  %10922 = vmatmul.mubr.f32.gmra.mxu0 %v10643
  %v10923 = vpop.f32.mrf.mxu0
  %v10924 = vadd.f32 0.0, %v10923
  %v10925 = vpop.f32.mrf.mxu0
  %10926 = vmatprep.mubr.f32.mxu0 0.0
  %10927 = vmatmul.mubr.f32.gmra.mxu0 %v10646
  %v10928 = vpop.f32.mrf.mxu0
  %v10929 = vadd.f32 0.0, %v10928
  %v10930 = vpop.f32.mrf.mxu0
  %10931 = vmatprep.mubr.f32.mxu0 0.0
  %10932 = vmatmul.mubr.f32.gmra.mxu0 %v10649
  %v10933 = vpop.f32.mrf.mxu0
  %v10934 = vadd.f32 0.0, %v10933
  %v10935 = vpop.f32.mrf.mxu0
  %10936 = vmatprep.mubr.f32.mxu0 0.0
  %10937 = vmatmul.mubr.f32.gmra.mxu0 %v10652
  %v10938 = vpop.f32.mrf.mxu0
  %v10939 = vadd.f32 0.0, %v10938
  %v10940 = vpop.f32.mrf.mxu0
  %10941 = vmatprep.mubr.f32.mxu0 0.0
  %10942 = vmatmul.mubr.f32.gmra.mxu0 %v10655
  %v10943 = vpop.f32.mrf.mxu0
  %v10944 = vadd.f32 0.0, %v10943
  %v10945 = vpop.f32.mrf.mxu0
  %10946 = vmatprep.mubr.f32.mxu0 0.0
  %10947 = vmatmul.mubr.f32.gmra.mxu0 %v10658
  %v10948 = vpop.f32.mrf.mxu0
  %v10949 = vadd.f32 0.0, %v10948
  %v10950 = vpop.f32.mrf.mxu0
  %10951 = vmatprep.mubr.f32.mxu0 0.0
  %10952 = vmatmul.mubr.f32.gmra.mxu0 %v10661
  %v10953 = vpop.f32.mrf.mxu0
  %v10954 = vadd.f32 0.0, %v10953
  %v10955 = vpop.f32.mrf.mxu0
  %10956 = vmatprep.mubr.f32.mxu0 0.0
  %10957 = vmatmul.mubr.f32.gmra.mxu0 %v10664
  %v10958 = vpop.f32.mrf.mxu0
  %v10959 = vadd.f32 0.0, %v10958
  %v10960 = vpop.f32.mrf.mxu0
  %10961 = vmatprep.mubr.f32.mxu0 0.0
  %10962 = vmatmul.mubr.f32.gmra.mxu0 %v10667
  %v10963 = vpop.f32.mrf.mxu0
  %v10964 = vadd.f32 0.0, %v10963
  %v10965 = vpop.f32.mrf.mxu0
  %10966 = vmatprep.mubr.f32.mxu0 0.0
  %10967 = vmatmul.mubr.f32.gmra.mxu0 %v10670
  %v10968 = vpop.f32.mrf.mxu0
  %v10969 = vadd.f32 0.0, %v10968
  %v10970 = vpop.f32.mrf.mxu0
  %10971 = vmatprep.mubr.f32.mxu0 0.0
  %10972 = vmatmul.mubr.f32.gmra.mxu0 %v10673
  %v10973 = vpop.f32.mrf.mxu0
  %v10974 = vadd.f32 0.0, %v10973
  %v10975 = vpop.f32.mrf.mxu0
  %10976 = vmatprep.mubr.f32.mxu0 0.0
  %10977 = vmatmul.mubr.f32.gmra.mxu0 %v10676
  %v10978 = vpop.f32.mrf.mxu0
  %v10979 = vadd.f32 0.0, %v10978
  %v10980 = vpop.f32.mrf.mxu0
  %10981 = vmatprep.mubr.f32.mxu0 0.0
  %10982 = vmatmul.mubr.f32.gmra.mxu0 %v10679
  %v10983 = vpop.f32.mrf.mxu0
  %v10984 = vadd.f32 0.0, %v10983
  %v10985 = vpop.f32.mrf.mxu0
  %10986 = vmatprep.mubr.f32.mxu0 0.0
  %10987 = vmatmul.mubr.f32.gmra.mxu0 %v10682
  %v10988 = vpop.f32.mrf.mxu0
  %v10989 = vadd.f32 0.0, %v10988
  %v10990 = vpop.f32.mrf.mxu0
  %10991 = vmatprep.mubr.f32.mxu0 0.0
  %10992 = vmatmul.mubr.f32.gmra.mxu0 %v10685
  %v10993 = vpop.f32.mrf.mxu0
  %v10994 = vadd.f32 0.0, %v10993
  %v10995 = vpop.f32.mrf.mxu0
  %10996 = vmatprep.mubr.f32.mxu0 0.0
  %10997 = vmatmul.mubr.f32.gmra.mxu0 %v10688
  %v10998 = vpop.f32.mrf.mxu0
  %v10999 = vadd.f32 0.0, %v10998
  %v11000 = vpop.f32.mrf.mxu0
  %11001 = vmatprep.mubr.f32.mxu0 0.0
  %11002 = vmatmul.mubr.f32.gmra.mxu0 %v10691
  %v11003 = vpop.f32.mrf.mxu0
  %v11004 = vadd.f32 0.0, %v11003
  %v11005 = vpop.f32.mrf.mxu0
  %11006 = vmatprep.mubr.f32.mxu0 0.0
  %11007 = vmatmul.mubr.f32.gmra.mxu0 %v10694
  %v11008 = vpop.f32.mrf.mxu0
  %v11009 = vadd.f32 0.0, %v11008
  %v11010 = vpop.f32.mrf.mxu0
  %11011 = vmatprep.mubr.f32.mxu0 0.0
  %11012 = vmatmul.mubr.f32.gmra.mxu0 %v10697
  %v11013 = vpop.f32.mrf.mxu0
  %v11014 = vadd.f32 0.0, %v11013
  %v11015 = vpop.f32.mrf.mxu0
  %11016 = vmatprep.mubr.f32.mxu0 0.0
  %11017 = vmatmul.mubr.f32.gmra.mxu0 %v10700
  %v11018 = vpop.f32.mrf.mxu0
  %v11019 = vadd.f32 0.0, %v11018
  %v11020 = vpop.f32.mrf.mxu0
  %11021 = vmatprep.mubr.f32.mxu0 0.0
  %11022 = vmatmul.mubr.f32.gmra.mxu0 %v10703
  %v11023 = vpop.f32.mrf.mxu0
  %v11024 = vadd.f32 0.0, %v11023
  %v11025 = vpop.f32.mrf.mxu0
  %11026 = vmatprep.mubr.f32.mxu0 0.0
  %11027 = vmatmul.mubr.f32.gmra.mxu0 %v10706
  %v11028 = vpop.f32.mrf.mxu0
  %v11029 = vadd.f32 0.0, %v11028
  %v11030 = vpop.f32.mrf.mxu0
  %11031 = vmatprep.mubr.f32.mxu0 0.0
  %11032 = vmatmul.mubr.f32.gmra.mxu0 %v10709
  %v11033 = vpop.f32.mrf.mxu0
  %v11034 = vadd.f32 0.0, %v11033
  %v11035 = vpop.f32.mrf.mxu0
  %11036 = vmatprep.mubr.f32.mxu0 0.0
  %11037 = vmatmul.mubr.f32.gmra.mxu0 %v10712
  %v11038 = vpop.f32.mrf.mxu0
  %v11039 = vadd.f32 0.0, %v11038
  %v11040 = vpop.f32.mrf.mxu0
  %11041 = vmatprep.mubr.f32.mxu0 0.0
  %11042 = vmatmul.mubr.f32.gmra.mxu0 %v10715
  %v11043 = vpop.f32.mrf.mxu0
  %v11044 = vadd.f32 0.0, %v11043
  %v11045 = vpop.f32.mrf.mxu0
  %11046 = vmatprep.mubr.f32.mxu0 0.0
  %11047 = vmatmul.mubr.f32.gmra.mxu0 %v10718
  %v11048 = vpop.f32.mrf.mxu0
  %v11049 = vadd.f32 0.0, %v11048
  %v11050 = vpop.f32.mrf.mxu0
  %11051 = vmatprep.mubr.f32.mxu0 0.0
  %11052 = vmatmul.mubr.f32.gmra.mxu0 %v10721
  %v11053 = vpop.f32.mrf.mxu0
  %v11054 = vadd.f32 0.0, %v11053
  %v11055 = vpop.f32.mrf.mxu0
  %11056 = vmatprep.mubr.f32.mxu0 0.0
  %11057 = vmatmul.mubr.f32.gmra.mxu0 %v10724
  %v11058 = vpop.f32.mrf.mxu0
  %v11059 = vadd.f32 0.0, %v11058
  %v11060 = vpop.f32.mrf.mxu0
  %11061 = vmatprep.mubr.f32.mxu0 0.0
  %11062 = vmatmul.mubr.f32.gmra.mxu0 %v10727
  %v11063 = vpop.f32.mrf.mxu0
  %v11064 = vadd.f32 0.0, %v11063
  %v11065 = vpop.f32.mrf.mxu0
  %11066 = vmatprep.mubr.f32.mxu0 0.0
  %11067 = vmatmul.mubr.f32.gmra.mxu0 %v10730
  %v11068 = vpop.f32.mrf.mxu0
  %v11069 = vadd.f32 0.0, %v11068
  %v11070 = vpop.f32.mrf.mxu0
  %11071 = vmatprep.mubr.f32.mxu0 0.0
  %11072 = vmatmul.mubr.f32.gmra.mxu0 %v10733
  %v11073 = vpop.f32.mrf.mxu0
  %v11074 = vadd.f32 0.0, %v11073
  %v11075 = vpop.f32.mrf.mxu0
  %11076 = vmatprep.mubr.f32.mxu0 0.0
  %11077 = vmatmul.mubr.f32.gmra.mxu0 %v10736
  %v11078 = vpop.f32.mrf.mxu0
  %v11079 = vadd.f32 0.0, %v11078
  %v11080 = vpop.f32.mrf.mxu0
  %11081 = vmatprep.mubr.f32.mxu0 0.0
  %11082 = vmatmul.mubr.f32.gmra.mxu0 %v10739
  %v11083 = vpop.f32.mrf.mxu0
  %v11084 = vadd.f32 0.0, %v11083
  %v11085 = vpop.f32.mrf.mxu0
  %11086 = vmatprep.mubr.f32.mxu0 0.0
  %11087 = vmatmul.mubr.f32.gmra.mxu0 %v10742
  %v11088 = vpop.f32.mrf.mxu0
  %v11089 = vadd.f32 0.0, %v11088
  %v11090 = vpop.f32.mrf.mxu0
  %11091 = vmatprep.mubr.f32.mxu0 0.0
  %11092 = vmatmul.mubr.f32.gmra.mxu0 %v10745
  %v11093 = vpop.f32.mrf.mxu0
  %v11094 = vadd.f32 0.0, %v11093
  %v11095 = vpop.f32.mrf.mxu0
  %11096 = vmatprep.mubr.f32.mxu0 0.0
  %11097 = vmatmul.mubr.f32.gmra.mxu0 %v10748
  %v11098 = vpop.f32.mrf.mxu0
  %v11099 = vadd.f32 0.0, %v11098
  %v11100 = vpop.f32.mrf.mxu0
  %11101 = vmatprep.mubr.f32.mxu0 0.0
  %11102 = vmatmul.mubr.f32.gmra.mxu0 %v10751
  %v11103 = vpop.f32.mrf.mxu0
  %v11104 = vadd.f32 0.0, %v11103
  %v11105 = vpop.f32.mrf.mxu0
  %11106 = vmatprep.mubr.f32.mxu0 0.0
  %11107 = vmatmul.mubr.f32.gmra.mxu0 %v10754
  %v11108 = vpop.f32.mrf.mxu0
  %v11109 = vadd.f32 0.0, %v11108
  %v11110 = vpop.f32.mrf.mxu0
  %11111 = vmatprep.mubr.f32.mxu0 0.0
  %11112 = vmatmul.mubr.f32.gmra.mxu0 %v10757
  %v11113 = vpop.f32.mrf.mxu0
  %v11114 = vadd.f32 0.0, %v11113
  %v11115 = vpop.f32.mrf.mxu0
  %11116 = vmatprep.mubr.f32.mxu0 0.0
  %11117 = vmatmul.mubr.f32.gmra.mxu0 %v10760
  %v11118 = vpop.f32.mrf.mxu0
  %v11119 = vadd.f32 0.0, %v11118
  %v11120 = vpop.f32.mrf.mxu0
  %11121 = vmatprep.mubr.f32.mxu0 0.0
  %11122 = vmatmul.mubr.f32.gmra.mxu0 %v10763
  %v11123 = vpop.f32.mrf.mxu0
  %v11124 = vadd.f32 0.0, %v11123
  %v11125 = vpop.f32.mrf.mxu0
  %11126 = vmatprep.mubr.f32.mxu0 0.0
  %11127 = vmatmul.mubr.f32.gmra.mxu0 %v10766
  %v11128 = vpop.f32.mrf.mxu0
  %v11129 = vadd.f32 0.0, %v11128
  %v11130 = vpop.f32.mrf.mxu0
  %11131 = vmatprep.mubr.f32.mxu0 0.0
  %11132 = vmatmul.mubr.f32.gmra.mxu0 %v10769
  %v11133 = vpop.f32.mrf.mxu0
  %v11134 = vadd.f32 0.0, %v11133
  %v11135 = vpop.f32.mrf.mxu0
  %11136 = vmatprep.mubr.f32.mxu0 0.0
  %11137 = vmatmul.mubr.f32.gmra.mxu0 %v10772
  %v11138 = vpop.f32.mrf.mxu0
  %v11139 = vadd.f32 0.0, %v11138
  %v11140 = vpop.f32.mrf.mxu0
  %11141 = vmatprep.mubr.f32.mxu0 0.0
  %11142 = vmatmul.mubr.f32.gmra.mxu0 %v10775
  %v11143 = vpop.f32.mrf.mxu0
  %v11144 = vadd.f32 0.0, %v11143
  %v11145 = vpop.f32.mrf.mxu0
  %11146 = vmatprep.mubr.f32.mxu0 0.0
  %11147 = vmatmul.mubr.f32.gmra.mxu0 %v10778
  %v11148 = vpop.f32.mrf.mxu0
  %v11149 = vadd.f32 0.0, %v11148
  %v11150 = vpop.f32.mrf.mxu0
  %11151 = vmatprep.mubr.f32.mxu0 0.0
  %11152 = vmatmul.mubr.f32.gmra.mxu0 %v10781
  %v11153 = vpop.f32.mrf.mxu0
  %v11154 = vadd.f32 0.0, %v11153
  %v11155 = vpop.f32.mrf.mxu0
  %11156 = vmatprep.mubr.f32.mxu0 0.0
  %11157 = vmatmul.mubr.f32.gmra.mxu0 %v10784
  %v11158 = vpop.f32.mrf.mxu0
  %v11159 = vadd.f32 0.0, %v11158
  %v11160 = vpop.f32.mrf.mxu0
  %11161 = vmatprep.mubr.f32.mxu0 0.0
  %11162 = vmatmul.mubr.f32.gmra.mxu0 %v10787
  %v11163 = vpop.f32.mrf.mxu0
  %v11164 = vadd.f32 0.0, %v11163
  %v11165 = vpop.f32.mrf.mxu0
  %11166 = vmatprep.mubr.f32.mxu0 0.0
  %11167 = vmatmul.mubr.f32.gmra.mxu0 %v10790
  %v11168 = vpop.f32.mrf.mxu0
  %v11169 = vadd.f32 0.0, %v11168
  %v11170 = vpop.f32.mrf.mxu0
  %11171 = vmatprep.mubr.f32.mxu0 0.0
  %11172 = vmatmul.mubr.f32.gmra.mxu0 %v10793
  %v11173 = vpop.f32.mrf.mxu0
  %v11174 = vadd.f32 0.0, %v11173
  %v11175 = vpop.f32.mrf.mxu0
  %11176 = vmatprep.mubr.f32.mxu0 0.0
  %11177 = vmatmul.mubr.f32.gmra.mxu0 %v10796
  %v11178 = vpop.f32.mrf.mxu0
  %v11179 = vadd.f32 0.0, %v11178
  %v11180 = vpop.f32.mrf.mxu0
  %11181 = vmatprep.mubr.f32.mxu0 0.0
  %11182 = vmatmul.mubr.f32.gmra.mxu0 %v10799
  %v11183 = vpop.f32.mrf.mxu0
  %v11184 = vadd.f32 0.0, %v11183
  %v11185 = vpop.f32.mrf.mxu0
  %11186 = vmatprep.mubr.f32.mxu0 0.0
  %11187 = vmatmul.mubr.f32.gmra.mxu0 %v10802
  %v11188 = vpop.f32.mrf.mxu0
  %v11189 = vadd.f32 0.0, %v11188
  %v11190 = vpop.f32.mrf.mxu0
  %11191 = vdwg.mxu0
  %v11192 = vadd.f32 %v10482, %v10874
  %v11193 = vadd.f32 %v10483, %v10879
  %v11194 = vadd.f32 %v10484, %v10884
  %v11195 = vadd.f32 %v10485, %v10889
  %v11196 = vadd.f32 %v10486, %v10894
  %v11197 = vadd.f32 %v10487, %v10899
  %v11198 = vadd.f32 %v10488, %v10904
  %v11199 = vadd.f32 %v10489, %v10909
  %v11200 = vadd.f32 %v10490, %v10914
  %v11201 = vadd.f32 %v10491, %v10919
  %v11202 = vadd.f32 %v10492, %v10924
  %v11203 = vadd.f32 %v10493, %v10929
  %v11204 = vadd.f32 %v10494, %v10934
  %v11205 = vadd.f32 %v10495, %v10939
  %v11206 = vadd.f32 %v10496, %v10944
  %v11207 = vadd.f32 %v10497, %v10949
  %v11208 = vadd.f32 %v10498, %v10954
  %v11209 = vadd.f32 %v10499, %v10959
  %v11210 = vadd.f32 %v10500, %v10964
  %v11211 = vadd.f32 %v10501, %v10969
  %v11212 = vadd.f32 %v10502, %v10974
  %v11213 = vadd.f32 %v10503, %v10979
  %v11214 = vadd.f32 %v10504, %v10984
  %v11215 = vadd.f32 %v10505, %v10989
  %v11216 = vadd.f32 %v10506, %v10994
  %v11217 = vadd.f32 %v10507, %v10999
  %v11218 = vadd.f32 %v10508, %v11004
  %v11219 = vadd.f32 %v10509, %v11009
  %v11220 = vadd.f32 %v10510, %v11014
  %v11221 = vadd.f32 %v10511, %v11019
  %v11222 = vadd.f32 %v10512, %v11024
  %v11223 = vadd.f32 %v10513, %v11029
  %v11224 = vadd.f32 %v10514, %v11034
  %v11225 = vadd.f32 %v10515, %v11039
  %v11226 = vadd.f32 %v10516, %v11044
  %v11227 = vadd.f32 %v10517, %v11049
  %v11228 = vadd.f32 %v10518, %v11054
  %v11229 = vadd.f32 %v10519, %v11059
  %v11230 = vadd.f32 %v10520, %v11064
  %v11231 = vadd.f32 %v10521, %v11069
  %v11232 = vadd.f32 %v10522, %v11074
  %v11233 = vadd.f32 %v10523, %v11079
  %v11234 = vadd.f32 %v10524, %v11084
  %v11235 = vadd.f32 %v10525, %v11089
  %v11236 = vadd.f32 %v10526, %v11094
  %v11237 = vadd.f32 %v10527, %v11099
  %v11238 = vadd.f32 %v10528, %v11104
  %v11239 = vadd.f32 %v10529, %v11109
  %v11240 = vadd.f32 %v10530, %v11114
  %v11241 = vadd.f32 %v10531, %v11119
  %v11242 = vadd.f32 %v10532, %v11124
  %v11243 = vadd.f32 %v10533, %v11129
  %v11244 = vadd.f32 %v10534, %v11134
  %v11245 = vadd.f32 %v10535, %v11139
  %v11246 = vadd.f32 %v10536, %v11144
  %v11247 = vadd.f32 %v10537, %v11149
  %v11248 = vadd.f32 %v10538, %v11154
  %v11249 = vadd.f32 %v10539, %v11159
  %v11250 = vadd.f32 %v10540, %v11164
  %v11251 = vadd.f32 %v10541, %v11169
  %v11252 = vadd.f32 %v10542, %v11174
  %v11253 = vadd.f32 %v10543, %v11179
  %v11254 = vadd.f32 %v10544, %v11184
  %v11255 = vadd.f32 %v10545, %v11189
  %v11256 = vld [vmem:[%s4386] sm:$0xff]
  %v11257 = vld [vmem:[%s4386 + $0x8] sm:$0xff]
  %v11258 = vld [vmem:[%s4386 + $0x18] sm:$0xff]
  %v11259 = vld [vmem:[%s4386 + $0x20] sm:$0xff]
  %v11260 = vld [vmem:[%s4386 + $0x30] sm:$0xff]
  %v11261 = vld [vmem:[%s4386 + $0x38] sm:$0xff]
  %v11262 = vld [vmem:[%s4386 + $0x48] sm:$0xff]
  %v11263 = vld [vmem:[%s4386 + $0x50] sm:$0xff]
  %v11264 = vld [vmem:[%s4386 + $0x60] sm:$0xff]
  %v11265 = vld [vmem:[%s4386 + $0x68] sm:$0xff]
  %v11266 = vld [vmem:[%s4386 + $0x78] sm:$0xff]
  %v11267 = vld [vmem:[%s4386 + $0x80] sm:$0xff]
  %v11268 = vld [vmem:[%s4386 + $0x90] sm:$0xff]
  %v11269 = vld [vmem:[%s4386 + $0x98] sm:$0xff]
  %v11270 = vld [vmem:[%s4386 + $0xa8] sm:$0xff]
  %v11271 = vld [vmem:[%s4386 + $0xb0] sm:$0xff]
  %v11272 = vld [vmem:[%s4386 + $0xc0] sm:$0xff]
  %v11273 = vld [vmem:[%s4386 + $0xc8] sm:$0xff]
  %v11274 = vld [vmem:[%s4386 + $0xd8] sm:$0xff]
  %v11275 = vld [vmem:[%s4386 + $0xe0] sm:$0xff]
  %v11276 = vld [vmem:[%s4386 + $0xf0] sm:$0xff]
  %v11277 = vld [vmem:[%s4386 + $0xf8] sm:$0xff]
  %v11278 = vld [vmem:[%s4386 + $0x108] sm:$0xff]
  %v11279 = vld [vmem:[%s4386 + $0x110] sm:$0xff]
  %v11280 = vld [vmem:[%s4386 + $0x120] sm:$0xff]
  %v11281 = vld [vmem:[%s4386 + $0x128] sm:$0xff]
  %v11282 = vld [vmem:[%s4386 + $0x138] sm:$0xff]
  %v11283 = vld [vmem:[%s4386 + $0x140] sm:$0xff]
  %v11284 = vld [vmem:[%s4386 + $0x150] sm:$0xff]
  %v11285 = vld [vmem:[%s4386 + $0x158] sm:$0xff]
  %v11286 = vld [vmem:[%s4386 + $0x168] sm:$0xff]
  %v11287 = vld [vmem:[%s4386 + $0x170] sm:$0xff]
  %v11288 = vld [vmem:[%s4386 + $0x1b0] sm:$0xff]
  %v11289 = vld [vmem:[%s4386 + $0x1b8] sm:$0xff]
  %v11290 = vld [vmem:[%s4386 + $0x1c8] sm:$0xff]
  %v11291 = vld [vmem:[%s4386 + $0x1d0] sm:$0xff]
  %v11292 = vld [vmem:[%s4386 + $0x1e0] sm:$0xff]
  %v11293 = vld [vmem:[%s4386 + $0x1e8] sm:$0xff]
  %v11294 = vld [vmem:[%s4386 + $0x1f8] sm:$0xff]
  %v11295 = vld [vmem:[%s4386 + $0x200] sm:$0xff]
  %v11296 = vld [vmem:[%s4386 + $0x210] sm:$0xff]
  %v11297 = vld [vmem:[%s4386 + $0x218] sm:$0xff]
  %v11298 = vld [vmem:[%s4386 + $0x228] sm:$0xff]
  %v11299 = vld [vmem:[%s4386 + $0x230] sm:$0xff]
  %v11300 = vld [vmem:[%s4386 + $0x240] sm:$0xff]
  %v11301 = vld [vmem:[%s4386 + $0x248] sm:$0xff]
  %v11302 = vld [vmem:[%s4386 + $0x258] sm:$0xff]
  %v11303 = vld [vmem:[%s4386 + $0x260] sm:$0xff]
  %v11304 = vld [vmem:[%s4386 + $0x270] sm:$0xff]
  %v11305 = vld [vmem:[%s4386 + $0x278] sm:$0xff]
  %v11306 = vld [vmem:[%s4386 + $0x288] sm:$0xff]
  %v11307 = vld [vmem:[%s4386 + $0x290] sm:$0xff]
  %v11308 = vld [vmem:[%s4386 + $0x2a0] sm:$0xff]
  %v11309 = vld [vmem:[%s4386 + $0x2a8] sm:$0xff]
  %v11310 = vld [vmem:[%s4386 + $0x2b8] sm:$0xff]
  %v11311 = vld [vmem:[%s4386 + $0x2c0] sm:$0xff]
  %v11312 = vld [vmem:[%s4386 + $0x2d0] sm:$0xff]
  %v11313 = vld [vmem:[%s4386 + $0x2d8] sm:$0xff]
  %v11314 = vld [vmem:[%s4386 + $0x2e8] sm:$0xff]
  %v11315 = vld [vmem:[%s4386 + $0x2f0] sm:$0xff]
  %v11316 = vld [vmem:[%s4386 + $0x300] sm:$0xff]
  %v11317 = vld [vmem:[%s4386 + $0x308] sm:$0xff]
  %v11318 = vld [vmem:[%s4386 + $0x318] sm:$0xff]
  %v11319 = vld [vmem:[%s4386 + $0x320] sm:$0xff]
  %s11320 = scalar_lea.vmem %s1, 60
  %v11321 = vld [vmem:[%s11320] sm:$0xf]
  %v11323 = vsel %vm14, %v11256, 0
  %v11326 = vsel %vm14, %v11257, 0
  %v11329 = vsel %vm14, %v11258, 0
  %v11332 = vsel %vm14, %v11259, 0
  %v11335 = vsel %vm14, %v11260, 0
  %v11338 = vsel %vm14, %v11261, 0
  %v11341 = vsel %vm14, %v11262, 0
  %v11344 = vsel %vm14, %v11263, 0
  %v11347 = vsel %vm14, %v11264, 0
  %v11350 = vsel %vm14, %v11265, 0
  %v11353 = vsel %vm14, %v11266, 0
  %v11356 = vsel %vm14, %v11267, 0
  %v11359 = vsel %vm14, %v11268, 0
  %v11362 = vsel %vm14, %v11269, 0
  %v11365 = vsel %vm14, %v11270, 0
  %v11368 = vsel %vm14, %v11271, 0
  %v11371 = vsel %vm14, %v11272, 0
  %v11374 = vsel %vm14, %v11273, 0
  %v11377 = vsel %vm14, %v11274, 0
  %v11380 = vsel %vm14, %v11275, 0
  %v11383 = vsel %vm14, %v11276, 0
  %v11386 = vsel %vm14, %v11277, 0
  %v11389 = vsel %vm14, %v11278, 0
  %v11392 = vsel %vm14, %v11279, 0
  %v11395 = vsel %vm14, %v11280, 0
  %v11398 = vsel %vm14, %v11281, 0
  %v11401 = vsel %vm14, %v11282, 0
  %v11404 = vsel %vm14, %v11283, 0
  %v11407 = vsel %vm14, %v11284, 0
  %v11410 = vsel %vm14, %v11285, 0
  %v11413 = vsel %vm14, %v11286, 0
  %v11416 = vsel %vm14, %v11287, 0
  %v11419 = vsel %vm14, %v11288, 0
  %v11422 = vsel %vm14, %v11289, 0
  %v11425 = vsel %vm14, %v11290, 0
  %v11428 = vsel %vm14, %v11291, 0
  %v11431 = vsel %vm14, %v11292, 0
  %v11434 = vsel %vm14, %v11293, 0
  %v11437 = vsel %vm14, %v11294, 0
  %v11440 = vsel %vm14, %v11295, 0
  %v11443 = vsel %vm14, %v11296, 0
  %v11446 = vsel %vm14, %v11297, 0
  %v11449 = vsel %vm14, %v11298, 0
  %v11452 = vsel %vm14, %v11299, 0
  %v11455 = vsel %vm14, %v11300, 0
  %v11458 = vsel %vm14, %v11301, 0
  %v11461 = vsel %vm14, %v11302, 0
  %v11464 = vsel %vm14, %v11303, 0
  %v11467 = vsel %vm14, %v11304, 0
  %v11470 = vsel %vm14, %v11305, 0
  %v11473 = vsel %vm14, %v11306, 0
  %v11476 = vsel %vm14, %v11307, 0
  %v11479 = vsel %vm14, %v11308, 0
  %v11482 = vsel %vm14, %v11309, 0
  %v11485 = vsel %vm14, %v11310, 0
  %v11488 = vsel %vm14, %v11311, 0
  %v11491 = vsel %vm14, %v11312, 0
  %v11494 = vsel %vm14, %v11313, 0
  %v11497 = vsel %vm14, %v11314, 0
  %v11500 = vsel %vm14, %v11315, 0
  %v11503 = vsel %vm14, %v11316, 0
  %v11506 = vsel %vm14, %v11317, 0
  %v11509 = vsel %vm14, %v11318, 0
  %v11512 = vsel %vm14, %v11319, 0
  %v11515 = vsel %vm577, %v11321, 0
  %11517 = vmatprep.subr.mxu0 0.0
  %11518 = vmatpush1.msra.mxu0 0.0
  %11519 = vmatprep.subr.mxu0 0.0
  %11520 = vmatpush1.msra.mxu0 0.0
  %11521 = vmatprep.subr.mxu0 0.0
  %11522 = vmatpush1.msra.mxu0 0.0
  %11523 = vmatprep.subr.mxu0 0.0
  %11524 = vmatpush1.msra.mxu0 0.0
  %11525 = vmatprep.subr.mxu0 0.0
  %11526 = vmatpush1.msra.mxu0 0.0
  %11527 = vmatprep.subr.mxu0 0.0
  %11528 = vmatpush1.msra.mxu0 0.0
  %11529 = vmatprep.subr.mxu0 0.0
  %11530 = vmatpush1.msra.mxu0 0.0
  %11531 = vmatprep.subr.mxu0 0.0
  %11532 = vmatpush1.msra.mxu0 0.0
  %11533 = vmatprep.subr.mxu0 0.0
  %11534 = vmatpush1.msra.mxu0 0.0
  %11535 = vmatprep.subr.mxu0 0.0
  %11536 = vmatpush1.msra.mxu0 0.0
  %11537 = vmatprep.subr.mxu0 0.0
  %11538 = vmatpush1.msra.mxu0 0.0
  %11539 = vmatprep.subr.mxu0 0.0
  %11540 = vmatpush1.msra.mxu0 0.0
  %11541 = vmatprep.subr.mxu0 0.0
  %11542 = vmatpush1.msra.mxu0 0.0
  %11543 = vmatprep.subr.mxu0 0.0
  %11544 = vmatpush1.msra.mxu0 0.0
  %11545 = vmatprep.subr.mxu0 0.0
  %11546 = vmatpush1.msra.mxu0 0.0
  %11547 = vmatprep.subr.mxu0 0.0
  %11548 = vmatpush1.msra.mxu0 %v11515
  %11549 = vmatprep.subr.mxu0 0.0
  %11550 = vmatpush2.msra.mxu0 0.0
  %11551 = vmatprep.subr.mxu0 0.0
  %11552 = vmatpush2.msra.mxu0 0.0
  %11553 = vmatprep.subr.mxu0 0.0
  %11554 = vmatpush2.msra.mxu0 0.0
  %11555 = vmatprep.subr.mxu0 0.0
  %11556 = vmatpush2.msra.mxu0 0.0
  %11557 = vmatprep.subr.mxu0 0.0
  %11558 = vmatpush2.msra.mxu0 0.0
  %11559 = vmatprep.subr.mxu0 0.0
  %11560 = vmatpush2.msra.mxu0 0.0
  %11561 = vmatprep.subr.mxu0 0.0
  %11562 = vmatpush2.msra.mxu0 0.0
  %11563 = vmatprep.subr.mxu0 0.0
  %11564 = vmatpush2.msra.mxu0 0.0
  %11565 = vmatprep.subr.mxu0 0.0
  %11566 = vmatpush2.msra.mxu0 0.0
  %11567 = vmatprep.subr.mxu0 0.0
  %11568 = vmatpush2.msra.mxu0 0.0
  %11569 = vmatprep.subr.mxu0 0.0
  %11570 = vmatpush2.msra.mxu0 0.0
  %11571 = vmatprep.subr.mxu0 0.0
  %11572 = vmatpush2.msra.mxu0 0.0
  %11573 = vmatprep.subr.mxu0 0.0
  %11574 = vmatpush2.msra.mxu0 0.0
  %11575 = vmatprep.subr.mxu0 0.0
  %11576 = vmatpush2.msra.mxu0 0.0
  %11577 = vmatprep.subr.mxu0 0.0
  %11578 = vmatpush2.msra.mxu0 0.0
  %11579 = vmatprep.subr.mxu0 0.0
  %11580 = vmatpush2.msra.mxu0 0.0
  %11581 = vmatprep.mubr.f32.mxu0 0.0
  %11582 = vmatmul.mubr.f32.gmra.mxu0 %v11323
  %v11583 = vpop.f32.mrf.mxu0
  %v11584 = vadd.f32 0.0, %v11583
  %v11585 = vpop.f32.mrf.mxu0
  %11586 = vmatprep.mubr.f32.mxu0 0.0
  %11587 = vmatmul.mubr.f32.gmra.mxu0 %v11326
  %v11588 = vpop.f32.mrf.mxu0
  %v11589 = vadd.f32 0.0, %v11588
  %v11590 = vpop.f32.mrf.mxu0
  %11591 = vmatprep.mubr.f32.mxu0 0.0
  %11592 = vmatmul.mubr.f32.gmra.mxu0 %v11329
  %v11593 = vpop.f32.mrf.mxu0
  %v11594 = vadd.f32 0.0, %v11593
  %v11595 = vpop.f32.mrf.mxu0
  %11596 = vmatprep.mubr.f32.mxu0 0.0
  %11597 = vmatmul.mubr.f32.gmra.mxu0 %v11332
  %v11598 = vpop.f32.mrf.mxu0
  %v11599 = vadd.f32 0.0, %v11598
  %v11600 = vpop.f32.mrf.mxu0
  %11601 = vmatprep.mubr.f32.mxu0 0.0
  %11602 = vmatmul.mubr.f32.gmra.mxu0 %v11335
  %v11603 = vpop.f32.mrf.mxu0
  %v11604 = vadd.f32 0.0, %v11603
  %v11605 = vpop.f32.mrf.mxu0
  %11606 = vmatprep.mubr.f32.mxu0 0.0
  %11607 = vmatmul.mubr.f32.gmra.mxu0 %v11338
  %v11608 = vpop.f32.mrf.mxu0
  %v11609 = vadd.f32 0.0, %v11608
  %v11610 = vpop.f32.mrf.mxu0
  %11611 = vmatprep.mubr.f32.mxu0 0.0
  %11612 = vmatmul.mubr.f32.gmra.mxu0 %v11341
  %v11613 = vpop.f32.mrf.mxu0
  %v11614 = vadd.f32 0.0, %v11613
  %v11615 = vpop.f32.mrf.mxu0
  %11616 = vmatprep.mubr.f32.mxu0 0.0
  %11617 = vmatmul.mubr.f32.gmra.mxu0 %v11344
  %v11618 = vpop.f32.mrf.mxu0
  %v11619 = vadd.f32 0.0, %v11618
  %v11620 = vpop.f32.mrf.mxu0
  %11621 = vmatprep.mubr.f32.mxu0 0.0
  %11622 = vmatmul.mubr.f32.gmra.mxu0 %v11347
  %v11623 = vpop.f32.mrf.mxu0
  %v11624 = vadd.f32 0.0, %v11623
  %v11625 = vpop.f32.mrf.mxu0
  %11626 = vmatprep.mubr.f32.mxu0 0.0
  %11627 = vmatmul.mubr.f32.gmra.mxu0 %v11350
  %v11628 = vpop.f32.mrf.mxu0
  %v11629 = vadd.f32 0.0, %v11628
  %v11630 = vpop.f32.mrf.mxu0
  %11631 = vmatprep.mubr.f32.mxu0 0.0
  %11632 = vmatmul.mubr.f32.gmra.mxu0 %v11353
  %v11633 = vpop.f32.mrf.mxu0
  %v11634 = vadd.f32 0.0, %v11633
  %v11635 = vpop.f32.mrf.mxu0
  %11636 = vmatprep.mubr.f32.mxu0 0.0
  %11637 = vmatmul.mubr.f32.gmra.mxu0 %v11356
  %v11638 = vpop.f32.mrf.mxu0
  %v11639 = vadd.f32 0.0, %v11638
  %v11640 = vpop.f32.mrf.mxu0
  %11641 = vmatprep.mubr.f32.mxu0 0.0
  %11642 = vmatmul.mubr.f32.gmra.mxu0 %v11359
  %v11643 = vpop.f32.mrf.mxu0
  %v11644 = vadd.f32 0.0, %v11643
  %v11645 = vpop.f32.mrf.mxu0
  %11646 = vmatprep.mubr.f32.mxu0 0.0
  %11647 = vmatmul.mubr.f32.gmra.mxu0 %v11362
  %v11648 = vpop.f32.mrf.mxu0
  %v11649 = vadd.f32 0.0, %v11648
  %v11650 = vpop.f32.mrf.mxu0
  %11651 = vmatprep.mubr.f32.mxu0 0.0
  %11652 = vmatmul.mubr.f32.gmra.mxu0 %v11365
  %v11653 = vpop.f32.mrf.mxu0
  %v11654 = vadd.f32 0.0, %v11653
  %v11655 = vpop.f32.mrf.mxu0
  %11656 = vmatprep.mubr.f32.mxu0 0.0
  %11657 = vmatmul.mubr.f32.gmra.mxu0 %v11368
  %v11658 = vpop.f32.mrf.mxu0
  %v11659 = vadd.f32 0.0, %v11658
  %v11660 = vpop.f32.mrf.mxu0
  %11661 = vmatprep.mubr.f32.mxu0 0.0
  %11662 = vmatmul.mubr.f32.gmra.mxu0 %v11371
  %v11663 = vpop.f32.mrf.mxu0
  %v11664 = vadd.f32 0.0, %v11663
  %v11665 = vpop.f32.mrf.mxu0
  %11666 = vmatprep.mubr.f32.mxu0 0.0
  %11667 = vmatmul.mubr.f32.gmra.mxu0 %v11374
  %v11668 = vpop.f32.mrf.mxu0
  %v11669 = vadd.f32 0.0, %v11668
  %v11670 = vpop.f32.mrf.mxu0
  %11671 = vmatprep.mubr.f32.mxu0 0.0
  %11672 = vmatmul.mubr.f32.gmra.mxu0 %v11377
  %v11673 = vpop.f32.mrf.mxu0
  %v11674 = vadd.f32 0.0, %v11673
  %v11675 = vpop.f32.mrf.mxu0
  %11676 = vmatprep.mubr.f32.mxu0 0.0
  %11677 = vmatmul.mubr.f32.gmra.mxu0 %v11380
  %v11678 = vpop.f32.mrf.mxu0
  %v11679 = vadd.f32 0.0, %v11678
  %v11680 = vpop.f32.mrf.mxu0
  %11681 = vmatprep.mubr.f32.mxu0 0.0
  %11682 = vmatmul.mubr.f32.gmra.mxu0 %v11383
  %v11683 = vpop.f32.mrf.mxu0
  %v11684 = vadd.f32 0.0, %v11683
  %v11685 = vpop.f32.mrf.mxu0
  %11686 = vmatprep.mubr.f32.mxu0 0.0
  %11687 = vmatmul.mubr.f32.gmra.mxu0 %v11386
  %v11688 = vpop.f32.mrf.mxu0
  %v11689 = vadd.f32 0.0, %v11688
  %v11690 = vpop.f32.mrf.mxu0
  %11691 = vmatprep.mubr.f32.mxu0 0.0
  %11692 = vmatmul.mubr.f32.gmra.mxu0 %v11389
  %v11693 = vpop.f32.mrf.mxu0
  %v11694 = vadd.f32 0.0, %v11693
  %v11695 = vpop.f32.mrf.mxu0
  %11696 = vmatprep.mubr.f32.mxu0 0.0
  %11697 = vmatmul.mubr.f32.gmra.mxu0 %v11392
  %v11698 = vpop.f32.mrf.mxu0
  %v11699 = vadd.f32 0.0, %v11698
  %v11700 = vpop.f32.mrf.mxu0
  %11701 = vmatprep.mubr.f32.mxu0 0.0
  %11702 = vmatmul.mubr.f32.gmra.mxu0 %v11395
  %v11703 = vpop.f32.mrf.mxu0
  %v11704 = vadd.f32 0.0, %v11703
  %v11705 = vpop.f32.mrf.mxu0
  %11706 = vmatprep.mubr.f32.mxu0 0.0
  %11707 = vmatmul.mubr.f32.gmra.mxu0 %v11398
  %v11708 = vpop.f32.mrf.mxu0
  %v11709 = vadd.f32 0.0, %v11708
  %v11710 = vpop.f32.mrf.mxu0
  %11711 = vmatprep.mubr.f32.mxu0 0.0
  %11712 = vmatmul.mubr.f32.gmra.mxu0 %v11401
  %v11713 = vpop.f32.mrf.mxu0
  %v11714 = vadd.f32 0.0, %v11713
  %v11715 = vpop.f32.mrf.mxu0
  %11716 = vmatprep.mubr.f32.mxu0 0.0
  %11717 = vmatmul.mubr.f32.gmra.mxu0 %v11404
  %v11718 = vpop.f32.mrf.mxu0
  %v11719 = vadd.f32 0.0, %v11718
  %v11720 = vpop.f32.mrf.mxu0
  %11721 = vmatprep.mubr.f32.mxu0 0.0
  %11722 = vmatmul.mubr.f32.gmra.mxu0 %v11407
  %v11723 = vpop.f32.mrf.mxu0
  %v11724 = vadd.f32 0.0, %v11723
  %v11725 = vpop.f32.mrf.mxu0
  %11726 = vmatprep.mubr.f32.mxu0 0.0
  %11727 = vmatmul.mubr.f32.gmra.mxu0 %v11410
  %v11728 = vpop.f32.mrf.mxu0
  %v11729 = vadd.f32 0.0, %v11728
  %v11730 = vpop.f32.mrf.mxu0
  %11731 = vmatprep.mubr.f32.mxu0 0.0
  %11732 = vmatmul.mubr.f32.gmra.mxu0 %v11413
  %v11733 = vpop.f32.mrf.mxu0
  %v11734 = vadd.f32 0.0, %v11733
  %v11735 = vpop.f32.mrf.mxu0
  %11736 = vmatprep.mubr.f32.mxu0 0.0
  %11737 = vmatmul.mubr.f32.gmra.mxu0 %v11416
  %v11738 = vpop.f32.mrf.mxu0
  %v11739 = vadd.f32 0.0, %v11738
  %v11740 = vpop.f32.mrf.mxu0
  %11741 = vmatprep.mubr.f32.mxu0 0.0
  %11742 = vmatmul.mubr.f32.gmra.mxu0 %v11419
  %v11743 = vpop.f32.mrf.mxu0
  %v11744 = vadd.f32 0.0, %v11743
  %v11745 = vpop.f32.mrf.mxu0
  %11746 = vmatprep.mubr.f32.mxu0 0.0
  %11747 = vmatmul.mubr.f32.gmra.mxu0 %v11422
  %v11748 = vpop.f32.mrf.mxu0
  %v11749 = vadd.f32 0.0, %v11748
  %v11750 = vpop.f32.mrf.mxu0
  %11751 = vmatprep.mubr.f32.mxu0 0.0
  %11752 = vmatmul.mubr.f32.gmra.mxu0 %v11425
  %v11753 = vpop.f32.mrf.mxu0
  %v11754 = vadd.f32 0.0, %v11753
  %v11755 = vpop.f32.mrf.mxu0
  %11756 = vmatprep.mubr.f32.mxu0 0.0
  %11757 = vmatmul.mubr.f32.gmra.mxu0 %v11428
  %v11758 = vpop.f32.mrf.mxu0
  %v11759 = vadd.f32 0.0, %v11758
  %v11760 = vpop.f32.mrf.mxu0
  %11761 = vmatprep.mubr.f32.mxu0 0.0
  %11762 = vmatmul.mubr.f32.gmra.mxu0 %v11431
  %v11763 = vpop.f32.mrf.mxu0
  %v11764 = vadd.f32 0.0, %v11763
  %v11765 = vpop.f32.mrf.mxu0
  %11766 = vmatprep.mubr.f32.mxu0 0.0
  %11767 = vmatmul.mubr.f32.gmra.mxu0 %v11434
  %v11768 = vpop.f32.mrf.mxu0
  %v11769 = vadd.f32 0.0, %v11768
  %v11770 = vpop.f32.mrf.mxu0
  %11771 = vmatprep.mubr.f32.mxu0 0.0
  %11772 = vmatmul.mubr.f32.gmra.mxu0 %v11437
  %v11773 = vpop.f32.mrf.mxu0
  %v11774 = vadd.f32 0.0, %v11773
  %v11775 = vpop.f32.mrf.mxu0
  %11776 = vmatprep.mubr.f32.mxu0 0.0
  %11777 = vmatmul.mubr.f32.gmra.mxu0 %v11440
  %v11778 = vpop.f32.mrf.mxu0
  %v11779 = vadd.f32 0.0, %v11778
  %v11780 = vpop.f32.mrf.mxu0
  %11781 = vmatprep.mubr.f32.mxu0 0.0
  %11782 = vmatmul.mubr.f32.gmra.mxu0 %v11443
  %v11783 = vpop.f32.mrf.mxu0
  %v11784 = vadd.f32 0.0, %v11783
  %v11785 = vpop.f32.mrf.mxu0
  %11786 = vmatprep.mubr.f32.mxu0 0.0
  %11787 = vmatmul.mubr.f32.gmra.mxu0 %v11446
  %v11788 = vpop.f32.mrf.mxu0
  %v11789 = vadd.f32 0.0, %v11788
  %v11790 = vpop.f32.mrf.mxu0
  %11791 = vmatprep.mubr.f32.mxu0 0.0
  %11792 = vmatmul.mubr.f32.gmra.mxu0 %v11449
  %v11793 = vpop.f32.mrf.mxu0
  %v11794 = vadd.f32 0.0, %v11793
  %v11795 = vpop.f32.mrf.mxu0
  %11796 = vmatprep.mubr.f32.mxu0 0.0
  %11797 = vmatmul.mubr.f32.gmra.mxu0 %v11452
  %v11798 = vpop.f32.mrf.mxu0
  %v11799 = vadd.f32 0.0, %v11798
  %v11800 = vpop.f32.mrf.mxu0
  %11801 = vmatprep.mubr.f32.mxu0 0.0
  %11802 = vmatmul.mubr.f32.gmra.mxu0 %v11455
  %v11803 = vpop.f32.mrf.mxu0
  %v11804 = vadd.f32 0.0, %v11803
  %v11805 = vpop.f32.mrf.mxu0
  %11806 = vmatprep.mubr.f32.mxu0 0.0
  %11807 = vmatmul.mubr.f32.gmra.mxu0 %v11458
  %v11808 = vpop.f32.mrf.mxu0
  %v11809 = vadd.f32 0.0, %v11808
  %v11810 = vpop.f32.mrf.mxu0
  %11811 = vmatprep.mubr.f32.mxu0 0.0
  %11812 = vmatmul.mubr.f32.gmra.mxu0 %v11461
  %v11813 = vpop.f32.mrf.mxu0
  %v11814 = vadd.f32 0.0, %v11813
  %v11815 = vpop.f32.mrf.mxu0
  %11816 = vmatprep.mubr.f32.mxu0 0.0
  %11817 = vmatmul.mubr.f32.gmra.mxu0 %v11464
  %v11818 = vpop.f32.mrf.mxu0
  %v11819 = vadd.f32 0.0, %v11818
  %v11820 = vpop.f32.mrf.mxu0
  %11821 = vmatprep.mubr.f32.mxu0 0.0
  %11822 = vmatmul.mubr.f32.gmra.mxu0 %v11467
  %v11823 = vpop.f32.mrf.mxu0
  %v11824 = vadd.f32 0.0, %v11823
  %v11825 = vpop.f32.mrf.mxu0
  %11826 = vmatprep.mubr.f32.mxu0 0.0
  %11827 = vmatmul.mubr.f32.gmra.mxu0 %v11470
  %v11828 = vpop.f32.mrf.mxu0
  %v11829 = vadd.f32 0.0, %v11828
  %v11830 = vpop.f32.mrf.mxu0
  %11831 = vmatprep.mubr.f32.mxu0 0.0
  %11832 = vmatmul.mubr.f32.gmra.mxu0 %v11473
  %v11833 = vpop.f32.mrf.mxu0
  %v11834 = vadd.f32 0.0, %v11833
  %v11835 = vpop.f32.mrf.mxu0
  %11836 = vmatprep.mubr.f32.mxu0 0.0
  %11837 = vmatmul.mubr.f32.gmra.mxu0 %v11476
  %v11838 = vpop.f32.mrf.mxu0
  %v11839 = vadd.f32 0.0, %v11838
  %v11840 = vpop.f32.mrf.mxu0
  %11841 = vmatprep.mubr.f32.mxu0 0.0
  %11842 = vmatmul.mubr.f32.gmra.mxu0 %v11479
  %v11843 = vpop.f32.mrf.mxu0
  %v11844 = vadd.f32 0.0, %v11843
  %v11845 = vpop.f32.mrf.mxu0
  %11846 = vmatprep.mubr.f32.mxu0 0.0
  %11847 = vmatmul.mubr.f32.gmra.mxu0 %v11482
  %v11848 = vpop.f32.mrf.mxu0
  %v11849 = vadd.f32 0.0, %v11848
  %v11850 = vpop.f32.mrf.mxu0
  %11851 = vmatprep.mubr.f32.mxu0 0.0
  %11852 = vmatmul.mubr.f32.gmra.mxu0 %v11485
  %v11853 = vpop.f32.mrf.mxu0
  %v11854 = vadd.f32 0.0, %v11853
  %v11855 = vpop.f32.mrf.mxu0
  %11856 = vmatprep.mubr.f32.mxu0 0.0
  %11857 = vmatmul.mubr.f32.gmra.mxu0 %v11488
  %v11858 = vpop.f32.mrf.mxu0
  %v11859 = vadd.f32 0.0, %v11858
  %v11860 = vpop.f32.mrf.mxu0
  %11861 = vmatprep.mubr.f32.mxu0 0.0
  %11862 = vmatmul.mubr.f32.gmra.mxu0 %v11491
  %v11863 = vpop.f32.mrf.mxu0
  %v11864 = vadd.f32 0.0, %v11863
  %v11865 = vpop.f32.mrf.mxu0
  %11866 = vmatprep.mubr.f32.mxu0 0.0
  %11867 = vmatmul.mubr.f32.gmra.mxu0 %v11494
  %v11868 = vpop.f32.mrf.mxu0
  %v11869 = vadd.f32 0.0, %v11868
  %v11870 = vpop.f32.mrf.mxu0
  %11871 = vmatprep.mubr.f32.mxu0 0.0
  %11872 = vmatmul.mubr.f32.gmra.mxu0 %v11497
  %v11873 = vpop.f32.mrf.mxu0
  %v11874 = vadd.f32 0.0, %v11873
  %v11875 = vpop.f32.mrf.mxu0
  %11876 = vmatprep.mubr.f32.mxu0 0.0
  %11877 = vmatmul.mubr.f32.gmra.mxu0 %v11500
  %v11878 = vpop.f32.mrf.mxu0
  %v11879 = vadd.f32 0.0, %v11878
  %v11880 = vpop.f32.mrf.mxu0
  %11881 = vmatprep.mubr.f32.mxu0 0.0
  %11882 = vmatmul.mubr.f32.gmra.mxu0 %v11503
  %v11883 = vpop.f32.mrf.mxu0
  %v11884 = vadd.f32 0.0, %v11883
  %v11885 = vpop.f32.mrf.mxu0
  %11886 = vmatprep.mubr.f32.mxu0 0.0
  %11887 = vmatmul.mubr.f32.gmra.mxu0 %v11506
  %v11888 = vpop.f32.mrf.mxu0
  %v11889 = vadd.f32 0.0, %v11888
  %v11890 = vpop.f32.mrf.mxu0
  %11891 = vmatprep.mubr.f32.mxu0 0.0
  %11892 = vmatmul.mubr.f32.gmra.mxu0 %v11509
  %v11893 = vpop.f32.mrf.mxu0
  %v11894 = vadd.f32 0.0, %v11893
  %v11895 = vpop.f32.mrf.mxu0
  %11896 = vmatprep.mubr.f32.mxu0 0.0
  %11897 = vmatmul.mubr.f32.gmra.mxu0 %v11512
  %v11898 = vpop.f32.mrf.mxu0
  %v11899 = vadd.f32 0.0, %v11898
  %v11900 = vpop.f32.mrf.mxu0
  %11901 = vdwg.mxu0
  %v11902 = vadd.f32 %v11192, %v11584
  %v11903 = vadd.f32 %v11193, %v11589
  %v11904 = vadd.f32 %v11194, %v11594
  %v11905 = vadd.f32 %v11195, %v11599
  %v11906 = vadd.f32 %v11196, %v11604
  %v11907 = vadd.f32 %v11197, %v11609
  %v11908 = vadd.f32 %v11198, %v11614
  %v11909 = vadd.f32 %v11199, %v11619
  %v11910 = vadd.f32 %v11200, %v11624
  %v11911 = vadd.f32 %v11201, %v11629
  %v11912 = vadd.f32 %v11202, %v11634
  %v11913 = vadd.f32 %v11203, %v11639
  %v11914 = vadd.f32 %v11204, %v11644
  %v11915 = vadd.f32 %v11205, %v11649
  %v11916 = vadd.f32 %v11206, %v11654
  %v11917 = vadd.f32 %v11207, %v11659
  %v11918 = vadd.f32 %v11208, %v11664
  %v11919 = vadd.f32 %v11209, %v11669
  %v11920 = vadd.f32 %v11210, %v11674
  %v11921 = vadd.f32 %v11211, %v11679
  %v11922 = vadd.f32 %v11212, %v11684
  %v11923 = vadd.f32 %v11213, %v11689
  %v11924 = vadd.f32 %v11214, %v11694
  %v11925 = vadd.f32 %v11215, %v11699
  %v11926 = vadd.f32 %v11216, %v11704
  %v11927 = vadd.f32 %v11217, %v11709
  %v11928 = vadd.f32 %v11218, %v11714
  %v11929 = vadd.f32 %v11219, %v11719
  %v11930 = vadd.f32 %v11220, %v11724
  %v11931 = vadd.f32 %v11221, %v11729
  %v11932 = vadd.f32 %v11222, %v11734
  %v11933 = vadd.f32 %v11223, %v11739
  %v11934 = vadd.f32 %v11224, %v11744
  %v11935 = vadd.f32 %v11225, %v11749
  %v11936 = vadd.f32 %v11226, %v11754
  %v11937 = vadd.f32 %v11227, %v11759
  %v11938 = vadd.f32 %v11228, %v11764
  %v11939 = vadd.f32 %v11229, %v11769
  %v11940 = vadd.f32 %v11230, %v11774
  %v11941 = vadd.f32 %v11231, %v11779
  %v11942 = vadd.f32 %v11232, %v11784
  %v11943 = vadd.f32 %v11233, %v11789
  %v11944 = vadd.f32 %v11234, %v11794
  %v11945 = vadd.f32 %v11235, %v11799
  %v11946 = vadd.f32 %v11236, %v11804
  %v11947 = vadd.f32 %v11237, %v11809
  %v11948 = vadd.f32 %v11238, %v11814
  %v11949 = vadd.f32 %v11239, %v11819
  %v11950 = vadd.f32 %v11240, %v11824
  %v11951 = vadd.f32 %v11241, %v11829
  %v11952 = vadd.f32 %v11242, %v11834
  %v11953 = vadd.f32 %v11243, %v11839
  %v11954 = vadd.f32 %v11244, %v11844
  %v11955 = vadd.f32 %v11245, %v11849
  %v11956 = vadd.f32 %v11246, %v11854
  %v11957 = vadd.f32 %v11247, %v11859
  %v11958 = vadd.f32 %v11248, %v11864
  %v11959 = vadd.f32 %v11249, %v11869
  %v11960 = vadd.f32 %v11250, %v11874
  %v11961 = vadd.f32 %v11251, %v11879
  %v11962 = vadd.f32 %v11252, %v11884
  %v11963 = vadd.f32 %v11253, %v11889
  %v11964 = vadd.f32 %v11254, %v11894
  %v11965 = vadd.f32 %v11255, %v11899
  %v11966 = vld [vmem:[%s4386 + $0x1] sm:$0xff]
  %v11967 = vld [vmem:[%s4386 + $0x9] sm:$0xff]
  %v11968 = vld [vmem:[%s4386 + $0x19] sm:$0xff]
  %v11969 = vld [vmem:[%s4386 + $0x21] sm:$0xff]
  %v11970 = vld [vmem:[%s4386 + $0x31] sm:$0xff]
  %v11971 = vld [vmem:[%s4386 + $0x39] sm:$0xff]
  %v11972 = vld [vmem:[%s4386 + $0x49] sm:$0xff]
  %v11973 = vld [vmem:[%s4386 + $0x51] sm:$0xff]
  %v11974 = vld [vmem:[%s4386 + $0x61] sm:$0xff]
  %v11975 = vld [vmem:[%s4386 + $0x69] sm:$0xff]
  %v11976 = vld [vmem:[%s4386 + $0x79] sm:$0xff]
  %v11977 = vld [vmem:[%s4386 + $0x81] sm:$0xff]
  %v11978 = vld [vmem:[%s4386 + $0x91] sm:$0xff]
  %v11979 = vld [vmem:[%s4386 + $0x99] sm:$0xff]
  %v11980 = vld [vmem:[%s4386 + $0xa9] sm:$0xff]
  %v11981 = vld [vmem:[%s4386 + $0xb1] sm:$0xff]
  %v11982 = vld [vmem:[%s4386 + $0xc1] sm:$0xff]
  %v11983 = vld [vmem:[%s4386 + $0xc9] sm:$0xff]
  %v11984 = vld [vmem:[%s4386 + $0xd9] sm:$0xff]
  %v11985 = vld [vmem:[%s4386 + $0xe1] sm:$0xff]
  %v11986 = vld [vmem:[%s4386 + $0xf1] sm:$0xff]
  %v11987 = vld [vmem:[%s4386 + $0xf9] sm:$0xff]
  %v11988 = vld [vmem:[%s4386 + $0x109] sm:$0xff]
  %v11989 = vld [vmem:[%s4386 + $0x111] sm:$0xff]
  %v11990 = vld [vmem:[%s4386 + $0x121] sm:$0xff]
  %v11991 = vld [vmem:[%s4386 + $0x129] sm:$0xff]
  %v11992 = vld [vmem:[%s4386 + $0x139] sm:$0xff]
  %v11993 = vld [vmem:[%s4386 + $0x141] sm:$0xff]
  %v11994 = vld [vmem:[%s4386 + $0x151] sm:$0xff]
  %v11995 = vld [vmem:[%s4386 + $0x159] sm:$0xff]
  %v11996 = vld [vmem:[%s4386 + $0x169] sm:$0xff]
  %v11997 = vld [vmem:[%s4386 + $0x171] sm:$0xff]
  %v11998 = vld [vmem:[%s4386 + $0x1b1] sm:$0xff]
  %v11999 = vld [vmem:[%s4386 + $0x1b9] sm:$0xff]
  %v12000 = vld [vmem:[%s4386 + $0x1c9] sm:$0xff]
  %v12001 = vld [vmem:[%s4386 + $0x1d1] sm:$0xff]
  %v12002 = vld [vmem:[%s4386 + $0x1e1] sm:$0xff]
  %v12003 = vld [vmem:[%s4386 + $0x1e9] sm:$0xff]
  %v12004 = vld [vmem:[%s4386 + $0x1f9] sm:$0xff]
  %v12005 = vld [vmem:[%s4386 + $0x201] sm:$0xff]
  %v12006 = vld [vmem:[%s4386 + $0x211] sm:$0xff]
  %v12007 = vld [vmem:[%s4386 + $0x219] sm:$0xff]
  %v12008 = vld [vmem:[%s4386 + $0x229] sm:$0xff]
  %v12009 = vld [vmem:[%s4386 + $0x231] sm:$0xff]
  %v12010 = vld [vmem:[%s4386 + $0x241] sm:$0xff]
  %v12011 = vld [vmem:[%s4386 + $0x249] sm:$0xff]
  %v12012 = vld [vmem:[%s4386 + $0x259] sm:$0xff]
  %v12013 = vld [vmem:[%s4386 + $0x261] sm:$0xff]
  %v12014 = vld [vmem:[%s4386 + $0x271] sm:$0xff]
  %v12015 = vld [vmem:[%s4386 + $0x279] sm:$0xff]
  %v12016 = vld [vmem:[%s4386 + $0x289] sm:$0xff]
  %v12017 = vld [vmem:[%s4386 + $0x291] sm:$0xff]
  %v12018 = vld [vmem:[%s4386 + $0x2a1] sm:$0xff]
  %v12019 = vld [vmem:[%s4386 + $0x2a9] sm:$0xff]
  %v12020 = vld [vmem:[%s4386 + $0x2b9] sm:$0xff]
  %v12021 = vld [vmem:[%s4386 + $0x2c1] sm:$0xff]
  %v12022 = vld [vmem:[%s4386 + $0x2d1] sm:$0xff]
  %v12023 = vld [vmem:[%s4386 + $0x2d9] sm:$0xff]
  %v12024 = vld [vmem:[%s4386 + $0x2e9] sm:$0xff]
  %v12025 = vld [vmem:[%s4386 + $0x2f1] sm:$0xff]
  %v12026 = vld [vmem:[%s4386 + $0x301] sm:$0xff]
  %v12027 = vld [vmem:[%s4386 + $0x309] sm:$0xff]
  %v12028 = vld [vmem:[%s4386 + $0x319] sm:$0xff]
  %v12029 = vld [vmem:[%s4386 + $0x321] sm:$0xff]
  %s12030 = scalar_lea.vmem %s1, 64
  %v12031 = vld [vmem:[%s12030] sm:$0xf]
  %v12033 = vsel %vm14, %v11966, 0
  %v12036 = vsel %vm14, %v11967, 0
  %v12039 = vsel %vm14, %v11968, 0
  %v12042 = vsel %vm14, %v11969, 0
  %v12045 = vsel %vm14, %v11970, 0
  %v12048 = vsel %vm14, %v11971, 0
  %v12051 = vsel %vm14, %v11972, 0
  %v12054 = vsel %vm14, %v11973, 0
  %v12057 = vsel %vm14, %v11974, 0
  %v12060 = vsel %vm14, %v11975, 0
  %v12063 = vsel %vm14, %v11976, 0
  %v12066 = vsel %vm14, %v11977, 0
  %v12069 = vsel %vm14, %v11978, 0
  %v12072 = vsel %vm14, %v11979, 0
  %v12075 = vsel %vm14, %v11980, 0
  %v12078 = vsel %vm14, %v11981, 0
  %v12081 = vsel %vm14, %v11982, 0
  %v12084 = vsel %vm14, %v11983, 0
  %v12087 = vsel %vm14, %v11984, 0
  %v12090 = vsel %vm14, %v11985, 0
  %v12093 = vsel %vm14, %v11986, 0
  %v12096 = vsel %vm14, %v11987, 0
  %v12099 = vsel %vm14, %v11988, 0
  %v12102 = vsel %vm14, %v11989, 0
  %v12105 = vsel %vm14, %v11990, 0
  %v12108 = vsel %vm14, %v11991, 0
  %v12111 = vsel %vm14, %v11992, 0
  %v12114 = vsel %vm14, %v11993, 0
  %v12117 = vsel %vm14, %v11994, 0
  %v12120 = vsel %vm14, %v11995, 0
  %v12123 = vsel %vm14, %v11996, 0
  %v12126 = vsel %vm14, %v11997, 0
  %v12129 = vsel %vm14, %v11998, 0
  %v12132 = vsel %vm14, %v11999, 0
  %v12135 = vsel %vm14, %v12000, 0
  %v12138 = vsel %vm14, %v12001, 0
  %v12141 = vsel %vm14, %v12002, 0
  %v12144 = vsel %vm14, %v12003, 0
  %v12147 = vsel %vm14, %v12004, 0
  %v12150 = vsel %vm14, %v12005, 0
  %v12153 = vsel %vm14, %v12006, 0
  %v12156 = vsel %vm14, %v12007, 0
  %v12159 = vsel %vm14, %v12008, 0
  %v12162 = vsel %vm14, %v12009, 0
  %v12165 = vsel %vm14, %v12010, 0
  %v12168 = vsel %vm14, %v12011, 0
  %v12171 = vsel %vm14, %v12012, 0
  %v12174 = vsel %vm14, %v12013, 0
  %v12177 = vsel %vm14, %v12014, 0
  %v12180 = vsel %vm14, %v12015, 0
  %v12183 = vsel %vm14, %v12016, 0
  %v12186 = vsel %vm14, %v12017, 0
  %v12189 = vsel %vm14, %v12018, 0
  %v12192 = vsel %vm14, %v12019, 0
  %v12195 = vsel %vm14, %v12020, 0
  %v12198 = vsel %vm14, %v12021, 0
  %v12201 = vsel %vm14, %v12022, 0
  %v12204 = vsel %vm14, %v12023, 0
  %v12207 = vsel %vm14, %v12024, 0
  %v12210 = vsel %vm14, %v12025, 0
  %v12213 = vsel %vm14, %v12026, 0
  %v12216 = vsel %vm14, %v12027, 0
  %v12219 = vsel %vm14, %v12028, 0
  %v12222 = vsel %vm14, %v12029, 0
  %v12225 = vsel %vm577, %v12031, 0
  %12227 = vmatprep.subr.mxu0 0.0
  %12228 = vmatpush1.msra.mxu0 0.0
  %12229 = vmatprep.subr.mxu0 0.0
  %12230 = vmatpush1.msra.mxu0 0.0
  %12231 = vmatprep.subr.mxu0 0.0
  %12232 = vmatpush1.msra.mxu0 0.0
  %12233 = vmatprep.subr.mxu0 0.0
  %12234 = vmatpush1.msra.mxu0 0.0
  %12235 = vmatprep.subr.mxu0 0.0
  %12236 = vmatpush1.msra.mxu0 0.0
  %12237 = vmatprep.subr.mxu0 0.0
  %12238 = vmatpush1.msra.mxu0 0.0
  %12239 = vmatprep.subr.mxu0 0.0
  %12240 = vmatpush1.msra.mxu0 0.0
  %12241 = vmatprep.subr.mxu0 0.0
  %12242 = vmatpush1.msra.mxu0 0.0
  %12243 = vmatprep.subr.mxu0 0.0
  %12244 = vmatpush1.msra.mxu0 0.0
  %12245 = vmatprep.subr.mxu0 0.0
  %12246 = vmatpush1.msra.mxu0 0.0
  %12247 = vmatprep.subr.mxu0 0.0
  %12248 = vmatpush1.msra.mxu0 0.0
  %12249 = vmatprep.subr.mxu0 0.0
  %12250 = vmatpush1.msra.mxu0 0.0
  %12251 = vmatprep.subr.mxu0 0.0
  %12252 = vmatpush1.msra.mxu0 0.0
  %12253 = vmatprep.subr.mxu0 0.0
  %12254 = vmatpush1.msra.mxu0 0.0
  %12255 = vmatprep.subr.mxu0 0.0
  %12256 = vmatpush1.msra.mxu0 0.0
  %12257 = vmatprep.subr.mxu0 0.0
  %12258 = vmatpush1.msra.mxu0 %v12225
  %12259 = vmatprep.subr.mxu0 0.0
  %12260 = vmatpush2.msra.mxu0 0.0
  %12261 = vmatprep.subr.mxu0 0.0
  %12262 = vmatpush2.msra.mxu0 0.0
  %12263 = vmatprep.subr.mxu0 0.0
  %12264 = vmatpush2.msra.mxu0 0.0
  %12265 = vmatprep.subr.mxu0 0.0
  %12266 = vmatpush2.msra.mxu0 0.0
  %12267 = vmatprep.subr.mxu0 0.0
  %12268 = vmatpush2.msra.mxu0 0.0
  %12269 = vmatprep.subr.mxu0 0.0
  %12270 = vmatpush2.msra.mxu0 0.0
  %12271 = vmatprep.subr.mxu0 0.0
  %12272 = vmatpush2.msra.mxu0 0.0
  %12273 = vmatprep.subr.mxu0 0.0
  %12274 = vmatpush2.msra.mxu0 0.0
  %12275 = vmatprep.subr.mxu0 0.0
  %12276 = vmatpush2.msra.mxu0 0.0
  %12277 = vmatprep.subr.mxu0 0.0
  %12278 = vmatpush2.msra.mxu0 0.0
  %12279 = vmatprep.subr.mxu0 0.0
  %12280 = vmatpush2.msra.mxu0 0.0
  %12281 = vmatprep.subr.mxu0 0.0
  %12282 = vmatpush2.msra.mxu0 0.0
  %12283 = vmatprep.subr.mxu0 0.0
  %12284 = vmatpush2.msra.mxu0 0.0
  %12285 = vmatprep.subr.mxu0 0.0
  %12286 = vmatpush2.msra.mxu0 0.0
  %12287 = vmatprep.subr.mxu0 0.0
  %12288 = vmatpush2.msra.mxu0 0.0
  %12289 = vmatprep.subr.mxu0 0.0
  %12290 = vmatpush2.msra.mxu0 0.0
  %12291 = vmatprep.mubr.f32.mxu0 0.0
  %12292 = vmatmul.mubr.f32.gmra.mxu0 %v12033
  %v12293 = vpop.f32.mrf.mxu0
  %v12294 = vadd.f32 0.0, %v12293
  %v12295 = vpop.f32.mrf.mxu0
  %12296 = vmatprep.mubr.f32.mxu0 0.0
  %12297 = vmatmul.mubr.f32.gmra.mxu0 %v12036
  %v12298 = vpop.f32.mrf.mxu0
  %v12299 = vadd.f32 0.0, %v12298
  %v12300 = vpop.f32.mrf.mxu0
  %12301 = vmatprep.mubr.f32.mxu0 0.0
  %12302 = vmatmul.mubr.f32.gmra.mxu0 %v12039
  %v12303 = vpop.f32.mrf.mxu0
  %v12304 = vadd.f32 0.0, %v12303
  %v12305 = vpop.f32.mrf.mxu0
  %12306 = vmatprep.mubr.f32.mxu0 0.0
  %12307 = vmatmul.mubr.f32.gmra.mxu0 %v12042
  %v12308 = vpop.f32.mrf.mxu0
  %v12309 = vadd.f32 0.0, %v12308
  %v12310 = vpop.f32.mrf.mxu0
  %12311 = vmatprep.mubr.f32.mxu0 0.0
  %12312 = vmatmul.mubr.f32.gmra.mxu0 %v12045
  %v12313 = vpop.f32.mrf.mxu0
  %v12314 = vadd.f32 0.0, %v12313
  %v12315 = vpop.f32.mrf.mxu0
  %12316 = vmatprep.mubr.f32.mxu0 0.0
  %12317 = vmatmul.mubr.f32.gmra.mxu0 %v12048
  %v12318 = vpop.f32.mrf.mxu0
  %v12319 = vadd.f32 0.0, %v12318
  %v12320 = vpop.f32.mrf.mxu0
  %12321 = vmatprep.mubr.f32.mxu0 0.0
  %12322 = vmatmul.mubr.f32.gmra.mxu0 %v12051
  %v12323 = vpop.f32.mrf.mxu0
  %v12324 = vadd.f32 0.0, %v12323
  %v12325 = vpop.f32.mrf.mxu0
  %12326 = vmatprep.mubr.f32.mxu0 0.0
  %12327 = vmatmul.mubr.f32.gmra.mxu0 %v12054
  %v12328 = vpop.f32.mrf.mxu0
  %v12329 = vadd.f32 0.0, %v12328
  %v12330 = vpop.f32.mrf.mxu0
  %12331 = vmatprep.mubr.f32.mxu0 0.0
  %12332 = vmatmul.mubr.f32.gmra.mxu0 %v12057
  %v12333 = vpop.f32.mrf.mxu0
  %v12334 = vadd.f32 0.0, %v12333
  %v12335 = vpop.f32.mrf.mxu0
  %12336 = vmatprep.mubr.f32.mxu0 0.0
  %12337 = vmatmul.mubr.f32.gmra.mxu0 %v12060
  %v12338 = vpop.f32.mrf.mxu0
  %v12339 = vadd.f32 0.0, %v12338
  %v12340 = vpop.f32.mrf.mxu0
  %12341 = vmatprep.mubr.f32.mxu0 0.0
  %12342 = vmatmul.mubr.f32.gmra.mxu0 %v12063
  %v12343 = vpop.f32.mrf.mxu0
  %v12344 = vadd.f32 0.0, %v12343
  %v12345 = vpop.f32.mrf.mxu0
  %12346 = vmatprep.mubr.f32.mxu0 0.0
  %12347 = vmatmul.mubr.f32.gmra.mxu0 %v12066
  %v12348 = vpop.f32.mrf.mxu0
  %v12349 = vadd.f32 0.0, %v12348
  %v12350 = vpop.f32.mrf.mxu0
  %12351 = vmatprep.mubr.f32.mxu0 0.0
  %12352 = vmatmul.mubr.f32.gmra.mxu0 %v12069
  %v12353 = vpop.f32.mrf.mxu0
  %v12354 = vadd.f32 0.0, %v12353
  %v12355 = vpop.f32.mrf.mxu0
  %12356 = vmatprep.mubr.f32.mxu0 0.0
  %12357 = vmatmul.mubr.f32.gmra.mxu0 %v12072
  %v12358 = vpop.f32.mrf.mxu0
  %v12359 = vadd.f32 0.0, %v12358
  %v12360 = vpop.f32.mrf.mxu0
  %12361 = vmatprep.mubr.f32.mxu0 0.0
  %12362 = vmatmul.mubr.f32.gmra.mxu0 %v12075
  %v12363 = vpop.f32.mrf.mxu0
  %v12364 = vadd.f32 0.0, %v12363
  %v12365 = vpop.f32.mrf.mxu0
  %12366 = vmatprep.mubr.f32.mxu0 0.0
  %12367 = vmatmul.mubr.f32.gmra.mxu0 %v12078
  %v12368 = vpop.f32.mrf.mxu0
  %v12369 = vadd.f32 0.0, %v12368
  %v12370 = vpop.f32.mrf.mxu0
  %12371 = vmatprep.mubr.f32.mxu0 0.0
  %12372 = vmatmul.mubr.f32.gmra.mxu0 %v12081
  %v12373 = vpop.f32.mrf.mxu0
  %v12374 = vadd.f32 0.0, %v12373
  %v12375 = vpop.f32.mrf.mxu0
  %12376 = vmatprep.mubr.f32.mxu0 0.0
  %12377 = vmatmul.mubr.f32.gmra.mxu0 %v12084
  %v12378 = vpop.f32.mrf.mxu0
  %v12379 = vadd.f32 0.0, %v12378
  %v12380 = vpop.f32.mrf.mxu0
  %12381 = vmatprep.mubr.f32.mxu0 0.0
  %12382 = vmatmul.mubr.f32.gmra.mxu0 %v12087
  %v12383 = vpop.f32.mrf.mxu0
  %v12384 = vadd.f32 0.0, %v12383
  %v12385 = vpop.f32.mrf.mxu0
  %12386 = vmatprep.mubr.f32.mxu0 0.0
  %12387 = vmatmul.mubr.f32.gmra.mxu0 %v12090
  %v12388 = vpop.f32.mrf.mxu0
  %v12389 = vadd.f32 0.0, %v12388
  %v12390 = vpop.f32.mrf.mxu0
  %12391 = vmatprep.mubr.f32.mxu0 0.0
  %12392 = vmatmul.mubr.f32.gmra.mxu0 %v12093
  %v12393 = vpop.f32.mrf.mxu0
  %v12394 = vadd.f32 0.0, %v12393
  %v12395 = vpop.f32.mrf.mxu0
  %12396 = vmatprep.mubr.f32.mxu0 0.0
  %12397 = vmatmul.mubr.f32.gmra.mxu0 %v12096
  %v12398 = vpop.f32.mrf.mxu0
  %v12399 = vadd.f32 0.0, %v12398
  %v12400 = vpop.f32.mrf.mxu0
  %12401 = vmatprep.mubr.f32.mxu0 0.0
  %12402 = vmatmul.mubr.f32.gmra.mxu0 %v12099
  %v12403 = vpop.f32.mrf.mxu0
  %v12404 = vadd.f32 0.0, %v12403
  %v12405 = vpop.f32.mrf.mxu0
  %12406 = vmatprep.mubr.f32.mxu0 0.0
  %12407 = vmatmul.mubr.f32.gmra.mxu0 %v12102
  %v12408 = vpop.f32.mrf.mxu0
  %v12409 = vadd.f32 0.0, %v12408
  %v12410 = vpop.f32.mrf.mxu0
  %12411 = vmatprep.mubr.f32.mxu0 0.0
  %12412 = vmatmul.mubr.f32.gmra.mxu0 %v12105
  %v12413 = vpop.f32.mrf.mxu0
  %v12414 = vadd.f32 0.0, %v12413
  %v12415 = vpop.f32.mrf.mxu0
  %12416 = vmatprep.mubr.f32.mxu0 0.0
  %12417 = vmatmul.mubr.f32.gmra.mxu0 %v12108
  %v12418 = vpop.f32.mrf.mxu0
  %v12419 = vadd.f32 0.0, %v12418
  %v12420 = vpop.f32.mrf.mxu0
  %12421 = vmatprep.mubr.f32.mxu0 0.0
  %12422 = vmatmul.mubr.f32.gmra.mxu0 %v12111
  %v12423 = vpop.f32.mrf.mxu0
  %v12424 = vadd.f32 0.0, %v12423
  %v12425 = vpop.f32.mrf.mxu0
  %12426 = vmatprep.mubr.f32.mxu0 0.0
  %12427 = vmatmul.mubr.f32.gmra.mxu0 %v12114
  %v12428 = vpop.f32.mrf.mxu0
  %v12429 = vadd.f32 0.0, %v12428
  %v12430 = vpop.f32.mrf.mxu0
  %12431 = vmatprep.mubr.f32.mxu0 0.0
  %12432 = vmatmul.mubr.f32.gmra.mxu0 %v12117
  %v12433 = vpop.f32.mrf.mxu0
  %v12434 = vadd.f32 0.0, %v12433
  %v12435 = vpop.f32.mrf.mxu0
  %12436 = vmatprep.mubr.f32.mxu0 0.0
  %12437 = vmatmul.mubr.f32.gmra.mxu0 %v12120
  %v12438 = vpop.f32.mrf.mxu0
  %v12439 = vadd.f32 0.0, %v12438
  %v12440 = vpop.f32.mrf.mxu0
  %12441 = vmatprep.mubr.f32.mxu0 0.0
  %12442 = vmatmul.mubr.f32.gmra.mxu0 %v12123
  %v12443 = vpop.f32.mrf.mxu0
  %v12444 = vadd.f32 0.0, %v12443
  %v12445 = vpop.f32.mrf.mxu0
  %12446 = vmatprep.mubr.f32.mxu0 0.0
  %12447 = vmatmul.mubr.f32.gmra.mxu0 %v12126
  %v12448 = vpop.f32.mrf.mxu0
  %v12449 = vadd.f32 0.0, %v12448
  %v12450 = vpop.f32.mrf.mxu0
  %12451 = vmatprep.mubr.f32.mxu0 0.0
  %12452 = vmatmul.mubr.f32.gmra.mxu0 %v12129
  %v12453 = vpop.f32.mrf.mxu0
  %v12454 = vadd.f32 0.0, %v12453
  %v12455 = vpop.f32.mrf.mxu0
  %12456 = vmatprep.mubr.f32.mxu0 0.0
  %12457 = vmatmul.mubr.f32.gmra.mxu0 %v12132
  %v12458 = vpop.f32.mrf.mxu0
  %v12459 = vadd.f32 0.0, %v12458
  %v12460 = vpop.f32.mrf.mxu0
  %12461 = vmatprep.mubr.f32.mxu0 0.0
  %12462 = vmatmul.mubr.f32.gmra.mxu0 %v12135
  %v12463 = vpop.f32.mrf.mxu0
  %v12464 = vadd.f32 0.0, %v12463
  %v12465 = vpop.f32.mrf.mxu0
  %12466 = vmatprep.mubr.f32.mxu0 0.0
  %12467 = vmatmul.mubr.f32.gmra.mxu0 %v12138
  %v12468 = vpop.f32.mrf.mxu0
  %v12469 = vadd.f32 0.0, %v12468
  %v12470 = vpop.f32.mrf.mxu0
  %12471 = vmatprep.mubr.f32.mxu0 0.0
  %12472 = vmatmul.mubr.f32.gmra.mxu0 %v12141
  %v12473 = vpop.f32.mrf.mxu0
  %v12474 = vadd.f32 0.0, %v12473
  %v12475 = vpop.f32.mrf.mxu0
  %12476 = vmatprep.mubr.f32.mxu0 0.0
  %12477 = vmatmul.mubr.f32.gmra.mxu0 %v12144
  %v12478 = vpop.f32.mrf.mxu0
  %v12479 = vadd.f32 0.0, %v12478
  %v12480 = vpop.f32.mrf.mxu0
  %12481 = vmatprep.mubr.f32.mxu0 0.0
  %12482 = vmatmul.mubr.f32.gmra.mxu0 %v12147
  %v12483 = vpop.f32.mrf.mxu0
  %v12484 = vadd.f32 0.0, %v12483
  %v12485 = vpop.f32.mrf.mxu0
  %12486 = vmatprep.mubr.f32.mxu0 0.0
  %12487 = vmatmul.mubr.f32.gmra.mxu0 %v12150
  %v12488 = vpop.f32.mrf.mxu0
  %v12489 = vadd.f32 0.0, %v12488
  %v12490 = vpop.f32.mrf.mxu0
  %12491 = vmatprep.mubr.f32.mxu0 0.0
  %12492 = vmatmul.mubr.f32.gmra.mxu0 %v12153
  %v12493 = vpop.f32.mrf.mxu0
  %v12494 = vadd.f32 0.0, %v12493
  %v12495 = vpop.f32.mrf.mxu0
  %12496 = vmatprep.mubr.f32.mxu0 0.0
  %12497 = vmatmul.mubr.f32.gmra.mxu0 %v12156
  %v12498 = vpop.f32.mrf.mxu0
  %v12499 = vadd.f32 0.0, %v12498
  %v12500 = vpop.f32.mrf.mxu0
  %12501 = vmatprep.mubr.f32.mxu0 0.0
  %12502 = vmatmul.mubr.f32.gmra.mxu0 %v12159
  %v12503 = vpop.f32.mrf.mxu0
  %v12504 = vadd.f32 0.0, %v12503
  %v12505 = vpop.f32.mrf.mxu0
  %12506 = vmatprep.mubr.f32.mxu0 0.0
  %12507 = vmatmul.mubr.f32.gmra.mxu0 %v12162
  %v12508 = vpop.f32.mrf.mxu0
  %v12509 = vadd.f32 0.0, %v12508
  %v12510 = vpop.f32.mrf.mxu0
  %12511 = vmatprep.mubr.f32.mxu0 0.0
  %12512 = vmatmul.mubr.f32.gmra.mxu0 %v12165
  %v12513 = vpop.f32.mrf.mxu0
  %v12514 = vadd.f32 0.0, %v12513
  %v12515 = vpop.f32.mrf.mxu0
  %12516 = vmatprep.mubr.f32.mxu0 0.0
  %12517 = vmatmul.mubr.f32.gmra.mxu0 %v12168
  %v12518 = vpop.f32.mrf.mxu0
  %v12519 = vadd.f32 0.0, %v12518
  %v12520 = vpop.f32.mrf.mxu0
  %12521 = vmatprep.mubr.f32.mxu0 0.0
  %12522 = vmatmul.mubr.f32.gmra.mxu0 %v12171
  %v12523 = vpop.f32.mrf.mxu0
  %v12524 = vadd.f32 0.0, %v12523
  %v12525 = vpop.f32.mrf.mxu0
  %12526 = vmatprep.mubr.f32.mxu0 0.0
  %12527 = vmatmul.mubr.f32.gmra.mxu0 %v12174
  %v12528 = vpop.f32.mrf.mxu0
  %v12529 = vadd.f32 0.0, %v12528
  %v12530 = vpop.f32.mrf.mxu0
  %12531 = vmatprep.mubr.f32.mxu0 0.0
  %12532 = vmatmul.mubr.f32.gmra.mxu0 %v12177
  %v12533 = vpop.f32.mrf.mxu0
  %v12534 = vadd.f32 0.0, %v12533
  %v12535 = vpop.f32.mrf.mxu0
  %12536 = vmatprep.mubr.f32.mxu0 0.0
  %12537 = vmatmul.mubr.f32.gmra.mxu0 %v12180
  %v12538 = vpop.f32.mrf.mxu0
  %v12539 = vadd.f32 0.0, %v12538
  %v12540 = vpop.f32.mrf.mxu0
  %12541 = vmatprep.mubr.f32.mxu0 0.0
  %12542 = vmatmul.mubr.f32.gmra.mxu0 %v12183
  %v12543 = vpop.f32.mrf.mxu0
  %v12544 = vadd.f32 0.0, %v12543
  %v12545 = vpop.f32.mrf.mxu0
  %12546 = vmatprep.mubr.f32.mxu0 0.0
  %12547 = vmatmul.mubr.f32.gmra.mxu0 %v12186
  %v12548 = vpop.f32.mrf.mxu0
  %v12549 = vadd.f32 0.0, %v12548
  %v12550 = vpop.f32.mrf.mxu0
  %12551 = vmatprep.mubr.f32.mxu0 0.0
  %12552 = vmatmul.mubr.f32.gmra.mxu0 %v12189
  %v12553 = vpop.f32.mrf.mxu0
  %v12554 = vadd.f32 0.0, %v12553
  %v12555 = vpop.f32.mrf.mxu0
  %12556 = vmatprep.mubr.f32.mxu0 0.0
  %12557 = vmatmul.mubr.f32.gmra.mxu0 %v12192
  %v12558 = vpop.f32.mrf.mxu0
  %v12559 = vadd.f32 0.0, %v12558
  %v12560 = vpop.f32.mrf.mxu0
  %12561 = vmatprep.mubr.f32.mxu0 0.0
  %12562 = vmatmul.mubr.f32.gmra.mxu0 %v12195
  %v12563 = vpop.f32.mrf.mxu0
  %v12564 = vadd.f32 0.0, %v12563
  %v12565 = vpop.f32.mrf.mxu0
  %12566 = vmatprep.mubr.f32.mxu0 0.0
  %12567 = vmatmul.mubr.f32.gmra.mxu0 %v12198
  %v12568 = vpop.f32.mrf.mxu0
  %v12569 = vadd.f32 0.0, %v12568
  %v12570 = vpop.f32.mrf.mxu0
  %12571 = vmatprep.mubr.f32.mxu0 0.0
  %12572 = vmatmul.mubr.f32.gmra.mxu0 %v12201
  %v12573 = vpop.f32.mrf.mxu0
  %v12574 = vadd.f32 0.0, %v12573
  %v12575 = vpop.f32.mrf.mxu0
  %12576 = vmatprep.mubr.f32.mxu0 0.0
  %12577 = vmatmul.mubr.f32.gmra.mxu0 %v12204
  %v12578 = vpop.f32.mrf.mxu0
  %v12579 = vadd.f32 0.0, %v12578
  %v12580 = vpop.f32.mrf.mxu0
  %12581 = vmatprep.mubr.f32.mxu0 0.0
  %12582 = vmatmul.mubr.f32.gmra.mxu0 %v12207
  %v12583 = vpop.f32.mrf.mxu0
  %v12584 = vadd.f32 0.0, %v12583
  %v12585 = vpop.f32.mrf.mxu0
  %12586 = vmatprep.mubr.f32.mxu0 0.0
  %12587 = vmatmul.mubr.f32.gmra.mxu0 %v12210
  %v12588 = vpop.f32.mrf.mxu0
  %v12589 = vadd.f32 0.0, %v12588
  %v12590 = vpop.f32.mrf.mxu0
  %12591 = vmatprep.mubr.f32.mxu0 0.0
  %12592 = vmatmul.mubr.f32.gmra.mxu0 %v12213
  %v12593 = vpop.f32.mrf.mxu0
  %v12594 = vadd.f32 0.0, %v12593
  %v12595 = vpop.f32.mrf.mxu0
  %12596 = vmatprep.mubr.f32.mxu0 0.0
  %12597 = vmatmul.mubr.f32.gmra.mxu0 %v12216
  %v12598 = vpop.f32.mrf.mxu0
  %v12599 = vadd.f32 0.0, %v12598
  %v12600 = vpop.f32.mrf.mxu0
  %12601 = vmatprep.mubr.f32.mxu0 0.0
  %12602 = vmatmul.mubr.f32.gmra.mxu0 %v12219
  %v12603 = vpop.f32.mrf.mxu0
  %v12604 = vadd.f32 0.0, %v12603
  %v12605 = vpop.f32.mrf.mxu0
  %12606 = vmatprep.mubr.f32.mxu0 0.0
  %12607 = vmatmul.mubr.f32.gmra.mxu0 %v12222
  %v12608 = vpop.f32.mrf.mxu0
  %v12609 = vadd.f32 0.0, %v12608
  %v12610 = vpop.f32.mrf.mxu0
  %12611 = vdwg.mxu0
  %v12612 = vadd.f32 %v11902, %v12294
  %v12613 = vadd.f32 %v11903, %v12299
  %v12614 = vadd.f32 %v11904, %v12304
  %v12615 = vadd.f32 %v11905, %v12309
  %v12616 = vadd.f32 %v11906, %v12314
  %v12617 = vadd.f32 %v11907, %v12319
  %v12618 = vadd.f32 %v11908, %v12324
  %v12619 = vadd.f32 %v11909, %v12329
  %v12620 = vadd.f32 %v11910, %v12334
  %v12621 = vadd.f32 %v11911, %v12339
  %v12622 = vadd.f32 %v11912, %v12344
  %v12623 = vadd.f32 %v11913, %v12349
  %v12624 = vadd.f32 %v11914, %v12354
  %v12625 = vadd.f32 %v11915, %v12359
  %v12626 = vadd.f32 %v11916, %v12364
  %v12627 = vadd.f32 %v11917, %v12369
  %v12628 = vadd.f32 %v11918, %v12374
  %v12629 = vadd.f32 %v11919, %v12379
  %v12630 = vadd.f32 %v11920, %v12384
  %v12631 = vadd.f32 %v11921, %v12389
  %v12632 = vadd.f32 %v11922, %v12394
  %v12633 = vadd.f32 %v11923, %v12399
  %v12634 = vadd.f32 %v11924, %v12404
  %v12635 = vadd.f32 %v11925, %v12409
  %v12636 = vadd.f32 %v11926, %v12414
  %v12637 = vadd.f32 %v11927, %v12419
  %v12638 = vadd.f32 %v11928, %v12424
  %v12639 = vadd.f32 %v11929, %v12429
  %v12640 = vadd.f32 %v11930, %v12434
  %v12641 = vadd.f32 %v11931, %v12439
  %v12642 = vadd.f32 %v11932, %v12444
  %v12643 = vadd.f32 %v11933, %v12449
  %v12644 = vadd.f32 %v11934, %v12454
  %v12645 = vadd.f32 %v11935, %v12459
  %v12646 = vadd.f32 %v11936, %v12464
  %v12647 = vadd.f32 %v11937, %v12469
  %v12648 = vadd.f32 %v11938, %v12474
  %v12649 = vadd.f32 %v11939, %v12479
  %v12650 = vadd.f32 %v11940, %v12484
  %v12651 = vadd.f32 %v11941, %v12489
  %v12652 = vadd.f32 %v11942, %v12494
  %v12653 = vadd.f32 %v11943, %v12499
  %v12654 = vadd.f32 %v11944, %v12504
  %v12655 = vadd.f32 %v11945, %v12509
  %v12656 = vadd.f32 %v11946, %v12514
  %v12657 = vadd.f32 %v11947, %v12519
  %v12658 = vadd.f32 %v11948, %v12524
  %v12659 = vadd.f32 %v11949, %v12529
  %v12660 = vadd.f32 %v11950, %v12534
  %v12661 = vadd.f32 %v11951, %v12539
  %v12662 = vadd.f32 %v11952, %v12544
  %v12663 = vadd.f32 %v11953, %v12549
  %v12664 = vadd.f32 %v11954, %v12554
  %v12665 = vadd.f32 %v11955, %v12559
  %v12666 = vadd.f32 %v11956, %v12564
  %v12667 = vadd.f32 %v11957, %v12569
  %v12668 = vadd.f32 %v11958, %v12574
  %v12669 = vadd.f32 %v11959, %v12579
  %v12670 = vadd.f32 %v11960, %v12584
  %v12671 = vadd.f32 %v11961, %v12589
  %v12672 = vadd.f32 %v11962, %v12594
  %v12673 = vadd.f32 %v11963, %v12599
  %v12674 = vadd.f32 %v11964, %v12604
  %v12675 = vadd.f32 %v11965, %v12609
  %v12676 = vld [vmem:[%s4386 + $0x2] sm:$0xff]
  %v12677 = vld [vmem:[%s4386 + $0xa] sm:$0xff]
  %v12678 = vld [vmem:[%s4386 + $0x1a] sm:$0xff]
  %v12679 = vld [vmem:[%s4386 + $0x22] sm:$0xff]
  %v12680 = vld [vmem:[%s4386 + $0x32] sm:$0xff]
  %v12681 = vld [vmem:[%s4386 + $0x3a] sm:$0xff]
  %v12682 = vld [vmem:[%s4386 + $0x4a] sm:$0xff]
  %v12683 = vld [vmem:[%s4386 + $0x52] sm:$0xff]
  %v12684 = vld [vmem:[%s4386 + $0x62] sm:$0xff]
  %v12685 = vld [vmem:[%s4386 + $0x6a] sm:$0xff]
  %v12686 = vld [vmem:[%s4386 + $0x7a] sm:$0xff]
  %v12687 = vld [vmem:[%s4386 + $0x82] sm:$0xff]
  %v12688 = vld [vmem:[%s4386 + $0x92] sm:$0xff]
  %v12689 = vld [vmem:[%s4386 + $0x9a] sm:$0xff]
  %v12690 = vld [vmem:[%s4386 + $0xaa] sm:$0xff]
  %v12691 = vld [vmem:[%s4386 + $0xb2] sm:$0xff]
  %v12692 = vld [vmem:[%s4386 + $0xc2] sm:$0xff]
  %v12693 = vld [vmem:[%s4386 + $0xca] sm:$0xff]
  %v12694 = vld [vmem:[%s4386 + $0xda] sm:$0xff]
  %v12695 = vld [vmem:[%s4386 + $0xe2] sm:$0xff]
  %v12696 = vld [vmem:[%s4386 + $0xf2] sm:$0xff]
  %v12697 = vld [vmem:[%s4386 + $0xfa] sm:$0xff]
  %v12698 = vld [vmem:[%s4386 + $0x10a] sm:$0xff]
  %v12699 = vld [vmem:[%s4386 + $0x112] sm:$0xff]
  %v12700 = vld [vmem:[%s4386 + $0x122] sm:$0xff]
  %v12701 = vld [vmem:[%s4386 + $0x12a] sm:$0xff]
  %v12702 = vld [vmem:[%s4386 + $0x13a] sm:$0xff]
  %v12703 = vld [vmem:[%s4386 + $0x142] sm:$0xff]
  %v12704 = vld [vmem:[%s4386 + $0x152] sm:$0xff]
  %v12705 = vld [vmem:[%s4386 + $0x15a] sm:$0xff]
  %v12706 = vld [vmem:[%s4386 + $0x16a] sm:$0xff]
  %v12707 = vld [vmem:[%s4386 + $0x172] sm:$0xff]
  %v12708 = vld [vmem:[%s4386 + $0x1b2] sm:$0xff]
  %v12709 = vld [vmem:[%s4386 + $0x1ba] sm:$0xff]
  %v12710 = vld [vmem:[%s4386 + $0x1ca] sm:$0xff]
  %v12711 = vld [vmem:[%s4386 + $0x1d2] sm:$0xff]
  %v12712 = vld [vmem:[%s4386 + $0x1e2] sm:$0xff]
  %v12713 = vld [vmem:[%s4386 + $0x1ea] sm:$0xff]
  %v12714 = vld [vmem:[%s4386 + $0x1fa] sm:$0xff]
  %v12715 = vld [vmem:[%s4386 + $0x202] sm:$0xff]
  %v12716 = vld [vmem:[%s4386 + $0x212] sm:$0xff]
  %v12717 = vld [vmem:[%s4386 + $0x21a] sm:$0xff]
  %v12718 = vld [vmem:[%s4386 + $0x22a] sm:$0xff]
  %v12719 = vld [vmem:[%s4386 + $0x232] sm:$0xff]
  %v12720 = vld [vmem:[%s4386 + $0x242] sm:$0xff]
  %v12721 = vld [vmem:[%s4386 + $0x24a] sm:$0xff]
  %v12722 = vld [vmem:[%s4386 + $0x25a] sm:$0xff]
  %v12723 = vld [vmem:[%s4386 + $0x262] sm:$0xff]
  %v12724 = vld [vmem:[%s4386 + $0x272] sm:$0xff]
  %v12725 = vld [vmem:[%s4386 + $0x27a] sm:$0xff]
  %v12726 = vld [vmem:[%s4386 + $0x28a] sm:$0xff]
  %v12727 = vld [vmem:[%s4386 + $0x292] sm:$0xff]
  %v12728 = vld [vmem:[%s4386 + $0x2a2] sm:$0xff]
  %v12729 = vld [vmem:[%s4386 + $0x2aa] sm:$0xff]
  %v12730 = vld [vmem:[%s4386 + $0x2ba] sm:$0xff]
  %v12731 = vld [vmem:[%s4386 + $0x2c2] sm:$0xff]
  %v12732 = vld [vmem:[%s4386 + $0x2d2] sm:$0xff]
  %v12733 = vld [vmem:[%s4386 + $0x2da] sm:$0xff]
  %v12734 = vld [vmem:[%s4386 + $0x2ea] sm:$0xff]
  %v12735 = vld [vmem:[%s4386 + $0x2f2] sm:$0xff]
  %v12736 = vld [vmem:[%s4386 + $0x302] sm:$0xff]
  %v12737 = vld [vmem:[%s4386 + $0x30a] sm:$0xff]
  %v12738 = vld [vmem:[%s4386 + $0x31a] sm:$0xff]
  %v12739 = vld [vmem:[%s4386 + $0x322] sm:$0xff]
  %s12740 = scalar_lea.vmem %s1, 68
  %v12741 = vld [vmem:[%s12740] sm:$0xf]
  %v12743 = vsel %vm14, %v12676, 0
  %v12746 = vsel %vm14, %v12677, 0
  %v12749 = vsel %vm14, %v12678, 0
  %v12752 = vsel %vm14, %v12679, 0
  %v12755 = vsel %vm14, %v12680, 0
  %v12758 = vsel %vm14, %v12681, 0
  %v12761 = vsel %vm14, %v12682, 0
  %v12764 = vsel %vm14, %v12683, 0
  %v12767 = vsel %vm14, %v12684, 0
  %v12770 = vsel %vm14, %v12685, 0
  %v12773 = vsel %vm14, %v12686, 0
  %v12776 = vsel %vm14, %v12687, 0
  %v12779 = vsel %vm14, %v12688, 0
  %v12782 = vsel %vm14, %v12689, 0
  %v12785 = vsel %vm14, %v12690, 0
  %v12788 = vsel %vm14, %v12691, 0
  %v12791 = vsel %vm14, %v12692, 0
  %v12794 = vsel %vm14, %v12693, 0
  %v12797 = vsel %vm14, %v12694, 0
  %v12800 = vsel %vm14, %v12695, 0
  %v12803 = vsel %vm14, %v12696, 0
  %v12806 = vsel %vm14, %v12697, 0
  %v12809 = vsel %vm14, %v12698, 0
  %v12812 = vsel %vm14, %v12699, 0
  %v12815 = vsel %vm14, %v12700, 0
  %v12818 = vsel %vm14, %v12701, 0
  %v12821 = vsel %vm14, %v12702, 0
  %v12824 = vsel %vm14, %v12703, 0
  %v12827 = vsel %vm14, %v12704, 0
  %v12830 = vsel %vm14, %v12705, 0
  %v12833 = vsel %vm14, %v12706, 0
  %v12836 = vsel %vm14, %v12707, 0
  %v12839 = vsel %vm14, %v12708, 0
  %v12842 = vsel %vm14, %v12709, 0
  %v12845 = vsel %vm14, %v12710, 0
  %v12848 = vsel %vm14, %v12711, 0
  %v12851 = vsel %vm14, %v12712, 0
  %v12854 = vsel %vm14, %v12713, 0
  %v12857 = vsel %vm14, %v12714, 0
  %v12860 = vsel %vm14, %v12715, 0
  %v12863 = vsel %vm14, %v12716, 0
  %v12866 = vsel %vm14, %v12717, 0
  %v12869 = vsel %vm14, %v12718, 0
  %v12872 = vsel %vm14, %v12719, 0
  %v12875 = vsel %vm14, %v12720, 0
  %v12878 = vsel %vm14, %v12721, 0
  %v12881 = vsel %vm14, %v12722, 0
  %v12884 = vsel %vm14, %v12723, 0
  %v12887 = vsel %vm14, %v12724, 0
  %v12890 = vsel %vm14, %v12725, 0
  %v12893 = vsel %vm14, %v12726, 0
  %v12896 = vsel %vm14, %v12727, 0
  %v12899 = vsel %vm14, %v12728, 0
  %v12902 = vsel %vm14, %v12729, 0
  %v12905 = vsel %vm14, %v12730, 0
  %v12908 = vsel %vm14, %v12731, 0
  %v12911 = vsel %vm14, %v12732, 0
  %v12914 = vsel %vm14, %v12733, 0
  %v12917 = vsel %vm14, %v12734, 0
  %v12920 = vsel %vm14, %v12735, 0
  %v12923 = vsel %vm14, %v12736, 0
  %v12926 = vsel %vm14, %v12737, 0
  %v12929 = vsel %vm14, %v12738, 0
  %v12932 = vsel %vm14, %v12739, 0
  %v12935 = vsel %vm577, %v12741, 0
  %12937 = vmatprep.subr.mxu0 0.0
  %12938 = vmatpush1.msra.mxu0 0.0
  %12939 = vmatprep.subr.mxu0 0.0
  %12940 = vmatpush1.msra.mxu0 0.0
  %12941 = vmatprep.subr.mxu0 0.0
  %12942 = vmatpush1.msra.mxu0 0.0
  %12943 = vmatprep.subr.mxu0 0.0
  %12944 = vmatpush1.msra.mxu0 0.0
  %12945 = vmatprep.subr.mxu0 0.0
  %12946 = vmatpush1.msra.mxu0 0.0
  %12947 = vmatprep.subr.mxu0 0.0
  %12948 = vmatpush1.msra.mxu0 0.0
  %12949 = vmatprep.subr.mxu0 0.0
  %12950 = vmatpush1.msra.mxu0 0.0
  %12951 = vmatprep.subr.mxu0 0.0
  %12952 = vmatpush1.msra.mxu0 0.0
  %12953 = vmatprep.subr.mxu0 0.0
  %12954 = vmatpush1.msra.mxu0 0.0
  %12955 = vmatprep.subr.mxu0 0.0
  %12956 = vmatpush1.msra.mxu0 0.0
  %12957 = vmatprep.subr.mxu0 0.0
  %12958 = vmatpush1.msra.mxu0 0.0
  %12959 = vmatprep.subr.mxu0 0.0
  %12960 = vmatpush1.msra.mxu0 0.0
  %12961 = vmatprep.subr.mxu0 0.0
  %12962 = vmatpush1.msra.mxu0 0.0
  %12963 = vmatprep.subr.mxu0 0.0
  %12964 = vmatpush1.msra.mxu0 0.0
  %12965 = vmatprep.subr.mxu0 0.0
  %12966 = vmatpush1.msra.mxu0 0.0
  %12967 = vmatprep.subr.mxu0 0.0
  %12968 = vmatpush1.msra.mxu0 %v12935
  %12969 = vmatprep.subr.mxu0 0.0
  %12970 = vmatpush2.msra.mxu0 0.0
  %12971 = vmatprep.subr.mxu0 0.0
  %12972 = vmatpush2.msra.mxu0 0.0
  %12973 = vmatprep.subr.mxu0 0.0
  %12974 = vmatpush2.msra.mxu0 0.0
  %12975 = vmatprep.subr.mxu0 0.0
  %12976 = vmatpush2.msra.mxu0 0.0
  %12977 = vmatprep.subr.mxu0 0.0
  %12978 = vmatpush2.msra.mxu0 0.0
  %12979 = vmatprep.subr.mxu0 0.0
  %12980 = vmatpush2.msra.mxu0 0.0
  %12981 = vmatprep.subr.mxu0 0.0
  %12982 = vmatpush2.msra.mxu0 0.0
  %12983 = vmatprep.subr.mxu0 0.0
  %12984 = vmatpush2.msra.mxu0 0.0
  %12985 = vmatprep.subr.mxu0 0.0
  %12986 = vmatpush2.msra.mxu0 0.0
  %12987 = vmatprep.subr.mxu0 0.0
  %12988 = vmatpush2.msra.mxu0 0.0
  %12989 = vmatprep.subr.mxu0 0.0
  %12990 = vmatpush2.msra.mxu0 0.0
  %12991 = vmatprep.subr.mxu0 0.0
  %12992 = vmatpush2.msra.mxu0 0.0
  %12993 = vmatprep.subr.mxu0 0.0
  %12994 = vmatpush2.msra.mxu0 0.0
  %12995 = vmatprep.subr.mxu0 0.0
  %12996 = vmatpush2.msra.mxu0 0.0
  %12997 = vmatprep.subr.mxu0 0.0
  %12998 = vmatpush2.msra.mxu0 0.0
  %12999 = vmatprep.subr.mxu0 0.0
  %13000 = vmatpush2.msra.mxu0 0.0
  %13001 = vmatprep.mubr.f32.mxu0 0.0
  %13002 = vmatmul.mubr.f32.gmra.mxu0 %v12743
  %v13003 = vpop.f32.mrf.mxu0
  %v13004 = vadd.f32 0.0, %v13003
  %v13005 = vpop.f32.mrf.mxu0
  %13006 = vmatprep.mubr.f32.mxu0 0.0
  %13007 = vmatmul.mubr.f32.gmra.mxu0 %v12746
  %v13008 = vpop.f32.mrf.mxu0
  %v13009 = vadd.f32 0.0, %v13008
  %v13010 = vpop.f32.mrf.mxu0
  %13011 = vmatprep.mubr.f32.mxu0 0.0
  %13012 = vmatmul.mubr.f32.gmra.mxu0 %v12749
  %v13013 = vpop.f32.mrf.mxu0
  %v13014 = vadd.f32 0.0, %v13013
  %v13015 = vpop.f32.mrf.mxu0
  %13016 = vmatprep.mubr.f32.mxu0 0.0
  %13017 = vmatmul.mubr.f32.gmra.mxu0 %v12752
  %v13018 = vpop.f32.mrf.mxu0
  %v13019 = vadd.f32 0.0, %v13018
  %v13020 = vpop.f32.mrf.mxu0
  %13021 = vmatprep.mubr.f32.mxu0 0.0
  %13022 = vmatmul.mubr.f32.gmra.mxu0 %v12755
  %v13023 = vpop.f32.mrf.mxu0
  %v13024 = vadd.f32 0.0, %v13023
  %v13025 = vpop.f32.mrf.mxu0
  %13026 = vmatprep.mubr.f32.mxu0 0.0
  %13027 = vmatmul.mubr.f32.gmra.mxu0 %v12758
  %v13028 = vpop.f32.mrf.mxu0
  %v13029 = vadd.f32 0.0, %v13028
  %v13030 = vpop.f32.mrf.mxu0
  %13031 = vmatprep.mubr.f32.mxu0 0.0
  %13032 = vmatmul.mubr.f32.gmra.mxu0 %v12761
  %v13033 = vpop.f32.mrf.mxu0
  %v13034 = vadd.f32 0.0, %v13033
  %v13035 = vpop.f32.mrf.mxu0
  %13036 = vmatprep.mubr.f32.mxu0 0.0
  %13037 = vmatmul.mubr.f32.gmra.mxu0 %v12764
  %v13038 = vpop.f32.mrf.mxu0
  %v13039 = vadd.f32 0.0, %v13038
  %v13040 = vpop.f32.mrf.mxu0
  %13041 = vmatprep.mubr.f32.mxu0 0.0
  %13042 = vmatmul.mubr.f32.gmra.mxu0 %v12767
  %v13043 = vpop.f32.mrf.mxu0
  %v13044 = vadd.f32 0.0, %v13043
  %v13045 = vpop.f32.mrf.mxu0
  %13046 = vmatprep.mubr.f32.mxu0 0.0
  %13047 = vmatmul.mubr.f32.gmra.mxu0 %v12770
  %v13048 = vpop.f32.mrf.mxu0
  %v13049 = vadd.f32 0.0, %v13048
  %v13050 = vpop.f32.mrf.mxu0
  %13051 = vmatprep.mubr.f32.mxu0 0.0
  %13052 = vmatmul.mubr.f32.gmra.mxu0 %v12773
  %v13053 = vpop.f32.mrf.mxu0
  %v13054 = vadd.f32 0.0, %v13053
  %v13055 = vpop.f32.mrf.mxu0
  %13056 = vmatprep.mubr.f32.mxu0 0.0
  %13057 = vmatmul.mubr.f32.gmra.mxu0 %v12776
  %v13058 = vpop.f32.mrf.mxu0
  %v13059 = vadd.f32 0.0, %v13058
  %v13060 = vpop.f32.mrf.mxu0
  %13061 = vmatprep.mubr.f32.mxu0 0.0
  %13062 = vmatmul.mubr.f32.gmra.mxu0 %v12779
  %v13063 = vpop.f32.mrf.mxu0
  %v13064 = vadd.f32 0.0, %v13063
  %v13065 = vpop.f32.mrf.mxu0
  %13066 = vmatprep.mubr.f32.mxu0 0.0
  %13067 = vmatmul.mubr.f32.gmra.mxu0 %v12782
  %v13068 = vpop.f32.mrf.mxu0
  %v13069 = vadd.f32 0.0, %v13068
  %v13070 = vpop.f32.mrf.mxu0
  %13071 = vmatprep.mubr.f32.mxu0 0.0
  %13072 = vmatmul.mubr.f32.gmra.mxu0 %v12785
  %v13073 = vpop.f32.mrf.mxu0
  %v13074 = vadd.f32 0.0, %v13073
  %v13075 = vpop.f32.mrf.mxu0
  %13076 = vmatprep.mubr.f32.mxu0 0.0
  %13077 = vmatmul.mubr.f32.gmra.mxu0 %v12788
  %v13078 = vpop.f32.mrf.mxu0
  %v13079 = vadd.f32 0.0, %v13078
  %v13080 = vpop.f32.mrf.mxu0
  %13081 = vmatprep.mubr.f32.mxu0 0.0
  %13082 = vmatmul.mubr.f32.gmra.mxu0 %v12791
  %v13083 = vpop.f32.mrf.mxu0
  %v13084 = vadd.f32 0.0, %v13083
  %v13085 = vpop.f32.mrf.mxu0
  %13086 = vmatprep.mubr.f32.mxu0 0.0
  %13087 = vmatmul.mubr.f32.gmra.mxu0 %v12794
  %v13088 = vpop.f32.mrf.mxu0
  %v13089 = vadd.f32 0.0, %v13088
  %v13090 = vpop.f32.mrf.mxu0
  %13091 = vmatprep.mubr.f32.mxu0 0.0
  %13092 = vmatmul.mubr.f32.gmra.mxu0 %v12797
  %v13093 = vpop.f32.mrf.mxu0
  %v13094 = vadd.f32 0.0, %v13093
  %v13095 = vpop.f32.mrf.mxu0
  %13096 = vmatprep.mubr.f32.mxu0 0.0
  %13097 = vmatmul.mubr.f32.gmra.mxu0 %v12800
  %v13098 = vpop.f32.mrf.mxu0
  %v13099 = vadd.f32 0.0, %v13098
  %v13100 = vpop.f32.mrf.mxu0
  %13101 = vmatprep.mubr.f32.mxu0 0.0
  %13102 = vmatmul.mubr.f32.gmra.mxu0 %v12803
  %v13103 = vpop.f32.mrf.mxu0
  %v13104 = vadd.f32 0.0, %v13103
  %v13105 = vpop.f32.mrf.mxu0
  %13106 = vmatprep.mubr.f32.mxu0 0.0
  %13107 = vmatmul.mubr.f32.gmra.mxu0 %v12806
  %v13108 = vpop.f32.mrf.mxu0
  %v13109 = vadd.f32 0.0, %v13108
  %v13110 = vpop.f32.mrf.mxu0
  %13111 = vmatprep.mubr.f32.mxu0 0.0
  %13112 = vmatmul.mubr.f32.gmra.mxu0 %v12809
  %v13113 = vpop.f32.mrf.mxu0
  %v13114 = vadd.f32 0.0, %v13113
  %v13115 = vpop.f32.mrf.mxu0
  %13116 = vmatprep.mubr.f32.mxu0 0.0
  %13117 = vmatmul.mubr.f32.gmra.mxu0 %v12812
  %v13118 = vpop.f32.mrf.mxu0
  %v13119 = vadd.f32 0.0, %v13118
  %v13120 = vpop.f32.mrf.mxu0
  %13121 = vmatprep.mubr.f32.mxu0 0.0
  %13122 = vmatmul.mubr.f32.gmra.mxu0 %v12815
  %v13123 = vpop.f32.mrf.mxu0
  %v13124 = vadd.f32 0.0, %v13123
  %v13125 = vpop.f32.mrf.mxu0
  %13126 = vmatprep.mubr.f32.mxu0 0.0
  %13127 = vmatmul.mubr.f32.gmra.mxu0 %v12818
  %v13128 = vpop.f32.mrf.mxu0
  %v13129 = vadd.f32 0.0, %v13128
  %v13130 = vpop.f32.mrf.mxu0
  %13131 = vmatprep.mubr.f32.mxu0 0.0
  %13132 = vmatmul.mubr.f32.gmra.mxu0 %v12821
  %v13133 = vpop.f32.mrf.mxu0
  %v13134 = vadd.f32 0.0, %v13133
  %v13135 = vpop.f32.mrf.mxu0
  %13136 = vmatprep.mubr.f32.mxu0 0.0
  %13137 = vmatmul.mubr.f32.gmra.mxu0 %v12824
  %v13138 = vpop.f32.mrf.mxu0
  %v13139 = vadd.f32 0.0, %v13138
  %v13140 = vpop.f32.mrf.mxu0
  %13141 = vmatprep.mubr.f32.mxu0 0.0
  %13142 = vmatmul.mubr.f32.gmra.mxu0 %v12827
  %v13143 = vpop.f32.mrf.mxu0
  %v13144 = vadd.f32 0.0, %v13143
  %v13145 = vpop.f32.mrf.mxu0
  %13146 = vmatprep.mubr.f32.mxu0 0.0
  %13147 = vmatmul.mubr.f32.gmra.mxu0 %v12830
  %v13148 = vpop.f32.mrf.mxu0
  %v13149 = vadd.f32 0.0, %v13148
  %v13150 = vpop.f32.mrf.mxu0
  %13151 = vmatprep.mubr.f32.mxu0 0.0
  %13152 = vmatmul.mubr.f32.gmra.mxu0 %v12833
  %v13153 = vpop.f32.mrf.mxu0
  %v13154 = vadd.f32 0.0, %v13153
  %v13155 = vpop.f32.mrf.mxu0
  %13156 = vmatprep.mubr.f32.mxu0 0.0
  %13157 = vmatmul.mubr.f32.gmra.mxu0 %v12836
  %v13158 = vpop.f32.mrf.mxu0
  %v13159 = vadd.f32 0.0, %v13158
  %v13160 = vpop.f32.mrf.mxu0
  %13161 = vmatprep.mubr.f32.mxu0 0.0
  %13162 = vmatmul.mubr.f32.gmra.mxu0 %v12839
  %v13163 = vpop.f32.mrf.mxu0
  %v13164 = vadd.f32 0.0, %v13163
  %v13165 = vpop.f32.mrf.mxu0
  %13166 = vmatprep.mubr.f32.mxu0 0.0
  %13167 = vmatmul.mubr.f32.gmra.mxu0 %v12842
  %v13168 = vpop.f32.mrf.mxu0
  %v13169 = vadd.f32 0.0, %v13168
  %v13170 = vpop.f32.mrf.mxu0
  %13171 = vmatprep.mubr.f32.mxu0 0.0
  %13172 = vmatmul.mubr.f32.gmra.mxu0 %v12845
  %v13173 = vpop.f32.mrf.mxu0
  %v13174 = vadd.f32 0.0, %v13173
  %v13175 = vpop.f32.mrf.mxu0
  %13176 = vmatprep.mubr.f32.mxu0 0.0
  %13177 = vmatmul.mubr.f32.gmra.mxu0 %v12848
  %v13178 = vpop.f32.mrf.mxu0
  %v13179 = vadd.f32 0.0, %v13178
  %v13180 = vpop.f32.mrf.mxu0
  %13181 = vmatprep.mubr.f32.mxu0 0.0
  %13182 = vmatmul.mubr.f32.gmra.mxu0 %v12851
  %v13183 = vpop.f32.mrf.mxu0
  %v13184 = vadd.f32 0.0, %v13183
  %v13185 = vpop.f32.mrf.mxu0
  %13186 = vmatprep.mubr.f32.mxu0 0.0
  %13187 = vmatmul.mubr.f32.gmra.mxu0 %v12854
  %v13188 = vpop.f32.mrf.mxu0
  %v13189 = vadd.f32 0.0, %v13188
  %v13190 = vpop.f32.mrf.mxu0
  %13191 = vmatprep.mubr.f32.mxu0 0.0
  %13192 = vmatmul.mubr.f32.gmra.mxu0 %v12857
  %v13193 = vpop.f32.mrf.mxu0
  %v13194 = vadd.f32 0.0, %v13193
  %v13195 = vpop.f32.mrf.mxu0
  %13196 = vmatprep.mubr.f32.mxu0 0.0
  %13197 = vmatmul.mubr.f32.gmra.mxu0 %v12860
  %v13198 = vpop.f32.mrf.mxu0
  %v13199 = vadd.f32 0.0, %v13198
  %v13200 = vpop.f32.mrf.mxu0
  %13201 = vmatprep.mubr.f32.mxu0 0.0
  %13202 = vmatmul.mubr.f32.gmra.mxu0 %v12863
  %v13203 = vpop.f32.mrf.mxu0
  %v13204 = vadd.f32 0.0, %v13203
  %v13205 = vpop.f32.mrf.mxu0
  %13206 = vmatprep.mubr.f32.mxu0 0.0
  %13207 = vmatmul.mubr.f32.gmra.mxu0 %v12866
  %v13208 = vpop.f32.mrf.mxu0
  %v13209 = vadd.f32 0.0, %v13208
  %v13210 = vpop.f32.mrf.mxu0
  %13211 = vmatprep.mubr.f32.mxu0 0.0
  %13212 = vmatmul.mubr.f32.gmra.mxu0 %v12869
  %v13213 = vpop.f32.mrf.mxu0
  %v13214 = vadd.f32 0.0, %v13213
  %v13215 = vpop.f32.mrf.mxu0
  %13216 = vmatprep.mubr.f32.mxu0 0.0
  %13217 = vmatmul.mubr.f32.gmra.mxu0 %v12872
  %v13218 = vpop.f32.mrf.mxu0
  %v13219 = vadd.f32 0.0, %v13218
  %v13220 = vpop.f32.mrf.mxu0
  %13221 = vmatprep.mubr.f32.mxu0 0.0
  %13222 = vmatmul.mubr.f32.gmra.mxu0 %v12875
  %v13223 = vpop.f32.mrf.mxu0
  %v13224 = vadd.f32 0.0, %v13223
  %v13225 = vpop.f32.mrf.mxu0
  %13226 = vmatprep.mubr.f32.mxu0 0.0
  %13227 = vmatmul.mubr.f32.gmra.mxu0 %v12878
  %v13228 = vpop.f32.mrf.mxu0
  %v13229 = vadd.f32 0.0, %v13228
  %v13230 = vpop.f32.mrf.mxu0
  %13231 = vmatprep.mubr.f32.mxu0 0.0
  %13232 = vmatmul.mubr.f32.gmra.mxu0 %v12881
  %v13233 = vpop.f32.mrf.mxu0
  %v13234 = vadd.f32 0.0, %v13233
  %v13235 = vpop.f32.mrf.mxu0
  %13236 = vmatprep.mubr.f32.mxu0 0.0
  %13237 = vmatmul.mubr.f32.gmra.mxu0 %v12884
  %v13238 = vpop.f32.mrf.mxu0
  %v13239 = vadd.f32 0.0, %v13238
  %v13240 = vpop.f32.mrf.mxu0
  %13241 = vmatprep.mubr.f32.mxu0 0.0
  %13242 = vmatmul.mubr.f32.gmra.mxu0 %v12887
  %v13243 = vpop.f32.mrf.mxu0
  %v13244 = vadd.f32 0.0, %v13243
  %v13245 = vpop.f32.mrf.mxu0
  %13246 = vmatprep.mubr.f32.mxu0 0.0
  %13247 = vmatmul.mubr.f32.gmra.mxu0 %v12890
  %v13248 = vpop.f32.mrf.mxu0
  %v13249 = vadd.f32 0.0, %v13248
  %v13250 = vpop.f32.mrf.mxu0
  %13251 = vmatprep.mubr.f32.mxu0 0.0
  %13252 = vmatmul.mubr.f32.gmra.mxu0 %v12893
  %v13253 = vpop.f32.mrf.mxu0
  %v13254 = vadd.f32 0.0, %v13253
  %v13255 = vpop.f32.mrf.mxu0
  %13256 = vmatprep.mubr.f32.mxu0 0.0
  %13257 = vmatmul.mubr.f32.gmra.mxu0 %v12896
  %v13258 = vpop.f32.mrf.mxu0
  %v13259 = vadd.f32 0.0, %v13258
  %v13260 = vpop.f32.mrf.mxu0
  %13261 = vmatprep.mubr.f32.mxu0 0.0
  %13262 = vmatmul.mubr.f32.gmra.mxu0 %v12899
  %v13263 = vpop.f32.mrf.mxu0
  %v13264 = vadd.f32 0.0, %v13263
  %v13265 = vpop.f32.mrf.mxu0
  %13266 = vmatprep.mubr.f32.mxu0 0.0
  %13267 = vmatmul.mubr.f32.gmra.mxu0 %v12902
  %v13268 = vpop.f32.mrf.mxu0
  %v13269 = vadd.f32 0.0, %v13268
  %v13270 = vpop.f32.mrf.mxu0
  %13271 = vmatprep.mubr.f32.mxu0 0.0
  %13272 = vmatmul.mubr.f32.gmra.mxu0 %v12905
  %v13273 = vpop.f32.mrf.mxu0
  %v13274 = vadd.f32 0.0, %v13273
  %v13275 = vpop.f32.mrf.mxu0
  %13276 = vmatprep.mubr.f32.mxu0 0.0
  %13277 = vmatmul.mubr.f32.gmra.mxu0 %v12908
  %v13278 = vpop.f32.mrf.mxu0
  %v13279 = vadd.f32 0.0, %v13278
  %v13280 = vpop.f32.mrf.mxu0
  %13281 = vmatprep.mubr.f32.mxu0 0.0
  %13282 = vmatmul.mubr.f32.gmra.mxu0 %v12911
  %v13283 = vpop.f32.mrf.mxu0
  %v13284 = vadd.f32 0.0, %v13283
  %v13285 = vpop.f32.mrf.mxu0
  %13286 = vmatprep.mubr.f32.mxu0 0.0
  %13287 = vmatmul.mubr.f32.gmra.mxu0 %v12914
  %v13288 = vpop.f32.mrf.mxu0
  %v13289 = vadd.f32 0.0, %v13288
  %v13290 = vpop.f32.mrf.mxu0
  %13291 = vmatprep.mubr.f32.mxu0 0.0
  %13292 = vmatmul.mubr.f32.gmra.mxu0 %v12917
  %v13293 = vpop.f32.mrf.mxu0
  %v13294 = vadd.f32 0.0, %v13293
  %v13295 = vpop.f32.mrf.mxu0
  %13296 = vmatprep.mubr.f32.mxu0 0.0
  %13297 = vmatmul.mubr.f32.gmra.mxu0 %v12920
  %v13298 = vpop.f32.mrf.mxu0
  %v13299 = vadd.f32 0.0, %v13298
  %v13300 = vpop.f32.mrf.mxu0
  %13301 = vmatprep.mubr.f32.mxu0 0.0
  %13302 = vmatmul.mubr.f32.gmra.mxu0 %v12923
  %v13303 = vpop.f32.mrf.mxu0
  %v13304 = vadd.f32 0.0, %v13303
  %v13305 = vpop.f32.mrf.mxu0
  %13306 = vmatprep.mubr.f32.mxu0 0.0
  %13307 = vmatmul.mubr.f32.gmra.mxu0 %v12926
  %v13308 = vpop.f32.mrf.mxu0
  %v13309 = vadd.f32 0.0, %v13308
  %v13310 = vpop.f32.mrf.mxu0
  %13311 = vmatprep.mubr.f32.mxu0 0.0
  %13312 = vmatmul.mubr.f32.gmra.mxu0 %v12929
  %v13313 = vpop.f32.mrf.mxu0
  %v13314 = vadd.f32 0.0, %v13313
  %v13315 = vpop.f32.mrf.mxu0
  %13316 = vmatprep.mubr.f32.mxu0 0.0
  %13317 = vmatmul.mubr.f32.gmra.mxu0 %v12932
  %v13318 = vpop.f32.mrf.mxu0
  %v13319 = vadd.f32 0.0, %v13318
  %v13320 = vpop.f32.mrf.mxu0
  %13321 = vdwg.mxu0
  %v13322 = vadd.f32 %v12612, %v13004
  %v13323 = vadd.f32 %v12613, %v13009
  %v13324 = vadd.f32 %v12614, %v13014
  %v13325 = vadd.f32 %v12615, %v13019
  %v13326 = vadd.f32 %v12616, %v13024
  %v13327 = vadd.f32 %v12617, %v13029
  %v13328 = vadd.f32 %v12618, %v13034
  %v13329 = vadd.f32 %v12619, %v13039
  %v13330 = vadd.f32 %v12620, %v13044
  %v13331 = vadd.f32 %v12621, %v13049
  %v13332 = vadd.f32 %v12622, %v13054
  %v13333 = vadd.f32 %v12623, %v13059
  %v13334 = vadd.f32 %v12624, %v13064
  %v13335 = vadd.f32 %v12625, %v13069
  %v13336 = vadd.f32 %v12626, %v13074
  %v13337 = vadd.f32 %v12627, %v13079
  %v13338 = vadd.f32 %v12628, %v13084
  %v13339 = vadd.f32 %v12629, %v13089
  %v13340 = vadd.f32 %v12630, %v13094
  %v13341 = vadd.f32 %v12631, %v13099
  %v13342 = vadd.f32 %v12632, %v13104
  %v13343 = vadd.f32 %v12633, %v13109
  %v13344 = vadd.f32 %v12634, %v13114
  %v13345 = vadd.f32 %v12635, %v13119
  %v13346 = vadd.f32 %v12636, %v13124
  %v13347 = vadd.f32 %v12637, %v13129
  %v13348 = vadd.f32 %v12638, %v13134
  %v13349 = vadd.f32 %v12639, %v13139
  %v13350 = vadd.f32 %v12640, %v13144
  %v13351 = vadd.f32 %v12641, %v13149
  %v13352 = vadd.f32 %v12642, %v13154
  %v13353 = vadd.f32 %v12643, %v13159
  %v13354 = vadd.f32 %v12644, %v13164
  %v13355 = vadd.f32 %v12645, %v13169
  %v13356 = vadd.f32 %v12646, %v13174
  %v13357 = vadd.f32 %v12647, %v13179
  %v13358 = vadd.f32 %v12648, %v13184
  %v13359 = vadd.f32 %v12649, %v13189
  %v13360 = vadd.f32 %v12650, %v13194
  %v13361 = vadd.f32 %v12651, %v13199
  %v13362 = vadd.f32 %v12652, %v13204
  %v13363 = vadd.f32 %v12653, %v13209
  %v13364 = vadd.f32 %v12654, %v13214
  %v13365 = vadd.f32 %v12655, %v13219
  %v13366 = vadd.f32 %v12656, %v13224
  %v13367 = vadd.f32 %v12657, %v13229
  %v13368 = vadd.f32 %v12658, %v13234
  %v13369 = vadd.f32 %v12659, %v13239
  %v13370 = vadd.f32 %v12660, %v13244
  %v13371 = vadd.f32 %v12661, %v13249
  %v13372 = vadd.f32 %v12662, %v13254
  %v13373 = vadd.f32 %v12663, %v13259
  %v13374 = vadd.f32 %v12664, %v13264
  %v13375 = vadd.f32 %v12665, %v13269
  %v13376 = vadd.f32 %v12666, %v13274
  %v13377 = vadd.f32 %v12667, %v13279
  %v13378 = vadd.f32 %v12668, %v13284
  %v13379 = vadd.f32 %v12669, %v13289
  %v13380 = vadd.f32 %v12670, %v13294
  %v13381 = vadd.f32 %v12671, %v13299
  %v13382 = vadd.f32 %v12672, %v13304
  %v13383 = vadd.f32 %v12673, %v13309
  %v13384 = vadd.f32 %v12674, %v13314
  %v13385 = vadd.f32 %v12675, %v13319
  %v13386 = vsel %vm14, %v13322, 0.0
  %v13387 = vsel %vm14, %v13323, 0.0
  %v13388 = vadd.f32 %v13386, %v13387
  %v13389 = vsel %vm14, %v13324, 0.0
  %v13390 = vadd.f32 %v13388, %v13389
  %v13391 = vsel %vm14, %v13325, 0.0
  %v13392 = vadd.f32 %v13390, %v13391
  %v13393 = vsel %vm14, %v13326, 0.0
  %v13394 = vadd.f32 %v13392, %v13393
  %v13395 = vsel %vm14, %v13327, 0.0
  %v13396 = vadd.f32 %v13394, %v13395
  %v13397 = vsel %vm14, %v13328, 0.0
  %v13398 = vadd.f32 %v13396, %v13397
  %v13399 = vsel %vm14, %v13329, 0.0
  %v13400 = vadd.f32 %v13398, %v13399
  %v13401 = vsel %vm14, %v13330, 0.0
  %v13402 = vadd.f32 %v13400, %v13401
  %v13403 = vsel %vm14, %v13331, 0.0
  %v13404 = vadd.f32 %v13402, %v13403
  %v13405 = vsel %vm14, %v13332, 0.0
  %v13406 = vadd.f32 %v13404, %v13405
  %v13407 = vsel %vm14, %v13333, 0.0
  %v13408 = vadd.f32 %v13406, %v13407
  %v13409 = vsel %vm14, %v13334, 0.0
  %v13410 = vadd.f32 %v13408, %v13409
  %v13411 = vsel %vm14, %v13335, 0.0
  %v13412 = vadd.f32 %v13410, %v13411
  %v13413 = vsel %vm14, %v13336, 0.0
  %v13414 = vadd.f32 %v13412, %v13413
  %v13415 = vsel %vm14, %v13337, 0.0
  %v13416 = vadd.f32 %v13414, %v13415
  %v13417 = vsel %vm14, %v13338, 0.0
  %v13418 = vadd.f32 %v13416, %v13417
  %v13419 = vsel %vm14, %v13339, 0.0
  %v13420 = vadd.f32 %v13418, %v13419
  %v13421 = vsel %vm14, %v13340, 0.0
  %v13422 = vadd.f32 %v13420, %v13421
  %v13423 = vsel %vm14, %v13341, 0.0
  %v13424 = vadd.f32 %v13422, %v13423
  %v13425 = vsel %vm14, %v13342, 0.0
  %v13426 = vadd.f32 %v13424, %v13425
  %v13427 = vsel %vm14, %v13343, 0.0
  %v13428 = vadd.f32 %v13426, %v13427
  %v13429 = vsel %vm14, %v13344, 0.0
  %v13430 = vadd.f32 %v13428, %v13429
  %v13431 = vsel %vm14, %v13345, 0.0
  %v13432 = vadd.f32 %v13430, %v13431
  %v13433 = vsel %vm14, %v13346, 0.0
  %v13434 = vadd.f32 %v13432, %v13433
  %v13435 = vsel %vm14, %v13347, 0.0
  %v13436 = vadd.f32 %v13434, %v13435
  %v13437 = vsel %vm14, %v13348, 0.0
  %v13438 = vadd.f32 %v13436, %v13437
  %v13439 = vsel %vm14, %v13349, 0.0
  %v13440 = vadd.f32 %v13438, %v13439
  %v13441 = vsel %vm14, %v13350, 0.0
  %v13442 = vadd.f32 %v13440, %v13441
  %v13443 = vsel %vm14, %v13351, 0.0
  %v13444 = vadd.f32 %v13442, %v13443
  %v13445 = vsel %vm14, %v13352, 0.0
  %v13446 = vadd.f32 %v13444, %v13445
  %v13447 = vsel %vm14, %v13353, 0.0
  %v13448 = vadd.f32 %v13446, %v13447
  %v13449 = vsel %vm14, %v13354, 0.0
  %v13450 = vadd.f32 %v13448, %v13449
  %v13451 = vsel %vm14, %v13355, 0.0
  %v13452 = vadd.f32 %v13450, %v13451
  %v13453 = vsel %vm14, %v13356, 0.0
  %v13454 = vadd.f32 %v13452, %v13453
  %v13455 = vsel %vm14, %v13357, 0.0
  %v13456 = vadd.f32 %v13454, %v13455
  %v13457 = vsel %vm14, %v13358, 0.0
  %v13458 = vadd.f32 %v13456, %v13457
  %v13459 = vsel %vm14, %v13359, 0.0
  %v13460 = vadd.f32 %v13458, %v13459
  %v13461 = vsel %vm14, %v13360, 0.0
  %v13462 = vadd.f32 %v13460, %v13461
  %v13463 = vsel %vm14, %v13361, 0.0
  %v13464 = vadd.f32 %v13462, %v13463
  %v13465 = vsel %vm14, %v13362, 0.0
  %v13466 = vadd.f32 %v13464, %v13465
  %v13467 = vsel %vm14, %v13363, 0.0
  %v13468 = vadd.f32 %v13466, %v13467
  %v13469 = vsel %vm14, %v13364, 0.0
  %v13470 = vadd.f32 %v13468, %v13469
  %v13471 = vsel %vm14, %v13365, 0.0
  %v13472 = vadd.f32 %v13470, %v13471
  %v13473 = vsel %vm14, %v13366, 0.0
  %v13474 = vadd.f32 %v13472, %v13473
  %v13475 = vsel %vm14, %v13367, 0.0
  %v13476 = vadd.f32 %v13474, %v13475
  %v13477 = vsel %vm14, %v13368, 0.0
  %v13478 = vadd.f32 %v13476, %v13477
  %v13479 = vsel %vm14, %v13369, 0.0
  %v13480 = vadd.f32 %v13478, %v13479
  %v13481 = vsel %vm14, %v13370, 0.0
  %v13482 = vadd.f32 %v13480, %v13481
  %v13483 = vsel %vm14, %v13371, 0.0
  %v13484 = vadd.f32 %v13482, %v13483
  %v13485 = vsel %vm14, %v13372, 0.0
  %v13486 = vadd.f32 %v13484, %v13485
  %v13487 = vsel %vm14, %v13373, 0.0
  %v13488 = vadd.f32 %v13486, %v13487
  %v13489 = vsel %vm14, %v13374, 0.0
  %v13490 = vadd.f32 %v13488, %v13489
  %v13491 = vsel %vm14, %v13375, 0.0
  %v13492 = vadd.f32 %v13490, %v13491
  %v13493 = vsel %vm14, %v13376, 0.0
  %v13494 = vadd.f32 %v13492, %v13493
  %v13495 = vsel %vm14, %v13377, 0.0
  %v13496 = vadd.f32 %v13494, %v13495
  %v13497 = vsel %vm14, %v13378, 0.0
  %v13498 = vadd.f32 %v13496, %v13497
  %v13499 = vsel %vm14, %v13379, 0.0
  %v13500 = vadd.f32 %v13498, %v13499
  %v13501 = vsel %vm14, %v13380, 0.0
  %v13502 = vadd.f32 %v13500, %v13501
  %v13503 = vsel %vm14, %v13381, 0.0
  %v13504 = vadd.f32 %v13502, %v13503
  %v13505 = vsel %vm14, %v13382, 0.0
  %v13506 = vadd.f32 %v13504, %v13505
  %v13507 = vsel %vm14, %v13383, 0.0
  %v13508 = vadd.f32 %v13506, %v13507
  %v13509 = vsel %vm14, %v13384, 0.0
  %v13510 = vadd.f32 %v13508, %v13509
  %v13511 = vsel %vm14, %v13385, 0.0
  %v13512 = vadd.f32 %v13510, %v13511
  %v13513 = vrot.slane %v13512, 4
  %v13514 = vadd.f32 %v13512, %v13513
  %v13515 = vrot.slane %v13514, 2
  %v13516 = vadd.f32 %v13514, %v13515
  %v13517 = vrot.slane %v13516, 1
  %v13518 = vadd.f32 %v13516, %v13517
  %v13519 = vmul.f32 %v13518, 0.001953125
  %v13520 = vmul.f32 %v13322, %v13322
  %v13521 = vmul.f32 %v13323, %v13323
  %v13522 = vmul.f32 %v13324, %v13324
  %v13523 = vmul.f32 %v13325, %v13325
  %v13524 = vmul.f32 %v13326, %v13326
  %v13525 = vmul.f32 %v13327, %v13327
  %v13526 = vmul.f32 %v13328, %v13328
  %v13527 = vmul.f32 %v13329, %v13329
  %v13528 = vmul.f32 %v13330, %v13330
  %v13529 = vmul.f32 %v13331, %v13331
  %v13530 = vmul.f32 %v13332, %v13332
  %v13531 = vmul.f32 %v13333, %v13333
  %v13532 = vmul.f32 %v13334, %v13334
  %v13533 = vmul.f32 %v13335, %v13335
  %v13534 = vmul.f32 %v13336, %v13336
  %v13535 = vmul.f32 %v13337, %v13337
  %v13536 = vmul.f32 %v13338, %v13338
  %v13537 = vmul.f32 %v13339, %v13339
  %v13538 = vmul.f32 %v13340, %v13340
  %v13539 = vmul.f32 %v13341, %v13341
  %v13540 = vmul.f32 %v13342, %v13342
  %v13541 = vmul.f32 %v13343, %v13343
  %v13542 = vmul.f32 %v13344, %v13344
  %v13543 = vmul.f32 %v13345, %v13345
  %v13544 = vmul.f32 %v13346, %v13346
  %v13545 = vmul.f32 %v13347, %v13347
  %v13546 = vmul.f32 %v13348, %v13348
  %v13547 = vmul.f32 %v13349, %v13349
  %v13548 = vmul.f32 %v13350, %v13350
  %v13549 = vmul.f32 %v13351, %v13351
  %v13550 = vmul.f32 %v13352, %v13352
  %v13551 = vmul.f32 %v13353, %v13353
  %v13552 = vmul.f32 %v13354, %v13354
  %v13553 = vmul.f32 %v13355, %v13355
  %v13554 = vmul.f32 %v13356, %v13356
  %v13555 = vmul.f32 %v13357, %v13357
  %v13556 = vmul.f32 %v13358, %v13358
  %v13557 = vmul.f32 %v13359, %v13359
  %v13558 = vmul.f32 %v13360, %v13360
  %v13559 = vmul.f32 %v13361, %v13361
  %v13560 = vmul.f32 %v13362, %v13362
  %v13561 = vmul.f32 %v13363, %v13363
  %v13562 = vmul.f32 %v13364, %v13364
  %v13563 = vmul.f32 %v13365, %v13365
  %v13564 = vmul.f32 %v13366, %v13366
  %v13565 = vmul.f32 %v13367, %v13367
  %v13566 = vmul.f32 %v13368, %v13368
  %v13567 = vmul.f32 %v13369, %v13369
  %v13568 = vmul.f32 %v13370, %v13370
  %v13569 = vmul.f32 %v13371, %v13371
  %v13570 = vmul.f32 %v13372, %v13372
  %v13571 = vmul.f32 %v13373, %v13373
  %v13572 = vmul.f32 %v13374, %v13374
  %v13573 = vmul.f32 %v13375, %v13375
  %v13574 = vmul.f32 %v13376, %v13376
  %v13575 = vmul.f32 %v13377, %v13377
  %v13576 = vmul.f32 %v13378, %v13378
  %v13577 = vmul.f32 %v13379, %v13379
  %v13578 = vmul.f32 %v13380, %v13380
  %v13579 = vmul.f32 %v13381, %v13381
  %v13580 = vmul.f32 %v13382, %v13382
  %v13581 = vmul.f32 %v13383, %v13383
  %v13582 = vmul.f32 %v13384, %v13384
  %v13583 = vmul.f32 %v13385, %v13385
  %v13584 = vsel %vm14, %v13520, 0.0
  %v13585 = vsel %vm14, %v13521, 0.0
  %v13586 = vadd.f32 %v13584, %v13585
  %v13587 = vsel %vm14, %v13522, 0.0
  %v13588 = vadd.f32 %v13586, %v13587
  %v13589 = vsel %vm14, %v13523, 0.0
  %v13590 = vadd.f32 %v13588, %v13589
  %v13591 = vsel %vm14, %v13524, 0.0
  %v13592 = vadd.f32 %v13590, %v13591
  %v13593 = vsel %vm14, %v13525, 0.0
  %v13594 = vadd.f32 %v13592, %v13593
  %v13595 = vsel %vm14, %v13526, 0.0
  %v13596 = vadd.f32 %v13594, %v13595
  %v13597 = vsel %vm14, %v13527, 0.0
  %v13598 = vadd.f32 %v13596, %v13597
  %v13599 = vsel %vm14, %v13528, 0.0
  %v13600 = vadd.f32 %v13598, %v13599
  %v13601 = vsel %vm14, %v13529, 0.0
  %v13602 = vadd.f32 %v13600, %v13601
  %v13603 = vsel %vm14, %v13530, 0.0
  %v13604 = vadd.f32 %v13602, %v13603
  %v13605 = vsel %vm14, %v13531, 0.0
  %v13606 = vadd.f32 %v13604, %v13605
  %v13607 = vsel %vm14, %v13532, 0.0
  %v13608 = vadd.f32 %v13606, %v13607
  %v13609 = vsel %vm14, %v13533, 0.0
  %v13610 = vadd.f32 %v13608, %v13609
  %v13611 = vsel %vm14, %v13534, 0.0
  %v13612 = vadd.f32 %v13610, %v13611
  %v13613 = vsel %vm14, %v13535, 0.0
  %v13614 = vadd.f32 %v13612, %v13613
  %v13615 = vsel %vm14, %v13536, 0.0
  %v13616 = vadd.f32 %v13614, %v13615
  %v13617 = vsel %vm14, %v13537, 0.0
  %v13618 = vadd.f32 %v13616, %v13617
  %v13619 = vsel %vm14, %v13538, 0.0
  %v13620 = vadd.f32 %v13618, %v13619
  %v13621 = vsel %vm14, %v13539, 0.0
  %v13622 = vadd.f32 %v13620, %v13621
  %v13623 = vsel %vm14, %v13540, 0.0
  %v13624 = vadd.f32 %v13622, %v13623
  %v13625 = vsel %vm14, %v13541, 0.0
  %v13626 = vadd.f32 %v13624, %v13625
  %v13627 = vsel %vm14, %v13542, 0.0
  %v13628 = vadd.f32 %v13626, %v13627
  %v13629 = vsel %vm14, %v13543, 0.0
  %v13630 = vadd.f32 %v13628, %v13629
  %v13631 = vsel %vm14, %v13544, 0.0
  %v13632 = vadd.f32 %v13630, %v13631
  %v13633 = vsel %vm14, %v13545, 0.0
  %v13634 = vadd.f32 %v13632, %v13633
  %v13635 = vsel %vm14, %v13546, 0.0
  %v13636 = vadd.f32 %v13634, %v13635
  %v13637 = vsel %vm14, %v13547, 0.0
  %v13638 = vadd.f32 %v13636, %v13637
  %v13639 = vsel %vm14, %v13548, 0.0
  %v13640 = vadd.f32 %v13638, %v13639
  %v13641 = vsel %vm14, %v13549, 0.0
  %v13642 = vadd.f32 %v13640, %v13641
  %v13643 = vsel %vm14, %v13550, 0.0
  %v13644 = vadd.f32 %v13642, %v13643
  %v13645 = vsel %vm14, %v13551, 0.0
  %v13646 = vadd.f32 %v13644, %v13645
  %v13647 = vsel %vm14, %v13552, 0.0
  %v13648 = vadd.f32 %v13646, %v13647
  %v13649 = vsel %vm14, %v13553, 0.0
  %v13650 = vadd.f32 %v13648, %v13649
  %v13651 = vsel %vm14, %v13554, 0.0
  %v13652 = vadd.f32 %v13650, %v13651
  %v13653 = vsel %vm14, %v13555, 0.0
  %v13654 = vadd.f32 %v13652, %v13653
  %v13655 = vsel %vm14, %v13556, 0.0
  %v13656 = vadd.f32 %v13654, %v13655
  %v13657 = vsel %vm14, %v13557, 0.0
  %v13658 = vadd.f32 %v13656, %v13657
  %v13659 = vsel %vm14, %v13558, 0.0
  %v13660 = vadd.f32 %v13658, %v13659
  %v13661 = vsel %vm14, %v13559, 0.0
  %v13662 = vadd.f32 %v13660, %v13661
  %v13663 = vsel %vm14, %v13560, 0.0
  %v13664 = vadd.f32 %v13662, %v13663
  %v13665 = vsel %vm14, %v13561, 0.0
  %v13666 = vadd.f32 %v13664, %v13665
  %v13667 = vsel %vm14, %v13562, 0.0
  %v13668 = vadd.f32 %v13666, %v13667
  %v13669 = vsel %vm14, %v13563, 0.0
  %v13670 = vadd.f32 %v13668, %v13669
  %v13671 = vsel %vm14, %v13564, 0.0
  %v13672 = vadd.f32 %v13670, %v13671
  %v13673 = vsel %vm14, %v13565, 0.0
  %v13674 = vadd.f32 %v13672, %v13673
  %v13675 = vsel %vm14, %v13566, 0.0
  %v13676 = vadd.f32 %v13674, %v13675
  %v13677 = vsel %vm14, %v13567, 0.0
  %v13678 = vadd.f32 %v13676, %v13677
  %v13679 = vsel %vm14, %v13568, 0.0
  %v13680 = vadd.f32 %v13678, %v13679
  %v13681 = vsel %vm14, %v13569, 0.0
  %v13682 = vadd.f32 %v13680, %v13681
  %v13683 = vsel %vm14, %v13570, 0.0
  %v13684 = vadd.f32 %v13682, %v13683
  %v13685 = vsel %vm14, %v13571, 0.0
  %v13686 = vadd.f32 %v13684, %v13685
  %v13687 = vsel %vm14, %v13572, 0.0
  %v13688 = vadd.f32 %v13686, %v13687
  %v13689 = vsel %vm14, %v13573, 0.0
  %v13690 = vadd.f32 %v13688, %v13689
  %v13691 = vsel %vm14, %v13574, 0.0
  %v13692 = vadd.f32 %v13690, %v13691
  %v13693 = vsel %vm14, %v13575, 0.0
  %v13694 = vadd.f32 %v13692, %v13693
  %v13695 = vsel %vm14, %v13576, 0.0
  %v13696 = vadd.f32 %v13694, %v13695
  %v13697 = vsel %vm14, %v13577, 0.0
  %v13698 = vadd.f32 %v13696, %v13697
  %v13699 = vsel %vm14, %v13578, 0.0
  %v13700 = vadd.f32 %v13698, %v13699
  %v13701 = vsel %vm14, %v13579, 0.0
  %v13702 = vadd.f32 %v13700, %v13701
  %v13703 = vsel %vm14, %v13580, 0.0
  %v13704 = vadd.f32 %v13702, %v13703
  %v13705 = vsel %vm14, %v13581, 0.0
  %v13706 = vadd.f32 %v13704, %v13705
  %v13707 = vsel %vm14, %v13582, 0.0
  %v13708 = vadd.f32 %v13706, %v13707
  %v13709 = vsel %vm14, %v13583, 0.0
  %v13710 = vadd.f32 %v13708, %v13709
  %v13711 = vrot.slane %v13710, 4
  %v13712 = vadd.f32 %v13710, %v13711
  %v13713 = vrot.slane %v13712, 2
  %v13714 = vadd.f32 %v13712, %v13713
  %v13715 = vrot.slane %v13714, 1
  %v13716 = vadd.f32 %v13714, %v13715
  %v13717 = vmul.f32 %v13716, 0.001953125
  %v13718 = vmul.f32 %v13519, %v13519
  %v13719 = vsub.f32 %v13717, %v13718
  %v13720 = vmax.f32 %v13719, 0.0
  %v13721 = vadd.f32 %v13720, 1e-05
  %v13722 = vrsqrt.pop %v13721
  %v13723 = vmul.f32 %v124, %v13722
  %v13724 = vmul.f32 %v13519, %v13723
  %v13726 = vrot.slane %v13724, 7
  %v13728 = vsub.f32 %v124, %v13726
  %v13729 = vlaneseq
  %v13730 = vshrl.u32 %v13729, 7
  %v13731 = vsub.s32 2, %v13730
  %v13732 = vrot.slane %v13723, %v13731
  %v13733 = vmul.f32 %v13322, %v13732
  %v13734 = vmul.f32 %v13323, %v13732
  %v13735 = vmul.f32 %v13324, %v13732
  %v13736 = vmul.f32 %v13325, %v13732
  %v13737 = vmul.f32 %v13326, %v13732
  %v13738 = vmul.f32 %v13327, %v13732
  %v13739 = vmul.f32 %v13328, %v13732
  %v13740 = vmul.f32 %v13329, %v13732
  %v13741 = vmul.f32 %v13330, %v13732
  %v13742 = vmul.f32 %v13331, %v13732
  %v13743 = vmul.f32 %v13332, %v13732
  %v13744 = vmul.f32 %v13333, %v13732
  %v13745 = vmul.f32 %v13334, %v13732
  %v13746 = vmul.f32 %v13335, %v13732
  %v13747 = vmul.f32 %v13336, %v13732
  %v13748 = vmul.f32 %v13337, %v13732
  %v13749 = vmul.f32 %v13338, %v13732
  %v13750 = vmul.f32 %v13339, %v13732
  %v13751 = vmul.f32 %v13340, %v13732
  %v13752 = vmul.f32 %v13341, %v13732
  %v13753 = vmul.f32 %v13342, %v13732
  %v13754 = vmul.f32 %v13343, %v13732
  %v13755 = vmul.f32 %v13344, %v13732
  %v13756 = vmul.f32 %v13345, %v13732
  %v13757 = vmul.f32 %v13346, %v13732
  %v13758 = vmul.f32 %v13347, %v13732
  %v13759 = vmul.f32 %v13348, %v13732
  %v13760 = vmul.f32 %v13349, %v13732
  %v13761 = vmul.f32 %v13350, %v13732
  %v13762 = vmul.f32 %v13351, %v13732
  %v13763 = vmul.f32 %v13352, %v13732
  %v13764 = vmul.f32 %v13353, %v13732
  %v13765 = vmul.f32 %v13354, %v13732
  %v13766 = vmul.f32 %v13355, %v13732
  %v13767 = vmul.f32 %v13356, %v13732
  %v13768 = vmul.f32 %v13357, %v13732
  %v13769 = vmul.f32 %v13358, %v13732
  %v13770 = vmul.f32 %v13359, %v13732
  %v13771 = vmul.f32 %v13360, %v13732
  %v13772 = vmul.f32 %v13361, %v13732
  %v13773 = vmul.f32 %v13362, %v13732
  %v13774 = vmul.f32 %v13363, %v13732
  %v13775 = vmul.f32 %v13364, %v13732
  %v13776 = vmul.f32 %v13365, %v13732
  %v13777 = vmul.f32 %v13366, %v13732
  %v13778 = vmul.f32 %v13367, %v13732
  %v13779 = vmul.f32 %v13368, %v13732
  %v13780 = vmul.f32 %v13369, %v13732
  %v13781 = vmul.f32 %v13370, %v13732
  %v13782 = vmul.f32 %v13371, %v13732
  %v13783 = vmul.f32 %v13372, %v13732
  %v13784 = vmul.f32 %v13373, %v13732
  %v13785 = vmul.f32 %v13374, %v13732
  %v13786 = vmul.f32 %v13375, %v13732
  %v13787 = vmul.f32 %v13376, %v13732
  %v13788 = vmul.f32 %v13377, %v13732
  %v13789 = vmul.f32 %v13378, %v13732
  %v13790 = vmul.f32 %v13379, %v13732
  %v13791 = vmul.f32 %v13380, %v13732
  %v13792 = vmul.f32 %v13381, %v13732
  %v13793 = vmul.f32 %v13382, %v13732
  %v13794 = vmul.f32 %v13383, %v13732
  %v13795 = vmul.f32 %v13384, %v13732
  %v13796 = vmul.f32 %v13385, %v13732
  %v13797 = vlaneseq
  %v13798 = vshrl.u32 %v13797, 7
  %v13799 = vsub.s32 3, %v13798
  %v13800 = vrot.slane %v13728, %v13799
  %v13801 = vadd.f32 %v13733, %v13800
  %v13802 = vadd.f32 %v13734, %v13800
  %v13803 = vadd.f32 %v13735, %v13800
  %v13804 = vadd.f32 %v13736, %v13800
  %v13805 = vadd.f32 %v13737, %v13800
  %v13806 = vadd.f32 %v13738, %v13800
  %v13807 = vadd.f32 %v13739, %v13800
  %v13808 = vadd.f32 %v13740, %v13800
  %v13809 = vadd.f32 %v13741, %v13800
  %v13810 = vadd.f32 %v13742, %v13800
  %v13811 = vadd.f32 %v13743, %v13800
  %v13812 = vadd.f32 %v13744, %v13800
  %v13813 = vadd.f32 %v13745, %v13800
  %v13814 = vadd.f32 %v13746, %v13800
  %v13815 = vadd.f32 %v13747, %v13800
  %v13816 = vadd.f32 %v13748, %v13800
  %v13817 = vadd.f32 %v13749, %v13800
  %v13818 = vadd.f32 %v13750, %v13800
  %v13819 = vadd.f32 %v13751, %v13800
  %v13820 = vadd.f32 %v13752, %v13800
  %v13821 = vadd.f32 %v13753, %v13800
  %v13822 = vadd.f32 %v13754, %v13800
  %v13823 = vadd.f32 %v13755, %v13800
  %v13824 = vadd.f32 %v13756, %v13800
  %v13825 = vadd.f32 %v13757, %v13800
  %v13826 = vadd.f32 %v13758, %v13800
  %v13827 = vadd.f32 %v13759, %v13800
  %v13828 = vadd.f32 %v13760, %v13800
  %v13829 = vadd.f32 %v13761, %v13800
  %v13830 = vadd.f32 %v13762, %v13800
  %v13831 = vadd.f32 %v13763, %v13800
  %v13832 = vadd.f32 %v13764, %v13800
  %v13833 = vadd.f32 %v13765, %v13800
  %v13834 = vadd.f32 %v13766, %v13800
  %v13835 = vadd.f32 %v13767, %v13800
  %v13836 = vadd.f32 %v13768, %v13800
  %v13837 = vadd.f32 %v13769, %v13800
  %v13838 = vadd.f32 %v13770, %v13800
  %v13839 = vadd.f32 %v13771, %v13800
  %v13840 = vadd.f32 %v13772, %v13800
  %v13841 = vadd.f32 %v13773, %v13800
  %v13842 = vadd.f32 %v13774, %v13800
  %v13843 = vadd.f32 %v13775, %v13800
  %v13844 = vadd.f32 %v13776, %v13800
  %v13845 = vadd.f32 %v13777, %v13800
  %v13846 = vadd.f32 %v13778, %v13800
  %v13847 = vadd.f32 %v13779, %v13800
  %v13848 = vadd.f32 %v13780, %v13800
  %v13849 = vadd.f32 %v13781, %v13800
  %v13850 = vadd.f32 %v13782, %v13800
  %v13851 = vadd.f32 %v13783, %v13800
  %v13852 = vadd.f32 %v13784, %v13800
  %v13853 = vadd.f32 %v13785, %v13800
  %v13854 = vadd.f32 %v13786, %v13800
  %v13855 = vadd.f32 %v13787, %v13800
  %v13856 = vadd.f32 %v13788, %v13800
  %v13857 = vadd.f32 %v13789, %v13800
  %v13858 = vadd.f32 %v13790, %v13800
  %v13859 = vadd.f32 %v13791, %v13800
  %v13860 = vadd.f32 %v13792, %v13800
  %v13861 = vadd.f32 %v13793, %v13800
  %v13862 = vadd.f32 %v13794, %v13800
  %v13863 = vadd.f32 %v13795, %v13800
  %v13864 = vadd.f32 %v13796, %v13800
  %v13865 = vadd.f32 %v13801, %v125
  %v13866 = vadd.f32 %v13802, %v126
  %v13867 = vadd.f32 %v13803, %v127
  %v13868 = vadd.f32 %v13804, %v128
  %v13869 = vadd.f32 %v13805, %v129
  %v13870 = vadd.f32 %v13806, %v130
  %v13871 = vadd.f32 %v13807, %v131
  %v13872 = vadd.f32 %v13808, %v132
  %v13873 = vadd.f32 %v13809, %v133
  %v13874 = vadd.f32 %v13810, %v134
  %v13875 = vadd.f32 %v13811, %v135
  %v13876 = vadd.f32 %v13812, %v136
  %v13877 = vadd.f32 %v13813, %v137
  %v13878 = vadd.f32 %v13814, %v138
  %v13879 = vadd.f32 %v13815, %v139
  %v13880 = vadd.f32 %v13816, %v140
  %v13881 = vadd.f32 %v13817, %v141
  %v13882 = vadd.f32 %v13818, %v142
  %v13883 = vadd.f32 %v13819, %v143
  %v13884 = vadd.f32 %v13820, %v144
  %v13885 = vadd.f32 %v13821, %v145
  %v13886 = vadd.f32 %v13822, %v146
  %v13887 = vadd.f32 %v13823, %v147
  %v13888 = vadd.f32 %v13824, %v148
  %v13889 = vadd.f32 %v13825, %v149
  %v13890 = vadd.f32 %v13826, %v150
  %v13891 = vadd.f32 %v13827, %v151
  %v13892 = vadd.f32 %v13828, %v152
  %v13893 = vadd.f32 %v13829, %v153
  %v13894 = vadd.f32 %v13830, %v154
  %v13895 = vadd.f32 %v13831, %v155
  %v13896 = vadd.f32 %v13832, %v156
  %v13897 = vadd.f32 %v13833, %v157
  %v13898 = vadd.f32 %v13834, %v158
  %v13899 = vadd.f32 %v13835, %v159
  %v13900 = vadd.f32 %v13836, %v160
  %v13901 = vadd.f32 %v13837, %v161
  %v13902 = vadd.f32 %v13838, %v162
  %v13903 = vadd.f32 %v13839, %v163
  %v13904 = vadd.f32 %v13840, %v164
  %v13905 = vadd.f32 %v13841, %v165
  %v13906 = vadd.f32 %v13842, %v166
  %v13907 = vadd.f32 %v13843, %v167
  %v13908 = vadd.f32 %v13844, %v168
  %v13909 = vadd.f32 %v13845, %v169
  %v13910 = vadd.f32 %v13846, %v170
  %v13911 = vadd.f32 %v13847, %v171
  %v13912 = vadd.f32 %v13848, %v172
  %v13913 = vadd.f32 %v13849, %v173
  %v13914 = vadd.f32 %v13850, %v174
  %v13915 = vadd.f32 %v13851, %v175
  %v13916 = vadd.f32 %v13852, %v176
  %v13917 = vadd.f32 %v13853, %v177
  %v13918 = vadd.f32 %v13854, %v178
  %v13919 = vadd.f32 %v13855, %v179
  %v13920 = vadd.f32 %v13856, %v180
  %v13921 = vadd.f32 %v13857, %v181
  %v13922 = vadd.f32 %v13858, %v182
  %v13923 = vadd.f32 %v13859, %v183
  %v13924 = vadd.f32 %v13860, %v184
  %v13925 = vadd.f32 %v13861, %v185
  %v13926 = vadd.f32 %v13862, %v186
  %v13927 = vadd.f32 %v13863, %v187
  %v13928 = vadd.f32 %v13864, %v188
  %v13929 = vmax.f32 %v13865, 0.0
  %v13930 = vmax.f32 %v13866, 0.0
  %v13931 = vmax.f32 %v13867, 0.0
  %v13932 = vmax.f32 %v13868, 0.0
  %v13933 = vmax.f32 %v13869, 0.0
  %v13934 = vmax.f32 %v13870, 0.0
  %v13935 = vmax.f32 %v13871, 0.0
  %v13936 = vmax.f32 %v13872, 0.0
  %v13937 = vmax.f32 %v13873, 0.0
  %v13938 = vmax.f32 %v13874, 0.0
  %v13939 = vmax.f32 %v13875, 0.0
  %v13940 = vmax.f32 %v13876, 0.0
  %v13941 = vmax.f32 %v13877, 0.0
  %v13942 = vmax.f32 %v13878, 0.0
  %v13943 = vmax.f32 %v13879, 0.0
  %v13944 = vmax.f32 %v13880, 0.0
  %v13945 = vmax.f32 %v13881, 0.0
  %v13946 = vmax.f32 %v13882, 0.0
  %v13947 = vmax.f32 %v13883, 0.0
  %v13948 = vmax.f32 %v13884, 0.0
  %v13949 = vmax.f32 %v13885, 0.0
  %v13950 = vmax.f32 %v13886, 0.0
  %v13951 = vmax.f32 %v13887, 0.0
  %v13952 = vmax.f32 %v13888, 0.0
  %v13953 = vmax.f32 %v13889, 0.0
  %v13954 = vmax.f32 %v13890, 0.0
  %v13955 = vmax.f32 %v13891, 0.0
  %v13956 = vmax.f32 %v13892, 0.0
  %v13957 = vmax.f32 %v13893, 0.0
  %v13958 = vmax.f32 %v13894, 0.0
  %v13959 = vmax.f32 %v13895, 0.0
  %v13960 = vmax.f32 %v13896, 0.0
  %v13961 = vmax.f32 %v13897, 0.0
  %v13962 = vmax.f32 %v13898, 0.0
  %v13963 = vmax.f32 %v13899, 0.0
  %v13964 = vmax.f32 %v13900, 0.0
  %v13965 = vmax.f32 %v13901, 0.0
  %v13966 = vmax.f32 %v13902, 0.0
  %v13967 = vmax.f32 %v13903, 0.0
  %v13968 = vmax.f32 %v13904, 0.0
  %v13969 = vmax.f32 %v13905, 0.0
  %v13970 = vmax.f32 %v13906, 0.0
  %v13971 = vmax.f32 %v13907, 0.0
  %v13972 = vmax.f32 %v13908, 0.0
  %v13973 = vmax.f32 %v13909, 0.0
  %v13974 = vmax.f32 %v13910, 0.0
  %v13975 = vmax.f32 %v13911, 0.0
  %v13976 = vmax.f32 %v13912, 0.0
  %v13977 = vmax.f32 %v13913, 0.0
  %v13978 = vmax.f32 %v13914, 0.0
  %v13979 = vmax.f32 %v13915, 0.0
  %v13980 = vmax.f32 %v13916, 0.0
  %v13981 = vmax.f32 %v13917, 0.0
  %v13982 = vmax.f32 %v13918, 0.0
  %v13983 = vmax.f32 %v13919, 0.0
  %v13984 = vmax.f32 %v13920, 0.0
  %v13985 = vmax.f32 %v13921, 0.0
  %v13986 = vmax.f32 %v13922, 0.0
  %v13987 = vmax.f32 %v13923, 0.0
  %v13988 = vmax.f32 %v13924, 0.0
  %v13989 = vmax.f32 %v13925, 0.0
  %v13990 = vmax.f32 %v13926, 0.0
  %v13991 = vmax.f32 %v13927, 0.0
  %v13992 = vmax.f32 %v13928, 0.0
  %13993 = vst.msk [vmem:[%s3] sm:$0xff] %vm14, %v13929
  %13994 = vst.msk [vmem:[%s3 + $0x8] sm:$0xff] %vm14, %v13930
  %13995 = vst.msk [vmem:[%s3 + $0x10] sm:$0xff] %vm14, %v13931
  %13996 = vst.msk [vmem:[%s3 + $0x18] sm:$0xff] %vm14, %v13932
  %13997 = vst.msk [vmem:[%s3 + $0x20] sm:$0xff] %vm14, %v13933
  %13998 = vst.msk [vmem:[%s3 + $0x28] sm:$0xff] %vm14, %v13934
  %13999 = vst.msk [vmem:[%s3 + $0x30] sm:$0xff] %vm14, %v13935
  %14000 = vst.msk [vmem:[%s3 + $0x38] sm:$0xff] %vm14, %v13936
  %14001 = vst.msk [vmem:[%s3 + $0x40] sm:$0xff] %vm14, %v13937
  %14002 = vst.msk [vmem:[%s3 + $0x48] sm:$0xff] %vm14, %v13938
  %14003 = vst.msk [vmem:[%s3 + $0x50] sm:$0xff] %vm14, %v13939
  %14004 = vst.msk [vmem:[%s3 + $0x58] sm:$0xff] %vm14, %v13940
  %14005 = vst.msk [vmem:[%s3 + $0x60] sm:$0xff] %vm14, %v13941
  %14006 = vst.msk [vmem:[%s3 + $0x68] sm:$0xff] %vm14, %v13942
  %14007 = vst.msk [vmem:[%s3 + $0x70] sm:$0xff] %vm14, %v13943
  %14008 = vst.msk [vmem:[%s3 + $0x78] sm:$0xff] %vm14, %v13944
  %14009 = vst.msk [vmem:[%s3 + $0x80] sm:$0xff] %vm14, %v13945
  %14010 = vst.msk [vmem:[%s3 + $0x88] sm:$0xff] %vm14, %v13946
  %14011 = vst.msk [vmem:[%s3 + $0x90] sm:$0xff] %vm14, %v13947
  %14012 = vst.msk [vmem:[%s3 + $0x98] sm:$0xff] %vm14, %v13948
  %14013 = vst.msk [vmem:[%s3 + $0xa0] sm:$0xff] %vm14, %v13949
  %14014 = vst.msk [vmem:[%s3 + $0xa8] sm:$0xff] %vm14, %v13950
  %14015 = vst.msk [vmem:[%s3 + $0xb0] sm:$0xff] %vm14, %v13951
  %14016 = vst.msk [vmem:[%s3 + $0xb8] sm:$0xff] %vm14, %v13952
  %14017 = vst.msk [vmem:[%s3 + $0xc0] sm:$0xff] %vm14, %v13953
  %14018 = vst.msk [vmem:[%s3 + $0xc8] sm:$0xff] %vm14, %v13954
  %14019 = vst.msk [vmem:[%s3 + $0xd0] sm:$0xff] %vm14, %v13955
  %14020 = vst.msk [vmem:[%s3 + $0xd8] sm:$0xff] %vm14, %v13956
  %14021 = vst.msk [vmem:[%s3 + $0xe0] sm:$0xff] %vm14, %v13957
  %14022 = vst.msk [vmem:[%s3 + $0xe8] sm:$0xff] %vm14, %v13958
  %14023 = vst.msk [vmem:[%s3 + $0xf0] sm:$0xff] %vm14, %v13959
  %14024 = vst.msk [vmem:[%s3 + $0xf8] sm:$0xff] %vm14, %v13960
  %14025 = vst.msk [vmem:[%s3 + $0x100] sm:$0xff] %vm14, %v13961
  %14026 = vst.msk [vmem:[%s3 + $0x108] sm:$0xff] %vm14, %v13962
  %14027 = vst.msk [vmem:[%s3 + $0x110] sm:$0xff] %vm14, %v13963
  %14028 = vst.msk [vmem:[%s3 + $0x118] sm:$0xff] %vm14, %v13964
  %14029 = vst.msk [vmem:[%s3 + $0x120] sm:$0xff] %vm14, %v13965
  %14030 = vst.msk [vmem:[%s3 + $0x128] sm:$0xff] %vm14, %v13966
  %14031 = vst.msk [vmem:[%s3 + $0x130] sm:$0xff] %vm14, %v13967
  %14032 = vst.msk [vmem:[%s3 + $0x138] sm:$0xff] %vm14, %v13968
  %14033 = vst.msk [vmem:[%s3 + $0x140] sm:$0xff] %vm14, %v13969
  %14034 = vst.msk [vmem:[%s3 + $0x148] sm:$0xff] %vm14, %v13970
  %14035 = vst.msk [vmem:[%s3 + $0x150] sm:$0xff] %vm14, %v13971
  %14036 = vst.msk [vmem:[%s3 + $0x158] sm:$0xff] %vm14, %v13972
  %14037 = vst.msk [vmem:[%s3 + $0x160] sm:$0xff] %vm14, %v13973
  %14038 = vst.msk [vmem:[%s3 + $0x168] sm:$0xff] %vm14, %v13974
  %14039 = vst.msk [vmem:[%s3 + $0x170] sm:$0xff] %vm14, %v13975
  %14040 = vst.msk [vmem:[%s3 + $0x178] sm:$0xff] %vm14, %v13976
  %14041 = vst.msk [vmem:[%s3 + $0x180] sm:$0xff] %vm14, %v13977
  %14042 = vst.msk [vmem:[%s3 + $0x188] sm:$0xff] %vm14, %v13978
  %14043 = vst.msk [vmem:[%s3 + $0x190] sm:$0xff] %vm14, %v13979
  %14044 = vst.msk [vmem:[%s3 + $0x198] sm:$0xff] %vm14, %v13980
  %14045 = vst.msk [vmem:[%s3 + $0x1a0] sm:$0xff] %vm14, %v13981
  %14046 = vst.msk [vmem:[%s3 + $0x1a8] sm:$0xff] %vm14, %v13982
  %14047 = vst.msk [vmem:[%s3 + $0x1b0] sm:$0xff] %vm14, %v13983
  %14048 = vst.msk [vmem:[%s3 + $0x1b8] sm:$0xff] %vm14, %v13984
  %14049 = vst.msk [vmem:[%s3 + $0x1c0] sm:$0xff] %vm14, %v13985
  %14050 = vst.msk [vmem:[%s3 + $0x1c8] sm:$0xff] %vm14, %v13986
  %14051 = vst.msk [vmem:[%s3 + $0x1d0] sm:$0xff] %vm14, %v13987
  %14052 = vst.msk [vmem:[%s3 + $0x1d8] sm:$0xff] %vm14, %v13988
  %14053 = vst.msk [vmem:[%s3 + $0x1e0] sm:$0xff] %vm14, %v13989
  %14054 = vst.msk [vmem:[%s3 + $0x1e8] sm:$0xff] %vm14, %v13990
  %14055 = vst.msk [vmem:[%s3 + $0x1f0] sm:$0xff] %vm14, %v13991
  %14056 = vst.msk [vmem:[%s3 + $0x1f8] sm:$0xff] %vm14, %v13992
  // Predicated region
  $region14: #{tpu_custom_call.1} parent=0 // pred_check
    _
  $region15: #{tpu_custom_call.1} parent=0 // pred_check_branch
    %14058 = sbr.rel (0) target = $region17
  $region16: #{tpu_custom_call.1} parent=0 // pred_region
    _
  $region17: #{tpu_custom_call.1} parent=0 // pred_fallthru
    _
  // Predicated region
  $region18: #{tpu_custom_call.1} parent=0 // pred_check
    _
  $region19: #{tpu_custom_call.1} parent=0 // pred_check_branch
    %14060 = sbr.rel (0) target = $region21
  $region20: #{tpu_custom_call.1} parent=0 // pred_region
    _
  $region21: #{tpu_custom_call.1} parent=0 // pred_fallthru
    _

</llo_original>
